<compile_context>
chip_gen: v7x
topology: tpu7x:2x2x1
jax: 0.10.0
libtpu: 0.0.40
codegen_flags: <defaults>
</compile_context>

<pallas_src>
import jax
import jax.numpy as jnp
import numpy as np
from jax.experimental import pallas as pl
from jax.experimental.pallas import tpu as pltpu

H = 768          # BERT hidden size (fixed by Linear(768, 5))
NCLS = 5         # classifier classes
NCLS_PAD = 128   # lane-dense padded output width
P_DROP = 0.5     # nn.Dropout(0.5)


def _bert_classifier_kernel(hidden_ref, maskf_ref, inv_len_ref,
                            w_pool_ref, b_pool_ref, drop_ref,
                            w_lin_ref, b_lin_ref, out_ref, acc_ref):
    s = pl.program_id(1)

    @pl.when(s == 0)
    def _init():
        acc_ref[...] = jnp.zeros_like(acc_ref)

    # --- per-step work: masked sequence-sum accumulation (hidden under the DMA) ---
    # Mask multiply in bf16 (exact: mask is {0,1}), upcast once, accumulate in f32.
    masked = (hidden_ref[...] * maskf_ref[...]).astype(jnp.float32)   # (bt, st, H)
    acc_ref[...] += jnp.sum(masked, axis=1)                           # (bt, H)

    # --- head: pooler + dropout + Linear + ReLU, only on the last seq block ---
    @pl.when(s == pl.num_programs(1) - 1)
    def _finalize():
        seq_repr = acc_ref[...] * inv_len_ref[...]       # (bt, H) * (bt, 1)
        pooled = jnp.tanh(
            jnp.dot(seq_repr, w_pool_ref[...],
                    preferred_element_type=jnp.float32) + b_pool_ref[...])
        dropped = pooled * drop_ref[...]                 # pre-scaled keep mask
        logits = jnp.dot(dropped, w_lin_ref[...],
                         preferred_element_type=jnp.float32) + b_lin_ref[...]
        out_ref[...] = jnp.maximum(logits, 0.0)          # (bt, 128) lane-dense store


def _pick_tile(dim, preferred, align):
    """Largest multiple of `align` <= preferred that divides dim, else full dim."""
    t = min(dim, preferred)
    t -= t % align
    while t >= align:
        if dim % t == 0:
            return t
        t -= align
    return dim


def bert_classifier(input_id, mask, params, *, dropout_rng=None):
    """input_id, mask: (B, S) int32. dropout_rng=None -> eval mode (no dropout)."""
    B, S = input_id.shape

    # TODO(synk): fuse this embedding gather into the kernel (scalar-prefetch / DMA gather).
    hidden = params["emb"][input_id]                                   # (B, S, H) bf16

    maskf = mask.astype(jnp.bfloat16)[:, :, None]                      # (B, S, 1) bf16
    inv_len = 1.0 / jnp.maximum(
        mask.astype(jnp.float32).sum(axis=1, keepdims=True), 1.0)      # (B, 1)

    if dropout_rng is not None:
        keep = jax.random.bernoulli(dropout_rng, 1.0 - P_DROP, (B, H))
        drop_scale = keep.astype(jnp.float32) / (1.0 - P_DROP)
    else:
        drop_scale = jnp.ones((B, H), jnp.float32)

    # Tile sizes: keep the bf16 hidden tile ~1.5 MiB so double-buffering plus the
    # resident weights fit the scoped-VMEM budget on v5e/v6e/v7x.
    b_tile = _pick_tile(B, 8, 8)
    s_tile = _pick_tile(S, 128, 8)
    grid = (B // b_tile, S // s_tile)

    out = pl.pallas_call(
        _bert_classifier_kernel,
        out_shape=jax.ShapeDtypeStruct((B, NCLS_PAD), jnp.float32),
        grid=grid,
        in_specs=[
            pl.BlockSpec((b_tile, s_tile, H), lambda b, s: (b, s, 0)),   # hidden (bf16)
            pl.BlockSpec((b_tile, s_tile, 1), lambda b, s: (b, s, 0)),   # attention mask (bf16)
            pl.BlockSpec((b_tile, 1), lambda b, s: (b, 0)),              # 1/num_valid_tokens
            pl.BlockSpec((H, H), lambda b, s: (0, 0)),                   # pooler weight
            pl.BlockSpec((1, H), lambda b, s: (0, 0)),                   # pooler bias
            pl.BlockSpec((b_tile, H), lambda b, s: (b, 0)),              # dropout scale mask
            pl.BlockSpec((H, NCLS_PAD), lambda b, s: (0, 0)),            # classifier weight (padded)
            pl.BlockSpec((1, NCLS_PAD), lambda b, s: (0, 0)),            # classifier bias (padded)
        ],
        out_specs=pl.BlockSpec((b_tile, NCLS_PAD), lambda b, s: (b, 0)),
        scratch_shapes=[pltpu.VMEM((b_tile, H), jnp.float32)],           # seq-sum accumulator
        compiler_params=pltpu.CompilerParams(
            dimension_semantics=("parallel", "arbitrary"),
            vmem_limit_bytes=32 * 1024 * 1024),
    )(hidden, maskf, inv_len,
      params["w_pool"], params["b_pool"], drop_scale,
      params["w_lin_pad"], params["b_lin_pad"])

    return out[:, :NCLS]


def init_params(key, vocab=500):
    k_emb, k_wp, k_bp, k_wl, k_bl = jax.random.split(key, 5)
    w_lin = jax.random.normal(k_wl, (H, NCLS), jnp.float32) * 0.02
    b_lin = jax.random.normal(k_bl, (1, NCLS), jnp.float32) * 0.02
    return {
        # bf16 embeddings halve HBM bytes of the dominant stream; upcast in-kernel.
        "emb":       (jax.random.normal(k_emb, (vocab, H), jnp.float32) * 0.02
                      ).astype(jnp.bfloat16),
        "w_pool":    jax.random.normal(k_wp, (H, H), jnp.float32) * 0.02,
        "b_pool":    jax.random.normal(k_bp, (1, H), jnp.float32) * 0.02,
        # zero-padded to 128 output lanes for lane-dense stores
        "w_lin_pad": jnp.zeros((H, NCLS_PAD), jnp.float32).at[:, :NCLS].set(w_lin),
        "b_lin_pad": jnp.zeros((1, NCLS_PAD), jnp.float32).at[:, :NCLS].set(b_lin),
    }


def _reference(input_id, mask, params, drop_scale):
    hidden = params["emb"][input_id].astype(jnp.float32)
    m = mask.astype(jnp.float32)
    denom = jnp.maximum(m.sum(axis=1, keepdims=True), 1.0)
    seq_repr = (hidden * m[:, :, None]).sum(axis=1) / denom
    pooled = jnp.tanh(seq_repr @ params["w_pool"] + params["b_pool"])
    dropped = pooled * drop_scale
    logits = dropped @ params["w_lin_pad"] + params["b_lin_pad"]
    return jnp.maximum(logits, 0.0)[:, :NCLS]


if __name__ == "__main__":
    key = jax.random.PRNGKey(0)
    k_params, k_ids, k_len, k_drop = jax.random.split(key, 4)

    # Small but shape-consistent: hidden=768 is fixed by Linear(768, 5).
    B, S, VOCAB = 8, 256, 500
    params = init_params(k_params, vocab=VOCAB)
    input_id = jax.random.randint(k_ids, (B, S), 0, VOCAB, dtype=jnp.int32)
    lengths = jax.random.randint(k_len, (B, 1), 1, S + 1, dtype=jnp.int32)
    mask = (jnp.arange(S, dtype=jnp.int32)[None, :] < lengths).astype(jnp.int32)

    out = bert_classifier(input_id, mask, params, dropout_rng=k_drop)
    out = jax.block_until_ready(out)

    assert out.shape == (B, NCLS) and out.dtype == jnp.float32
    assert bool(jnp.all(out >= 0.0))  # ReLU output

    # deterministic reference (same dropout mask: same key -> same bernoulli draw)
    keep = jax.random.bernoulli(k_drop, 1.0 - P_DROP, (B, H))
    drop_scale = keep.astype(jnp.float32) / (1.0 - P_DROP)
    ref = _reference(input_id, mask, params, drop_scale)
    np.testing.assert_allclose(np.asarray(out), np.asarray(ref), rtol=5e-2, atol=5e-4)

    print("KERNEL_OK")
</pallas_src>

<mosaic_0001>
module attributes {stable_mosaic.version = 11 : i64} {
  func.func @_bert_classifier_kernel(%arg0: i32, %arg1: i32, %arg2: memref<8x128x768xbf16, #tpu.memory_space<vmem>>, %arg3: memref<8x128x1xbf16, #tpu.memory_space<vmem>>, %arg4: memref<8x1xf32, #tpu.memory_space<vmem>>, %arg5: memref<768x768xf32, #tpu.memory_space<vmem>>, %arg6: memref<1x768xf32, #tpu.memory_space<vmem>>, %arg7: memref<8x768xf32, #tpu.memory_space<vmem>>, %arg8: memref<768x128xf32, #tpu.memory_space<vmem>>, %arg9: memref<1x128xf32, #tpu.memory_space<vmem>>, %arg10: memref<8x128xf32, #tpu.memory_space<vmem>>, %arg11: memref<8x768xf32, #tpu.memory_space<vmem>>) attributes {dimension_semantics = [#tpu.dimension_semantics<parallel>, #tpu.dimension_semantics<arbitrary>], iteration_bounds = array<i64: 1, 2>, scalar_prefetch = 0 : i64, scratch_operands = 1 : i64, tpu.core_type = #tpu.core_type<tc>, window_params = [{transform_indices = @transform_0, window_bounds = array<i64: 8, 128, 768>}, {transform_indices = @transform_1, window_bounds = array<i64: 8, 128, 1>}, {transform_indices = @transform_2, window_bounds = array<i64: 8, 1>}, {pipeline_mode = #tpu.pipeline_mode<synchronous>, transform_indices = @transform_3, window_bounds = array<i64: 768, 768>}, {pipeline_mode = #tpu.pipeline_mode<synchronous>, transform_indices = @transform_4, window_bounds = array<i64: 1, 768>}, {transform_indices = @transform_5, window_bounds = array<i64: 8, 768>}, {pipeline_mode = #tpu.pipeline_mode<synchronous>, transform_indices = @transform_6, window_bounds = array<i64: 768, 128>}, {pipeline_mode = #tpu.pipeline_mode<synchronous>, transform_indices = @transform_7, window_bounds = array<i64: 1, 128>}, {transform_indices = @transform_8, window_bounds = array<i64: 8, 128>}]} {
    %c0_i32 = arith.constant 0 : i32
    %0 = arith.cmpi eq, %arg1, %c0_i32 : i32
    %1 = arith.extui %0 : i1 to i32
    %c0_i32_0 = arith.constant 0 : i32
    %2 = arith.cmpi ne, %1, %c0_i32_0 : i32
    scf.if %2 {
      %cst_11 = arith.constant 0.000000e+00 : f32
      %15 = vector.broadcast %cst_11 : f32 to vector<8x768xf32>
      %c0_12 = arith.constant 0 : index
      %c0_13 = arith.constant 0 : index
      %16 = vector.load %arg11[%c0_12, %c0_13] : memref<8x768xf32, #tpu.memory_space<vmem>>, vector<8x768xf32>
      tpu.vector_store %arg11[%c0_12, %c0_13], %15 {strides = array<i32>} : memref<8x768xf32, #tpu.memory_space<vmem>>, vector<8x768xf32>,
    } else {
    }
    %c0 = arith.constant 0 : index
    %c0_1 = arith.constant 0 : index
    %c0_2 = arith.constant 0 : index
    %3 = vector.load %arg2[%c0, %c0_1, %c0_2] : memref<8x128x768xbf16, #tpu.memory_space<vmem>>, vector<8x128x768xbf16>
    %c0_3 = arith.constant 0 : index
    %c0_4 = arith.constant 0 : index
    %c0_5 = arith.constant 0 : index
    %4 = vector.load %arg3[%c0_3, %c0_4, %c0_5] : memref<8x128x1xbf16, #tpu.memory_space<vmem>>, vector<8x128x1xbf16>
    %5 = vector.broadcast %4 : vector<8x128x1xbf16> to vector<8x128x768xbf16>
    %6 = arith.mulf %3, %5 : vector<8x128x768xbf16>
    %7 = arith.extf %6 : vector<8x128x768xbf16> to vector<8x128x768xf32>
    %c0_6 = arith.constant 0 : index
    %c0_7 = arith.constant 0 : index
    %8 = vector.load %arg11[%c0_6, %c0_7] : memref<8x768xf32, #tpu.memory_space<vmem>>, vector<8x768xf32>
    %cst = arith.constant dense<0.000000e+00> : vector<8x768xf32>
    %9 = vector.multi_reduction <add>, %7, %cst [1] : vector<8x128x768xf32> to vector<8x768xf32>
    %10 = arith.addf %8, %9 : vector<8x768xf32>
    %c0_8 = arith.constant 0 : index
    %c0_9 = arith.constant 0 : index
    %11 = vector.load %arg11[%c0_8, %c0_9] : memref<8x768xf32, #tpu.memory_space<vmem>>, vector<8x768xf32>
    tpu.vector_store %arg11[%c0_8, %c0_9], %10 {strides = array<i32>} : memref<8x768xf32, #tpu.memory_space<vmem>>, vector<8x768xf32>,
    %c1_i32 = arith.constant 1 : i32
    %12 = arith.cmpi eq, %arg1, %c1_i32 : i32
    %13 = arith.extui %12 : i1 to i32
    %c0_i32_10 = arith.constant 0 : i32
    %14 = arith.cmpi ne, %13, %c0_i32_10 : i32
    scf.if %14 {
      %c0_11 = arith.constant 0 : index
      %c0_12 = arith.constant 0 : index
      %15 = vector.load %arg11[%c0_11, %c0_12] : memref<8x768xf32, #tpu.memory_space<vmem>>, vector<8x768xf32>
      %c0_13 = arith.constant 0 : index
      %c0_14 = arith.constant 0 : index
      %16 = vector.load %arg4[%c0_13, %c0_14] : memref<8x1xf32, #tpu.memory_space<vmem>>, vector<8x1xf32>
      %17 = vector.broadcast %16 : vector<8x1xf32> to vector<8x768xf32>
      %18 = arith.mulf %15, %17 : vector<8x768xf32>
      %c0_15 = arith.constant 0 : index
      %c0_16 = arith.constant 0 : index
      %19 = vector.load %arg5[%c0_15, %c0_16] : memref<768x768xf32, #tpu.memory_space<vmem>>, vector<768x768xf32>
      %cst_17 = arith.constant dense<0.000000e+00> : vector<8x768xf32>
      %20 = tpu.matmul %18, %19, %cst_17 {dimension_numbers = #tpu.dot_dimension_numbers<[1], [0], [0], [1], [0, 0, 1, 1], [], []>} : vector<8x768xf32>, vector<768x768xf32>, vector<8x768xf32> -> vector<8x768xf32>
      %c0_18 = arith.constant 0 : index
      %c0_19 = arith.constant 0 : index
      %21 = vector.load %arg6[%c0_18, %c0_19] : memref<1x768xf32, #tpu.memory_space<vmem>>, vector<1x768xf32>
      %22 = vector.broadcast %21 : vector<1x768xf32> to vector<8x768xf32>
      %23 = arith.addf %20, %22 : vector<8x768xf32>
      %24 = math.tanh %23 : vector<8x768xf32>
      %c0_20 = arith.constant 0 : index
      %c0_21 = arith.constant 0 : index
      %25 = vector.load %arg7[%c0_20, %c0_21] : memref<8x768xf32, #tpu.memory_space<vmem>>, vector<8x768xf32>
      %26 = arith.mulf %24, %25 : vector<8x768xf32>
      %c0_22 = arith.constant 0 : index
      %c0_23 = arith.constant 0 : index
      %27 = vector.load %arg8[%c0_22, %c0_23] : memref<768x128xf32, #tpu.memory_space<vmem>>, vector<768x128xf32>
      %cst_24 = arith.constant dense<0.000000e+00> : vector<8x128xf32>
      %28 = tpu.matmul %26, %27, %cst_24 {dimension_numbers = #tpu.dot_dimension_numbers<[1], [0], [0], [1], [0, 0, 1, 1], [], []>} : vector<8x768xf32>, vector<768x128xf32>, vector<8x128xf32> -> vector<8x128xf32>
      %c0_25 = arith.constant 0 : index
      %c0_26 = arith.constant 0 : index
      %29 = vector.load %arg9[%c0_25, %c0_26] : memref<1x128xf32, #tpu.memory_space<vmem>>, vector<1x128xf32>
      %30 = vector.broadcast %29 : vector<1x128xf32> to vector<8x128xf32>
      %31 = arith.addf %28, %30 : vector<8x128xf32>
      %cst_27 = arith.constant 0.000000e+00 : f32
      %32 = vector.broadcast %cst_27 : f32 to vector<8x128xf32>
      %33 = arith.maximumf %31, %32 : vector<8x128xf32>
      %c0_28 = arith.constant 0 : index
      %c0_29 = arith.constant 0 : index
      %34 = vector.load %arg10[%c0_28, %c0_29] : memref<8x128xf32, #tpu.memory_space<vmem>>, vector<8x128xf32>
      tpu.vector_store %arg10[%c0_28, %c0_29], %33 {strides = array<i32>} : memref<8x128xf32, #tpu.memory_space<vmem>>, vector<8x128xf32>,
    } else {
    }
    return
  }
  func.func @transform_0(%arg0: i32, %arg1: i32) -> (i32, i32, i32) {
    %c0_i32 = arith.constant 0 : i32
    %c0_i32_0 = arith.constant 0 : i32
    return %arg0, %arg1, %c0_i32 : i32, i32, i32
  }
  func.func @transform_1(%arg0: i32, %arg1: i32) -> (i32, i32, i32) {
    %c0_i32 = arith.constant 0 : i32
    %c0_i32_0 = arith.constant 0 : i32
    return %arg0, %arg1, %c0_i32 : i32, i32, i32
  }
  func.func @transform_2(%arg0: i32, %arg1: i32) -> (i32, i32) {
    %c0_i32 = arith.constant 0 : i32
    %c0_i32_0 = arith.constant 0 : i32
    return %arg0, %c0_i32 : i32, i32
  }
  func.func @transform_3(%arg0: i32, %arg1: i32) -> (i32, i32) {
    %c0_i32 = arith.constant 0 : i32
    %c0_i32_0 = arith.constant 0 : i32
    %c0_i32_1 = arith.constant 0 : i32
    return %c0_i32, %c0_i32_0 : i32, i32
  }
  func.func @transform_4(%arg0: i32, %arg1: i32) -> (i32, i32) {
    %c0_i32 = arith.constant 0 : i32
    %c0_i32_0 = arith.constant 0 : i32
    %c0_i32_1 = arith.constant 0 : i32
    return %c0_i32, %c0_i32_0 : i32, i32
  }
  func.func @transform_5(%arg0: i32, %arg1: i32) -> (i32, i32) {
    %c0_i32 = arith.constant 0 : i32
    %c0_i32_0 = arith.constant 0 : i32
    return %arg0, %c0_i32 : i32, i32
  }
  func.func @transform_6(%arg0: i32, %arg1: i32) -> (i32, i32) {
    %c0_i32 = arith.constant 0 : i32
    %c0_i32_0 = arith.constant 0 : i32
    %c0_i32_1 = arith.constant 0 : i32
    return %c0_i32, %c0_i32_0 : i32, i32
  }
  func.func @transform_7(%arg0: i32, %arg1: i32) -> (i32, i32) {
    %c0_i32 = arith.constant 0 : i32
    %c0_i32_0 = arith.constant 0 : i32
    %c0_i32_1 = arith.constant 0 : i32
    return %c0_i32, %c0_i32_0 : i32, i32
  }
  func.func @transform_8(%arg0: i32, %arg1: i32) -> (i32, i32) {
    %c0_i32 = arith.constant 0 : i32
    %c0_i32_0 = arith.constant 0 : i32
    return %arg0, %c0_i32 : i32, i32
  }
}

</mosaic_0001>

<llo_original>
// kernel: tpu_custom_call.1
$region0: #{tpu_custom_call.1}
  #allocation0 [shape = 'u32[]', space=smem, size = 0x4, offset = 0x4, fixed_abs, tag = 'smem constant byte address 0x4 - core index']
  #allocation1 [shape = 'u32[144,128]{1,0:T(1,128)}', space=vmem, size = 0x12000, scoped, tag = 'internal scratch']
  #allocation2 [shape = 'f32[8,768]{1,0:T(8,128)}', space=vmem, size = 0x6000, scoped, tag = 'scratch operand']
  #allocation16 [shape = 's32[]', space=sflag, size = 0x4, offset = 0, fixed_abs, tag = 'sflag constant byte address 0x0 - dummy sync flag']
  %s0 = inlined_call_operand.hbm [shape: bf16[8,256,768], index: 0, kind: input, shape index: {}]
  %s1 = inlined_call_operand.vmem [shape: bf16[8,256,1], index: 1, kind: input, shape index: {}]
  %s2 = inlined_call_operand.vmem [shape: f32[8,1], index: 2, kind: input, shape index: {}]
  %s3 = inlined_call_operand.hbm [shape: f32[768,768], index: 3, kind: input, shape index: {}]
  %s4 = inlined_call_operand.hbm [shape: f32[1,768], index: 4, kind: input, shape index: {}]
  %s5 = inlined_call_operand.hbm [shape: f32[8,768], index: 5, kind: input, shape index: {}]
  %s6 = inlined_call_operand.hbm [shape: f32[768,128], index: 6, kind: input, shape index: {}]
  %s7 = inlined_call_operand.hbm [shape: f32[1,128], index: 7, kind: input, shape index: {}]
  %s8 = inlined_call_operand.hbm [shape: f32[8,128], index: 8, kind: output, shape index: {}]
  %s9 = sld [smem:[#allocation0]]
  $region138: #{tpu_custom_call.1} parent=0
    _
  %s11 = ssub.s32 1, %s9
  %s12 = scalar_select 0, %s11, %s9
  $region1: #{tpu_custom_call.1} parent=0
    #allocation3 [shape = 'u8[3145728]{0}', space=vmem, size = 0x300000, scoped, tag = 'input window, operand 0']
    #allocation4 [shape = 's32[2]{0}', space=sflag, size = 0x8, scoped, tag = 'scoped memory for tpu_custom_call.1']
    #allocation5 [shape = 's32[2]{0}', space=sflag, size = 0x8, scoped, tag = 'scoped memory for tpu_custom_call.1']
    #allocation6 [shape = 'u8[524288]{0}', space=vmem, size = 0x80000, scoped, tag = 'input window, operand 1']
    #allocation7 [shape = 'u8[2359296]{0}', space=vmem, size = 0x240000, scoped, tag = 'input window, operand 3, single buffered']
    #allocation8 [shape = 's32[1]{0}', space=sflag, size = 0x4, scoped, tag = 'scoped memory for tpu_custom_call.1']
    #allocation9 [shape = 'u8[3072]{0}', space=vmem, size = 0xc00, scoped, tag = 'input window, operand 4, single buffered']
    #allocation10 [shape = 'u8[24576]{0}', space=vmem, size = 0x6000, scoped, tag = 'input window, operand 5, single buffered']
    #allocation11 [shape = 's32[1]{0}', space=sflag, size = 0x4, scoped, tag = 'scoped memory for tpu_custom_call.1']
    #allocation12 [shape = 'u8[393216]{0}', space=vmem, size = 0x60000, scoped, tag = 'input window, operand 6, single buffered']
    #allocation13 [shape = 'u8[512]{0}', space=vmem, size = 0x400, scoped, tag = 'input window, operand 7, single buffered']
    #allocation14 [shape = 's32[1]{0}', space=sflag, size = 0x4, scoped, tag = 'scoped memory for tpu_custom_call.1']
    #allocation15 [shape = 'u8[4096]{0}', space=vmem, size = 0x1000, scoped, tag = 'output window, operand 0, single buffered']
    %13 = vsyncpa [#allocation4], 0
    %s14 = scalar_lea.sflag [#allocation4], 1
    %15 = vsyncpa %s14, 0
    %16 = vsyncpa [#allocation8], 0
    %17 = vsyncpa [#allocation11], 0
    %18 = vsyncpa [#allocation14], 0
    %19 = vsyncpa [#allocation5], 0
    loop: start=0, step=1, limit=4
    $region2: #{tpu_custom_call.1} parent=1 // loop_pre_header
      _
    $region3: #{tpu_custom_call.1} parent=1 // loop_header
      %s21 = sphi 0, %s25
      %p22 = scmp.ge.s32.totalorder %s21, 4
      %s28 = sphi 0, %s40
      %s29 = sphi 0, %s36
      %s30 = sphi 0, %s28
      %s31 = sphi 0, %s29
      %s32 = sphi 0, %s30
      %s33 = sphi 0, %s31
      %s45 = sphi 0, %s47
      %s48 = sphi 0, %s45
      %s49 = sphi 0, %s48
      %s65 = sphi 0, %s49
      %s73 = sphi 0, %s75
      %s76 = sphi 0, %s73
      %s77 = sphi 0, %s76
      %s93 = sphi 0, %s77
      %s99 = sphi 0, %s101
      %s102 = sphi 0, %s99
      %s103 = sphi 0, %s102
      %s119 = sphi 0, %s103
      %s123 = sphi 0, %s123
      %s125 = sphi 0, %s123
      %s126 = sphi 0, %s125
      %s140 = sphi 0, %s126
      %s144 = sphi 0, %s144
      %s146 = sphi 0, %s144
      %s147 = sphi 0, %s146
      %s161 = sphi 0, %s147
      %s167 = sphi 0, %s169
      %s170 = sphi 0, %s167
      %s171 = sphi 0, %s170
      %s187 = sphi 0, %s171
      %s191 = sphi 0, %s191
      %s193 = sphi 0, %s191
      %s194 = sphi 0, %s193
      %s208 = sphi 0, %s194
      %s212 = sphi 0, %s212
      %s214 = sphi 0, %s212
      %s215 = sphi 0, %s214
      %s229 = sphi 0, %s215
      %s235 = sphi 0, %s237
      %s238 = sphi 0, %s235
      %s239 = sphi 0, %s238
      %s255 = sphi 0, %s239
    $region4: #{tpu_custom_call.1} parent=1 // loop_header_branch
      %24 = sbr.rel (%p22) target = $region8
    $region5: #{tpu_custom_call.1} parent=1 // loop_body
      %s26 = ssub.s32 %s21, 1
      %s27 = ssub.s32 %s21, 2
      %s34 = sadd.s32 1, %s29
      %p35 = scmp.ge.s32.totalorder %s34, 2
      %s36 = scalar_select %p35, 0, %s34
      %s37 = sadd.s32 1, %s28
      %s38 = scalar_select %p35, %s37, %s28
      %p39 = scmp.ge.s32.totalorder %s38, 1
      %s40 = scalar_select %p39, 0, %s38
      %s41 = ssub.s32 %s28, %s40
      %s42 = ssub.s32 %s29, %s36
      %s43 = sor.u32 %s41, %s42
      %p44 = scmp.eq.s32.totalorder %s43, 0
      %s46 = sadd.s32 %s45, 1
      %s47 = scalar_select %p44, %s45, %s46
      %p50 = pneg %p44
      %p51 = scmp.eq.s32.totalorder %s21, 1
      %p52 = por %p50, %p51
      %p53 = scmp.ne.s32.totalorder %s45, %s48
      %p54 = scmp.eq.s32.totalorder %s21, 0
      %p55 = por %p53, %p54
      %p56 = scmp.ne.s32.totalorder %s45, %s48
      %p57 = scmp.eq.s32.totalorder %s26, 1
      %p58 = por %p56, %p57
      %p59 = scmp.ne.s32.totalorder %s48, %s49
      %p60 = scmp.eq.s32.totalorder %s26, 0
      %p61 = por %p59, %p60
      %p62 = scmp.ne.s32.totalorder %s48, %s49
      %p63 = scmp.eq.s32.totalorder %s27, 1
      %p64 = por %p62, %p63
      %p66 = scmp.ne.s32.totalorder %s49, %s65
      %p67 = scmp.eq.s32.totalorder %s27, 0
      %p68 = por %p66, %p67
      %s69 = ssub.s32 %s28, %s40
      %s70 = ssub.s32 %s29, %s36
      %s71 = sor.u32 %s69, %s70
      %p72 = scmp.eq.s32.totalorder %s71, 0
      %s74 = sadd.s32 %s73, 1
      %s75 = scalar_select %p72, %s73, %s74
      %p78 = pneg %p72
      %p79 = scmp.eq.s32.totalorder %s21, 1
      %p80 = por %p78, %p79
      %p81 = scmp.ne.s32.totalorder %s73, %s76
      %p82 = scmp.eq.s32.totalorder %s21, 0
      %p83 = por %p81, %p82
      %p84 = scmp.ne.s32.totalorder %s73, %s76
      %p85 = scmp.eq.s32.totalorder %s26, 1
      %p86 = por %p84, %p85
      %p87 = scmp.ne.s32.totalorder %s76, %s77
      %p88 = scmp.eq.s32.totalorder %s26, 0
      %p89 = por %p87, %p88
      %p90 = scmp.ne.s32.totalorder %s76, %s77
      %p91 = scmp.eq.s32.totalorder %s27, 1
      %p92 = por %p90, %p91
      %p94 = scmp.ne.s32.totalorder %s77, %s93
      %p95 = scmp.eq.s32.totalorder %s27, 0
      %p96 = por %p94, %p95
      %s97 = ssub.s32 %s28, %s40
      %p98 = scmp.eq.s32.totalorder %s97, 0
      %s100 = sadd.s32 %s99, 1
      %s101 = scalar_select %p98, %s99, %s100
      %p104 = pneg %p98
      %p105 = scmp.eq.s32.totalorder %s21, 1
      %p106 = por %p104, %p105
      %p107 = scmp.ne.s32.totalorder %s99, %s102
      %p108 = scmp.eq.s32.totalorder %s21, 0
      %p109 = por %p107, %p108
      %p110 = scmp.ne.s32.totalorder %s99, %s102
      %p111 = scmp.eq.s32.totalorder %s26, 1
      %p112 = por %p110, %p111
      %p113 = scmp.ne.s32.totalorder %s102, %s103
      %p114 = scmp.eq.s32.totalorder %s26, 0
      %p115 = por %p113, %p114
      %p116 = scmp.ne.s32.totalorder %s102, %s103
      %p117 = scmp.eq.s32.totalorder %s27, 1
      %p118 = por %p116, %p117
      %p120 = scmp.ne.s32.totalorder %s103, %s119
      %p121 = scmp.eq.s32.totalorder %s27, 0
      %p122 = por %p120, %p121
      %s124 = sadd.s32 %s123, 1
      %p127 = scmp.eq.s32.totalorder %s21, 1
      %p128 = scmp.ne.s32.totalorder %s123, %s125
      %p129 = scmp.eq.s32.totalorder %s21, 0
      %p130 = por %p128, %p129
      %p131 = scmp.ne.s32.totalorder %s123, %s125
      %p132 = scmp.eq.s32.totalorder %s26, 1
      %p133 = por %p131, %p132
      %p134 = scmp.ne.s32.totalorder %s125, %s126
      %p135 = scmp.eq.s32.totalorder %s26, 0
      %p136 = por %p134, %p135
      %p137 = scmp.ne.s32.totalorder %s125, %s126
      %p138 = scmp.eq.s32.totalorder %s27, 1
      %p139 = por %p137, %p138
      %p141 = scmp.ne.s32.totalorder %s126, %s140
      %p142 = scmp.eq.s32.totalorder %s27, 0
      %p143 = por %p141, %p142
      %s145 = sadd.s32 %s144, 1
      %p148 = scmp.eq.s32.totalorder %s21, 1
      %p149 = scmp.ne.s32.totalorder %s144, %s146
      %p150 = scmp.eq.s32.totalorder %s21, 0
      %p151 = por %p149, %p150
      %p152 = scmp.ne.s32.totalorder %s144, %s146
      %p153 = scmp.eq.s32.totalorder %s26, 1
      %p154 = por %p152, %p153
      %p155 = scmp.ne.s32.totalorder %s146, %s147
      %p156 = scmp.eq.s32.totalorder %s26, 0
      %p157 = por %p155, %p156
      %p158 = scmp.ne.s32.totalorder %s146, %s147
      %p159 = scmp.eq.s32.totalorder %s27, 1
      %p160 = por %p158, %p159
      %p162 = scmp.ne.s32.totalorder %s147, %s161
      %p163 = scmp.eq.s32.totalorder %s27, 0
      %p164 = por %p162, %p163
      %s165 = ssub.s32 %s28, %s40
      %p166 = scmp.eq.s32.totalorder %s165, 0
      %s168 = sadd.s32 %s167, 1
      %s169 = scalar_select %p166, %s167, %s168
      %p172 = pneg %p166
      %p173 = scmp.eq.s32.totalorder %s21, 1
      %p174 = por %p172, %p173
      %p175 = scmp.ne.s32.totalorder %s167, %s170
      %p176 = scmp.eq.s32.totalorder %s21, 0
      %p177 = por %p175, %p176
      %p178 = scmp.ne.s32.totalorder %s167, %s170
      %p179 = scmp.eq.s32.totalorder %s26, 1
      %p180 = por %p178, %p179
      %p181 = scmp.ne.s32.totalorder %s170, %s171
      %p182 = scmp.eq.s32.totalorder %s26, 0
      %p183 = por %p181, %p182
      %p184 = scmp.ne.s32.totalorder %s170, %s171
      %p185 = scmp.eq.s32.totalorder %s27, 1
      %p186 = por %p184, %p185
      %p188 = scmp.ne.s32.totalorder %s171, %s187
      %p189 = scmp.eq.s32.totalorder %s27, 0
      %p190 = por %p188, %p189
      %s192 = sadd.s32 %s191, 1
      %p195 = scmp.eq.s32.totalorder %s21, 1
      %p196 = scmp.ne.s32.totalorder %s191, %s193
      %p197 = scmp.eq.s32.totalorder %s21, 0
      %p198 = por %p196, %p197
      %p199 = scmp.ne.s32.totalorder %s191, %s193
      %p200 = scmp.eq.s32.totalorder %s26, 1
      %p201 = por %p199, %p200
      %p202 = scmp.ne.s32.totalorder %s193, %s194
      %p203 = scmp.eq.s32.totalorder %s26, 0
      %p204 = por %p202, %p203
      %p205 = scmp.ne.s32.totalorder %s193, %s194
      %p206 = scmp.eq.s32.totalorder %s27, 1
      %p207 = por %p205, %p206
      %p209 = scmp.ne.s32.totalorder %s194, %s208
      %p210 = scmp.eq.s32.totalorder %s27, 0
      %p211 = por %p209, %p210
      %s213 = sadd.s32 %s212, 1
      %p216 = scmp.eq.s32.totalorder %s21, 1
      %p217 = scmp.ne.s32.totalorder %s212, %s214
      %p218 = scmp.eq.s32.totalorder %s21, 0
      %p219 = por %p217, %p218
      %p220 = scmp.ne.s32.totalorder %s212, %s214
      %p221 = scmp.eq.s32.totalorder %s26, 1
      %p222 = por %p220, %p221
      %p223 = scmp.ne.s32.totalorder %s214, %s215
      %p224 = scmp.eq.s32.totalorder %s26, 0
      %p225 = por %p223, %p224
      %p226 = scmp.ne.s32.totalorder %s214, %s215
      %p227 = scmp.eq.s32.totalorder %s27, 1
      %p228 = por %p226, %p227
      %p230 = scmp.ne.s32.totalorder %s215, %s229
      %p231 = scmp.eq.s32.totalorder %s27, 0
      %p232 = por %p230, %p231
      %s233 = ssub.s32 %s28, %s40
      %p234 = scmp.eq.s32.totalorder %s233, 0
      %s236 = sadd.s32 %s235, 1
      %s237 = scalar_select %p234, %s235, %s236
      %p240 = pneg %p234
      %p241 = scmp.eq.s32.totalorder %s21, 1
      %p242 = por %p240, %p241
      %p243 = scmp.ne.s32.totalorder %s235, %s238
      %p244 = scmp.eq.s32.totalorder %s21, 0
      %p245 = por %p243, %p244
      %p246 = scmp.ne.s32.totalorder %s235, %s238
      %p247 = scmp.eq.s32.totalorder %s26, 1
      %p248 = por %p246, %p247
      %p249 = scmp.ne.s32.totalorder %s238, %s239
      %p250 = scmp.eq.s32.totalorder %s26, 0
      %p251 = por %p249, %p250
      %p252 = scmp.ne.s32.totalorder %s238, %s239
      %p253 = scmp.eq.s32.totalorder %s27, 1
      %p254 = por %p252, %p253
      %p256 = scmp.ne.s32.totalorder %s239, %s255
      %p257 = scmp.eq.s32.totalorder %s27, 0
      %p258 = por %p256, %p257
      %p259 = scmp.le.s32.totalorder 1, %s21
      %p260 = scmp.lt.s32.totalorder %s21, 3
      %p261 = pnand %p259, %p260
      %p262 = pneg %p261
      // Predicated region
      $region9: #{tpu_custom_call.1} parent=5 // pred_check
        _
      $region10: #{tpu_custom_call.1} parent=5 // pred_check_branch
        %264 = sbr.rel (%p261) target = $region12
      $region11: #{tpu_custom_call.1} parent=5 // pred_region
        %s265 = ssub.s32 %s21, 1
        // Predicated region
        $region13: #{tpu_custom_call.1} parent=11 // pred_check
          %p266 = pneg %p115
        $region14: #{tpu_custom_call.1} parent=11 // pred_check_branch
          %268 = sbr.rel (%p266) target = $region16
        $region15: #{tpu_custom_call.1} parent=11 // pred_region
          %p269 = scmp.lt.s32.totalorder %s30, 0
          %s270 = scalar_select %p269, %s30, 0
          %s271 = smul.addr %s270, 8
          %s272 = scalar_lea.vmem %s2, %s271
        $region16: #{tpu_custom_call.1} parent=11 // pred_fallthru
          _
        // Predicated region
        $region17: #{tpu_custom_call.1} parent=11 // pred_check
          %p273 = pneg %p136
        $region18: #{tpu_custom_call.1} parent=11 // pred_check_branch
          %275 = sbr.rel (%p273) target = $region20
        $region19: #{tpu_custom_call.1} parent=11 // pred_region
          %s277 = ssub.s32 73728, 73728
          %278 = vsyncadd [#allocation8], %s277
          %s279 = sshll.u32 [#allocation7], 4
          %s280 = int_to_ptr.vmem [resolvable:$true] %s279
          %285 = dma.hbm_to_vmem [thread:$0]  %s3, 73728, %s280, [#allocation8], 768, 768, 48
        $region20: #{tpu_custom_call.1} parent=11 // pred_fallthru
          _
        // Predicated region
        $region21: #{tpu_custom_call.1} parent=11 // pred_check
          %p286 = pneg %p157
        $region22: #{tpu_custom_call.1} parent=11 // pred_check_branch
          %288 = sbr.rel (%p286) target = $region24
        $region23: #{tpu_custom_call.1} parent=11 // pred_region
          %s290 = ssub.s32 96, 96
          %291 = vsyncadd [#allocation8], %s290
          %s293 = sshll.u32 [#allocation9], 4
          %s294 = int_to_ptr.vmem [resolvable:$true] %s293
          %296 = dma.hbm_to_vmem [thread:$0]  %s4, 96, %s294, [#allocation8]
        $region24: #{tpu_custom_call.1} parent=11 // pred_fallthru
          _
        // Predicated region
        $region25: #{tpu_custom_call.1} parent=11 // pred_check
          %p297 = pneg %p183
        $region26: #{tpu_custom_call.1} parent=11 // pred_check_branch
          %299 = sbr.rel (%p297) target = $region28
        $region27: #{tpu_custom_call.1} parent=11 // pred_region
          %s301 = ssub.s32 768, 768
          %302 = vsyncadd [#allocation11], %s301
          %s303 = smul.addr %s30, 6
          %s304 = smul.addr %s303, 128
          %s305 = scalar_lea.hbm %s5, %s304
          %s307 = sshll.u32 [#allocation10], 4
          %s308 = int_to_ptr.vmem [resolvable:$true] %s307
          %310 = dma.hbm_to_vmem [thread:$0]  %s305, 768, %s308, [#allocation11]
        $region28: #{tpu_custom_call.1} parent=11 // pred_fallthru
          _
        // Predicated region
        $region29: #{tpu_custom_call.1} parent=11 // pred_check
          %p311 = pneg %p204
        $region30: #{tpu_custom_call.1} parent=11 // pred_check_branch
          %313 = sbr.rel (%p311) target = $region32
        $region31: #{tpu_custom_call.1} parent=11 // pred_region
          %s315 = ssub.s32 12288, 12288
          %316 = vsyncadd [#allocation11], %s315
          %s317 = sshll.u32 [#allocation12], 4
          %s318 = int_to_ptr.vmem [resolvable:$true] %s317
          %323 = dma.hbm_to_vmem [thread:$0]  %s6, 12288, %s318, [#allocation11], 128, 128, 8
        $region32: #{tpu_custom_call.1} parent=11 // pred_fallthru
          _
        // Predicated region
        $region33: #{tpu_custom_call.1} parent=11 // pred_check
          %p324 = pneg %p225
        $region34: #{tpu_custom_call.1} parent=11 // pred_check_branch
          %326 = sbr.rel (%p324) target = $region36
        $region35: #{tpu_custom_call.1} parent=11 // pred_region
          %s328 = ssub.s32 16, 16
          %329 = vsyncadd [#allocation14], %s328
          %s331 = sshll.u32 [#allocation13], 4
          %s332 = int_to_ptr.vmem [resolvable:$true] %s331
          %334 = dma.hbm_to_vmem [thread:$0]  %s7, 16, %s332, [#allocation14]
        $region36: #{tpu_custom_call.1} parent=11 // pred_fallthru
          _
      $region12: #{tpu_custom_call.1} parent=5 // pred_fallthru
        _
      %p335 = scmp.lt.s32.totalorder %s21, 2
      // Predicated region
      $region37: #{tpu_custom_call.1} parent=5 // pred_check
        %p336 = pneg %p335
      $region38: #{tpu_custom_call.1} parent=5 // pred_check_branch
        %338 = sbr.rel (%p336) target = $region40
      $region39: #{tpu_custom_call.1} parent=5 // pred_region
        // Predicated region
        $region41: #{tpu_custom_call.1} parent=39 // pred_check
          %p339 = pneg %p55
        $region42: #{tpu_custom_call.1} parent=39 // pred_check_branch
          %341 = sbr.rel (%p339) target = $region44
        $region43: #{tpu_custom_call.1} parent=39 // pred_region
          #allocation17 [shape = 'u32[6]{0}', space=smem, size = 0x18, scoped, tag = 'DMA stride descriptor']
          %s342 = sand.u32 %s45, 1
          %s343 = scalar_lea.sflag [#allocation4], %s342
          %s344 = sand.u32 %s45, 1
          %s345 = smul.addr %s344, 3072
          %s346 = scalar_lea.vmem [#allocation3], %s345
          %s347 = smul.u32 8, %s28
          %s348 = smul.u32 16, %s29
          %s350 = ssub.s32 49152, 49152
          %351 = vsyncadd %s343, %s350
          %s352 = smul.addr %s348, 6
          %s353 = smul.addr %s347, 192
          %s354 = sadd.s32 %s352, %s353
          %s355 = smul.addr %s354, 64
          %s356 = scalar_lea.hbm %s0, %s355
          %s358 = sshll.u32 1, 14
          %s359 = sxor.u32 4294967295, %s358
          %s361 = sld [smem:[#allocation0]]
          %s362 = sadd.s32 2, %s361
          %s364 = sshll.u32 7, 26
          %s365 = sxor.u32 4294967295, %s364
          %s366 = sand.u32 0, %s365
          %s367 = sshll.u32 %s362, 26
          %s368 = sor.u32 %s366, %s367
          %s369 = sshll.u32 %s346, 4
          %s370 = int_to_ptr.vmem [resolvable:$true] %s369
          %376 = sst [smem:[#allocation17]] 12288
          %s377 = scalar_lea.smem [#allocation17], 1
          %378 = sst [smem:[%s377]] 6144
          %s379 = scalar_lea.smem [#allocation17], 2
          %380 = sst [smem:[%s379]] 16
          %s381 = scalar_lea.smem [#allocation17], 3
          %382 = sst [smem:[%s381]] 384
          %s383 = scalar_lea.smem [#allocation17], 4
          %384 = sst [smem:[%s383]] 384
          %s385 = scalar_lea.smem [#allocation17], 5
          %386 = sst [smem:[%s385]] 24
          %388 = dma.general %s356, 49152, %s370, %s343, [#allocation16], [#allocation17], %s368, 0
        $region44: #{tpu_custom_call.1} parent=39 // pred_fallthru
          _
        // Predicated region
        $region45: #{tpu_custom_call.1} parent=39 // pred_check
          %p389 = pneg %p83
        $region46: #{tpu_custom_call.1} parent=39 // pred_check_branch
          %391 = sbr.rel (%p389) target = $region48
        $region47: #{tpu_custom_call.1} parent=39 // pred_region
          %s392 = sand.u32 %s73, 1
          %s393 = sand.u32 %s73, 1
          %s394 = smul.addr %s393, 512
          %s395 = scalar_lea.vmem [#allocation6], %s394
          %s396 = smul.u32 8, %s28
          %s397 = smul.u32 16, %s29
          %s398 = smul.addr %s396, 32
          %s399 = sadd.s32 %s397, %s398
          %s400 = smul.addr %s399, 4
          %s401 = scalar_lea.vmem %s1, %s400
          // Predicated region
          $region49: #{tpu_custom_call.1} parent=47 // pred_check
            _
          $region50: #{tpu_custom_call.1} parent=47 // pred_check_branch
            %403 = sbr.rel (0) target = $region52
          $region51: #{tpu_custom_call.1} parent=47 // pred_region
            // Predicated region
            $region53: #{tpu_custom_call.1} parent=51 // pred_check
              _
            $region54: #{tpu_custom_call.1} parent=51 // pred_check_branch
              %405 = sbr.rel target = $region56
            $region55: #{tpu_custom_call.1} parent=51 // pred_region
              // Predicated region
              $region68: #{tpu_custom_call.1} parent=55 // pred_check
                _
              $region69: #{tpu_custom_call.1} parent=55 // pred_check_branch
                %674 = sbr.rel (0) target = $region71
              $region70: #{tpu_custom_call.1} parent=55 // pred_region
                loop: start=0, step=1, limit=1
                $region72: #{tpu_custom_call.1} parent=70 // loop_pre_header
                  _
                $region73: #{tpu_custom_call.1} parent=70 // loop_header
                  %s676 = sphi 0, %s680
                  %p677 = scmp.ge.s32.totalorder %s676, 1
                  %s681 = sphi %s401, %s401
                  %s682 = sphi %s395, %s395
                $region74: #{tpu_custom_call.1} parent=70 // loop_header_branch
                  %679 = sbr.rel (%p677) target = $region78
                $region75: #{tpu_custom_call.1} parent=70 // loop_body
                  _
                $region76: #{tpu_custom_call.1} parent=70 // loop_footer
                  %s680 = sadd.s32 1, %s676
                $region77: #{tpu_custom_call.1} parent=70 // loop_footer_branch
                  %675 = sbr.rel target = $region73
                $region78: #{tpu_custom_call.1} parent=70 // loop_exit
                  _
                loop: start=0, step=1, limit=1
                $region79: #{tpu_custom_call.1} parent=70 // loop_pre_header
                  _
                $region80: #{tpu_custom_call.1} parent=70 // loop_header
                  %s685 = sphi 0, %s689
                  %p686 = scmp.ge.s32.totalorder %s685, 1
                  %s690 = sphi %s401, %s401
                  %s691 = sphi %s395, %s395
                $region81: #{tpu_custom_call.1} parent=70 // loop_header_branch
                  %688 = sbr.rel (%p686) target = $region85
                $region82: #{tpu_custom_call.1} parent=70 // loop_body
                  %v692 = vld [vmem:[%s690] sm:$0xf]
                  %693 = vst [vmem:[%s691] sm:$0xf] %v692
                  %v694 = vld [vmem:[%s690 + $0x4] sm:$0xf]
                  %695 = vst [vmem:[%s691 + $0x4] sm:$0xf] %v694
                  %v696 = vld [vmem:[%s690 + $0x8] sm:$0xf]
                  %697 = vst [vmem:[%s691 + $0x8] sm:$0xf] %v696
                  %v698 = vld [vmem:[%s690 + $0xc] sm:$0xf]
                  %699 = vst [vmem:[%s691 + $0xc] sm:$0xf] %v698
                  %v700 = vld [vmem:[%s690 + $0x10] sm:$0xf]
                  %701 = vst [vmem:[%s691 + $0x10] sm:$0xf] %v700
                  %v702 = vld [vmem:[%s690 + $0x14] sm:$0xf]
                  %703 = vst [vmem:[%s691 + $0x14] sm:$0xf] %v702
                  %v704 = vld [vmem:[%s690 + $0x18] sm:$0xf]
                  %705 = vst [vmem:[%s691 + $0x18] sm:$0xf] %v704
                  %v706 = vld [vmem:[%s690 + $0x1c] sm:$0xf]
                  %707 = vst [vmem:[%s691 + $0x1c] sm:$0xf] %v706
                  %v708 = vld [vmem:[%s690 + $0x20] sm:$0xf]
                  %709 = vst [vmem:[%s691 + $0x20] sm:$0xf] %v708
                  %v710 = vld [vmem:[%s690 + $0x24] sm:$0xf]
                  %711 = vst [vmem:[%s691 + $0x24] sm:$0xf] %v710
                  %v712 = vld [vmem:[%s690 + $0x28] sm:$0xf]
                  %713 = vst [vmem:[%s691 + $0x28] sm:$0xf] %v712
                  %v714 = vld [vmem:[%s690 + $0x2c] sm:$0xf]
                  %715 = vst [vmem:[%s691 + $0x2c] sm:$0xf] %v714
                  %v716 = vld [vmem:[%s690 + $0x30] sm:$0xf]
                  %717 = vst [vmem:[%s691 + $0x30] sm:$0xf] %v716
                  %v718 = vld [vmem:[%s690 + $0x34] sm:$0xf]
                  %719 = vst [vmem:[%s691 + $0x34] sm:$0xf] %v718
                  %v720 = vld [vmem:[%s690 + $0x38] sm:$0xf]
                  %721 = vst [vmem:[%s691 + $0x38] sm:$0xf] %v720
                  %v722 = vld [vmem:[%s690 + $0x3c] sm:$0xf]
                  %723 = vst [vmem:[%s691 + $0x3c] sm:$0xf] %v722
                  %v724 = vld [vmem:[%s690 + $0x80] sm:$0xf]
                  %725 = vst [vmem:[%s691 + $0x40] sm:$0xf] %v724
                  %v726 = vld [vmem:[%s690 + $0x84] sm:$0xf]
                  %727 = vst [vmem:[%s691 + $0x44] sm:$0xf] %v726
                  %v728 = vld [vmem:[%s690 + $0x88] sm:$0xf]
                  %729 = vst [vmem:[%s691 + $0x48] sm:$0xf] %v728
                  %v730 = vld [vmem:[%s690 + $0x8c] sm:$0xf]
                  %731 = vst [vmem:[%s691 + $0x4c] sm:$0xf] %v730
                  %v732 = vld [vmem:[%s690 + $0x90] sm:$0xf]
                  %733 = vst [vmem:[%s691 + $0x50] sm:$0xf] %v732
                  %v734 = vld [vmem:[%s690 + $0x94] sm:$0xf]
                  %735 = vst [vmem:[%s691 + $0x54] sm:$0xf] %v734
                  %v736 = vld [vmem:[%s690 + $0x98] sm:$0xf]
                  %737 = vst [vmem:[%s691 + $0x58] sm:$0xf] %v736
                  %v738 = vld [vmem:[%s690 + $0x9c] sm:$0xf]
                  %739 = vst [vmem:[%s691 + $0x5c] sm:$0xf] %v738
                  %v740 = vld [vmem:[%s690 + $0xa0] sm:$0xf]
                  %741 = vst [vmem:[%s691 + $0x60] sm:$0xf] %v740
                  %v742 = vld [vmem:[%s690 + $0xa4] sm:$0xf]
                  %743 = vst [vmem:[%s691 + $0x64] sm:$0xf] %v742
                  %v744 = vld [vmem:[%s690 + $0xa8] sm:$0xf]
                  %745 = vst [vmem:[%s691 + $0x68] sm:$0xf] %v744
                  %v746 = vld [vmem:[%s690 + $0xac] sm:$0xf]
                  %747 = vst [vmem:[%s691 + $0x6c] sm:$0xf] %v746
                  %v748 = vld [vmem:[%s690 + $0xb0] sm:$0xf]
                  %749 = vst [vmem:[%s691 + $0x70] sm:$0xf] %v748
                  %v750 = vld [vmem:[%s690 + $0xb4] sm:$0xf]
                  %751 = vst [vmem:[%s691 + $0x74] sm:$0xf] %v750
                  %v752 = vld [vmem:[%s690 + $0xb8] sm:$0xf]
                  %753 = vst [vmem:[%s691 + $0x78] sm:$0xf] %v752
                  %v754 = vld [vmem:[%s690 + $0xbc] sm:$0xf]
                  %755 = vst [vmem:[%s691 + $0x7c] sm:$0xf] %v754
                  %v756 = vld [vmem:[%s690 + $0x100] sm:$0xf]
                  %757 = vst [vmem:[%s691 + $0x80] sm:$0xf] %v756
                  %v758 = vld [vmem:[%s690 + $0x104] sm:$0xf]
                  %759 = vst [vmem:[%s691 + $0x84] sm:$0xf] %v758
                  %v760 = vld [vmem:[%s690 + $0x108] sm:$0xf]
                  %761 = vst [vmem:[%s691 + $0x88] sm:$0xf] %v760
                  %v762 = vld [vmem:[%s690 + $0x10c] sm:$0xf]
                  %763 = vst [vmem:[%s691 + $0x8c] sm:$0xf] %v762
                  %v764 = vld [vmem:[%s690 + $0x110] sm:$0xf]
                  %765 = vst [vmem:[%s691 + $0x90] sm:$0xf] %v764
                  %v766 = vld [vmem:[%s690 + $0x114] sm:$0xf]
                  %767 = vst [vmem:[%s691 + $0x94] sm:$0xf] %v766
                  %v768 = vld [vmem:[%s690 + $0x118] sm:$0xf]
                  %769 = vst [vmem:[%s691 + $0x98] sm:$0xf] %v768
                  %v770 = vld [vmem:[%s690 + $0x11c] sm:$0xf]
                  %771 = vst [vmem:[%s691 + $0x9c] sm:$0xf] %v770
                  %v772 = vld [vmem:[%s690 + $0x120] sm:$0xf]
                  %773 = vst [vmem:[%s691 + $0xa0] sm:$0xf] %v772
                  %v774 = vld [vmem:[%s690 + $0x124] sm:$0xf]
                  %775 = vst [vmem:[%s691 + $0xa4] sm:$0xf] %v774
                  %v776 = vld [vmem:[%s690 + $0x128] sm:$0xf]
                  %777 = vst [vmem:[%s691 + $0xa8] sm:$0xf] %v776
                  %v778 = vld [vmem:[%s690 + $0x12c] sm:$0xf]
                  %779 = vst [vmem:[%s691 + $0xac] sm:$0xf] %v778
                  %v780 = vld [vmem:[%s690 + $0x130] sm:$0xf]
                  %781 = vst [vmem:[%s691 + $0xb0] sm:$0xf] %v780
                  %v782 = vld [vmem:[%s690 + $0x134] sm:$0xf]
                  %783 = vst [vmem:[%s691 + $0xb4] sm:$0xf] %v782
                  %v784 = vld [vmem:[%s690 + $0x138] sm:$0xf]
                  %785 = vst [vmem:[%s691 + $0xb8] sm:$0xf] %v784
                  %v786 = vld [vmem:[%s690 + $0x13c] sm:$0xf]
                  %787 = vst [vmem:[%s691 + $0xbc] sm:$0xf] %v786
                  %v788 = vld [vmem:[%s690 + $0x180] sm:$0xf]
                  %789 = vst [vmem:[%s691 + $0xc0] sm:$0xf] %v788
                  %v790 = vld [vmem:[%s690 + $0x184] sm:$0xf]
                  %791 = vst [vmem:[%s691 + $0xc4] sm:$0xf] %v790
                  %v792 = vld [vmem:[%s690 + $0x188] sm:$0xf]
                  %793 = vst [vmem:[%s691 + $0xc8] sm:$0xf] %v792
                  %v794 = vld [vmem:[%s690 + $0x18c] sm:$0xf]
                  %795 = vst [vmem:[%s691 + $0xcc] sm:$0xf] %v794
                  %v796 = vld [vmem:[%s690 + $0x190] sm:$0xf]
                  %797 = vst [vmem:[%s691 + $0xd0] sm:$0xf] %v796
                  %v798 = vld [vmem:[%s690 + $0x194] sm:$0xf]
                  %799 = vst [vmem:[%s691 + $0xd4] sm:$0xf] %v798
                  %v800 = vld [vmem:[%s690 + $0x198] sm:$0xf]
                  %801 = vst [vmem:[%s691 + $0xd8] sm:$0xf] %v800
                  %v802 = vld [vmem:[%s690 + $0x19c] sm:$0xf]
                  %803 = vst [vmem:[%s691 + $0xdc] sm:$0xf] %v802
                  %v804 = vld [vmem:[%s690 + $0x1a0] sm:$0xf]
                  %805 = vst [vmem:[%s691 + $0xe0] sm:$0xf] %v804
                  %v806 = vld [vmem:[%s690 + $0x1a4] sm:$0xf]
                  %807 = vst [vmem:[%s691 + $0xe4] sm:$0xf] %v806
                  %v808 = vld [vmem:[%s690 + $0x1a8] sm:$0xf]
                  %809 = vst [vmem:[%s691 + $0xe8] sm:$0xf] %v808
                  %v810 = vld [vmem:[%s690 + $0x1ac] sm:$0xf]
                  %811 = vst [vmem:[%s691 + $0xec] sm:$0xf] %v810
                  %v812 = vld [vmem:[%s690 + $0x1b0] sm:$0xf]
                  %813 = vst [vmem:[%s691 + $0xf0] sm:$0xf] %v812
                  %v814 = vld [vmem:[%s690 + $0x1b4] sm:$0xf]
                  %815 = vst [vmem:[%s691 + $0xf4] sm:$0xf] %v814
                  %v816 = vld [vmem:[%s690 + $0x1b8] sm:$0xf]
                  %817 = vst [vmem:[%s691 + $0xf8] sm:$0xf] %v816
                  %v818 = vld [vmem:[%s690 + $0x1bc] sm:$0xf]
                  %819 = vst [vmem:[%s691 + $0xfc] sm:$0xf] %v818
                  %v820 = vld [vmem:[%s690 + $0x200] sm:$0xf]
                  %821 = vst [vmem:[%s691 + $0x100] sm:$0xf] %v820
                  %v822 = vld [vmem:[%s690 + $0x204] sm:$0xf]
                  %823 = vst [vmem:[%s691 + $0x104] sm:$0xf] %v822
                  %v824 = vld [vmem:[%s690 + $0x208] sm:$0xf]
                  %825 = vst [vmem:[%s691 + $0x108] sm:$0xf] %v824
                  %v826 = vld [vmem:[%s690 + $0x20c] sm:$0xf]
                  %827 = vst [vmem:[%s691 + $0x10c] sm:$0xf] %v826
                  %v828 = vld [vmem:[%s690 + $0x210] sm:$0xf]
                  %829 = vst [vmem:[%s691 + $0x110] sm:$0xf] %v828
                  %v830 = vld [vmem:[%s690 + $0x214] sm:$0xf]
                  %831 = vst [vmem:[%s691 + $0x114] sm:$0xf] %v830
                  %v832 = vld [vmem:[%s690 + $0x218] sm:$0xf]
                  %833 = vst [vmem:[%s691 + $0x118] sm:$0xf] %v832
                  %v834 = vld [vmem:[%s690 + $0x21c] sm:$0xf]
                  %835 = vst [vmem:[%s691 + $0x11c] sm:$0xf] %v834
                  %v836 = vld [vmem:[%s690 + $0x220] sm:$0xf]
                  %837 = vst [vmem:[%s691 + $0x120] sm:$0xf] %v836
                  %v838 = vld [vmem:[%s690 + $0x224] sm:$0xf]
                  %839 = vst [vmem:[%s691 + $0x124] sm:$0xf] %v838
                  %v840 = vld [vmem:[%s690 + $0x228] sm:$0xf]
                  %841 = vst [vmem:[%s691 + $0x128] sm:$0xf] %v840
                  %v842 = vld [vmem:[%s690 + $0x22c] sm:$0xf]
                  %843 = vst [vmem:[%s691 + $0x12c] sm:$0xf] %v842
                  %v844 = vld [vmem:[%s690 + $0x230] sm:$0xf]
                  %845 = vst [vmem:[%s691 + $0x130] sm:$0xf] %v844
                  %v846 = vld [vmem:[%s690 + $0x234] sm:$0xf]
                  %847 = vst [vmem:[%s691 + $0x134] sm:$0xf] %v846
                  %v848 = vld [vmem:[%s690 + $0x238] sm:$0xf]
                  %849 = vst [vmem:[%s691 + $0x138] sm:$0xf] %v848
                  %v850 = vld [vmem:[%s690 + $0x23c] sm:$0xf]
                  %851 = vst [vmem:[%s691 + $0x13c] sm:$0xf] %v850
                  %v852 = vld [vmem:[%s690 + $0x280] sm:$0xf]
                  %853 = vst [vmem:[%s691 + $0x140] sm:$0xf] %v852
                  %v854 = vld [vmem:[%s690 + $0x284] sm:$0xf]
                  %855 = vst [vmem:[%s691 + $0x144] sm:$0xf] %v854
                  %v856 = vld [vmem:[%s690 + $0x288] sm:$0xf]
                  %857 = vst [vmem:[%s691 + $0x148] sm:$0xf] %v856
                  %v858 = vld [vmem:[%s690 + $0x28c] sm:$0xf]
                  %859 = vst [vmem:[%s691 + $0x14c] sm:$0xf] %v858
                  %v860 = vld [vmem:[%s690 + $0x290] sm:$0xf]
                  %861 = vst [vmem:[%s691 + $0x150] sm:$0xf] %v860
                  %v862 = vld [vmem:[%s690 + $0x294] sm:$0xf]
                  %863 = vst [vmem:[%s691 + $0x154] sm:$0xf] %v862
                  %v864 = vld [vmem:[%s690 + $0x298] sm:$0xf]
                  %865 = vst [vmem:[%s691 + $0x158] sm:$0xf] %v864
                  %v866 = vld [vmem:[%s690 + $0x29c] sm:$0xf]
                  %867 = vst [vmem:[%s691 + $0x15c] sm:$0xf] %v866
                  %v868 = vld [vmem:[%s690 + $0x2a0] sm:$0xf]
                  %869 = vst [vmem:[%s691 + $0x160] sm:$0xf] %v868
                  %v870 = vld [vmem:[%s690 + $0x2a4] sm:$0xf]
                  %871 = vst [vmem:[%s691 + $0x164] sm:$0xf] %v870
                  %v872 = vld [vmem:[%s690 + $0x2a8] sm:$0xf]
                  %873 = vst [vmem:[%s691 + $0x168] sm:$0xf] %v872
                  %v874 = vld [vmem:[%s690 + $0x2ac] sm:$0xf]
                  %875 = vst [vmem:[%s691 + $0x16c] sm:$0xf] %v874
                  %v876 = vld [vmem:[%s690 + $0x2b0] sm:$0xf]
                  %877 = vst [vmem:[%s691 + $0x170] sm:$0xf] %v876
                  %v878 = vld [vmem:[%s690 + $0x2b4] sm:$0xf]
                  %879 = vst [vmem:[%s691 + $0x174] sm:$0xf] %v878
                  %v880 = vld [vmem:[%s690 + $0x2b8] sm:$0xf]
                  %881 = vst [vmem:[%s691 + $0x178] sm:$0xf] %v880
                  %v882 = vld [vmem:[%s690 + $0x2bc] sm:$0xf]
                  %883 = vst [vmem:[%s691 + $0x17c] sm:$0xf] %v882
                  %v884 = vld [vmem:[%s690 + $0x300] sm:$0xf]
                  %885 = vst [vmem:[%s691 + $0x180] sm:$0xf] %v884
                  %v886 = vld [vmem:[%s690 + $0x304] sm:$0xf]
                  %887 = vst [vmem:[%s691 + $0x184] sm:$0xf] %v886
                  %v888 = vld [vmem:[%s690 + $0x308] sm:$0xf]
                  %889 = vst [vmem:[%s691 + $0x188] sm:$0xf] %v888
                  %v890 = vld [vmem:[%s690 + $0x30c] sm:$0xf]
                  %891 = vst [vmem:[%s691 + $0x18c] sm:$0xf] %v890
                  %v892 = vld [vmem:[%s690 + $0x310] sm:$0xf]
                  %893 = vst [vmem:[%s691 + $0x190] sm:$0xf] %v892
                  %v894 = vld [vmem:[%s690 + $0x314] sm:$0xf]
                  %895 = vst [vmem:[%s691 + $0x194] sm:$0xf] %v894
                  %v896 = vld [vmem:[%s690 + $0x318] sm:$0xf]
                  %897 = vst [vmem:[%s691 + $0x198] sm:$0xf] %v896
                  %v898 = vld [vmem:[%s690 + $0x31c] sm:$0xf]
                  %899 = vst [vmem:[%s691 + $0x19c] sm:$0xf] %v898
                  %v900 = vld [vmem:[%s690 + $0x320] sm:$0xf]
                  %901 = vst [vmem:[%s691 + $0x1a0] sm:$0xf] %v900
                  %v902 = vld [vmem:[%s690 + $0x324] sm:$0xf]
                  %903 = vst [vmem:[%s691 + $0x1a4] sm:$0xf] %v902
                  %v904 = vld [vmem:[%s690 + $0x328] sm:$0xf]
                  %905 = vst [vmem:[%s691 + $0x1a8] sm:$0xf] %v904
                  %v906 = vld [vmem:[%s690 + $0x32c] sm:$0xf]
                  %907 = vst [vmem:[%s691 + $0x1ac] sm:$0xf] %v906
                  %v908 = vld [vmem:[%s690 + $0x330] sm:$0xf]
                  %909 = vst [vmem:[%s691 + $0x1b0] sm:$0xf] %v908
                  %v910 = vld [vmem:[%s690 + $0x334] sm:$0xf]
                  %911 = vst [vmem:[%s691 + $0x1b4] sm:$0xf] %v910
                  %v912 = vld [vmem:[%s690 + $0x338] sm:$0xf]
                  %913 = vst [vmem:[%s691 + $0x1b8] sm:$0xf] %v912
                  %v914 = vld [vmem:[%s690 + $0x33c] sm:$0xf]
                  %915 = vst [vmem:[%s691 + $0x1bc] sm:$0xf] %v914
                  %v916 = vld [vmem:[%s690 + $0x380] sm:$0xf]
                  %917 = vst [vmem:[%s691 + $0x1c0] sm:$0xf] %v916
                  %v918 = vld [vmem:[%s690 + $0x384] sm:$0xf]
                  %919 = vst [vmem:[%s691 + $0x1c4] sm:$0xf] %v918
                  %v920 = vld [vmem:[%s690 + $0x388] sm:$0xf]
                  %921 = vst [vmem:[%s691 + $0x1c8] sm:$0xf] %v920
                  %v922 = vld [vmem:[%s690 + $0x38c] sm:$0xf]
                  %923 = vst [vmem:[%s691 + $0x1cc] sm:$0xf] %v922
                  %v924 = vld [vmem:[%s690 + $0x390] sm:$0xf]
                  %925 = vst [vmem:[%s691 + $0x1d0] sm:$0xf] %v924
                  %v926 = vld [vmem:[%s690 + $0x394] sm:$0xf]
                  %927 = vst [vmem:[%s691 + $0x1d4] sm:$0xf] %v926
                  %v928 = vld [vmem:[%s690 + $0x398] sm:$0xf]
                  %929 = vst [vmem:[%s691 + $0x1d8] sm:$0xf] %v928
                  %v930 = vld [vmem:[%s690 + $0x39c] sm:$0xf]
                  %931 = vst [vmem:[%s691 + $0x1dc] sm:$0xf] %v930
                  %v932 = vld [vmem:[%s690 + $0x3a0] sm:$0xf]
                  %933 = vst [vmem:[%s691 + $0x1e0] sm:$0xf] %v932
                  %v934 = vld [vmem:[%s690 + $0x3a4] sm:$0xf]
                  %935 = vst [vmem:[%s691 + $0x1e4] sm:$0xf] %v934
                  %v936 = vld [vmem:[%s690 + $0x3a8] sm:$0xf]
                  %937 = vst [vmem:[%s691 + $0x1e8] sm:$0xf] %v936
                  %v938 = vld [vmem:[%s690 + $0x3ac] sm:$0xf]
                  %939 = vst [vmem:[%s691 + $0x1ec] sm:$0xf] %v938
                  %v940 = vld [vmem:[%s690 + $0x3b0] sm:$0xf]
                  %941 = vst [vmem:[%s691 + $0x1f0] sm:$0xf] %v940
                  %v942 = vld [vmem:[%s690 + $0x3b4] sm:$0xf]
                  %943 = vst [vmem:[%s691 + $0x1f4] sm:$0xf] %v942
                  %v944 = vld [vmem:[%s690 + $0x3b8] sm:$0xf]
                  %945 = vst [vmem:[%s691 + $0x1f8] sm:$0xf] %v944
                  %v946 = vld [vmem:[%s690 + $0x3bc] sm:$0xf]
                  %947 = vst [vmem:[%s691 + $0x1fc] sm:$0xf] %v946
                $region83: #{tpu_custom_call.1} parent=70 // loop_footer
                  %s689 = sadd.s32 1, %s685
                $region84: #{tpu_custom_call.1} parent=70 // loop_footer_branch
                  %684 = sbr.rel target = $region80
                $region85: #{tpu_custom_call.1} parent=70 // loop_exit
                  _
              $region71: #{tpu_custom_call.1} parent=55 // pred_fallthru
                _
            $region56: #{tpu_custom_call.1} parent=51 // pred_fallthru
              _
            // Predicated region
            $region57: #{tpu_custom_call.1} parent=51 // pred_check
              _
            $region58: #{tpu_custom_call.1} parent=51 // pred_check_branch
              %407 = sbr.rel (0) target = $region60
            $region59: #{tpu_custom_call.1} parent=51 // pred_region
              loop: start=0, step=1, limit=1
              $region61: #{tpu_custom_call.1} parent=59 // loop_pre_header
                _
              $region62: #{tpu_custom_call.1} parent=59 // loop_header
                %s410 = sphi 0, %s414
                %p411 = scmp.ge.s32.totalorder %s410, 1
                %s415 = sphi %s401, %s401
                %s416 = sphi %s395, %s395
              $region63: #{tpu_custom_call.1} parent=59 // loop_header_branch
                %413 = sbr.rel (%p411) target = $region67
              $region64: #{tpu_custom_call.1} parent=59 // loop_body
                %v417 = vld [vmem:[%s415] sm:$0xf]
                %418 = vst [vmem:[%s416] sm:$0xf] %v417
                %v419 = vld [vmem:[%s415 + $0x4] sm:$0xf]
                %420 = vst [vmem:[%s416 + $0x4] sm:$0xf] %v419
                %v421 = vld [vmem:[%s415 + $0x8] sm:$0xf]
                %422 = vst [vmem:[%s416 + $0x8] sm:$0xf] %v421
                %v423 = vld [vmem:[%s415 + $0xc] sm:$0xf]
                %424 = vst [vmem:[%s416 + $0xc] sm:$0xf] %v423
                %v425 = vld [vmem:[%s415 + $0x10] sm:$0xf]
                %426 = vst [vmem:[%s416 + $0x10] sm:$0xf] %v425
                %v427 = vld [vmem:[%s415 + $0x14] sm:$0xf]
                %428 = vst [vmem:[%s416 + $0x14] sm:$0xf] %v427
                %v429 = vld [vmem:[%s415 + $0x18] sm:$0xf]
                %430 = vst [vmem:[%s416 + $0x18] sm:$0xf] %v429
                %v431 = vld [vmem:[%s415 + $0x1c] sm:$0xf]
                %432 = vst [vmem:[%s416 + $0x1c] sm:$0xf] %v431
                %v433 = vld [vmem:[%s415 + $0x20] sm:$0xf]
                %434 = vst [vmem:[%s416 + $0x20] sm:$0xf] %v433
                %v435 = vld [vmem:[%s415 + $0x24] sm:$0xf]
                %436 = vst [vmem:[%s416 + $0x24] sm:$0xf] %v435
                %v437 = vld [vmem:[%s415 + $0x28] sm:$0xf]
                %438 = vst [vmem:[%s416 + $0x28] sm:$0xf] %v437
                %v439 = vld [vmem:[%s415 + $0x2c] sm:$0xf]
                %440 = vst [vmem:[%s416 + $0x2c] sm:$0xf] %v439
                %v441 = vld [vmem:[%s415 + $0x30] sm:$0xf]
                %442 = vst [vmem:[%s416 + $0x30] sm:$0xf] %v441
                %v443 = vld [vmem:[%s415 + $0x34] sm:$0xf]
                %444 = vst [vmem:[%s416 + $0x34] sm:$0xf] %v443
                %v445 = vld [vmem:[%s415 + $0x38] sm:$0xf]
                %446 = vst [vmem:[%s416 + $0x38] sm:$0xf] %v445
                %v447 = vld [vmem:[%s415 + $0x3c] sm:$0xf]
                %448 = vst [vmem:[%s416 + $0x3c] sm:$0xf] %v447
                %v449 = vld [vmem:[%s415 + $0x80] sm:$0xf]
                %450 = vst [vmem:[%s416 + $0x40] sm:$0xf] %v449
                %v451 = vld [vmem:[%s415 + $0x84] sm:$0xf]
                %452 = vst [vmem:[%s416 + $0x44] sm:$0xf] %v451
                %v453 = vld [vmem:[%s415 + $0x88] sm:$0xf]
                %454 = vst [vmem:[%s416 + $0x48] sm:$0xf] %v453
                %v455 = vld [vmem:[%s415 + $0x8c] sm:$0xf]
                %456 = vst [vmem:[%s416 + $0x4c] sm:$0xf] %v455
                %v457 = vld [vmem:[%s415 + $0x90] sm:$0xf]
                %458 = vst [vmem:[%s416 + $0x50] sm:$0xf] %v457
                %v459 = vld [vmem:[%s415 + $0x94] sm:$0xf]
                %460 = vst [vmem:[%s416 + $0x54] sm:$0xf] %v459
                %v461 = vld [vmem:[%s415 + $0x98] sm:$0xf]
                %462 = vst [vmem:[%s416 + $0x58] sm:$0xf] %v461
                %v463 = vld [vmem:[%s415 + $0x9c] sm:$0xf]
                %464 = vst [vmem:[%s416 + $0x5c] sm:$0xf] %v463
                %v465 = vld [vmem:[%s415 + $0xa0] sm:$0xf]
                %466 = vst [vmem:[%s416 + $0x60] sm:$0xf] %v465
                %v467 = vld [vmem:[%s415 + $0xa4] sm:$0xf]
                %468 = vst [vmem:[%s416 + $0x64] sm:$0xf] %v467
                %v469 = vld [vmem:[%s415 + $0xa8] sm:$0xf]
                %470 = vst [vmem:[%s416 + $0x68] sm:$0xf] %v469
                %v471 = vld [vmem:[%s415 + $0xac] sm:$0xf]
                %472 = vst [vmem:[%s416 + $0x6c] sm:$0xf] %v471
                %v473 = vld [vmem:[%s415 + $0xb0] sm:$0xf]
                %474 = vst [vmem:[%s416 + $0x70] sm:$0xf] %v473
                %v475 = vld [vmem:[%s415 + $0xb4] sm:$0xf]
                %476 = vst [vmem:[%s416 + $0x74] sm:$0xf] %v475
                %v477 = vld [vmem:[%s415 + $0xb8] sm:$0xf]
                %478 = vst [vmem:[%s416 + $0x78] sm:$0xf] %v477
                %v479 = vld [vmem:[%s415 + $0xbc] sm:$0xf]
                %480 = vst [vmem:[%s416 + $0x7c] sm:$0xf] %v479
                %v481 = vld [vmem:[%s415 + $0x100] sm:$0xf]
                %482 = vst [vmem:[%s416 + $0x80] sm:$0xf] %v481
                %v483 = vld [vmem:[%s415 + $0x104] sm:$0xf]
                %484 = vst [vmem:[%s416 + $0x84] sm:$0xf] %v483
                %v485 = vld [vmem:[%s415 + $0x108] sm:$0xf]
                %486 = vst [vmem:[%s416 + $0x88] sm:$0xf] %v485
                %v487 = vld [vmem:[%s415 + $0x10c] sm:$0xf]
                %488 = vst [vmem:[%s416 + $0x8c] sm:$0xf] %v487
                %v489 = vld [vmem:[%s415 + $0x110] sm:$0xf]
                %490 = vst [vmem:[%s416 + $0x90] sm:$0xf] %v489
                %v491 = vld [vmem:[%s415 + $0x114] sm:$0xf]
                %492 = vst [vmem:[%s416 + $0x94] sm:$0xf] %v491
                %v493 = vld [vmem:[%s415 + $0x118] sm:$0xf]
                %494 = vst [vmem:[%s416 + $0x98] sm:$0xf] %v493
                %v495 = vld [vmem:[%s415 + $0x11c] sm:$0xf]
                %496 = vst [vmem:[%s416 + $0x9c] sm:$0xf] %v495
                %v497 = vld [vmem:[%s415 + $0x120] sm:$0xf]
                %498 = vst [vmem:[%s416 + $0xa0] sm:$0xf] %v497
                %v499 = vld [vmem:[%s415 + $0x124] sm:$0xf]
                %500 = vst [vmem:[%s416 + $0xa4] sm:$0xf] %v499
                %v501 = vld [vmem:[%s415 + $0x128] sm:$0xf]
                %502 = vst [vmem:[%s416 + $0xa8] sm:$0xf] %v501
                %v503 = vld [vmem:[%s415 + $0x12c] sm:$0xf]
                %504 = vst [vmem:[%s416 + $0xac] sm:$0xf] %v503
                %v505 = vld [vmem:[%s415 + $0x130] sm:$0xf]
                %506 = vst [vmem:[%s416 + $0xb0] sm:$0xf] %v505
                %v507 = vld [vmem:[%s415 + $0x134] sm:$0xf]
                %508 = vst [vmem:[%s416 + $0xb4] sm:$0xf] %v507
                %v509 = vld [vmem:[%s415 + $0x138] sm:$0xf]
                %510 = vst [vmem:[%s416 + $0xb8] sm:$0xf] %v509
                %v511 = vld [vmem:[%s415 + $0x13c] sm:$0xf]
                %512 = vst [vmem:[%s416 + $0xbc] sm:$0xf] %v511
                %v513 = vld [vmem:[%s415 + $0x180] sm:$0xf]
                %514 = vst [vmem:[%s416 + $0xc0] sm:$0xf] %v513
                %v515 = vld [vmem:[%s415 + $0x184] sm:$0xf]
                %516 = vst [vmem:[%s416 + $0xc4] sm:$0xf] %v515
                %v517 = vld [vmem:[%s415 + $0x188] sm:$0xf]
                %518 = vst [vmem:[%s416 + $0xc8] sm:$0xf] %v517
                %v519 = vld [vmem:[%s415 + $0x18c] sm:$0xf]
                %520 = vst [vmem:[%s416 + $0xcc] sm:$0xf] %v519
                %v521 = vld [vmem:[%s415 + $0x190] sm:$0xf]
                %522 = vst [vmem:[%s416 + $0xd0] sm:$0xf] %v521
                %v523 = vld [vmem:[%s415 + $0x194] sm:$0xf]
                %524 = vst [vmem:[%s416 + $0xd4] sm:$0xf] %v523
                %v525 = vld [vmem:[%s415 + $0x198] sm:$0xf]
                %526 = vst [vmem:[%s416 + $0xd8] sm:$0xf] %v525
                %v527 = vld [vmem:[%s415 + $0x19c] sm:$0xf]
                %528 = vst [vmem:[%s416 + $0xdc] sm:$0xf] %v527
                %v529 = vld [vmem:[%s415 + $0x1a0] sm:$0xf]
                %530 = vst [vmem:[%s416 + $0xe0] sm:$0xf] %v529
                %v531 = vld [vmem:[%s415 + $0x1a4] sm:$0xf]
                %532 = vst [vmem:[%s416 + $0xe4] sm:$0xf] %v531
                %v533 = vld [vmem:[%s415 + $0x1a8] sm:$0xf]
                %534 = vst [vmem:[%s416 + $0xe8] sm:$0xf] %v533
                %v535 = vld [vmem:[%s415 + $0x1ac] sm:$0xf]
                %536 = vst [vmem:[%s416 + $0xec] sm:$0xf] %v535
                %v537 = vld [vmem:[%s415 + $0x1b0] sm:$0xf]
                %538 = vst [vmem:[%s416 + $0xf0] sm:$0xf] %v537
                %v539 = vld [vmem:[%s415 + $0x1b4] sm:$0xf]
                %540 = vst [vmem:[%s416 + $0xf4] sm:$0xf] %v539
                %v541 = vld [vmem:[%s415 + $0x1b8] sm:$0xf]
                %542 = vst [vmem:[%s416 + $0xf8] sm:$0xf] %v541
                %v543 = vld [vmem:[%s415 + $0x1bc] sm:$0xf]
                %544 = vst [vmem:[%s416 + $0xfc] sm:$0xf] %v543
                %v545 = vld [vmem:[%s415 + $0x200] sm:$0xf]
                %546 = vst [vmem:[%s416 + $0x100] sm:$0xf] %v545
                %v547 = vld [vmem:[%s415 + $0x204] sm:$0xf]
                %548 = vst [vmem:[%s416 + $0x104] sm:$0xf] %v547
                %v549 = vld [vmem:[%s415 + $0x208] sm:$0xf]
                %550 = vst [vmem:[%s416 + $0x108] sm:$0xf] %v549
                %v551 = vld [vmem:[%s415 + $0x20c] sm:$0xf]
                %552 = vst [vmem:[%s416 + $0x10c] sm:$0xf] %v551
                %v553 = vld [vmem:[%s415 + $0x210] sm:$0xf]
                %554 = vst [vmem:[%s416 + $0x110] sm:$0xf] %v553
                %v555 = vld [vmem:[%s415 + $0x214] sm:$0xf]
                %556 = vst [vmem:[%s416 + $0x114] sm:$0xf] %v555
                %v557 = vld [vmem:[%s415 + $0x218] sm:$0xf]
                %558 = vst [vmem:[%s416 + $0x118] sm:$0xf] %v557
                %v559 = vld [vmem:[%s415 + $0x21c] sm:$0xf]
                %560 = vst [vmem:[%s416 + $0x11c] sm:$0xf] %v559
                %v561 = vld [vmem:[%s415 + $0x220] sm:$0xf]
                %562 = vst [vmem:[%s416 + $0x120] sm:$0xf] %v561
                %v563 = vld [vmem:[%s415 + $0x224] sm:$0xf]
                %564 = vst [vmem:[%s416 + $0x124] sm:$0xf] %v563
                %v565 = vld [vmem:[%s415 + $0x228] sm:$0xf]
                %566 = vst [vmem:[%s416 + $0x128] sm:$0xf] %v565
                %v567 = vld [vmem:[%s415 + $0x22c] sm:$0xf]
                %568 = vst [vmem:[%s416 + $0x12c] sm:$0xf] %v567
                %v569 = vld [vmem:[%s415 + $0x230] sm:$0xf]
                %570 = vst [vmem:[%s416 + $0x130] sm:$0xf] %v569
                %v571 = vld [vmem:[%s415 + $0x234] sm:$0xf]
                %572 = vst [vmem:[%s416 + $0x134] sm:$0xf] %v571
                %v573 = vld [vmem:[%s415 + $0x238] sm:$0xf]
                %574 = vst [vmem:[%s416 + $0x138] sm:$0xf] %v573
                %v575 = vld [vmem:[%s415 + $0x23c] sm:$0xf]
                %576 = vst [vmem:[%s416 + $0x13c] sm:$0xf] %v575
                %v577 = vld [vmem:[%s415 + $0x280] sm:$0xf]
                %578 = vst [vmem:[%s416 + $0x140] sm:$0xf] %v577
                %v579 = vld [vmem:[%s415 + $0x284] sm:$0xf]
                %580 = vst [vmem:[%s416 + $0x144] sm:$0xf] %v579
                %v581 = vld [vmem:[%s415 + $0x288] sm:$0xf]
                %582 = vst [vmem:[%s416 + $0x148] sm:$0xf] %v581
                %v583 = vld [vmem:[%s415 + $0x28c] sm:$0xf]
                %584 = vst [vmem:[%s416 + $0x14c] sm:$0xf] %v583
                %v585 = vld [vmem:[%s415 + $0x290] sm:$0xf]
                %586 = vst [vmem:[%s416 + $0x150] sm:$0xf] %v585
                %v587 = vld [vmem:[%s415 + $0x294] sm:$0xf]
                %588 = vst [vmem:[%s416 + $0x154] sm:$0xf] %v587
                %v589 = vld [vmem:[%s415 + $0x298] sm:$0xf]
                %590 = vst [vmem:[%s416 + $0x158] sm:$0xf] %v589
                %v591 = vld [vmem:[%s415 + $0x29c] sm:$0xf]
                %592 = vst [vmem:[%s416 + $0x15c] sm:$0xf] %v591
                %v593 = vld [vmem:[%s415 + $0x2a0] sm:$0xf]
                %594 = vst [vmem:[%s416 + $0x160] sm:$0xf] %v593
                %v595 = vld [vmem:[%s415 + $0x2a4] sm:$0xf]
                %596 = vst [vmem:[%s416 + $0x164] sm:$0xf] %v595
                %v597 = vld [vmem:[%s415 + $0x2a8] sm:$0xf]
                %598 = vst [vmem:[%s416 + $0x168] sm:$0xf] %v597
                %v599 = vld [vmem:[%s415 + $0x2ac] sm:$0xf]
                %600 = vst [vmem:[%s416 + $0x16c] sm:$0xf] %v599
                %v601 = vld [vmem:[%s415 + $0x2b0] sm:$0xf]
                %602 = vst [vmem:[%s416 + $0x170] sm:$0xf] %v601
                %v603 = vld [vmem:[%s415 + $0x2b4] sm:$0xf]
                %604 = vst [vmem:[%s416 + $0x174] sm:$0xf] %v603
                %v605 = vld [vmem:[%s415 + $0x2b8] sm:$0xf]
                %606 = vst [vmem:[%s416 + $0x178] sm:$0xf] %v605
                %v607 = vld [vmem:[%s415 + $0x2bc] sm:$0xf]
                %608 = vst [vmem:[%s416 + $0x17c] sm:$0xf] %v607
                %v609 = vld [vmem:[%s415 + $0x300] sm:$0xf]
                %610 = vst [vmem:[%s416 + $0x180] sm:$0xf] %v609
                %v611 = vld [vmem:[%s415 + $0x304] sm:$0xf]
                %612 = vst [vmem:[%s416 + $0x184] sm:$0xf] %v611
                %v613 = vld [vmem:[%s415 + $0x308] sm:$0xf]
                %614 = vst [vmem:[%s416 + $0x188] sm:$0xf] %v613
                %v615 = vld [vmem:[%s415 + $0x30c] sm:$0xf]
                %616 = vst [vmem:[%s416 + $0x18c] sm:$0xf] %v615
                %v617 = vld [vmem:[%s415 + $0x310] sm:$0xf]
                %618 = vst [vmem:[%s416 + $0x190] sm:$0xf] %v617
                %v619 = vld [vmem:[%s415 + $0x314] sm:$0xf]
                %620 = vst [vmem:[%s416 + $0x194] sm:$0xf] %v619
                %v621 = vld [vmem:[%s415 + $0x318] sm:$0xf]
                %622 = vst [vmem:[%s416 + $0x198] sm:$0xf] %v621
                %v623 = vld [vmem:[%s415 + $0x31c] sm:$0xf]
                %624 = vst [vmem:[%s416 + $0x19c] sm:$0xf] %v623
                %v625 = vld [vmem:[%s415 + $0x320] sm:$0xf]
                %626 = vst [vmem:[%s416 + $0x1a0] sm:$0xf] %v625
                %v627 = vld [vmem:[%s415 + $0x324] sm:$0xf]
                %628 = vst [vmem:[%s416 + $0x1a4] sm:$0xf] %v627
                %v629 = vld [vmem:[%s415 + $0x328] sm:$0xf]
                %630 = vst [vmem:[%s416 + $0x1a8] sm:$0xf] %v629
                %v631 = vld [vmem:[%s415 + $0x32c] sm:$0xf]
                %632 = vst [vmem:[%s416 + $0x1ac] sm:$0xf] %v631
                %v633 = vld [vmem:[%s415 + $0x330] sm:$0xf]
                %634 = vst [vmem:[%s416 + $0x1b0] sm:$0xf] %v633
                %v635 = vld [vmem:[%s415 + $0x334] sm:$0xf]
                %636 = vst [vmem:[%s416 + $0x1b4] sm:$0xf] %v635
                %v637 = vld [vmem:[%s415 + $0x338] sm:$0xf]
                %638 = vst [vmem:[%s416 + $0x1b8] sm:$0xf] %v637
                %v639 = vld [vmem:[%s415 + $0x33c] sm:$0xf]
                %640 = vst [vmem:[%s416 + $0x1bc] sm:$0xf] %v639
                %v641 = vld [vmem:[%s415 + $0x380] sm:$0xf]
                %642 = vst [vmem:[%s416 + $0x1c0] sm:$0xf] %v641
                %v643 = vld [vmem:[%s415 + $0x384] sm:$0xf]
                %644 = vst [vmem:[%s416 + $0x1c4] sm:$0xf] %v643
                %v645 = vld [vmem:[%s415 + $0x388] sm:$0xf]
                %646 = vst [vmem:[%s416 + $0x1c8] sm:$0xf] %v645
                %v647 = vld [vmem:[%s415 + $0x38c] sm:$0xf]
                %648 = vst [vmem:[%s416 + $0x1cc] sm:$0xf] %v647
                %v649 = vld [vmem:[%s415 + $0x390] sm:$0xf]
                %650 = vst [vmem:[%s416 + $0x1d0] sm:$0xf] %v649
                %v651 = vld [vmem:[%s415 + $0x394] sm:$0xf]
                %652 = vst [vmem:[%s416 + $0x1d4] sm:$0xf] %v651
                %v653 = vld [vmem:[%s415 + $0x398] sm:$0xf]
                %654 = vst [vmem:[%s416 + $0x1d8] sm:$0xf] %v653
                %v655 = vld [vmem:[%s415 + $0x39c] sm:$0xf]
                %656 = vst [vmem:[%s416 + $0x1dc] sm:$0xf] %v655
                %v657 = vld [vmem:[%s415 + $0x3a0] sm:$0xf]
                %658 = vst [vmem:[%s416 + $0x1e0] sm:$0xf] %v657
                %v659 = vld [vmem:[%s415 + $0x3a4] sm:$0xf]
                %660 = vst [vmem:[%s416 + $0x1e4] sm:$0xf] %v659
                %v661 = vld [vmem:[%s415 + $0x3a8] sm:$0xf]
                %662 = vst [vmem:[%s416 + $0x1e8] sm:$0xf] %v661
                %v663 = vld [vmem:[%s415 + $0x3ac] sm:$0xf]
                %664 = vst [vmem:[%s416 + $0x1ec] sm:$0xf] %v663
                %v665 = vld [vmem:[%s415 + $0x3b0] sm:$0xf]
                %666 = vst [vmem:[%s416 + $0x1f0] sm:$0xf] %v665
                %v667 = vld [vmem:[%s415 + $0x3b4] sm:$0xf]
                %668 = vst [vmem:[%s416 + $0x1f4] sm:$0xf] %v667
                %v669 = vld [vmem:[%s415 + $0x3b8] sm:$0xf]
                %670 = vst [vmem:[%s416 + $0x1f8] sm:$0xf] %v669
                %v671 = vld [vmem:[%s415 + $0x3bc] sm:$0xf]
                %672 = vst [vmem:[%s416 + $0x1fc] sm:$0xf] %v671
              $region65: #{tpu_custom_call.1} parent=59 // loop_footer
                %s414 = sadd.s32 1, %s410
              $region66: #{tpu_custom_call.1} parent=59 // loop_footer_branch
                %409 = sbr.rel target = $region62
              $region67: #{tpu_custom_call.1} parent=59 // loop_exit
                _
            $region60: #{tpu_custom_call.1} parent=51 // pred_fallthru
              _
          $region52: #{tpu_custom_call.1} parent=47 // pred_fallthru
            _
          %948 = vnop
        $region48: #{tpu_custom_call.1} parent=39 // pred_fallthru
          _
      $region40: #{tpu_custom_call.1} parent=5 // pred_fallthru
        _
      %p949 = scmp.le.s32.totalorder 1, %s21
      %p950 = scmp.lt.s32.totalorder %s21, 3
      %p951 = pnand %p949, %p950
      %p952 = pneg %p951
      // Predicated region
      $region86: #{tpu_custom_call.1} parent=5 // pred_check
        _
      $region87: #{tpu_custom_call.1} parent=5 // pred_check_branch
        %954 = sbr.rel (%p951) target = $region89
      $region88: #{tpu_custom_call.1} parent=5 // pred_region
        %s955 = ssub.s32 %s21, 1
        %s956 = sand.u32 %s48, 1
        %s957 = scalar_lea.sflag [#allocation4], %s956
        %s958 = sand.u32 %s48, 1
        %s959 = smul.addr %s958, 3072
        %s960 = scalar_lea.vmem [#allocation3], %s959
        // Predicated region
        $region90: #{tpu_custom_call.1} parent=88 // pred_check
          %p961 = pneg %p61
        $region91: #{tpu_custom_call.1} parent=88 // pred_check_branch
          %963 = sbr.rel (%p961) target = $region93
        $region92: #{tpu_custom_call.1} parent=88 // pred_region
          %964 = dma.done %s957, 49152
        $region93: #{tpu_custom_call.1} parent=88 // pred_fallthru
          _
        %s965 = sand.u32 %s76, 1
        %s966 = sand.u32 %s76, 1
        %s967 = smul.addr %s966, 512
        %s968 = scalar_lea.vmem [#allocation6], %s967
        // Predicated region
        $region94: #{tpu_custom_call.1} parent=88 // pred_check
          %p969 = pneg %p89
        $region95: #{tpu_custom_call.1} parent=88 // pred_check_branch
          %971 = sbr.rel (%p969) target = $region97
        $region96: #{tpu_custom_call.1} parent=88 // pred_region
          _
        $region97: #{tpu_custom_call.1} parent=88 // pred_fallthru
          _
        // Predicated region
        $region98: #{tpu_custom_call.1} parent=88 // pred_check
          %p972 = pneg %p136
        $region99: #{tpu_custom_call.1} parent=88 // pred_check_branch
          %974 = sbr.rel (%p972) target = $region101
        $region100: #{tpu_custom_call.1} parent=88 // pred_region
          %975 = dma.done [#allocation8], 73728
        $region101: #{tpu_custom_call.1} parent=88 // pred_fallthru
          _
        // Predicated region
        $region102: #{tpu_custom_call.1} parent=88 // pred_check
          %p976 = pneg %p157
        $region103: #{tpu_custom_call.1} parent=88 // pred_check_branch
          %978 = sbr.rel (%p976) target = $region105
        $region104: #{tpu_custom_call.1} parent=88 // pred_region
          %979 = dma.done [#allocation8], 96
        $region105: #{tpu_custom_call.1} parent=88 // pred_fallthru
          _
        // Predicated region
        $region106: #{tpu_custom_call.1} parent=88 // pred_check
          %p980 = pneg %p183
        $region107: #{tpu_custom_call.1} parent=88 // pred_check_branch
          %982 = sbr.rel (%p980) target = $region109
        $region108: #{tpu_custom_call.1} parent=88 // pred_region
          %983 = dma.done [#allocation11], 768
        $region109: #{tpu_custom_call.1} parent=88 // pred_fallthru
          _
        // Predicated region
        $region110: #{tpu_custom_call.1} parent=88 // pred_check
          %p984 = pneg %p204
        $region111: #{tpu_custom_call.1} parent=88 // pred_check_branch
          %986 = sbr.rel (%p984) target = $region113
        $region112: #{tpu_custom_call.1} parent=88 // pred_region
          %987 = dma.done [#allocation11], 12288
        $region113: #{tpu_custom_call.1} parent=88 // pred_fallthru
          _
        // Predicated region
        $region114: #{tpu_custom_call.1} parent=88 // pred_check
          %p988 = pneg %p225
        $region115: #{tpu_custom_call.1} parent=88 // pred_check_branch
          %990 = sbr.rel (%p988) target = $region117
        $region116: #{tpu_custom_call.1} parent=88 // pred_region
          %991 = dma.done [#allocation14], 16
        $region117: #{tpu_custom_call.1} parent=88 // pred_fallthru
          _
        %s992 = sand.u32 %s48, 1
        %s993 = scalar_lea.sflag [#allocation4], %s992
        %s994 = sand.u32 %s48, 1
        %s995 = smul.addr %s994, 3072
        %s996 = scalar_lea.vmem [#allocation3], %s995
        %p997 = pneg %p61
        %p998 = pneg %p58
        %s999 = sand.u32 %s76, 1
        %s1000 = sand.u32 %s76, 1
        %s1001 = smul.addr %s1000, 512
        %s1002 = scalar_lea.vmem [#allocation6], %s1001
        %p1003 = pneg %p89
        %p1004 = pneg %p86
        %p1005 = scmp.lt.s32.totalorder %s30, 0
        %s1006 = scalar_select %p1005, %s30, 0
        %s1007 = smul.addr %s1006, 8
        %s1008 = scalar_lea.vmem %s2, %s1007
        %p1009 = pneg %p115
        %p1010 = pneg %p112
        %p1011 = pneg %p136
        %p1012 = pneg %p133
        %p1013 = pneg %p157
        %p1014 = pneg %p154
        %p1015 = pneg %p183
        %p1016 = pneg %p180
        %p1017 = pneg %p204
        %p1018 = pneg %p201
        %p1019 = pneg %p225
        %p1020 = pneg %p222
        %p1021 = pneg %p251
        %p1022 = pneg %p248
        %s1023 = smul.u32 8, %s30
        %s1024 = smul.u32 16, %s31
        %s1025 = smul.u32 8, %s30
        %s1026 = smul.u32 16, %s31
        %p1027 = scmp.lt.s32.totalorder %s30, 0
        %s1028 = scalar_select %p1027, %s30, 0
        %s1029 = smul.addr %s1028, 8
        %s1030 = scalar_lea.vmem %s2, %s1029
        %p1031 = scmp.eq.s32.totalorder %s31, 0
        // Predicated region
        $region118: #{tpu_custom_call.1} parent=88 // pred_check
          %p1032 = pneg %p1031
        $region119: #{tpu_custom_call.1} parent=88 // pred_check_branch
          %1034 = sbr.rel (%p1032) target = $region121
        $region120: #{tpu_custom_call.1} parent=88 // pred_region
          %1035 = vst [vmem:[#allocation2] sm:$0xff] 0.0
          %1036 = vst [vmem:[#allocation2 + $0x8] sm:$0xff] 0.0
          %1037 = vst [vmem:[#allocation2 + $0x10] sm:$0xff] 0.0
          %1038 = vst [vmem:[#allocation2 + $0x18] sm:$0xff] 0.0
          %1039 = vst [vmem:[#allocation2 + $0x20] sm:$0xff] 0.0
          %1040 = vst [vmem:[#allocation2 + $0x28] sm:$0xff] 0.0
        $region121: #{tpu_custom_call.1} parent=88 // pred_fallthru
          _
        %v1041 = vld [vmem:[%s960] sm:$0xff]
        %v1042 = vld [vmem:[%s960 + $0x8] sm:$0xff]
        %v1043 = vld [vmem:[%s960 + $0x10] sm:$0xff]
        %v1044 = vld [vmem:[%s960 + $0x18] sm:$0xff]
        %v1045 = vld [vmem:[%s960 + $0x20] sm:$0xff]
        %v1046 = vld [vmem:[%s960 + $0x28] sm:$0xff]
        %v1047 = vld [vmem:[%s960 + $0x30] sm:$0xff]
        %v1048 = vld [vmem:[%s960 + $0x38] sm:$0xff]
        %v1049 = vld [vmem:[%s960 + $0x40] sm:$0xff]
        %v1050 = vld [vmem:[%s960 + $0x48] sm:$0xff]
        %v1051 = vld [vmem:[%s960 + $0x50] sm:$0xff]
        %v1052 = vld [vmem:[%s960 + $0x58] sm:$0xff]
        %v1053 = vld [vmem:[%s960 + $0x60] sm:$0xff]
        %v1054 = vld [vmem:[%s960 + $0x68] sm:$0xff]
        %v1055 = vld [vmem:[%s960 + $0x70] sm:$0xff]
        %v1056 = vld [vmem:[%s960 + $0x78] sm:$0xff]
        %v1057 = vld [vmem:[%s960 + $0x80] sm:$0xff]
        %v1058 = vld [vmem:[%s960 + $0x88] sm:$0xff]
        %v1059 = vld [vmem:[%s960 + $0x90] sm:$0xff]
        %v1060 = vld [vmem:[%s960 + $0x98] sm:$0xff]
        %v1061 = vld [vmem:[%s960 + $0xa0] sm:$0xff]
        %v1062 = vld [vmem:[%s960 + $0xa8] sm:$0xff]
        %v1063 = vld [vmem:[%s960 + $0xb0] sm:$0xff]
        %v1064 = vld [vmem:[%s960 + $0xb8] sm:$0xff]
        %v1065 = vld [vmem:[%s960 + $0xc0] sm:$0xff]
        %v1066 = vld [vmem:[%s960 + $0xc8] sm:$0xff]
        %v1067 = vld [vmem:[%s960 + $0xd0] sm:$0xff]
        %v1068 = vld [vmem:[%s960 + $0xd8] sm:$0xff]
        %v1069 = vld [vmem:[%s960 + $0xe0] sm:$0xff]
        %v1070 = vld [vmem:[%s960 + $0xe8] sm:$0xff]
        %v1071 = vld [vmem:[%s960 + $0xf0] sm:$0xff]
        %v1072 = vld [vmem:[%s960 + $0xf8] sm:$0xff]
        %v1073 = vld [vmem:[%s960 + $0x100] sm:$0xff]
        %v1074 = vld [vmem:[%s960 + $0x108] sm:$0xff]
        %v1075 = vld [vmem:[%s960 + $0x110] sm:$0xff]
        %v1076 = vld [vmem:[%s960 + $0x118] sm:$0xff]
        %v1077 = vld [vmem:[%s960 + $0x120] sm:$0xff]
        %v1078 = vld [vmem:[%s960 + $0x128] sm:$0xff]
        %v1079 = vld [vmem:[%s960 + $0x130] sm:$0xff]
        %v1080 = vld [vmem:[%s960 + $0x138] sm:$0xff]
        %v1081 = vld [vmem:[%s960 + $0x140] sm:$0xff]
        %v1082 = vld [vmem:[%s960 + $0x148] sm:$0xff]
        %v1083 = vld [vmem:[%s960 + $0x150] sm:$0xff]
        %v1084 = vld [vmem:[%s960 + $0x158] sm:$0xff]
        %v1085 = vld [vmem:[%s960 + $0x160] sm:$0xff]
        %v1086 = vld [vmem:[%s960 + $0x168] sm:$0xff]
        %v1087 = vld [vmem:[%s960 + $0x170] sm:$0xff]
        %v1088 = vld [vmem:[%s960 + $0x178] sm:$0xff]
        %v1089 = vld [vmem:[%s960 + $0x180] sm:$0xff]
        %v1090 = vld [vmem:[%s960 + $0x188] sm:$0xff]
        %v1091 = vld [vmem:[%s960 + $0x190] sm:$0xff]
        %v1092 = vld [vmem:[%s960 + $0x198] sm:$0xff]
        %v1093 = vld [vmem:[%s960 + $0x1a0] sm:$0xff]
        %v1094 = vld [vmem:[%s960 + $0x1a8] sm:$0xff]
        %v1095 = vld [vmem:[%s960 + $0x1b0] sm:$0xff]
        %v1096 = vld [vmem:[%s960 + $0x1b8] sm:$0xff]
        %v1097 = vld [vmem:[%s960 + $0x1c0] sm:$0xff]
        %v1098 = vld [vmem:[%s960 + $0x1c8] sm:$0xff]
        %v1099 = vld [vmem:[%s960 + $0x1d0] sm:$0xff]
        %v1100 = vld [vmem:[%s960 + $0x1d8] sm:$0xff]
        %v1101 = vld [vmem:[%s960 + $0x1e0] sm:$0xff]
        %v1102 = vld [vmem:[%s960 + $0x1e8] sm:$0xff]
        %v1103 = vld [vmem:[%s960 + $0x1f0] sm:$0xff]
        %v1104 = vld [vmem:[%s960 + $0x1f8] sm:$0xff]
        %v1105 = vld [vmem:[%s960 + $0x200] sm:$0xff]
        %v1106 = vld [vmem:[%s960 + $0x208] sm:$0xff]
        %v1107 = vld [vmem:[%s960 + $0x210] sm:$0xff]
        %v1108 = vld [vmem:[%s960 + $0x218] sm:$0xff]
        %v1109 = vld [vmem:[%s960 + $0x220] sm:$0xff]
        %v1110 = vld [vmem:[%s960 + $0x228] sm:$0xff]
        %v1111 = vld [vmem:[%s960 + $0x230] sm:$0xff]
        %v1112 = vld [vmem:[%s960 + $0x238] sm:$0xff]
        %v1113 = vld [vmem:[%s960 + $0x240] sm:$0xff]
        %v1114 = vld [vmem:[%s960 + $0x248] sm:$0xff]
        %v1115 = vld [vmem:[%s960 + $0x250] sm:$0xff]
        %v1116 = vld [vmem:[%s960 + $0x258] sm:$0xff]
        %v1117 = vld [vmem:[%s960 + $0x260] sm:$0xff]
        %v1118 = vld [vmem:[%s960 + $0x268] sm:$0xff]
        %v1119 = vld [vmem:[%s960 + $0x270] sm:$0xff]
        %v1120 = vld [vmem:[%s960 + $0x278] sm:$0xff]
        %v1121 = vld [vmem:[%s960 + $0x280] sm:$0xff]
        %v1122 = vld [vmem:[%s960 + $0x288] sm:$0xff]
        %v1123 = vld [vmem:[%s960 + $0x290] sm:$0xff]
        %v1124 = vld [vmem:[%s960 + $0x298] sm:$0xff]
        %v1125 = vld [vmem:[%s960 + $0x2a0] sm:$0xff]
        %v1126 = vld [vmem:[%s960 + $0x2a8] sm:$0xff]
        %v1127 = vld [vmem:[%s960 + $0x2b0] sm:$0xff]
        %v1128 = vld [vmem:[%s960 + $0x2b8] sm:$0xff]
        %v1129 = vld [vmem:[%s960 + $0x2c0] sm:$0xff]
        %v1130 = vld [vmem:[%s960 + $0x2c8] sm:$0xff]
        %v1131 = vld [vmem:[%s960 + $0x2d0] sm:$0xff]
        %v1132 = vld [vmem:[%s960 + $0x2d8] sm:$0xff]
        %v1133 = vld [vmem:[%s960 + $0x2e0] sm:$0xff]
        %v1134 = vld [vmem:[%s960 + $0x2e8] sm:$0xff]
        %v1135 = vld [vmem:[%s960 + $0x2f0] sm:$0xff]
        %v1136 = vld [vmem:[%s960 + $0x2f8] sm:$0xff]
        %v1137 = vld [vmem:[%s960 + $0x300] sm:$0xff]
        %v1138 = vld [vmem:[%s960 + $0x308] sm:$0xff]
        %v1139 = vld [vmem:[%s960 + $0x310] sm:$0xff]
        %v1140 = vld [vmem:[%s960 + $0x318] sm:$0xff]
        %v1141 = vld [vmem:[%s960 + $0x320] sm:$0xff]
        %v1142 = vld [vmem:[%s960 + $0x328] sm:$0xff]
        %v1143 = vld [vmem:[%s960 + $0x330] sm:$0xff]
        %v1144 = vld [vmem:[%s960 + $0x338] sm:$0xff]
        %v1145 = vld [vmem:[%s960 + $0x340] sm:$0xff]
        %v1146 = vld [vmem:[%s960 + $0x348] sm:$0xff]
        %v1147 = vld [vmem:[%s960 + $0x350] sm:$0xff]
        %v1148 = vld [vmem:[%s960 + $0x358] sm:$0xff]
        %v1149 = vld [vmem:[%s960 + $0x360] sm:$0xff]
        %v1150 = vld [vmem:[%s960 + $0x368] sm:$0xff]
        %v1151 = vld [vmem:[%s960 + $0x370] sm:$0xff]
        %v1152 = vld [vmem:[%s960 + $0x378] sm:$0xff]
        %v1153 = vld [vmem:[%s960 + $0x380] sm:$0xff]
        %v1154 = vld [vmem:[%s960 + $0x388] sm:$0xff]
        %v1155 = vld [vmem:[%s960 + $0x390] sm:$0xff]
        %v1156 = vld [vmem:[%s960 + $0x398] sm:$0xff]
        %v1157 = vld [vmem:[%s960 + $0x3a0] sm:$0xff]
        %v1158 = vld [vmem:[%s960 + $0x3a8] sm:$0xff]
        %v1159 = vld [vmem:[%s960 + $0x3b0] sm:$0xff]
        %v1160 = vld [vmem:[%s960 + $0x3b8] sm:$0xff]
        %v1161 = vld [vmem:[%s960 + $0x3c0] sm:$0xff]
        %v1162 = vld [vmem:[%s960 + $0x3c8] sm:$0xff]
        %v1163 = vld [vmem:[%s960 + $0x3d0] sm:$0xff]
        %v1164 = vld [vmem:[%s960 + $0x3d8] sm:$0xff]
        %v1165 = vld [vmem:[%s960 + $0x3e0] sm:$0xff]
        %v1166 = vld [vmem:[%s960 + $0x3e8] sm:$0xff]
        %v1167 = vld [vmem:[%s960 + $0x3f0] sm:$0xff]
        %v1168 = vld [vmem:[%s960 + $0x3f8] sm:$0xff]
        %v1169 = vld [vmem:[%s960 + $0x400] sm:$0xff]
        %v1170 = vld [vmem:[%s960 + $0x408] sm:$0xff]
        %v1171 = vld [vmem:[%s960 + $0x410] sm:$0xff]
        %v1172 = vld [vmem:[%s960 + $0x418] sm:$0xff]
        %v1173 = vld [vmem:[%s960 + $0x420] sm:$0xff]
        %v1174 = vld [vmem:[%s960 + $0x428] sm:$0xff]
        %v1175 = vld [vmem:[%s960 + $0x430] sm:$0xff]
        %v1176 = vld [vmem:[%s960 + $0x438] sm:$0xff]
        %v1177 = vld [vmem:[%s960 + $0x440] sm:$0xff]
        %v1178 = vld [vmem:[%s960 + $0x448] sm:$0xff]
        %v1179 = vld [vmem:[%s960 + $0x450] sm:$0xff]
        %v1180 = vld [vmem:[%s960 + $0x458] sm:$0xff]
        %v1181 = vld [vmem:[%s960 + $0x460] sm:$0xff]
        %v1182 = vld [vmem:[%s960 + $0x468] sm:$0xff]
        %v1183 = vld [vmem:[%s960 + $0x470] sm:$0xff]
        %v1184 = vld [vmem:[%s960 + $0x478] sm:$0xff]
        %v1185 = vld [vmem:[%s960 + $0x480] sm:$0xff]
        %v1186 = vld [vmem:[%s960 + $0x488] sm:$0xff]
        %v1187 = vld [vmem:[%s960 + $0x490] sm:$0xff]
        %v1188 = vld [vmem:[%s960 + $0x498] sm:$0xff]
        %v1189 = vld [vmem:[%s960 + $0x4a0] sm:$0xff]
        %v1190 = vld [vmem:[%s960 + $0x4a8] sm:$0xff]
        %v1191 = vld [vmem:[%s960 + $0x4b0] sm:$0xff]
        %v1192 = vld [vmem:[%s960 + $0x4b8] sm:$0xff]
        %v1193 = vld [vmem:[%s960 + $0x4c0] sm:$0xff]
        %v1194 = vld [vmem:[%s960 + $0x4c8] sm:$0xff]
        %v1195 = vld [vmem:[%s960 + $0x4d0] sm:$0xff]
        %v1196 = vld [vmem:[%s960 + $0x4d8] sm:$0xff]
        %v1197 = vld [vmem:[%s960 + $0x4e0] sm:$0xff]
        %v1198 = vld [vmem:[%s960 + $0x4e8] sm:$0xff]
        %v1199 = vld [vmem:[%s960 + $0x4f0] sm:$0xff]
        %v1200 = vld [vmem:[%s960 + $0x4f8] sm:$0xff]
        %v1201 = vld [vmem:[%s960 + $0x500] sm:$0xff]
        %v1202 = vld [vmem:[%s960 + $0x508] sm:$0xff]
        %v1203 = vld [vmem:[%s960 + $0x510] sm:$0xff]
        %v1204 = vld [vmem:[%s960 + $0x518] sm:$0xff]
        %v1205 = vld [vmem:[%s960 + $0x520] sm:$0xff]
        %v1206 = vld [vmem:[%s960 + $0x528] sm:$0xff]
        %v1207 = vld [vmem:[%s960 + $0x530] sm:$0xff]
        %v1208 = vld [vmem:[%s960 + $0x538] sm:$0xff]
        %v1209 = vld [vmem:[%s960 + $0x540] sm:$0xff]
        %v1210 = vld [vmem:[%s960 + $0x548] sm:$0xff]
        %v1211 = vld [vmem:[%s960 + $0x550] sm:$0xff]
        %v1212 = vld [vmem:[%s960 + $0x558] sm:$0xff]
        %v1213 = vld [vmem:[%s960 + $0x560] sm:$0xff]
        %v1214 = vld [vmem:[%s960 + $0x568] sm:$0xff]
        %v1215 = vld [vmem:[%s960 + $0x570] sm:$0xff]
        %v1216 = vld [vmem:[%s960 + $0x578] sm:$0xff]
        %v1217 = vld [vmem:[%s960 + $0x580] sm:$0xff]
        %v1218 = vld [vmem:[%s960 + $0x588] sm:$0xff]
        %v1219 = vld [vmem:[%s960 + $0x590] sm:$0xff]
        %v1220 = vld [vmem:[%s960 + $0x598] sm:$0xff]
        %v1221 = vld [vmem:[%s960 + $0x5a0] sm:$0xff]
        %v1222 = vld [vmem:[%s960 + $0x5a8] sm:$0xff]
        %v1223 = vld [vmem:[%s960 + $0x5b0] sm:$0xff]
        %v1224 = vld [vmem:[%s960 + $0x5b8] sm:$0xff]
        %v1225 = vld [vmem:[%s960 + $0x5c0] sm:$0xff]
        %v1226 = vld [vmem:[%s960 + $0x5c8] sm:$0xff]
        %v1227 = vld [vmem:[%s960 + $0x5d0] sm:$0xff]
        %v1228 = vld [vmem:[%s960 + $0x5d8] sm:$0xff]
        %v1229 = vld [vmem:[%s960 + $0x5e0] sm:$0xff]
        %v1230 = vld [vmem:[%s960 + $0x5e8] sm:$0xff]
        %v1231 = vld [vmem:[%s960 + $0x5f0] sm:$0xff]
        %v1232 = vld [vmem:[%s960 + $0x5f8] sm:$0xff]
        %v1233 = vld [vmem:[%s960 + $0x600] sm:$0xff]
        %v1234 = vld [vmem:[%s960 + $0x608] sm:$0xff]
        %v1235 = vld [vmem:[%s960 + $0x610] sm:$0xff]
        %v1236 = vld [vmem:[%s960 + $0x618] sm:$0xff]
        %v1237 = vld [vmem:[%s960 + $0x620] sm:$0xff]
        %v1238 = vld [vmem:[%s960 + $0x628] sm:$0xff]
        %v1239 = vld [vmem:[%s960 + $0x630] sm:$0xff]
        %v1240 = vld [vmem:[%s960 + $0x638] sm:$0xff]
        %v1241 = vld [vmem:[%s960 + $0x640] sm:$0xff]
        %v1242 = vld [vmem:[%s960 + $0x648] sm:$0xff]
        %v1243 = vld [vmem:[%s960 + $0x650] sm:$0xff]
        %v1244 = vld [vmem:[%s960 + $0x658] sm:$0xff]
        %v1245 = vld [vmem:[%s960 + $0x660] sm:$0xff]
        %v1246 = vld [vmem:[%s960 + $0x668] sm:$0xff]
        %v1247 = vld [vmem:[%s960 + $0x670] sm:$0xff]
        %v1248 = vld [vmem:[%s960 + $0x678] sm:$0xff]
        %v1249 = vld [vmem:[%s960 + $0x680] sm:$0xff]
        %v1250 = vld [vmem:[%s960 + $0x688] sm:$0xff]
        %v1251 = vld [vmem:[%s960 + $0x690] sm:$0xff]
        %v1252 = vld [vmem:[%s960 + $0x698] sm:$0xff]
        %v1253 = vld [vmem:[%s960 + $0x6a0] sm:$0xff]
        %v1254 = vld [vmem:[%s960 + $0x6a8] sm:$0xff]
        %v1255 = vld [vmem:[%s960 + $0x6b0] sm:$0xff]
        %v1256 = vld [vmem:[%s960 + $0x6b8] sm:$0xff]
        %v1257 = vld [vmem:[%s960 + $0x6c0] sm:$0xff]
        %v1258 = vld [vmem:[%s960 + $0x6c8] sm:$0xff]
        %v1259 = vld [vmem:[%s960 + $0x6d0] sm:$0xff]
        %v1260 = vld [vmem:[%s960 + $0x6d8] sm:$0xff]
        %v1261 = vld [vmem:[%s960 + $0x6e0] sm:$0xff]
        %v1262 = vld [vmem:[%s960 + $0x6e8] sm:$0xff]
        %v1263 = vld [vmem:[%s960 + $0x6f0] sm:$0xff]
        %v1264 = vld [vmem:[%s960 + $0x6f8] sm:$0xff]
        %v1265 = vld [vmem:[%s960 + $0x700] sm:$0xff]
        %v1266 = vld [vmem:[%s960 + $0x708] sm:$0xff]
        %v1267 = vld [vmem:[%s960 + $0x710] sm:$0xff]
        %v1268 = vld [vmem:[%s960 + $0x718] sm:$0xff]
        %v1269 = vld [vmem:[%s960 + $0x720] sm:$0xff]
        %v1270 = vld [vmem:[%s960 + $0x728] sm:$0xff]
        %v1271 = vld [vmem:[%s960 + $0x730] sm:$0xff]
        %v1272 = vld [vmem:[%s960 + $0x738] sm:$0xff]
        %v1273 = vld [vmem:[%s960 + $0x740] sm:$0xff]
        %v1274 = vld [vmem:[%s960 + $0x748] sm:$0xff]
        %v1275 = vld [vmem:[%s960 + $0x750] sm:$0xff]
        %v1276 = vld [vmem:[%s960 + $0x758] sm:$0xff]
        %v1277 = vld [vmem:[%s960 + $0x760] sm:$0xff]
        %v1278 = vld [vmem:[%s960 + $0x768] sm:$0xff]
        %v1279 = vld [vmem:[%s960 + $0x770] sm:$0xff]
        %v1280 = vld [vmem:[%s960 + $0x778] sm:$0xff]
        %v1281 = vld [vmem:[%s960 + $0x780] sm:$0xff]
        %v1282 = vld [vmem:[%s960 + $0x788] sm:$0xff]
        %v1283 = vld [vmem:[%s960 + $0x790] sm:$0xff]
        %v1284 = vld [vmem:[%s960 + $0x798] sm:$0xff]
        %v1285 = vld [vmem:[%s960 + $0x7a0] sm:$0xff]
        %v1286 = vld [vmem:[%s960 + $0x7a8] sm:$0xff]
        %v1287 = vld [vmem:[%s960 + $0x7b0] sm:$0xff]
        %v1288 = vld [vmem:[%s960 + $0x7b8] sm:$0xff]
        %v1289 = vld [vmem:[%s960 + $0x7c0] sm:$0xff]
        %v1290 = vld [vmem:[%s960 + $0x7c8] sm:$0xff]
        %v1291 = vld [vmem:[%s960 + $0x7d0] sm:$0xff]
        %v1292 = vld [vmem:[%s960 + $0x7d8] sm:$0xff]
        %v1293 = vld [vmem:[%s960 + $0x7e0] sm:$0xff]
        %v1294 = vld [vmem:[%s960 + $0x7e8] sm:$0xff]
        %v1295 = vld [vmem:[%s960 + $0x7f0] sm:$0xff]
        %v1296 = vld [vmem:[%s960 + $0x7f8] sm:$0xff]
        %v1297 = vld [vmem:[%s960 + $0x800] sm:$0xff]
        %v1298 = vld [vmem:[%s960 + $0x808] sm:$0xff]
        %v1299 = vld [vmem:[%s960 + $0x810] sm:$0xff]
        %v1300 = vld [vmem:[%s960 + $0x818] sm:$0xff]
        %v1301 = vld [vmem:[%s960 + $0x820] sm:$0xff]
        %v1302 = vld [vmem:[%s960 + $0x828] sm:$0xff]
        %v1303 = vld [vmem:[%s960 + $0x830] sm:$0xff]
        %v1304 = vld [vmem:[%s960 + $0x838] sm:$0xff]
        %v1305 = vld [vmem:[%s960 + $0x840] sm:$0xff]
        %v1306 = vld [vmem:[%s960 + $0x848] sm:$0xff]
        %v1307 = vld [vmem:[%s960 + $0x850] sm:$0xff]
        %v1308 = vld [vmem:[%s960 + $0x858] sm:$0xff]
        %v1309 = vld [vmem:[%s960 + $0x860] sm:$0xff]
        %v1310 = vld [vmem:[%s960 + $0x868] sm:$0xff]
        %v1311 = vld [vmem:[%s960 + $0x870] sm:$0xff]
        %v1312 = vld [vmem:[%s960 + $0x878] sm:$0xff]
        %v1313 = vld [vmem:[%s960 + $0x880] sm:$0xff]
        %v1314 = vld [vmem:[%s960 + $0x888] sm:$0xff]
        %v1315 = vld [vmem:[%s960 + $0x890] sm:$0xff]
        %v1316 = vld [vmem:[%s960 + $0x898] sm:$0xff]
        %v1317 = vld [vmem:[%s960 + $0x8a0] sm:$0xff]
        %v1318 = vld [vmem:[%s960 + $0x8a8] sm:$0xff]
        %v1319 = vld [vmem:[%s960 + $0x8b0] sm:$0xff]
        %v1320 = vld [vmem:[%s960 + $0x8b8] sm:$0xff]
        %v1321 = vld [vmem:[%s960 + $0x8c0] sm:$0xff]
        %v1322 = vld [vmem:[%s960 + $0x8c8] sm:$0xff]
        %v1323 = vld [vmem:[%s960 + $0x8d0] sm:$0xff]
        %v1324 = vld [vmem:[%s960 + $0x8d8] sm:$0xff]
        %v1325 = vld [vmem:[%s960 + $0x8e0] sm:$0xff]
        %v1326 = vld [vmem:[%s960 + $0x8e8] sm:$0xff]
        %v1327 = vld [vmem:[%s960 + $0x8f0] sm:$0xff]
        %v1328 = vld [vmem:[%s960 + $0x8f8] sm:$0xff]
        %v1329 = vld [vmem:[%s960 + $0x900] sm:$0xff]
        %v1330 = vld [vmem:[%s960 + $0x908] sm:$0xff]
        %v1331 = vld [vmem:[%s960 + $0x910] sm:$0xff]
        %v1332 = vld [vmem:[%s960 + $0x918] sm:$0xff]
        %v1333 = vld [vmem:[%s960 + $0x920] sm:$0xff]
        %v1334 = vld [vmem:[%s960 + $0x928] sm:$0xff]
        %v1335 = vld [vmem:[%s960 + $0x930] sm:$0xff]
        %v1336 = vld [vmem:[%s960 + $0x938] sm:$0xff]
        %v1337 = vld [vmem:[%s960 + $0x940] sm:$0xff]
        %v1338 = vld [vmem:[%s960 + $0x948] sm:$0xff]
        %v1339 = vld [vmem:[%s960 + $0x950] sm:$0xff]
        %v1340 = vld [vmem:[%s960 + $0x958] sm:$0xff]
        %v1341 = vld [vmem:[%s960 + $0x960] sm:$0xff]
        %v1342 = vld [vmem:[%s960 + $0x968] sm:$0xff]
        %v1343 = vld [vmem:[%s960 + $0x970] sm:$0xff]
        %v1344 = vld [vmem:[%s960 + $0x978] sm:$0xff]
        %v1345 = vld [vmem:[%s960 + $0x980] sm:$0xff]
        %v1346 = vld [vmem:[%s960 + $0x988] sm:$0xff]
        %v1347 = vld [vmem:[%s960 + $0x990] sm:$0xff]
        %v1348 = vld [vmem:[%s960 + $0x998] sm:$0xff]
        %v1349 = vld [vmem:[%s960 + $0x9a0] sm:$0xff]
        %v1350 = vld [vmem:[%s960 + $0x9a8] sm:$0xff]
        %v1351 = vld [vmem:[%s960 + $0x9b0] sm:$0xff]
        %v1352 = vld [vmem:[%s960 + $0x9b8] sm:$0xff]
        %v1353 = vld [vmem:[%s960 + $0x9c0] sm:$0xff]
        %v1354 = vld [vmem:[%s960 + $0x9c8] sm:$0xff]
        %v1355 = vld [vmem:[%s960 + $0x9d0] sm:$0xff]
        %v1356 = vld [vmem:[%s960 + $0x9d8] sm:$0xff]
        %v1357 = vld [vmem:[%s960 + $0x9e0] sm:$0xff]
        %v1358 = vld [vmem:[%s960 + $0x9e8] sm:$0xff]
        %v1359 = vld [vmem:[%s960 + $0x9f0] sm:$0xff]
        %v1360 = vld [vmem:[%s960 + $0x9f8] sm:$0xff]
        %v1361 = vld [vmem:[%s960 + $0xa00] sm:$0xff]
        %v1362 = vld [vmem:[%s960 + $0xa08] sm:$0xff]
        %v1363 = vld [vmem:[%s960 + $0xa10] sm:$0xff]
        %v1364 = vld [vmem:[%s960 + $0xa18] sm:$0xff]
        %v1365 = vld [vmem:[%s960 + $0xa20] sm:$0xff]
        %v1366 = vld [vmem:[%s960 + $0xa28] sm:$0xff]
        %v1367 = vld [vmem:[%s960 + $0xa30] sm:$0xff]
        %v1368 = vld [vmem:[%s960 + $0xa38] sm:$0xff]
        %v1369 = vld [vmem:[%s960 + $0xa40] sm:$0xff]
        %v1370 = vld [vmem:[%s960 + $0xa48] sm:$0xff]
        %v1371 = vld [vmem:[%s960 + $0xa50] sm:$0xff]
        %v1372 = vld [vmem:[%s960 + $0xa58] sm:$0xff]
        %v1373 = vld [vmem:[%s960 + $0xa60] sm:$0xff]
        %v1374 = vld [vmem:[%s960 + $0xa68] sm:$0xff]
        %v1375 = vld [vmem:[%s960 + $0xa70] sm:$0xff]
        %v1376 = vld [vmem:[%s960 + $0xa78] sm:$0xff]
        %v1377 = vld [vmem:[%s960 + $0xa80] sm:$0xff]
        %v1378 = vld [vmem:[%s960 + $0xa88] sm:$0xff]
        %v1379 = vld [vmem:[%s960 + $0xa90] sm:$0xff]
        %v1380 = vld [vmem:[%s960 + $0xa98] sm:$0xff]
        %v1381 = vld [vmem:[%s960 + $0xaa0] sm:$0xff]
        %v1382 = vld [vmem:[%s960 + $0xaa8] sm:$0xff]
        %v1383 = vld [vmem:[%s960 + $0xab0] sm:$0xff]
        %v1384 = vld [vmem:[%s960 + $0xab8] sm:$0xff]
        %v1385 = vld [vmem:[%s960 + $0xac0] sm:$0xff]
        %v1386 = vld [vmem:[%s960 + $0xac8] sm:$0xff]
        %v1387 = vld [vmem:[%s960 + $0xad0] sm:$0xff]
        %v1388 = vld [vmem:[%s960 + $0xad8] sm:$0xff]
        %v1389 = vld [vmem:[%s960 + $0xae0] sm:$0xff]
        %v1390 = vld [vmem:[%s960 + $0xae8] sm:$0xff]
        %v1391 = vld [vmem:[%s960 + $0xaf0] sm:$0xff]
        %v1392 = vld [vmem:[%s960 + $0xaf8] sm:$0xff]
        %v1393 = vld [vmem:[%s960 + $0xb00] sm:$0xff]
        %v1394 = vld [vmem:[%s960 + $0xb08] sm:$0xff]
        %v1395 = vld [vmem:[%s960 + $0xb10] sm:$0xff]
        %v1396 = vld [vmem:[%s960 + $0xb18] sm:$0xff]
        %v1397 = vld [vmem:[%s960 + $0xb20] sm:$0xff]
        %v1398 = vld [vmem:[%s960 + $0xb28] sm:$0xff]
        %v1399 = vld [vmem:[%s960 + $0xb30] sm:$0xff]
        %v1400 = vld [vmem:[%s960 + $0xb38] sm:$0xff]
        %v1401 = vld [vmem:[%s960 + $0xb40] sm:$0xff]
        %v1402 = vld [vmem:[%s960 + $0xb48] sm:$0xff]
        %v1403 = vld [vmem:[%s960 + $0xb50] sm:$0xff]
        %v1404 = vld [vmem:[%s960 + $0xb58] sm:$0xff]
        %v1405 = vld [vmem:[%s960 + $0xb60] sm:$0xff]
        %v1406 = vld [vmem:[%s960 + $0xb68] sm:$0xff]
        %v1407 = vld [vmem:[%s960 + $0xb70] sm:$0xff]
        %v1408 = vld [vmem:[%s960 + $0xb78] sm:$0xff]
        %v1409 = vld [vmem:[%s960 + $0xb80] sm:$0xff]
        %v1410 = vld [vmem:[%s960 + $0xb88] sm:$0xff]
        %v1411 = vld [vmem:[%s960 + $0xb90] sm:$0xff]
        %v1412 = vld [vmem:[%s960 + $0xb98] sm:$0xff]
        %v1413 = vld [vmem:[%s960 + $0xba0] sm:$0xff]
        %v1414 = vld [vmem:[%s960 + $0xba8] sm:$0xff]
        %v1415 = vld [vmem:[%s960 + $0xbb0] sm:$0xff]
        %v1416 = vld [vmem:[%s960 + $0xbb8] sm:$0xff]
        %v1417 = vld [vmem:[%s960 + $0xbc0] sm:$0xff]
        %v1418 = vld [vmem:[%s960 + $0xbc8] sm:$0xff]
        %v1419 = vld [vmem:[%s960 + $0xbd0] sm:$0xff]
        %v1420 = vld [vmem:[%s960 + $0xbd8] sm:$0xff]
        %v1421 = vld [vmem:[%s960 + $0xbe0] sm:$0xff]
        %v1422 = vld [vmem:[%s960 + $0xbe8] sm:$0xff]
        %v1423 = vld [vmem:[%s960 + $0xbf0] sm:$0xff]
        %v1424 = vld [vmem:[%s960 + $0xbf8] sm:$0xff]
        %v1425 = vld [vmem:[%s968] sm:$0xf]
        %v1426 = vld [vmem:[%s968 + $0x4] sm:$0xf]
        %v1427 = vld [vmem:[%s968 + $0x8] sm:$0xf]
        %v1428 = vld [vmem:[%s968 + $0xc] sm:$0xf]
        %v1429 = vld [vmem:[%s968 + $0x10] sm:$0xf]
        %v1430 = vld [vmem:[%s968 + $0x14] sm:$0xf]
        %v1431 = vld [vmem:[%s968 + $0x18] sm:$0xf]
        %v1432 = vld [vmem:[%s968 + $0x1c] sm:$0xf]
        %v1433 = vld [vmem:[%s968 + $0x20] sm:$0xf]
        %v1434 = vld [vmem:[%s968 + $0x24] sm:$0xf]
        %v1435 = vld [vmem:[%s968 + $0x28] sm:$0xf]
        %v1436 = vld [vmem:[%s968 + $0x2c] sm:$0xf]
        %v1437 = vld [vmem:[%s968 + $0x30] sm:$0xf]
        %v1438 = vld [vmem:[%s968 + $0x34] sm:$0xf]
        %v1439 = vld [vmem:[%s968 + $0x38] sm:$0xf]
        %v1440 = vld [vmem:[%s968 + $0x3c] sm:$0xf]
        %v1441 = vld [vmem:[%s968 + $0x40] sm:$0xf]
        %v1442 = vld [vmem:[%s968 + $0x44] sm:$0xf]
        %v1443 = vld [vmem:[%s968 + $0x48] sm:$0xf]
        %v1444 = vld [vmem:[%s968 + $0x4c] sm:$0xf]
        %v1445 = vld [vmem:[%s968 + $0x50] sm:$0xf]
        %v1446 = vld [vmem:[%s968 + $0x54] sm:$0xf]
        %v1447 = vld [vmem:[%s968 + $0x58] sm:$0xf]
        %v1448 = vld [vmem:[%s968 + $0x5c] sm:$0xf]
        %v1449 = vld [vmem:[%s968 + $0x60] sm:$0xf]
        %v1450 = vld [vmem:[%s968 + $0x64] sm:$0xf]
        %v1451 = vld [vmem:[%s968 + $0x68] sm:$0xf]
        %v1452 = vld [vmem:[%s968 + $0x6c] sm:$0xf]
        %v1453 = vld [vmem:[%s968 + $0x70] sm:$0xf]
        %v1454 = vld [vmem:[%s968 + $0x74] sm:$0xf]
        %v1455 = vld [vmem:[%s968 + $0x78] sm:$0xf]
        %v1456 = vld [vmem:[%s968 + $0x7c] sm:$0xf]
        %v1457 = vld [vmem:[%s968 + $0x80] sm:$0xf]
        %v1458 = vld [vmem:[%s968 + $0x84] sm:$0xf]
        %v1459 = vld [vmem:[%s968 + $0x88] sm:$0xf]
        %v1460 = vld [vmem:[%s968 + $0x8c] sm:$0xf]
        %v1461 = vld [vmem:[%s968 + $0x90] sm:$0xf]
        %v1462 = vld [vmem:[%s968 + $0x94] sm:$0xf]
        %v1463 = vld [vmem:[%s968 + $0x98] sm:$0xf]
        %v1464 = vld [vmem:[%s968 + $0x9c] sm:$0xf]
        %v1465 = vld [vmem:[%s968 + $0xa0] sm:$0xf]
        %v1466 = vld [vmem:[%s968 + $0xa4] sm:$0xf]
        %v1467 = vld [vmem:[%s968 + $0xa8] sm:$0xf]
        %v1468 = vld [vmem:[%s968 + $0xac] sm:$0xf]
        %v1469 = vld [vmem:[%s968 + $0xb0] sm:$0xf]
        %v1470 = vld [vmem:[%s968 + $0xb4] sm:$0xf]
        %v1471 = vld [vmem:[%s968 + $0xb8] sm:$0xf]
        %v1472 = vld [vmem:[%s968 + $0xbc] sm:$0xf]
        %v1473 = vld [vmem:[%s968 + $0xc0] sm:$0xf]
        %v1474 = vld [vmem:[%s968 + $0xc4] sm:$0xf]
        %v1475 = vld [vmem:[%s968 + $0xc8] sm:$0xf]
        %v1476 = vld [vmem:[%s968 + $0xcc] sm:$0xf]
        %v1477 = vld [vmem:[%s968 + $0xd0] sm:$0xf]
        %v1478 = vld [vmem:[%s968 + $0xd4] sm:$0xf]
        %v1479 = vld [vmem:[%s968 + $0xd8] sm:$0xf]
        %v1480 = vld [vmem:[%s968 + $0xdc] sm:$0xf]
        %v1481 = vld [vmem:[%s968 + $0xe0] sm:$0xf]
        %v1482 = vld [vmem:[%s968 + $0xe4] sm:$0xf]
        %v1483 = vld [vmem:[%s968 + $0xe8] sm:$0xf]
        %v1484 = vld [vmem:[%s968 + $0xec] sm:$0xf]
        %v1485 = vld [vmem:[%s968 + $0xf0] sm:$0xf]
        %v1486 = vld [vmem:[%s968 + $0xf4] sm:$0xf]
        %v1487 = vld [vmem:[%s968 + $0xf8] sm:$0xf]
        %v1488 = vld [vmem:[%s968 + $0xfc] sm:$0xf]
        %v1489 = vld [vmem:[%s968 + $0x100] sm:$0xf]
        %v1490 = vld [vmem:[%s968 + $0x104] sm:$0xf]
        %v1491 = vld [vmem:[%s968 + $0x108] sm:$0xf]
        %v1492 = vld [vmem:[%s968 + $0x10c] sm:$0xf]
        %v1493 = vld [vmem:[%s968 + $0x110] sm:$0xf]
        %v1494 = vld [vmem:[%s968 + $0x114] sm:$0xf]
        %v1495 = vld [vmem:[%s968 + $0x118] sm:$0xf]
        %v1496 = vld [vmem:[%s968 + $0x11c] sm:$0xf]
        %v1497 = vld [vmem:[%s968 + $0x120] sm:$0xf]
        %v1498 = vld [vmem:[%s968 + $0x124] sm:$0xf]
        %v1499 = vld [vmem:[%s968 + $0x128] sm:$0xf]
        %v1500 = vld [vmem:[%s968 + $0x12c] sm:$0xf]
        %v1501 = vld [vmem:[%s968 + $0x130] sm:$0xf]
        %v1502 = vld [vmem:[%s968 + $0x134] sm:$0xf]
        %v1503 = vld [vmem:[%s968 + $0x138] sm:$0xf]
        %v1504 = vld [vmem:[%s968 + $0x13c] sm:$0xf]
        %v1505 = vld [vmem:[%s968 + $0x140] sm:$0xf]
        %v1506 = vld [vmem:[%s968 + $0x144] sm:$0xf]
        %v1507 = vld [vmem:[%s968 + $0x148] sm:$0xf]
        %v1508 = vld [vmem:[%s968 + $0x14c] sm:$0xf]
        %v1509 = vld [vmem:[%s968 + $0x150] sm:$0xf]
        %v1510 = vld [vmem:[%s968 + $0x154] sm:$0xf]
        %v1511 = vld [vmem:[%s968 + $0x158] sm:$0xf]
        %v1512 = vld [vmem:[%s968 + $0x15c] sm:$0xf]
        %v1513 = vld [vmem:[%s968 + $0x160] sm:$0xf]
        %v1514 = vld [vmem:[%s968 + $0x164] sm:$0xf]
        %v1515 = vld [vmem:[%s968 + $0x168] sm:$0xf]
        %v1516 = vld [vmem:[%s968 + $0x16c] sm:$0xf]
        %v1517 = vld [vmem:[%s968 + $0x170] sm:$0xf]
        %v1518 = vld [vmem:[%s968 + $0x174] sm:$0xf]
        %v1519 = vld [vmem:[%s968 + $0x178] sm:$0xf]
        %v1520 = vld [vmem:[%s968 + $0x17c] sm:$0xf]
        %v1521 = vld [vmem:[%s968 + $0x180] sm:$0xf]
        %v1522 = vld [vmem:[%s968 + $0x184] sm:$0xf]
        %v1523 = vld [vmem:[%s968 + $0x188] sm:$0xf]
        %v1524 = vld [vmem:[%s968 + $0x18c] sm:$0xf]
        %v1525 = vld [vmem:[%s968 + $0x190] sm:$0xf]
        %v1526 = vld [vmem:[%s968 + $0x194] sm:$0xf]
        %v1527 = vld [vmem:[%s968 + $0x198] sm:$0xf]
        %v1528 = vld [vmem:[%s968 + $0x19c] sm:$0xf]
        %v1529 = vld [vmem:[%s968 + $0x1a0] sm:$0xf]
        %v1530 = vld [vmem:[%s968 + $0x1a4] sm:$0xf]
        %v1531 = vld [vmem:[%s968 + $0x1a8] sm:$0xf]
        %v1532 = vld [vmem:[%s968 + $0x1ac] sm:$0xf]
        %v1533 = vld [vmem:[%s968 + $0x1b0] sm:$0xf]
        %v1534 = vld [vmem:[%s968 + $0x1b4] sm:$0xf]
        %v1535 = vld [vmem:[%s968 + $0x1b8] sm:$0xf]
        %v1536 = vld [vmem:[%s968 + $0x1bc] sm:$0xf]
        %v1537 = vld [vmem:[%s968 + $0x1c0] sm:$0xf]
        %v1538 = vld [vmem:[%s968 + $0x1c4] sm:$0xf]
        %v1539 = vld [vmem:[%s968 + $0x1c8] sm:$0xf]
        %v1540 = vld [vmem:[%s968 + $0x1cc] sm:$0xf]
        %v1541 = vld [vmem:[%s968 + $0x1d0] sm:$0xf]
        %v1542 = vld [vmem:[%s968 + $0x1d4] sm:$0xf]
        %v1543 = vld [vmem:[%s968 + $0x1d8] sm:$0xf]
        %v1544 = vld [vmem:[%s968 + $0x1dc] sm:$0xf]
        %v1545 = vld [vmem:[%s968 + $0x1e0] sm:$0xf]
        %v1546 = vld [vmem:[%s968 + $0x1e4] sm:$0xf]
        %v1547 = vld [vmem:[%s968 + $0x1e8] sm:$0xf]
        %v1548 = vld [vmem:[%s968 + $0x1ec] sm:$0xf]
        %v1549 = vld [vmem:[%s968 + $0x1f0] sm:$0xf]
        %v1550 = vld [vmem:[%s968 + $0x1f4] sm:$0xf]
        %v1551 = vld [vmem:[%s968 + $0x1f8] sm:$0xf]
        %v1552 = vld [vmem:[%s968 + $0x1fc] sm:$0xf]
        %1554 = vset.pattern.permute.xlu0 0
        %1555 = vperm.xlu0 %1554, %v1425
        %v1556 = vpop.permute.xlu0 %1555
        %v1559 = vunpack.c.l.s4 839922192
        %v1560 = vunpack.c.0.s8 %v1559
        %v1561 = vlaneseq
        %v1562 = vshrl.u32 %v1561, 7
        %v1563 = vsub.s32 %v1560, %v1562
        %v1564 = vrot.slane %v1556, %v1563
        %1566 = vset.pattern.permute.xlu0 0
        %1567 = vperm.xlu0 %1566, %v1426
        %v1568 = vpop.permute.xlu0 %1567
        %v1571 = vunpack.c.l.s4 839922192
        %v1572 = vunpack.c.0.s8 %v1571
        %v1573 = vlaneseq
        %v1574 = vshrl.u32 %v1573, 7
        %v1575 = vsub.s32 %v1572, %v1574
        %v1576 = vrot.slane %v1568, %v1575
        %1578 = vset.pattern.permute.xlu0 0
        %1579 = vperm.xlu0 %1578, %v1427
        %v1580 = vpop.permute.xlu0 %1579
        %v1583 = vunpack.c.l.s4 839922192
        %v1584 = vunpack.c.0.s8 %v1583
        %v1585 = vlaneseq
        %v1586 = vshrl.u32 %v1585, 7
        %v1587 = vsub.s32 %v1584, %v1586
        %v1588 = vrot.slane %v1580, %v1587
        %1590 = vset.pattern.permute.xlu0 0
        %1591 = vperm.xlu0 %1590, %v1428
        %v1592 = vpop.permute.xlu0 %1591
        %v1595 = vunpack.c.l.s4 839922192
        %v1596 = vunpack.c.0.s8 %v1595
        %v1597 = vlaneseq
        %v1598 = vshrl.u32 %v1597, 7
        %v1599 = vsub.s32 %v1596, %v1598
        %v1600 = vrot.slane %v1592, %v1599
        %1602 = vset.pattern.permute.xlu0 0
        %1603 = vperm.xlu0 %1602, %v1429
        %v1604 = vpop.permute.xlu0 %1603
        %v1607 = vunpack.c.l.s4 839922192
        %v1608 = vunpack.c.0.s8 %v1607
        %v1609 = vlaneseq
        %v1610 = vshrl.u32 %v1609, 7
        %v1611 = vsub.s32 %v1608, %v1610
        %v1612 = vrot.slane %v1604, %v1611
        %1614 = vset.pattern.permute.xlu0 0
        %1615 = vperm.xlu0 %1614, %v1430
        %v1616 = vpop.permute.xlu0 %1615
        %v1619 = vunpack.c.l.s4 839922192
        %v1620 = vunpack.c.0.s8 %v1619
        %v1621 = vlaneseq
        %v1622 = vshrl.u32 %v1621, 7
        %v1623 = vsub.s32 %v1620, %v1622
        %v1624 = vrot.slane %v1616, %v1623
        %1626 = vset.pattern.permute.xlu0 0
        %1627 = vperm.xlu0 %1626, %v1431
        %v1628 = vpop.permute.xlu0 %1627
        %v1631 = vunpack.c.l.s4 839922192
        %v1632 = vunpack.c.0.s8 %v1631
        %v1633 = vlaneseq
        %v1634 = vshrl.u32 %v1633, 7
        %v1635 = vsub.s32 %v1632, %v1634
        %v1636 = vrot.slane %v1628, %v1635
        %1638 = vset.pattern.permute.xlu0 0
        %1639 = vperm.xlu0 %1638, %v1432
        %v1640 = vpop.permute.xlu0 %1639
        %v1643 = vunpack.c.l.s4 839922192
        %v1644 = vunpack.c.0.s8 %v1643
        %v1645 = vlaneseq
        %v1646 = vshrl.u32 %v1645, 7
        %v1647 = vsub.s32 %v1644, %v1646
        %v1648 = vrot.slane %v1640, %v1647
        %1650 = vset.pattern.permute.xlu0 0
        %1651 = vperm.xlu0 %1650, %v1433
        %v1652 = vpop.permute.xlu0 %1651
        %v1655 = vunpack.c.l.s4 839922192
        %v1656 = vunpack.c.0.s8 %v1655
        %v1657 = vlaneseq
        %v1658 = vshrl.u32 %v1657, 7
        %v1659 = vsub.s32 %v1656, %v1658
        %v1660 = vrot.slane %v1652, %v1659
        %1662 = vset.pattern.permute.xlu0 0
        %1663 = vperm.xlu0 %1662, %v1434
        %v1664 = vpop.permute.xlu0 %1663
        %v1667 = vunpack.c.l.s4 839922192
        %v1668 = vunpack.c.0.s8 %v1667
        %v1669 = vlaneseq
        %v1670 = vshrl.u32 %v1669, 7
        %v1671 = vsub.s32 %v1668, %v1670
        %v1672 = vrot.slane %v1664, %v1671
        %1674 = vset.pattern.permute.xlu0 0
        %1675 = vperm.xlu0 %1674, %v1435
        %v1676 = vpop.permute.xlu0 %1675
        %v1679 = vunpack.c.l.s4 839922192
        %v1680 = vunpack.c.0.s8 %v1679
        %v1681 = vlaneseq
        %v1682 = vshrl.u32 %v1681, 7
        %v1683 = vsub.s32 %v1680, %v1682
        %v1684 = vrot.slane %v1676, %v1683
        %1686 = vset.pattern.permute.xlu0 0
        %1687 = vperm.xlu0 %1686, %v1436
        %v1688 = vpop.permute.xlu0 %1687
        %v1691 = vunpack.c.l.s4 839922192
        %v1692 = vunpack.c.0.s8 %v1691
        %v1693 = vlaneseq
        %v1694 = vshrl.u32 %v1693, 7
        %v1695 = vsub.s32 %v1692, %v1694
        %v1696 = vrot.slane %v1688, %v1695
        %1698 = vset.pattern.permute.xlu0 0
        %1699 = vperm.xlu0 %1698, %v1437
        %v1700 = vpop.permute.xlu0 %1699
        %v1703 = vunpack.c.l.s4 839922192
        %v1704 = vunpack.c.0.s8 %v1703
        %v1705 = vlaneseq
        %v1706 = vshrl.u32 %v1705, 7
        %v1707 = vsub.s32 %v1704, %v1706
        %v1708 = vrot.slane %v1700, %v1707
        %1710 = vset.pattern.permute.xlu0 0
        %1711 = vperm.xlu0 %1710, %v1438
        %v1712 = vpop.permute.xlu0 %1711
        %v1715 = vunpack.c.l.s4 839922192
        %v1716 = vunpack.c.0.s8 %v1715
        %v1717 = vlaneseq
        %v1718 = vshrl.u32 %v1717, 7
        %v1719 = vsub.s32 %v1716, %v1718
        %v1720 = vrot.slane %v1712, %v1719
        %1722 = vset.pattern.permute.xlu0 0
        %1723 = vperm.xlu0 %1722, %v1439
        %v1724 = vpop.permute.xlu0 %1723
        %v1727 = vunpack.c.l.s4 839922192
        %v1728 = vunpack.c.0.s8 %v1727
        %v1729 = vlaneseq
        %v1730 = vshrl.u32 %v1729, 7
        %v1731 = vsub.s32 %v1728, %v1730
        %v1732 = vrot.slane %v1724, %v1731
        %1734 = vset.pattern.permute.xlu0 0
        %1735 = vperm.xlu0 %1734, %v1440
        %v1736 = vpop.permute.xlu0 %1735
        %v1739 = vunpack.c.l.s4 839922192
        %v1740 = vunpack.c.0.s8 %v1739
        %v1741 = vlaneseq
        %v1742 = vshrl.u32 %v1741, 7
        %v1743 = vsub.s32 %v1740, %v1742
        %v1744 = vrot.slane %v1736, %v1743
        %1746 = vset.pattern.permute.xlu0 0
        %1747 = vperm.xlu0 %1746, %v1441
        %v1748 = vpop.permute.xlu0 %1747
        %v1751 = vunpack.c.l.s4 839922192
        %v1752 = vunpack.c.0.s8 %v1751
        %v1753 = vlaneseq
        %v1754 = vshrl.u32 %v1753, 7
        %v1755 = vsub.s32 %v1752, %v1754
        %v1756 = vrot.slane %v1748, %v1755
        %1758 = vset.pattern.permute.xlu0 0
        %1759 = vperm.xlu0 %1758, %v1442
        %v1760 = vpop.permute.xlu0 %1759
        %v1763 = vunpack.c.l.s4 839922192
        %v1764 = vunpack.c.0.s8 %v1763
        %v1765 = vlaneseq
        %v1766 = vshrl.u32 %v1765, 7
        %v1767 = vsub.s32 %v1764, %v1766
        %v1768 = vrot.slane %v1760, %v1767
        %1770 = vset.pattern.permute.xlu0 0
        %1771 = vperm.xlu0 %1770, %v1443
        %v1772 = vpop.permute.xlu0 %1771
        %v1775 = vunpack.c.l.s4 839922192
        %v1776 = vunpack.c.0.s8 %v1775
        %v1777 = vlaneseq
        %v1778 = vshrl.u32 %v1777, 7
        %v1779 = vsub.s32 %v1776, %v1778
        %v1780 = vrot.slane %v1772, %v1779
        %1782 = vset.pattern.permute.xlu0 0
        %1783 = vperm.xlu0 %1782, %v1444
        %v1784 = vpop.permute.xlu0 %1783
        %v1787 = vunpack.c.l.s4 839922192
        %v1788 = vunpack.c.0.s8 %v1787
        %v1789 = vlaneseq
        %v1790 = vshrl.u32 %v1789, 7
        %v1791 = vsub.s32 %v1788, %v1790
        %v1792 = vrot.slane %v1784, %v1791
        %1794 = vset.pattern.permute.xlu0 0
        %1795 = vperm.xlu0 %1794, %v1445
        %v1796 = vpop.permute.xlu0 %1795
        %v1799 = vunpack.c.l.s4 839922192
        %v1800 = vunpack.c.0.s8 %v1799
        %v1801 = vlaneseq
        %v1802 = vshrl.u32 %v1801, 7
        %v1803 = vsub.s32 %v1800, %v1802
        %v1804 = vrot.slane %v1796, %v1803
        %1806 = vset.pattern.permute.xlu0 0
        %1807 = vperm.xlu0 %1806, %v1446
        %v1808 = vpop.permute.xlu0 %1807
        %v1811 = vunpack.c.l.s4 839922192
        %v1812 = vunpack.c.0.s8 %v1811
        %v1813 = vlaneseq
        %v1814 = vshrl.u32 %v1813, 7
        %v1815 = vsub.s32 %v1812, %v1814
        %v1816 = vrot.slane %v1808, %v1815
        %1818 = vset.pattern.permute.xlu0 0
        %1819 = vperm.xlu0 %1818, %v1447
        %v1820 = vpop.permute.xlu0 %1819
        %v1823 = vunpack.c.l.s4 839922192
        %v1824 = vunpack.c.0.s8 %v1823
        %v1825 = vlaneseq
        %v1826 = vshrl.u32 %v1825, 7
        %v1827 = vsub.s32 %v1824, %v1826
        %v1828 = vrot.slane %v1820, %v1827
        %1830 = vset.pattern.permute.xlu0 0
        %1831 = vperm.xlu0 %1830, %v1448
        %v1832 = vpop.permute.xlu0 %1831
        %v1835 = vunpack.c.l.s4 839922192
        %v1836 = vunpack.c.0.s8 %v1835
        %v1837 = vlaneseq
        %v1838 = vshrl.u32 %v1837, 7
        %v1839 = vsub.s32 %v1836, %v1838
        %v1840 = vrot.slane %v1832, %v1839
        %1842 = vset.pattern.permute.xlu0 0
        %1843 = vperm.xlu0 %1842, %v1449
        %v1844 = vpop.permute.xlu0 %1843
        %v1847 = vunpack.c.l.s4 839922192
        %v1848 = vunpack.c.0.s8 %v1847
        %v1849 = vlaneseq
        %v1850 = vshrl.u32 %v1849, 7
        %v1851 = vsub.s32 %v1848, %v1850
        %v1852 = vrot.slane %v1844, %v1851
        %1854 = vset.pattern.permute.xlu0 0
        %1855 = vperm.xlu0 %1854, %v1450
        %v1856 = vpop.permute.xlu0 %1855
        %v1859 = vunpack.c.l.s4 839922192
        %v1860 = vunpack.c.0.s8 %v1859
        %v1861 = vlaneseq
        %v1862 = vshrl.u32 %v1861, 7
        %v1863 = vsub.s32 %v1860, %v1862
        %v1864 = vrot.slane %v1856, %v1863
        %1866 = vset.pattern.permute.xlu0 0
        %1867 = vperm.xlu0 %1866, %v1451
        %v1868 = vpop.permute.xlu0 %1867
        %v1871 = vunpack.c.l.s4 839922192
        %v1872 = vunpack.c.0.s8 %v1871
        %v1873 = vlaneseq
        %v1874 = vshrl.u32 %v1873, 7
        %v1875 = vsub.s32 %v1872, %v1874
        %v1876 = vrot.slane %v1868, %v1875
        %1878 = vset.pattern.permute.xlu0 0
        %1879 = vperm.xlu0 %1878, %v1452
        %v1880 = vpop.permute.xlu0 %1879
        %v1883 = vunpack.c.l.s4 839922192
        %v1884 = vunpack.c.0.s8 %v1883
        %v1885 = vlaneseq
        %v1886 = vshrl.u32 %v1885, 7
        %v1887 = vsub.s32 %v1884, %v1886
        %v1888 = vrot.slane %v1880, %v1887
        %1890 = vset.pattern.permute.xlu0 0
        %1891 = vperm.xlu0 %1890, %v1453
        %v1892 = vpop.permute.xlu0 %1891
        %v1895 = vunpack.c.l.s4 839922192
        %v1896 = vunpack.c.0.s8 %v1895
        %v1897 = vlaneseq
        %v1898 = vshrl.u32 %v1897, 7
        %v1899 = vsub.s32 %v1896, %v1898
        %v1900 = vrot.slane %v1892, %v1899
        %1902 = vset.pattern.permute.xlu0 0
        %1903 = vperm.xlu0 %1902, %v1454
        %v1904 = vpop.permute.xlu0 %1903
        %v1907 = vunpack.c.l.s4 839922192
        %v1908 = vunpack.c.0.s8 %v1907
        %v1909 = vlaneseq
        %v1910 = vshrl.u32 %v1909, 7
        %v1911 = vsub.s32 %v1908, %v1910
        %v1912 = vrot.slane %v1904, %v1911
        %1914 = vset.pattern.permute.xlu0 0
        %1915 = vperm.xlu0 %1914, %v1455
        %v1916 = vpop.permute.xlu0 %1915
        %v1919 = vunpack.c.l.s4 839922192
        %v1920 = vunpack.c.0.s8 %v1919
        %v1921 = vlaneseq
        %v1922 = vshrl.u32 %v1921, 7
        %v1923 = vsub.s32 %v1920, %v1922
        %v1924 = vrot.slane %v1916, %v1923
        %1926 = vset.pattern.permute.xlu0 0
        %1927 = vperm.xlu0 %1926, %v1456
        %v1928 = vpop.permute.xlu0 %1927
        %v1931 = vunpack.c.l.s4 839922192
        %v1932 = vunpack.c.0.s8 %v1931
        %v1933 = vlaneseq
        %v1934 = vshrl.u32 %v1933, 7
        %v1935 = vsub.s32 %v1932, %v1934
        %v1936 = vrot.slane %v1928, %v1935
        %1938 = vset.pattern.permute.xlu0 0
        %1939 = vperm.xlu0 %1938, %v1457
        %v1940 = vpop.permute.xlu0 %1939
        %v1943 = vunpack.c.l.s4 839922192
        %v1944 = vunpack.c.0.s8 %v1943
        %v1945 = vlaneseq
        %v1946 = vshrl.u32 %v1945, 7
        %v1947 = vsub.s32 %v1944, %v1946
        %v1948 = vrot.slane %v1940, %v1947
        %1950 = vset.pattern.permute.xlu0 0
        %1951 = vperm.xlu0 %1950, %v1458
        %v1952 = vpop.permute.xlu0 %1951
        %v1955 = vunpack.c.l.s4 839922192
        %v1956 = vunpack.c.0.s8 %v1955
        %v1957 = vlaneseq
        %v1958 = vshrl.u32 %v1957, 7
        %v1959 = vsub.s32 %v1956, %v1958
        %v1960 = vrot.slane %v1952, %v1959
        %1962 = vset.pattern.permute.xlu0 0
        %1963 = vperm.xlu0 %1962, %v1459
        %v1964 = vpop.permute.xlu0 %1963
        %v1967 = vunpack.c.l.s4 839922192
        %v1968 = vunpack.c.0.s8 %v1967
        %v1969 = vlaneseq
        %v1970 = vshrl.u32 %v1969, 7
        %v1971 = vsub.s32 %v1968, %v1970
        %v1972 = vrot.slane %v1964, %v1971
        %1974 = vset.pattern.permute.xlu0 0
        %1975 = vperm.xlu0 %1974, %v1460
        %v1976 = vpop.permute.xlu0 %1975
        %v1979 = vunpack.c.l.s4 839922192
        %v1980 = vunpack.c.0.s8 %v1979
        %v1981 = vlaneseq
        %v1982 = vshrl.u32 %v1981, 7
        %v1983 = vsub.s32 %v1980, %v1982
        %v1984 = vrot.slane %v1976, %v1983
        %1986 = vset.pattern.permute.xlu0 0
        %1987 = vperm.xlu0 %1986, %v1461
        %v1988 = vpop.permute.xlu0 %1987
        %v1991 = vunpack.c.l.s4 839922192
        %v1992 = vunpack.c.0.s8 %v1991
        %v1993 = vlaneseq
        %v1994 = vshrl.u32 %v1993, 7
        %v1995 = vsub.s32 %v1992, %v1994
        %v1996 = vrot.slane %v1988, %v1995
        %1998 = vset.pattern.permute.xlu0 0
        %1999 = vperm.xlu0 %1998, %v1462
        %v2000 = vpop.permute.xlu0 %1999
        %v2003 = vunpack.c.l.s4 839922192
        %v2004 = vunpack.c.0.s8 %v2003
        %v2005 = vlaneseq
        %v2006 = vshrl.u32 %v2005, 7
        %v2007 = vsub.s32 %v2004, %v2006
        %v2008 = vrot.slane %v2000, %v2007
        %2010 = vset.pattern.permute.xlu0 0
        %2011 = vperm.xlu0 %2010, %v1463
        %v2012 = vpop.permute.xlu0 %2011
        %v2015 = vunpack.c.l.s4 839922192
        %v2016 = vunpack.c.0.s8 %v2015
        %v2017 = vlaneseq
        %v2018 = vshrl.u32 %v2017, 7
        %v2019 = vsub.s32 %v2016, %v2018
        %v2020 = vrot.slane %v2012, %v2019
        %2022 = vset.pattern.permute.xlu0 0
        %2023 = vperm.xlu0 %2022, %v1464
        %v2024 = vpop.permute.xlu0 %2023
        %v2027 = vunpack.c.l.s4 839922192
        %v2028 = vunpack.c.0.s8 %v2027
        %v2029 = vlaneseq
        %v2030 = vshrl.u32 %v2029, 7
        %v2031 = vsub.s32 %v2028, %v2030
        %v2032 = vrot.slane %v2024, %v2031
        %2034 = vset.pattern.permute.xlu0 0
        %2035 = vperm.xlu0 %2034, %v1465
        %v2036 = vpop.permute.xlu0 %2035
        %v2039 = vunpack.c.l.s4 839922192
        %v2040 = vunpack.c.0.s8 %v2039
        %v2041 = vlaneseq
        %v2042 = vshrl.u32 %v2041, 7
        %v2043 = vsub.s32 %v2040, %v2042
        %v2044 = vrot.slane %v2036, %v2043
        %2046 = vset.pattern.permute.xlu0 0
        %2047 = vperm.xlu0 %2046, %v1466
        %v2048 = vpop.permute.xlu0 %2047
        %v2051 = vunpack.c.l.s4 839922192
        %v2052 = vunpack.c.0.s8 %v2051
        %v2053 = vlaneseq
        %v2054 = vshrl.u32 %v2053, 7
        %v2055 = vsub.s32 %v2052, %v2054
        %v2056 = vrot.slane %v2048, %v2055
        %2058 = vset.pattern.permute.xlu0 0
        %2059 = vperm.xlu0 %2058, %v1467
        %v2060 = vpop.permute.xlu0 %2059
        %v2063 = vunpack.c.l.s4 839922192
        %v2064 = vunpack.c.0.s8 %v2063
        %v2065 = vlaneseq
        %v2066 = vshrl.u32 %v2065, 7
        %v2067 = vsub.s32 %v2064, %v2066
        %v2068 = vrot.slane %v2060, %v2067
        %2070 = vset.pattern.permute.xlu0 0
        %2071 = vperm.xlu0 %2070, %v1468
        %v2072 = vpop.permute.xlu0 %2071
        %v2075 = vunpack.c.l.s4 839922192
        %v2076 = vunpack.c.0.s8 %v2075
        %v2077 = vlaneseq
        %v2078 = vshrl.u32 %v2077, 7
        %v2079 = vsub.s32 %v2076, %v2078
        %v2080 = vrot.slane %v2072, %v2079
        %2082 = vset.pattern.permute.xlu0 0
        %2083 = vperm.xlu0 %2082, %v1469
        %v2084 = vpop.permute.xlu0 %2083
        %v2087 = vunpack.c.l.s4 839922192
        %v2088 = vunpack.c.0.s8 %v2087
        %v2089 = vlaneseq
        %v2090 = vshrl.u32 %v2089, 7
        %v2091 = vsub.s32 %v2088, %v2090
        %v2092 = vrot.slane %v2084, %v2091
        %2094 = vset.pattern.permute.xlu0 0
        %2095 = vperm.xlu0 %2094, %v1470
        %v2096 = vpop.permute.xlu0 %2095
        %v2099 = vunpack.c.l.s4 839922192
        %v2100 = vunpack.c.0.s8 %v2099
        %v2101 = vlaneseq
        %v2102 = vshrl.u32 %v2101, 7
        %v2103 = vsub.s32 %v2100, %v2102
        %v2104 = vrot.slane %v2096, %v2103
        %2106 = vset.pattern.permute.xlu0 0
        %2107 = vperm.xlu0 %2106, %v1471
        %v2108 = vpop.permute.xlu0 %2107
        %v2111 = vunpack.c.l.s4 839922192
        %v2112 = vunpack.c.0.s8 %v2111
        %v2113 = vlaneseq
        %v2114 = vshrl.u32 %v2113, 7
        %v2115 = vsub.s32 %v2112, %v2114
        %v2116 = vrot.slane %v2108, %v2115
        %2118 = vset.pattern.permute.xlu0 0
        %2119 = vperm.xlu0 %2118, %v1472
        %v2120 = vpop.permute.xlu0 %2119
        %v2123 = vunpack.c.l.s4 839922192
        %v2124 = vunpack.c.0.s8 %v2123
        %v2125 = vlaneseq
        %v2126 = vshrl.u32 %v2125, 7
        %v2127 = vsub.s32 %v2124, %v2126
        %v2128 = vrot.slane %v2120, %v2127
        %2130 = vset.pattern.permute.xlu0 0
        %2131 = vperm.xlu0 %2130, %v1473
        %v2132 = vpop.permute.xlu0 %2131
        %v2135 = vunpack.c.l.s4 839922192
        %v2136 = vunpack.c.0.s8 %v2135
        %v2137 = vlaneseq
        %v2138 = vshrl.u32 %v2137, 7
        %v2139 = vsub.s32 %v2136, %v2138
        %v2140 = vrot.slane %v2132, %v2139
        %2142 = vset.pattern.permute.xlu0 0
        %2143 = vperm.xlu0 %2142, %v1474
        %v2144 = vpop.permute.xlu0 %2143
        %v2147 = vunpack.c.l.s4 839922192
        %v2148 = vunpack.c.0.s8 %v2147
        %v2149 = vlaneseq
        %v2150 = vshrl.u32 %v2149, 7
        %v2151 = vsub.s32 %v2148, %v2150
        %v2152 = vrot.slane %v2144, %v2151
        %2154 = vset.pattern.permute.xlu0 0
        %2155 = vperm.xlu0 %2154, %v1475
        %v2156 = vpop.permute.xlu0 %2155
        %v2159 = vunpack.c.l.s4 839922192
        %v2160 = vunpack.c.0.s8 %v2159
        %v2161 = vlaneseq
        %v2162 = vshrl.u32 %v2161, 7
        %v2163 = vsub.s32 %v2160, %v2162
        %v2164 = vrot.slane %v2156, %v2163
        %2166 = vset.pattern.permute.xlu0 0
        %2167 = vperm.xlu0 %2166, %v1476
        %v2168 = vpop.permute.xlu0 %2167
        %v2171 = vunpack.c.l.s4 839922192
        %v2172 = vunpack.c.0.s8 %v2171
        %v2173 = vlaneseq
        %v2174 = vshrl.u32 %v2173, 7
        %v2175 = vsub.s32 %v2172, %v2174
        %v2176 = vrot.slane %v2168, %v2175
        %2178 = vset.pattern.permute.xlu0 0
        %2179 = vperm.xlu0 %2178, %v1477
        %v2180 = vpop.permute.xlu0 %2179
        %v2183 = vunpack.c.l.s4 839922192
        %v2184 = vunpack.c.0.s8 %v2183
        %v2185 = vlaneseq
        %v2186 = vshrl.u32 %v2185, 7
        %v2187 = vsub.s32 %v2184, %v2186
        %v2188 = vrot.slane %v2180, %v2187
        %2190 = vset.pattern.permute.xlu0 0
        %2191 = vperm.xlu0 %2190, %v1478
        %v2192 = vpop.permute.xlu0 %2191
        %v2195 = vunpack.c.l.s4 839922192
        %v2196 = vunpack.c.0.s8 %v2195
        %v2197 = vlaneseq
        %v2198 = vshrl.u32 %v2197, 7
        %v2199 = vsub.s32 %v2196, %v2198
        %v2200 = vrot.slane %v2192, %v2199
        %2202 = vset.pattern.permute.xlu0 0
        %2203 = vperm.xlu0 %2202, %v1479
        %v2204 = vpop.permute.xlu0 %2203
        %v2207 = vunpack.c.l.s4 839922192
        %v2208 = vunpack.c.0.s8 %v2207
        %v2209 = vlaneseq
        %v2210 = vshrl.u32 %v2209, 7
        %v2211 = vsub.s32 %v2208, %v2210
        %v2212 = vrot.slane %v2204, %v2211
        %2214 = vset.pattern.permute.xlu0 0
        %2215 = vperm.xlu0 %2214, %v1480
        %v2216 = vpop.permute.xlu0 %2215
        %v2219 = vunpack.c.l.s4 839922192
        %v2220 = vunpack.c.0.s8 %v2219
        %v2221 = vlaneseq
        %v2222 = vshrl.u32 %v2221, 7
        %v2223 = vsub.s32 %v2220, %v2222
        %v2224 = vrot.slane %v2216, %v2223
        %2226 = vset.pattern.permute.xlu0 0
        %2227 = vperm.xlu0 %2226, %v1481
        %v2228 = vpop.permute.xlu0 %2227
        %v2231 = vunpack.c.l.s4 839922192
        %v2232 = vunpack.c.0.s8 %v2231
        %v2233 = vlaneseq
        %v2234 = vshrl.u32 %v2233, 7
        %v2235 = vsub.s32 %v2232, %v2234
        %v2236 = vrot.slane %v2228, %v2235
        %2238 = vset.pattern.permute.xlu0 0
        %2239 = vperm.xlu0 %2238, %v1482
        %v2240 = vpop.permute.xlu0 %2239
        %v2243 = vunpack.c.l.s4 839922192
        %v2244 = vunpack.c.0.s8 %v2243
        %v2245 = vlaneseq
        %v2246 = vshrl.u32 %v2245, 7
        %v2247 = vsub.s32 %v2244, %v2246
        %v2248 = vrot.slane %v2240, %v2247
        %2250 = vset.pattern.permute.xlu0 0
        %2251 = vperm.xlu0 %2250, %v1483
        %v2252 = vpop.permute.xlu0 %2251
        %v2255 = vunpack.c.l.s4 839922192
        %v2256 = vunpack.c.0.s8 %v2255
        %v2257 = vlaneseq
        %v2258 = vshrl.u32 %v2257, 7
        %v2259 = vsub.s32 %v2256, %v2258
        %v2260 = vrot.slane %v2252, %v2259
        %2262 = vset.pattern.permute.xlu0 0
        %2263 = vperm.xlu0 %2262, %v1484
        %v2264 = vpop.permute.xlu0 %2263
        %v2267 = vunpack.c.l.s4 839922192
        %v2268 = vunpack.c.0.s8 %v2267
        %v2269 = vlaneseq
        %v2270 = vshrl.u32 %v2269, 7
        %v2271 = vsub.s32 %v2268, %v2270
        %v2272 = vrot.slane %v2264, %v2271
        %2274 = vset.pattern.permute.xlu0 0
        %2275 = vperm.xlu0 %2274, %v1485
        %v2276 = vpop.permute.xlu0 %2275
        %v2279 = vunpack.c.l.s4 839922192
        %v2280 = vunpack.c.0.s8 %v2279
        %v2281 = vlaneseq
        %v2282 = vshrl.u32 %v2281, 7
        %v2283 = vsub.s32 %v2280, %v2282
        %v2284 = vrot.slane %v2276, %v2283
        %2286 = vset.pattern.permute.xlu0 0
        %2287 = vperm.xlu0 %2286, %v1486
        %v2288 = vpop.permute.xlu0 %2287
        %v2291 = vunpack.c.l.s4 839922192
        %v2292 = vunpack.c.0.s8 %v2291
        %v2293 = vlaneseq
        %v2294 = vshrl.u32 %v2293, 7
        %v2295 = vsub.s32 %v2292, %v2294
        %v2296 = vrot.slane %v2288, %v2295
        %2298 = vset.pattern.permute.xlu0 0
        %2299 = vperm.xlu0 %2298, %v1487
        %v2300 = vpop.permute.xlu0 %2299
        %v2303 = vunpack.c.l.s4 839922192
        %v2304 = vunpack.c.0.s8 %v2303
        %v2305 = vlaneseq
        %v2306 = vshrl.u32 %v2305, 7
        %v2307 = vsub.s32 %v2304, %v2306
        %v2308 = vrot.slane %v2300, %v2307
        %2310 = vset.pattern.permute.xlu0 0
        %2311 = vperm.xlu0 %2310, %v1488
        %v2312 = vpop.permute.xlu0 %2311
        %v2315 = vunpack.c.l.s4 839922192
        %v2316 = vunpack.c.0.s8 %v2315
        %v2317 = vlaneseq
        %v2318 = vshrl.u32 %v2317, 7
        %v2319 = vsub.s32 %v2316, %v2318
        %v2320 = vrot.slane %v2312, %v2319
        %2322 = vset.pattern.permute.xlu0 0
        %2323 = vperm.xlu0 %2322, %v1489
        %v2324 = vpop.permute.xlu0 %2323
        %v2327 = vunpack.c.l.s4 839922192
        %v2328 = vunpack.c.0.s8 %v2327
        %v2329 = vlaneseq
        %v2330 = vshrl.u32 %v2329, 7
        %v2331 = vsub.s32 %v2328, %v2330
        %v2332 = vrot.slane %v2324, %v2331
        %2334 = vset.pattern.permute.xlu0 0
        %2335 = vperm.xlu0 %2334, %v1490
        %v2336 = vpop.permute.xlu0 %2335
        %v2339 = vunpack.c.l.s4 839922192
        %v2340 = vunpack.c.0.s8 %v2339
        %v2341 = vlaneseq
        %v2342 = vshrl.u32 %v2341, 7
        %v2343 = vsub.s32 %v2340, %v2342
        %v2344 = vrot.slane %v2336, %v2343
        %2346 = vset.pattern.permute.xlu0 0
        %2347 = vperm.xlu0 %2346, %v1491
        %v2348 = vpop.permute.xlu0 %2347
        %v2351 = vunpack.c.l.s4 839922192
        %v2352 = vunpack.c.0.s8 %v2351
        %v2353 = vlaneseq
        %v2354 = vshrl.u32 %v2353, 7
        %v2355 = vsub.s32 %v2352, %v2354
        %v2356 = vrot.slane %v2348, %v2355
        %2358 = vset.pattern.permute.xlu0 0
        %2359 = vperm.xlu0 %2358, %v1492
        %v2360 = vpop.permute.xlu0 %2359
        %v2363 = vunpack.c.l.s4 839922192
        %v2364 = vunpack.c.0.s8 %v2363
        %v2365 = vlaneseq
        %v2366 = vshrl.u32 %v2365, 7
        %v2367 = vsub.s32 %v2364, %v2366
        %v2368 = vrot.slane %v2360, %v2367
        %2370 = vset.pattern.permute.xlu0 0
        %2371 = vperm.xlu0 %2370, %v1493
        %v2372 = vpop.permute.xlu0 %2371
        %v2375 = vunpack.c.l.s4 839922192
        %v2376 = vunpack.c.0.s8 %v2375
        %v2377 = vlaneseq
        %v2378 = vshrl.u32 %v2377, 7
        %v2379 = vsub.s32 %v2376, %v2378
        %v2380 = vrot.slane %v2372, %v2379
        %2382 = vset.pattern.permute.xlu0 0
        %2383 = vperm.xlu0 %2382, %v1494
        %v2384 = vpop.permute.xlu0 %2383
        %v2387 = vunpack.c.l.s4 839922192
        %v2388 = vunpack.c.0.s8 %v2387
        %v2389 = vlaneseq
        %v2390 = vshrl.u32 %v2389, 7
        %v2391 = vsub.s32 %v2388, %v2390
        %v2392 = vrot.slane %v2384, %v2391
        %2394 = vset.pattern.permute.xlu0 0
        %2395 = vperm.xlu0 %2394, %v1495
        %v2396 = vpop.permute.xlu0 %2395
        %v2399 = vunpack.c.l.s4 839922192
        %v2400 = vunpack.c.0.s8 %v2399
        %v2401 = vlaneseq
        %v2402 = vshrl.u32 %v2401, 7
        %v2403 = vsub.s32 %v2400, %v2402
        %v2404 = vrot.slane %v2396, %v2403
        %2406 = vset.pattern.permute.xlu0 0
        %2407 = vperm.xlu0 %2406, %v1496
        %v2408 = vpop.permute.xlu0 %2407
        %v2411 = vunpack.c.l.s4 839922192
        %v2412 = vunpack.c.0.s8 %v2411
        %v2413 = vlaneseq
        %v2414 = vshrl.u32 %v2413, 7
        %v2415 = vsub.s32 %v2412, %v2414
        %v2416 = vrot.slane %v2408, %v2415
        %2418 = vset.pattern.permute.xlu0 0
        %2419 = vperm.xlu0 %2418, %v1497
        %v2420 = vpop.permute.xlu0 %2419
        %v2423 = vunpack.c.l.s4 839922192
        %v2424 = vunpack.c.0.s8 %v2423
        %v2425 = vlaneseq
        %v2426 = vshrl.u32 %v2425, 7
        %v2427 = vsub.s32 %v2424, %v2426
        %v2428 = vrot.slane %v2420, %v2427
        %2430 = vset.pattern.permute.xlu0 0
        %2431 = vperm.xlu0 %2430, %v1498
        %v2432 = vpop.permute.xlu0 %2431
        %v2435 = vunpack.c.l.s4 839922192
        %v2436 = vunpack.c.0.s8 %v2435
        %v2437 = vlaneseq
        %v2438 = vshrl.u32 %v2437, 7
        %v2439 = vsub.s32 %v2436, %v2438
        %v2440 = vrot.slane %v2432, %v2439
        %2442 = vset.pattern.permute.xlu0 0
        %2443 = vperm.xlu0 %2442, %v1499
        %v2444 = vpop.permute.xlu0 %2443
        %v2447 = vunpack.c.l.s4 839922192
        %v2448 = vunpack.c.0.s8 %v2447
        %v2449 = vlaneseq
        %v2450 = vshrl.u32 %v2449, 7
        %v2451 = vsub.s32 %v2448, %v2450
        %v2452 = vrot.slane %v2444, %v2451
        %2454 = vset.pattern.permute.xlu0 0
        %2455 = vperm.xlu0 %2454, %v1500
        %v2456 = vpop.permute.xlu0 %2455
        %v2459 = vunpack.c.l.s4 839922192
        %v2460 = vunpack.c.0.s8 %v2459
        %v2461 = vlaneseq
        %v2462 = vshrl.u32 %v2461, 7
        %v2463 = vsub.s32 %v2460, %v2462
        %v2464 = vrot.slane %v2456, %v2463
        %2466 = vset.pattern.permute.xlu0 0
        %2467 = vperm.xlu0 %2466, %v1501
        %v2468 = vpop.permute.xlu0 %2467
        %v2471 = vunpack.c.l.s4 839922192
        %v2472 = vunpack.c.0.s8 %v2471
        %v2473 = vlaneseq
        %v2474 = vshrl.u32 %v2473, 7
        %v2475 = vsub.s32 %v2472, %v2474
        %v2476 = vrot.slane %v2468, %v2475
        %2478 = vset.pattern.permute.xlu0 0
        %2479 = vperm.xlu0 %2478, %v1502
        %v2480 = vpop.permute.xlu0 %2479
        %v2483 = vunpack.c.l.s4 839922192
        %v2484 = vunpack.c.0.s8 %v2483
        %v2485 = vlaneseq
        %v2486 = vshrl.u32 %v2485, 7
        %v2487 = vsub.s32 %v2484, %v2486
        %v2488 = vrot.slane %v2480, %v2487
        %2490 = vset.pattern.permute.xlu0 0
        %2491 = vperm.xlu0 %2490, %v1503
        %v2492 = vpop.permute.xlu0 %2491
        %v2495 = vunpack.c.l.s4 839922192
        %v2496 = vunpack.c.0.s8 %v2495
        %v2497 = vlaneseq
        %v2498 = vshrl.u32 %v2497, 7
        %v2499 = vsub.s32 %v2496, %v2498
        %v2500 = vrot.slane %v2492, %v2499
        %2502 = vset.pattern.permute.xlu0 0
        %2503 = vperm.xlu0 %2502, %v1504
        %v2504 = vpop.permute.xlu0 %2503
        %v2507 = vunpack.c.l.s4 839922192
        %v2508 = vunpack.c.0.s8 %v2507
        %v2509 = vlaneseq
        %v2510 = vshrl.u32 %v2509, 7
        %v2511 = vsub.s32 %v2508, %v2510
        %v2512 = vrot.slane %v2504, %v2511
        %2514 = vset.pattern.permute.xlu0 0
        %2515 = vperm.xlu0 %2514, %v1505
        %v2516 = vpop.permute.xlu0 %2515
        %v2519 = vunpack.c.l.s4 839922192
        %v2520 = vunpack.c.0.s8 %v2519
        %v2521 = vlaneseq
        %v2522 = vshrl.u32 %v2521, 7
        %v2523 = vsub.s32 %v2520, %v2522
        %v2524 = vrot.slane %v2516, %v2523
        %2526 = vset.pattern.permute.xlu0 0
        %2527 = vperm.xlu0 %2526, %v1506
        %v2528 = vpop.permute.xlu0 %2527
        %v2531 = vunpack.c.l.s4 839922192
        %v2532 = vunpack.c.0.s8 %v2531
        %v2533 = vlaneseq
        %v2534 = vshrl.u32 %v2533, 7
        %v2535 = vsub.s32 %v2532, %v2534
        %v2536 = vrot.slane %v2528, %v2535
        %2538 = vset.pattern.permute.xlu0 0
        %2539 = vperm.xlu0 %2538, %v1507
        %v2540 = vpop.permute.xlu0 %2539
        %v2543 = vunpack.c.l.s4 839922192
        %v2544 = vunpack.c.0.s8 %v2543
        %v2545 = vlaneseq
        %v2546 = vshrl.u32 %v2545, 7
        %v2547 = vsub.s32 %v2544, %v2546
        %v2548 = vrot.slane %v2540, %v2547
        %2550 = vset.pattern.permute.xlu0 0
        %2551 = vperm.xlu0 %2550, %v1508
        %v2552 = vpop.permute.xlu0 %2551
        %v2555 = vunpack.c.l.s4 839922192
        %v2556 = vunpack.c.0.s8 %v2555
        %v2557 = vlaneseq
        %v2558 = vshrl.u32 %v2557, 7
        %v2559 = vsub.s32 %v2556, %v2558
        %v2560 = vrot.slane %v2552, %v2559
        %2562 = vset.pattern.permute.xlu0 0
        %2563 = vperm.xlu0 %2562, %v1509
        %v2564 = vpop.permute.xlu0 %2563
        %v2567 = vunpack.c.l.s4 839922192
        %v2568 = vunpack.c.0.s8 %v2567
        %v2569 = vlaneseq
        %v2570 = vshrl.u32 %v2569, 7
        %v2571 = vsub.s32 %v2568, %v2570
        %v2572 = vrot.slane %v2564, %v2571
        %2574 = vset.pattern.permute.xlu0 0
        %2575 = vperm.xlu0 %2574, %v1510
        %v2576 = vpop.permute.xlu0 %2575
        %v2579 = vunpack.c.l.s4 839922192
        %v2580 = vunpack.c.0.s8 %v2579
        %v2581 = vlaneseq
        %v2582 = vshrl.u32 %v2581, 7
        %v2583 = vsub.s32 %v2580, %v2582
        %v2584 = vrot.slane %v2576, %v2583
        %2586 = vset.pattern.permute.xlu0 0
        %2587 = vperm.xlu0 %2586, %v1511
        %v2588 = vpop.permute.xlu0 %2587
        %v2591 = vunpack.c.l.s4 839922192
        %v2592 = vunpack.c.0.s8 %v2591
        %v2593 = vlaneseq
        %v2594 = vshrl.u32 %v2593, 7
        %v2595 = vsub.s32 %v2592, %v2594
        %v2596 = vrot.slane %v2588, %v2595
        %2598 = vset.pattern.permute.xlu0 0
        %2599 = vperm.xlu0 %2598, %v1512
        %v2600 = vpop.permute.xlu0 %2599
        %v2603 = vunpack.c.l.s4 839922192
        %v2604 = vunpack.c.0.s8 %v2603
        %v2605 = vlaneseq
        %v2606 = vshrl.u32 %v2605, 7
        %v2607 = vsub.s32 %v2604, %v2606
        %v2608 = vrot.slane %v2600, %v2607
        %2610 = vset.pattern.permute.xlu0 0
        %2611 = vperm.xlu0 %2610, %v1513
        %v2612 = vpop.permute.xlu0 %2611
        %v2615 = vunpack.c.l.s4 839922192
        %v2616 = vunpack.c.0.s8 %v2615
        %v2617 = vlaneseq
        %v2618 = vshrl.u32 %v2617, 7
        %v2619 = vsub.s32 %v2616, %v2618
        %v2620 = vrot.slane %v2612, %v2619
        %2622 = vset.pattern.permute.xlu0 0
        %2623 = vperm.xlu0 %2622, %v1514
        %v2624 = vpop.permute.xlu0 %2623
        %v2627 = vunpack.c.l.s4 839922192
        %v2628 = vunpack.c.0.s8 %v2627
        %v2629 = vlaneseq
        %v2630 = vshrl.u32 %v2629, 7
        %v2631 = vsub.s32 %v2628, %v2630
        %v2632 = vrot.slane %v2624, %v2631
        %2634 = vset.pattern.permute.xlu0 0
        %2635 = vperm.xlu0 %2634, %v1515
        %v2636 = vpop.permute.xlu0 %2635
        %v2639 = vunpack.c.l.s4 839922192
        %v2640 = vunpack.c.0.s8 %v2639
        %v2641 = vlaneseq
        %v2642 = vshrl.u32 %v2641, 7
        %v2643 = vsub.s32 %v2640, %v2642
        %v2644 = vrot.slane %v2636, %v2643
        %2646 = vset.pattern.permute.xlu0 0
        %2647 = vperm.xlu0 %2646, %v1516
        %v2648 = vpop.permute.xlu0 %2647
        %v2651 = vunpack.c.l.s4 839922192
        %v2652 = vunpack.c.0.s8 %v2651
        %v2653 = vlaneseq
        %v2654 = vshrl.u32 %v2653, 7
        %v2655 = vsub.s32 %v2652, %v2654
        %v2656 = vrot.slane %v2648, %v2655
        %2658 = vset.pattern.permute.xlu0 0
        %2659 = vperm.xlu0 %2658, %v1517
        %v2660 = vpop.permute.xlu0 %2659
        %v2663 = vunpack.c.l.s4 839922192
        %v2664 = vunpack.c.0.s8 %v2663
        %v2665 = vlaneseq
        %v2666 = vshrl.u32 %v2665, 7
        %v2667 = vsub.s32 %v2664, %v2666
        %v2668 = vrot.slane %v2660, %v2667
        %2670 = vset.pattern.permute.xlu0 0
        %2671 = vperm.xlu0 %2670, %v1518
        %v2672 = vpop.permute.xlu0 %2671
        %v2675 = vunpack.c.l.s4 839922192
        %v2676 = vunpack.c.0.s8 %v2675
        %v2677 = vlaneseq
        %v2678 = vshrl.u32 %v2677, 7
        %v2679 = vsub.s32 %v2676, %v2678
        %v2680 = vrot.slane %v2672, %v2679
        %2682 = vset.pattern.permute.xlu0 0
        %2683 = vperm.xlu0 %2682, %v1519
        %v2684 = vpop.permute.xlu0 %2683
        %v2687 = vunpack.c.l.s4 839922192
        %v2688 = vunpack.c.0.s8 %v2687
        %v2689 = vlaneseq
        %v2690 = vshrl.u32 %v2689, 7
        %v2691 = vsub.s32 %v2688, %v2690
        %v2692 = vrot.slane %v2684, %v2691
        %2694 = vset.pattern.permute.xlu0 0
        %2695 = vperm.xlu0 %2694, %v1520
        %v2696 = vpop.permute.xlu0 %2695
        %v2699 = vunpack.c.l.s4 839922192
        %v2700 = vunpack.c.0.s8 %v2699
        %v2701 = vlaneseq
        %v2702 = vshrl.u32 %v2701, 7
        %v2703 = vsub.s32 %v2700, %v2702
        %v2704 = vrot.slane %v2696, %v2703
        %2706 = vset.pattern.permute.xlu0 0
        %2707 = vperm.xlu0 %2706, %v1521
        %v2708 = vpop.permute.xlu0 %2707
        %v2711 = vunpack.c.l.s4 839922192
        %v2712 = vunpack.c.0.s8 %v2711
        %v2713 = vlaneseq
        %v2714 = vshrl.u32 %v2713, 7
        %v2715 = vsub.s32 %v2712, %v2714
        %v2716 = vrot.slane %v2708, %v2715
        %2718 = vset.pattern.permute.xlu0 0
        %2719 = vperm.xlu0 %2718, %v1522
        %v2720 = vpop.permute.xlu0 %2719
        %v2723 = vunpack.c.l.s4 839922192
        %v2724 = vunpack.c.0.s8 %v2723
        %v2725 = vlaneseq
        %v2726 = vshrl.u32 %v2725, 7
        %v2727 = vsub.s32 %v2724, %v2726
        %v2728 = vrot.slane %v2720, %v2727
        %2730 = vset.pattern.permute.xlu0 0
        %2731 = vperm.xlu0 %2730, %v1523
        %v2732 = vpop.permute.xlu0 %2731
        %v2735 = vunpack.c.l.s4 839922192
        %v2736 = vunpack.c.0.s8 %v2735
        %v2737 = vlaneseq
        %v2738 = vshrl.u32 %v2737, 7
        %v2739 = vsub.s32 %v2736, %v2738
        %v2740 = vrot.slane %v2732, %v2739
        %2742 = vset.pattern.permute.xlu0 0
        %2743 = vperm.xlu0 %2742, %v1524
        %v2744 = vpop.permute.xlu0 %2743
        %v2747 = vunpack.c.l.s4 839922192
        %v2748 = vunpack.c.0.s8 %v2747
        %v2749 = vlaneseq
        %v2750 = vshrl.u32 %v2749, 7
        %v2751 = vsub.s32 %v2748, %v2750
        %v2752 = vrot.slane %v2744, %v2751
        %2754 = vset.pattern.permute.xlu0 0
        %2755 = vperm.xlu0 %2754, %v1525
        %v2756 = vpop.permute.xlu0 %2755
        %v2759 = vunpack.c.l.s4 839922192
        %v2760 = vunpack.c.0.s8 %v2759
        %v2761 = vlaneseq
        %v2762 = vshrl.u32 %v2761, 7
        %v2763 = vsub.s32 %v2760, %v2762
        %v2764 = vrot.slane %v2756, %v2763
        %2766 = vset.pattern.permute.xlu0 0
        %2767 = vperm.xlu0 %2766, %v1526
        %v2768 = vpop.permute.xlu0 %2767
        %v2771 = vunpack.c.l.s4 839922192
        %v2772 = vunpack.c.0.s8 %v2771
        %v2773 = vlaneseq
        %v2774 = vshrl.u32 %v2773, 7
        %v2775 = vsub.s32 %v2772, %v2774
        %v2776 = vrot.slane %v2768, %v2775
        %2778 = vset.pattern.permute.xlu0 0
        %2779 = vperm.xlu0 %2778, %v1527
        %v2780 = vpop.permute.xlu0 %2779
        %v2783 = vunpack.c.l.s4 839922192
        %v2784 = vunpack.c.0.s8 %v2783
        %v2785 = vlaneseq
        %v2786 = vshrl.u32 %v2785, 7
        %v2787 = vsub.s32 %v2784, %v2786
        %v2788 = vrot.slane %v2780, %v2787
        %2790 = vset.pattern.permute.xlu0 0
        %2791 = vperm.xlu0 %2790, %v1528
        %v2792 = vpop.permute.xlu0 %2791
        %v2795 = vunpack.c.l.s4 839922192
        %v2796 = vunpack.c.0.s8 %v2795
        %v2797 = vlaneseq
        %v2798 = vshrl.u32 %v2797, 7
        %v2799 = vsub.s32 %v2796, %v2798
        %v2800 = vrot.slane %v2792, %v2799
        %2802 = vset.pattern.permute.xlu0 0
        %2803 = vperm.xlu0 %2802, %v1529
        %v2804 = vpop.permute.xlu0 %2803
        %v2807 = vunpack.c.l.s4 839922192
        %v2808 = vunpack.c.0.s8 %v2807
        %v2809 = vlaneseq
        %v2810 = vshrl.u32 %v2809, 7
        %v2811 = vsub.s32 %v2808, %v2810
        %v2812 = vrot.slane %v2804, %v2811
        %2814 = vset.pattern.permute.xlu0 0
        %2815 = vperm.xlu0 %2814, %v1530
        %v2816 = vpop.permute.xlu0 %2815
        %v2819 = vunpack.c.l.s4 839922192
        %v2820 = vunpack.c.0.s8 %v2819
        %v2821 = vlaneseq
        %v2822 = vshrl.u32 %v2821, 7
        %v2823 = vsub.s32 %v2820, %v2822
        %v2824 = vrot.slane %v2816, %v2823
        %2826 = vset.pattern.permute.xlu0 0
        %2827 = vperm.xlu0 %2826, %v1531
        %v2828 = vpop.permute.xlu0 %2827
        %v2831 = vunpack.c.l.s4 839922192
        %v2832 = vunpack.c.0.s8 %v2831
        %v2833 = vlaneseq
        %v2834 = vshrl.u32 %v2833, 7
        %v2835 = vsub.s32 %v2832, %v2834
        %v2836 = vrot.slane %v2828, %v2835
        %2838 = vset.pattern.permute.xlu0 0
        %2839 = vperm.xlu0 %2838, %v1532
        %v2840 = vpop.permute.xlu0 %2839
        %v2843 = vunpack.c.l.s4 839922192
        %v2844 = vunpack.c.0.s8 %v2843
        %v2845 = vlaneseq
        %v2846 = vshrl.u32 %v2845, 7
        %v2847 = vsub.s32 %v2844, %v2846
        %v2848 = vrot.slane %v2840, %v2847
        %2850 = vset.pattern.permute.xlu0 0
        %2851 = vperm.xlu0 %2850, %v1533
        %v2852 = vpop.permute.xlu0 %2851
        %v2855 = vunpack.c.l.s4 839922192
        %v2856 = vunpack.c.0.s8 %v2855
        %v2857 = vlaneseq
        %v2858 = vshrl.u32 %v2857, 7
        %v2859 = vsub.s32 %v2856, %v2858
        %v2860 = vrot.slane %v2852, %v2859
        %2862 = vset.pattern.permute.xlu0 0
        %2863 = vperm.xlu0 %2862, %v1534
        %v2864 = vpop.permute.xlu0 %2863
        %v2867 = vunpack.c.l.s4 839922192
        %v2868 = vunpack.c.0.s8 %v2867
        %v2869 = vlaneseq
        %v2870 = vshrl.u32 %v2869, 7
        %v2871 = vsub.s32 %v2868, %v2870
        %v2872 = vrot.slane %v2864, %v2871
        %2874 = vset.pattern.permute.xlu0 0
        %2875 = vperm.xlu0 %2874, %v1535
        %v2876 = vpop.permute.xlu0 %2875
        %v2879 = vunpack.c.l.s4 839922192
        %v2880 = vunpack.c.0.s8 %v2879
        %v2881 = vlaneseq
        %v2882 = vshrl.u32 %v2881, 7
        %v2883 = vsub.s32 %v2880, %v2882
        %v2884 = vrot.slane %v2876, %v2883
        %2886 = vset.pattern.permute.xlu0 0
        %2887 = vperm.xlu0 %2886, %v1536
        %v2888 = vpop.permute.xlu0 %2887
        %v2891 = vunpack.c.l.s4 839922192
        %v2892 = vunpack.c.0.s8 %v2891
        %v2893 = vlaneseq
        %v2894 = vshrl.u32 %v2893, 7
        %v2895 = vsub.s32 %v2892, %v2894
        %v2896 = vrot.slane %v2888, %v2895
        %2898 = vset.pattern.permute.xlu0 0
        %2899 = vperm.xlu0 %2898, %v1537
        %v2900 = vpop.permute.xlu0 %2899
        %v2903 = vunpack.c.l.s4 839922192
        %v2904 = vunpack.c.0.s8 %v2903
        %v2905 = vlaneseq
        %v2906 = vshrl.u32 %v2905, 7
        %v2907 = vsub.s32 %v2904, %v2906
        %v2908 = vrot.slane %v2900, %v2907
        %2910 = vset.pattern.permute.xlu0 0
        %2911 = vperm.xlu0 %2910, %v1538
        %v2912 = vpop.permute.xlu0 %2911
        %v2915 = vunpack.c.l.s4 839922192
        %v2916 = vunpack.c.0.s8 %v2915
        %v2917 = vlaneseq
        %v2918 = vshrl.u32 %v2917, 7
        %v2919 = vsub.s32 %v2916, %v2918
        %v2920 = vrot.slane %v2912, %v2919
        %2922 = vset.pattern.permute.xlu0 0
        %2923 = vperm.xlu0 %2922, %v1539
        %v2924 = vpop.permute.xlu0 %2923
        %v2927 = vunpack.c.l.s4 839922192
        %v2928 = vunpack.c.0.s8 %v2927
        %v2929 = vlaneseq
        %v2930 = vshrl.u32 %v2929, 7
        %v2931 = vsub.s32 %v2928, %v2930
        %v2932 = vrot.slane %v2924, %v2931
        %2934 = vset.pattern.permute.xlu0 0
        %2935 = vperm.xlu0 %2934, %v1540
        %v2936 = vpop.permute.xlu0 %2935
        %v2939 = vunpack.c.l.s4 839922192
        %v2940 = vunpack.c.0.s8 %v2939
        %v2941 = vlaneseq
        %v2942 = vshrl.u32 %v2941, 7
        %v2943 = vsub.s32 %v2940, %v2942
        %v2944 = vrot.slane %v2936, %v2943
        %2946 = vset.pattern.permute.xlu0 0
        %2947 = vperm.xlu0 %2946, %v1541
        %v2948 = vpop.permute.xlu0 %2947
        %v2951 = vunpack.c.l.s4 839922192
        %v2952 = vunpack.c.0.s8 %v2951
        %v2953 = vlaneseq
        %v2954 = vshrl.u32 %v2953, 7
        %v2955 = vsub.s32 %v2952, %v2954
        %v2956 = vrot.slane %v2948, %v2955
        %2958 = vset.pattern.permute.xlu0 0
        %2959 = vperm.xlu0 %2958, %v1542
        %v2960 = vpop.permute.xlu0 %2959
        %v2963 = vunpack.c.l.s4 839922192
        %v2964 = vunpack.c.0.s8 %v2963
        %v2965 = vlaneseq
        %v2966 = vshrl.u32 %v2965, 7
        %v2967 = vsub.s32 %v2964, %v2966
        %v2968 = vrot.slane %v2960, %v2967
        %2970 = vset.pattern.permute.xlu0 0
        %2971 = vperm.xlu0 %2970, %v1543
        %v2972 = vpop.permute.xlu0 %2971
        %v2975 = vunpack.c.l.s4 839922192
        %v2976 = vunpack.c.0.s8 %v2975
        %v2977 = vlaneseq
        %v2978 = vshrl.u32 %v2977, 7
        %v2979 = vsub.s32 %v2976, %v2978
        %v2980 = vrot.slane %v2972, %v2979
        %2982 = vset.pattern.permute.xlu0 0
        %2983 = vperm.xlu0 %2982, %v1544
        %v2984 = vpop.permute.xlu0 %2983
        %v2987 = vunpack.c.l.s4 839922192
        %v2988 = vunpack.c.0.s8 %v2987
        %v2989 = vlaneseq
        %v2990 = vshrl.u32 %v2989, 7
        %v2991 = vsub.s32 %v2988, %v2990
        %v2992 = vrot.slane %v2984, %v2991
        %2994 = vset.pattern.permute.xlu0 0
        %2995 = vperm.xlu0 %2994, %v1545
        %v2996 = vpop.permute.xlu0 %2995
        %v2999 = vunpack.c.l.s4 839922192
        %v3000 = vunpack.c.0.s8 %v2999
        %v3001 = vlaneseq
        %v3002 = vshrl.u32 %v3001, 7
        %v3003 = vsub.s32 %v3000, %v3002
        %v3004 = vrot.slane %v2996, %v3003
        %3006 = vset.pattern.permute.xlu0 0
        %3007 = vperm.xlu0 %3006, %v1546
        %v3008 = vpop.permute.xlu0 %3007
        %v3011 = vunpack.c.l.s4 839922192
        %v3012 = vunpack.c.0.s8 %v3011
        %v3013 = vlaneseq
        %v3014 = vshrl.u32 %v3013, 7
        %v3015 = vsub.s32 %v3012, %v3014
        %v3016 = vrot.slane %v3008, %v3015
        %3018 = vset.pattern.permute.xlu0 0
        %3019 = vperm.xlu0 %3018, %v1547
        %v3020 = vpop.permute.xlu0 %3019
        %v3023 = vunpack.c.l.s4 839922192
        %v3024 = vunpack.c.0.s8 %v3023
        %v3025 = vlaneseq
        %v3026 = vshrl.u32 %v3025, 7
        %v3027 = vsub.s32 %v3024, %v3026
        %v3028 = vrot.slane %v3020, %v3027
        %3030 = vset.pattern.permute.xlu0 0
        %3031 = vperm.xlu0 %3030, %v1548
        %v3032 = vpop.permute.xlu0 %3031
        %v3035 = vunpack.c.l.s4 839922192
        %v3036 = vunpack.c.0.s8 %v3035
        %v3037 = vlaneseq
        %v3038 = vshrl.u32 %v3037, 7
        %v3039 = vsub.s32 %v3036, %v3038
        %v3040 = vrot.slane %v3032, %v3039
        %3042 = vset.pattern.permute.xlu0 0
        %3043 = vperm.xlu0 %3042, %v1549
        %v3044 = vpop.permute.xlu0 %3043
        %v3047 = vunpack.c.l.s4 839922192
        %v3048 = vunpack.c.0.s8 %v3047
        %v3049 = vlaneseq
        %v3050 = vshrl.u32 %v3049, 7
        %v3051 = vsub.s32 %v3048, %v3050
        %v3052 = vrot.slane %v3044, %v3051
        %3054 = vset.pattern.permute.xlu0 0
        %3055 = vperm.xlu0 %3054, %v1550
        %v3056 = vpop.permute.xlu0 %3055
        %v3059 = vunpack.c.l.s4 839922192
        %v3060 = vunpack.c.0.s8 %v3059
        %v3061 = vlaneseq
        %v3062 = vshrl.u32 %v3061, 7
        %v3063 = vsub.s32 %v3060, %v3062
        %v3064 = vrot.slane %v3056, %v3063
        %3066 = vset.pattern.permute.xlu0 0
        %3067 = vperm.xlu0 %3066, %v1551
        %v3068 = vpop.permute.xlu0 %3067
        %v3071 = vunpack.c.l.s4 839922192
        %v3072 = vunpack.c.0.s8 %v3071
        %v3073 = vlaneseq
        %v3074 = vshrl.u32 %v3073, 7
        %v3075 = vsub.s32 %v3072, %v3074
        %v3076 = vrot.slane %v3068, %v3075
        %3078 = vset.pattern.permute.xlu0 0
        %3079 = vperm.xlu0 %3078, %v1552
        %v3080 = vpop.permute.xlu0 %3079
        %v3083 = vunpack.c.l.s4 839922192
        %v3084 = vunpack.c.0.s8 %v3083
        %v3085 = vlaneseq
        %v3086 = vshrl.u32 %v3085, 7
        %v3087 = vsub.s32 %v3084, %v3086
        %v3088 = vrot.slane %v3080, %v3087
        %v3089 = vmul.bf16 %v1041, %v1564
        %v3090 = vmul.bf16 %v1042, %v1564
        %v3091 = vmul.bf16 %v1043, %v1564
        %v3092 = vmul.bf16 %v1044, %v1576
        %v3093 = vmul.bf16 %v1045, %v1576
        %v3094 = vmul.bf16 %v1046, %v1576
        %v3095 = vmul.bf16 %v1047, %v1588
        %v3096 = vmul.bf16 %v1048, %v1588
        %v3097 = vmul.bf16 %v1049, %v1588
        %v3098 = vmul.bf16 %v1050, %v1600
        %v3099 = vmul.bf16 %v1051, %v1600
        %v3100 = vmul.bf16 %v1052, %v1600
        %v3101 = vmul.bf16 %v1053, %v1612
        %v3102 = vmul.bf16 %v1054, %v1612
        %v3103 = vmul.bf16 %v1055, %v1612
        %v3104 = vmul.bf16 %v1056, %v1624
        %v3105 = vmul.bf16 %v1057, %v1624
        %v3106 = vmul.bf16 %v1058, %v1624
        %v3107 = vmul.bf16 %v1059, %v1636
        %v3108 = vmul.bf16 %v1060, %v1636
        %v3109 = vmul.bf16 %v1061, %v1636
        %v3110 = vmul.bf16 %v1062, %v1648
        %v3111 = vmul.bf16 %v1063, %v1648
        %v3112 = vmul.bf16 %v1064, %v1648
        %v3113 = vmul.bf16 %v1065, %v1660
        %v3114 = vmul.bf16 %v1066, %v1660
        %v3115 = vmul.bf16 %v1067, %v1660
        %v3116 = vmul.bf16 %v1068, %v1672
        %v3117 = vmul.bf16 %v1069, %v1672
        %v3118 = vmul.bf16 %v1070, %v1672
        %v3119 = vmul.bf16 %v1071, %v1684
        %v3120 = vmul.bf16 %v1072, %v1684
        %v3121 = vmul.bf16 %v1073, %v1684
        %v3122 = vmul.bf16 %v1074, %v1696
        %v3123 = vmul.bf16 %v1075, %v1696
        %v3124 = vmul.bf16 %v1076, %v1696
        %v3125 = vmul.bf16 %v1077, %v1708
        %v3126 = vmul.bf16 %v1078, %v1708
        %v3127 = vmul.bf16 %v1079, %v1708
        %v3128 = vmul.bf16 %v1080, %v1720
        %v3129 = vmul.bf16 %v1081, %v1720
        %v3130 = vmul.bf16 %v1082, %v1720
        %v3131 = vmul.bf16 %v1083, %v1732
        %v3132 = vmul.bf16 %v1084, %v1732
        %v3133 = vmul.bf16 %v1085, %v1732
        %v3134 = vmul.bf16 %v1086, %v1744
        %v3135 = vmul.bf16 %v1087, %v1744
        %v3136 = vmul.bf16 %v1088, %v1744
        %v3137 = vmul.bf16 %v1089, %v1756
        %v3138 = vmul.bf16 %v1090, %v1756
        %v3139 = vmul.bf16 %v1091, %v1756
        %v3140 = vmul.bf16 %v1092, %v1768
        %v3141 = vmul.bf16 %v1093, %v1768
        %v3142 = vmul.bf16 %v1094, %v1768
        %v3143 = vmul.bf16 %v1095, %v1780
        %v3144 = vmul.bf16 %v1096, %v1780
        %v3145 = vmul.bf16 %v1097, %v1780
        %v3146 = vmul.bf16 %v1098, %v1792
        %v3147 = vmul.bf16 %v1099, %v1792
        %v3148 = vmul.bf16 %v1100, %v1792
        %v3149 = vmul.bf16 %v1101, %v1804
        %v3150 = vmul.bf16 %v1102, %v1804
        %v3151 = vmul.bf16 %v1103, %v1804
        %v3152 = vmul.bf16 %v1104, %v1816
        %v3153 = vmul.bf16 %v1105, %v1816
        %v3154 = vmul.bf16 %v1106, %v1816
        %v3155 = vmul.bf16 %v1107, %v1828
        %v3156 = vmul.bf16 %v1108, %v1828
        %v3157 = vmul.bf16 %v1109, %v1828
        %v3158 = vmul.bf16 %v1110, %v1840
        %v3159 = vmul.bf16 %v1111, %v1840
        %v3160 = vmul.bf16 %v1112, %v1840
        %v3161 = vmul.bf16 %v1113, %v1852
        %v3162 = vmul.bf16 %v1114, %v1852
        %v3163 = vmul.bf16 %v1115, %v1852
        %v3164 = vmul.bf16 %v1116, %v1864
        %v3165 = vmul.bf16 %v1117, %v1864
        %v3166 = vmul.bf16 %v1118, %v1864
        %v3167 = vmul.bf16 %v1119, %v1876
        %v3168 = vmul.bf16 %v1120, %v1876
        %v3169 = vmul.bf16 %v1121, %v1876
        %v3170 = vmul.bf16 %v1122, %v1888
        %v3171 = vmul.bf16 %v1123, %v1888
        %v3172 = vmul.bf16 %v1124, %v1888
        %v3173 = vmul.bf16 %v1125, %v1900
        %v3174 = vmul.bf16 %v1126, %v1900
        %v3175 = vmul.bf16 %v1127, %v1900
        %v3176 = vmul.bf16 %v1128, %v1912
        %v3177 = vmul.bf16 %v1129, %v1912
        %v3178 = vmul.bf16 %v1130, %v1912
        %v3179 = vmul.bf16 %v1131, %v1924
        %v3180 = vmul.bf16 %v1132, %v1924
        %v3181 = vmul.bf16 %v1133, %v1924
        %v3182 = vmul.bf16 %v1134, %v1936
        %v3183 = vmul.bf16 %v1135, %v1936
        %v3184 = vmul.bf16 %v1136, %v1936
        %v3185 = vmul.bf16 %v1137, %v1948
        %v3186 = vmul.bf16 %v1138, %v1948
        %v3187 = vmul.bf16 %v1139, %v1948
        %v3188 = vmul.bf16 %v1140, %v1960
        %v3189 = vmul.bf16 %v1141, %v1960
        %v3190 = vmul.bf16 %v1142, %v1960
        %v3191 = vmul.bf16 %v1143, %v1972
        %v3192 = vmul.bf16 %v1144, %v1972
        %v3193 = vmul.bf16 %v1145, %v1972
        %v3194 = vmul.bf16 %v1146, %v1984
        %v3195 = vmul.bf16 %v1147, %v1984
        %v3196 = vmul.bf16 %v1148, %v1984
        %v3197 = vmul.bf16 %v1149, %v1996
        %v3198 = vmul.bf16 %v1150, %v1996
        %v3199 = vmul.bf16 %v1151, %v1996
        %v3200 = vmul.bf16 %v1152, %v2008
        %v3201 = vmul.bf16 %v1153, %v2008
        %v3202 = vmul.bf16 %v1154, %v2008
        %v3203 = vmul.bf16 %v1155, %v2020
        %v3204 = vmul.bf16 %v1156, %v2020
        %v3205 = vmul.bf16 %v1157, %v2020
        %v3206 = vmul.bf16 %v1158, %v2032
        %v3207 = vmul.bf16 %v1159, %v2032
        %v3208 = vmul.bf16 %v1160, %v2032
        %v3209 = vmul.bf16 %v1161, %v2044
        %v3210 = vmul.bf16 %v1162, %v2044
        %v3211 = vmul.bf16 %v1163, %v2044
        %v3212 = vmul.bf16 %v1164, %v2056
        %v3213 = vmul.bf16 %v1165, %v2056
        %v3214 = vmul.bf16 %v1166, %v2056
        %v3215 = vmul.bf16 %v1167, %v2068
        %v3216 = vmul.bf16 %v1168, %v2068
        %v3217 = vmul.bf16 %v1169, %v2068
        %v3218 = vmul.bf16 %v1170, %v2080
        %v3219 = vmul.bf16 %v1171, %v2080
        %v3220 = vmul.bf16 %v1172, %v2080
        %v3221 = vmul.bf16 %v1173, %v2092
        %v3222 = vmul.bf16 %v1174, %v2092
        %v3223 = vmul.bf16 %v1175, %v2092
        %v3224 = vmul.bf16 %v1176, %v2104
        %v3225 = vmul.bf16 %v1177, %v2104
        %v3226 = vmul.bf16 %v1178, %v2104
        %v3227 = vmul.bf16 %v1179, %v2116
        %v3228 = vmul.bf16 %v1180, %v2116
        %v3229 = vmul.bf16 %v1181, %v2116
        %v3230 = vmul.bf16 %v1182, %v2128
        %v3231 = vmul.bf16 %v1183, %v2128
        %v3232 = vmul.bf16 %v1184, %v2128
        %v3233 = vmul.bf16 %v1185, %v2140
        %v3234 = vmul.bf16 %v1186, %v2140
        %v3235 = vmul.bf16 %v1187, %v2140
        %v3236 = vmul.bf16 %v1188, %v2152
        %v3237 = vmul.bf16 %v1189, %v2152
        %v3238 = vmul.bf16 %v1190, %v2152
        %v3239 = vmul.bf16 %v1191, %v2164
        %v3240 = vmul.bf16 %v1192, %v2164
        %v3241 = vmul.bf16 %v1193, %v2164
        %v3242 = vmul.bf16 %v1194, %v2176
        %v3243 = vmul.bf16 %v1195, %v2176
        %v3244 = vmul.bf16 %v1196, %v2176
        %v3245 = vmul.bf16 %v1197, %v2188
        %v3246 = vmul.bf16 %v1198, %v2188
        %v3247 = vmul.bf16 %v1199, %v2188
        %v3248 = vmul.bf16 %v1200, %v2200
        %v3249 = vmul.bf16 %v1201, %v2200
        %v3250 = vmul.bf16 %v1202, %v2200
        %v3251 = vmul.bf16 %v1203, %v2212
        %v3252 = vmul.bf16 %v1204, %v2212
        %v3253 = vmul.bf16 %v1205, %v2212
        %v3254 = vmul.bf16 %v1206, %v2224
        %v3255 = vmul.bf16 %v1207, %v2224
        %v3256 = vmul.bf16 %v1208, %v2224
        %v3257 = vmul.bf16 %v1209, %v2236
        %v3258 = vmul.bf16 %v1210, %v2236
        %v3259 = vmul.bf16 %v1211, %v2236
        %v3260 = vmul.bf16 %v1212, %v2248
        %v3261 = vmul.bf16 %v1213, %v2248
        %v3262 = vmul.bf16 %v1214, %v2248
        %v3263 = vmul.bf16 %v1215, %v2260
        %v3264 = vmul.bf16 %v1216, %v2260
        %v3265 = vmul.bf16 %v1217, %v2260
        %v3266 = vmul.bf16 %v1218, %v2272
        %v3267 = vmul.bf16 %v1219, %v2272
        %v3268 = vmul.bf16 %v1220, %v2272
        %v3269 = vmul.bf16 %v1221, %v2284
        %v3270 = vmul.bf16 %v1222, %v2284
        %v3271 = vmul.bf16 %v1223, %v2284
        %v3272 = vmul.bf16 %v1224, %v2296
        %v3273 = vmul.bf16 %v1225, %v2296
        %v3274 = vmul.bf16 %v1226, %v2296
        %v3275 = vmul.bf16 %v1227, %v2308
        %v3276 = vmul.bf16 %v1228, %v2308
        %v3277 = vmul.bf16 %v1229, %v2308
        %v3278 = vmul.bf16 %v1230, %v2320
        %v3279 = vmul.bf16 %v1231, %v2320
        %v3280 = vmul.bf16 %v1232, %v2320
        %v3281 = vmul.bf16 %v1233, %v2332
        %v3282 = vmul.bf16 %v1234, %v2332
        %v3283 = vmul.bf16 %v1235, %v2332
        %v3284 = vmul.bf16 %v1236, %v2344
        %v3285 = vmul.bf16 %v1237, %v2344
        %v3286 = vmul.bf16 %v1238, %v2344
        %v3287 = vmul.bf16 %v1239, %v2356
        %v3288 = vmul.bf16 %v1240, %v2356
        %v3289 = vmul.bf16 %v1241, %v2356
        %v3290 = vmul.bf16 %v1242, %v2368
        %v3291 = vmul.bf16 %v1243, %v2368
        %v3292 = vmul.bf16 %v1244, %v2368
        %v3293 = vmul.bf16 %v1245, %v2380
        %v3294 = vmul.bf16 %v1246, %v2380
        %v3295 = vmul.bf16 %v1247, %v2380
        %v3296 = vmul.bf16 %v1248, %v2392
        %v3297 = vmul.bf16 %v1249, %v2392
        %v3298 = vmul.bf16 %v1250, %v2392
        %v3299 = vmul.bf16 %v1251, %v2404
        %v3300 = vmul.bf16 %v1252, %v2404
        %v3301 = vmul.bf16 %v1253, %v2404
        %v3302 = vmul.bf16 %v1254, %v2416
        %v3303 = vmul.bf16 %v1255, %v2416
        %v3304 = vmul.bf16 %v1256, %v2416
        %v3305 = vmul.bf16 %v1257, %v2428
        %v3306 = vmul.bf16 %v1258, %v2428
        %v3307 = vmul.bf16 %v1259, %v2428
        %v3308 = vmul.bf16 %v1260, %v2440
        %v3309 = vmul.bf16 %v1261, %v2440
        %v3310 = vmul.bf16 %v1262, %v2440
        %v3311 = vmul.bf16 %v1263, %v2452
        %v3312 = vmul.bf16 %v1264, %v2452
        %v3313 = vmul.bf16 %v1265, %v2452
        %v3314 = vmul.bf16 %v1266, %v2464
        %v3315 = vmul.bf16 %v1267, %v2464
        %v3316 = vmul.bf16 %v1268, %v2464
        %v3317 = vmul.bf16 %v1269, %v2476
        %v3318 = vmul.bf16 %v1270, %v2476
        %v3319 = vmul.bf16 %v1271, %v2476
        %v3320 = vmul.bf16 %v1272, %v2488
        %v3321 = vmul.bf16 %v1273, %v2488
        %v3322 = vmul.bf16 %v1274, %v2488
        %v3323 = vmul.bf16 %v1275, %v2500
        %v3324 = vmul.bf16 %v1276, %v2500
        %v3325 = vmul.bf16 %v1277, %v2500
        %v3326 = vmul.bf16 %v1278, %v2512
        %v3327 = vmul.bf16 %v1279, %v2512
        %v3328 = vmul.bf16 %v1280, %v2512
        %v3329 = vmul.bf16 %v1281, %v2524
        %v3330 = vmul.bf16 %v1282, %v2524
        %v3331 = vmul.bf16 %v1283, %v2524
        %v3332 = vmul.bf16 %v1284, %v2536
        %v3333 = vmul.bf16 %v1285, %v2536
        %v3334 = vmul.bf16 %v1286, %v2536
        %v3335 = vmul.bf16 %v1287, %v2548
        %v3336 = vmul.bf16 %v1288, %v2548
        %v3337 = vmul.bf16 %v1289, %v2548
        %v3338 = vmul.bf16 %v1290, %v2560
        %v3339 = vmul.bf16 %v1291, %v2560
        %v3340 = vmul.bf16 %v1292, %v2560
        %v3341 = vmul.bf16 %v1293, %v2572
        %v3342 = vmul.bf16 %v1294, %v2572
        %v3343 = vmul.bf16 %v1295, %v2572
        %v3344 = vmul.bf16 %v1296, %v2584
        %v3345 = vmul.bf16 %v1297, %v2584
        %v3346 = vmul.bf16 %v1298, %v2584
        %v3347 = vmul.bf16 %v1299, %v2596
        %v3348 = vmul.bf16 %v1300, %v2596
        %v3349 = vmul.bf16 %v1301, %v2596
        %v3350 = vmul.bf16 %v1302, %v2608
        %v3351 = vmul.bf16 %v1303, %v2608
        %v3352 = vmul.bf16 %v1304, %v2608
        %v3353 = vmul.bf16 %v1305, %v2620
        %v3354 = vmul.bf16 %v1306, %v2620
        %v3355 = vmul.bf16 %v1307, %v2620
        %v3356 = vmul.bf16 %v1308, %v2632
        %v3357 = vmul.bf16 %v1309, %v2632
        %v3358 = vmul.bf16 %v1310, %v2632
        %v3359 = vmul.bf16 %v1311, %v2644
        %v3360 = vmul.bf16 %v1312, %v2644
        %v3361 = vmul.bf16 %v1313, %v2644
        %v3362 = vmul.bf16 %v1314, %v2656
        %v3363 = vmul.bf16 %v1315, %v2656
        %v3364 = vmul.bf16 %v1316, %v2656
        %v3365 = vmul.bf16 %v1317, %v2668
        %v3366 = vmul.bf16 %v1318, %v2668
        %v3367 = vmul.bf16 %v1319, %v2668
        %v3368 = vmul.bf16 %v1320, %v2680
        %v3369 = vmul.bf16 %v1321, %v2680
        %v3370 = vmul.bf16 %v1322, %v2680
        %v3371 = vmul.bf16 %v1323, %v2692
        %v3372 = vmul.bf16 %v1324, %v2692
        %v3373 = vmul.bf16 %v1325, %v2692
        %v3374 = vmul.bf16 %v1326, %v2704
        %v3375 = vmul.bf16 %v1327, %v2704
        %v3376 = vmul.bf16 %v1328, %v2704
        %v3377 = vmul.bf16 %v1329, %v2716
        %v3378 = vmul.bf16 %v1330, %v2716
        %v3379 = vmul.bf16 %v1331, %v2716
        %v3380 = vmul.bf16 %v1332, %v2728
        %v3381 = vmul.bf16 %v1333, %v2728
        %v3382 = vmul.bf16 %v1334, %v2728
        %v3383 = vmul.bf16 %v1335, %v2740
        %v3384 = vmul.bf16 %v1336, %v2740
        %v3385 = vmul.bf16 %v1337, %v2740
        %v3386 = vmul.bf16 %v1338, %v2752
        %v3387 = vmul.bf16 %v1339, %v2752
        %v3388 = vmul.bf16 %v1340, %v2752
        %v3389 = vmul.bf16 %v1341, %v2764
        %v3390 = vmul.bf16 %v1342, %v2764
        %v3391 = vmul.bf16 %v1343, %v2764
        %v3392 = vmul.bf16 %v1344, %v2776
        %v3393 = vmul.bf16 %v1345, %v2776
        %v3394 = vmul.bf16 %v1346, %v2776
        %v3395 = vmul.bf16 %v1347, %v2788
        %v3396 = vmul.bf16 %v1348, %v2788
        %v3397 = vmul.bf16 %v1349, %v2788
        %v3398 = vmul.bf16 %v1350, %v2800
        %v3399 = vmul.bf16 %v1351, %v2800
        %v3400 = vmul.bf16 %v1352, %v2800
        %v3401 = vmul.bf16 %v1353, %v2812
        %v3402 = vmul.bf16 %v1354, %v2812
        %v3403 = vmul.bf16 %v1355, %v2812
        %v3404 = vmul.bf16 %v1356, %v2824
        %v3405 = vmul.bf16 %v1357, %v2824
        %v3406 = vmul.bf16 %v1358, %v2824
        %v3407 = vmul.bf16 %v1359, %v2836
        %v3408 = vmul.bf16 %v1360, %v2836
        %v3409 = vmul.bf16 %v1361, %v2836
        %v3410 = vmul.bf16 %v1362, %v2848
        %v3411 = vmul.bf16 %v1363, %v2848
        %v3412 = vmul.bf16 %v1364, %v2848
        %v3413 = vmul.bf16 %v1365, %v2860
        %v3414 = vmul.bf16 %v1366, %v2860
        %v3415 = vmul.bf16 %v1367, %v2860
        %v3416 = vmul.bf16 %v1368, %v2872
        %v3417 = vmul.bf16 %v1369, %v2872
        %v3418 = vmul.bf16 %v1370, %v2872
        %v3419 = vmul.bf16 %v1371, %v2884
        %v3420 = vmul.bf16 %v1372, %v2884
        %v3421 = vmul.bf16 %v1373, %v2884
        %v3422 = vmul.bf16 %v1374, %v2896
        %v3423 = vmul.bf16 %v1375, %v2896
        %v3424 = vmul.bf16 %v1376, %v2896
        %v3425 = vmul.bf16 %v1377, %v2908
        %v3426 = vmul.bf16 %v1378, %v2908
        %v3427 = vmul.bf16 %v1379, %v2908
        %v3428 = vmul.bf16 %v1380, %v2920
        %v3429 = vmul.bf16 %v1381, %v2920
        %v3430 = vmul.bf16 %v1382, %v2920
        %v3431 = vmul.bf16 %v1383, %v2932
        %v3432 = vmul.bf16 %v1384, %v2932
        %v3433 = vmul.bf16 %v1385, %v2932
        %v3434 = vmul.bf16 %v1386, %v2944
        %v3435 = vmul.bf16 %v1387, %v2944
        %v3436 = vmul.bf16 %v1388, %v2944
        %v3437 = vmul.bf16 %v1389, %v2956
        %v3438 = vmul.bf16 %v1390, %v2956
        %v3439 = vmul.bf16 %v1391, %v2956
        %v3440 = vmul.bf16 %v1392, %v2968
        %v3441 = vmul.bf16 %v1393, %v2968
        %v3442 = vmul.bf16 %v1394, %v2968
        %v3443 = vmul.bf16 %v1395, %v2980
        %v3444 = vmul.bf16 %v1396, %v2980
        %v3445 = vmul.bf16 %v1397, %v2980
        %v3446 = vmul.bf16 %v1398, %v2992
        %v3447 = vmul.bf16 %v1399, %v2992
        %v3448 = vmul.bf16 %v1400, %v2992
        %v3449 = vmul.bf16 %v1401, %v3004
        %v3450 = vmul.bf16 %v1402, %v3004
        %v3451 = vmul.bf16 %v1403, %v3004
        %v3452 = vmul.bf16 %v1404, %v3016
        %v3453 = vmul.bf16 %v1405, %v3016
        %v3454 = vmul.bf16 %v1406, %v3016
        %v3455 = vmul.bf16 %v1407, %v3028
        %v3456 = vmul.bf16 %v1408, %v3028
        %v3457 = vmul.bf16 %v1409, %v3028
        %v3458 = vmul.bf16 %v1410, %v3040
        %v3459 = vmul.bf16 %v1411, %v3040
        %v3460 = vmul.bf16 %v1412, %v3040
        %v3461 = vmul.bf16 %v1413, %v3052
        %v3462 = vmul.bf16 %v1414, %v3052
        %v3463 = vmul.bf16 %v1415, %v3052
        %v3464 = vmul.bf16 %v1416, %v3064
        %v3465 = vmul.bf16 %v1417, %v3064
        %v3466 = vmul.bf16 %v1418, %v3064
        %v3467 = vmul.bf16 %v1419, %v3076
        %v3468 = vmul.bf16 %v1420, %v3076
        %v3469 = vmul.bf16 %v1421, %v3076
        %v3470 = vmul.bf16 %v1422, %v3088
        %v3471 = vmul.bf16 %v1423, %v3088
        %v3472 = vmul.bf16 %v1424, %v3088
        %v3473 = vunpack.c.l.bf16 %v3089
        %v3474 = vunpack.c.h.bf16 %v3089
        %v3475 = vunpack.c.l.bf16 %v3090
        %v3476 = vunpack.c.h.bf16 %v3090
        %v3477 = vunpack.c.l.bf16 %v3091
        %v3478 = vunpack.c.h.bf16 %v3091
        %v3479 = vunpack.c.l.bf16 %v3092
        %v3480 = vunpack.c.h.bf16 %v3092
        %v3481 = vunpack.c.l.bf16 %v3093
        %v3482 = vunpack.c.h.bf16 %v3093
        %v3483 = vunpack.c.l.bf16 %v3094
        %v3484 = vunpack.c.h.bf16 %v3094
        %v3485 = vunpack.c.l.bf16 %v3095
        %v3486 = vunpack.c.h.bf16 %v3095
        %v3487 = vunpack.c.l.bf16 %v3096
        %v3488 = vunpack.c.h.bf16 %v3096
        %v3489 = vunpack.c.l.bf16 %v3097
        %v3490 = vunpack.c.h.bf16 %v3097
        %v3491 = vunpack.c.l.bf16 %v3098
        %v3492 = vunpack.c.h.bf16 %v3098
        %v3493 = vunpack.c.l.bf16 %v3099
        %v3494 = vunpack.c.h.bf16 %v3099
        %v3495 = vunpack.c.l.bf16 %v3100
        %v3496 = vunpack.c.h.bf16 %v3100
        %v3497 = vunpack.c.l.bf16 %v3101
        %v3498 = vunpack.c.h.bf16 %v3101
        %v3499 = vunpack.c.l.bf16 %v3102
        %v3500 = vunpack.c.h.bf16 %v3102
        %v3501 = vunpack.c.l.bf16 %v3103
        %v3502 = vunpack.c.h.bf16 %v3103
        %v3503 = vunpack.c.l.bf16 %v3104
        %v3504 = vunpack.c.h.bf16 %v3104
        %v3505 = vunpack.c.l.bf16 %v3105
        %v3506 = vunpack.c.h.bf16 %v3105
        %v3507 = vunpack.c.l.bf16 %v3106
        %v3508 = vunpack.c.h.bf16 %v3106
        %v3509 = vunpack.c.l.bf16 %v3107
        %v3510 = vunpack.c.h.bf16 %v3107
        %v3511 = vunpack.c.l.bf16 %v3108
        %v3512 = vunpack.c.h.bf16 %v3108
        %v3513 = vunpack.c.l.bf16 %v3109
        %v3514 = vunpack.c.h.bf16 %v3109
        %v3515 = vunpack.c.l.bf16 %v3110
        %v3516 = vunpack.c.h.bf16 %v3110
        %v3517 = vunpack.c.l.bf16 %v3111
        %v3518 = vunpack.c.h.bf16 %v3111
        %v3519 = vunpack.c.l.bf16 %v3112
        %v3520 = vunpack.c.h.bf16 %v3112
        %v3521 = vunpack.c.l.bf16 %v3113
        %v3522 = vunpack.c.h.bf16 %v3113
        %v3523 = vunpack.c.l.bf16 %v3114
        %v3524 = vunpack.c.h.bf16 %v3114
        %v3525 = vunpack.c.l.bf16 %v3115
        %v3526 = vunpack.c.h.bf16 %v3115
        %v3527 = vunpack.c.l.bf16 %v3116
        %v3528 = vunpack.c.h.bf16 %v3116
        %v3529 = vunpack.c.l.bf16 %v3117
        %v3530 = vunpack.c.h.bf16 %v3117
        %v3531 = vunpack.c.l.bf16 %v3118
        %v3532 = vunpack.c.h.bf16 %v3118
        %v3533 = vunpack.c.l.bf16 %v3119
        %v3534 = vunpack.c.h.bf16 %v3119
        %v3535 = vunpack.c.l.bf16 %v3120
        %v3536 = vunpack.c.h.bf16 %v3120
        %v3537 = vunpack.c.l.bf16 %v3121
        %v3538 = vunpack.c.h.bf16 %v3121
        %v3539 = vunpack.c.l.bf16 %v3122
        %v3540 = vunpack.c.h.bf16 %v3122
        %v3541 = vunpack.c.l.bf16 %v3123
        %v3542 = vunpack.c.h.bf16 %v3123
        %v3543 = vunpack.c.l.bf16 %v3124
        %v3544 = vunpack.c.h.bf16 %v3124
        %v3545 = vunpack.c.l.bf16 %v3125
        %v3546 = vunpack.c.h.bf16 %v3125
        %v3547 = vunpack.c.l.bf16 %v3126
        %v3548 = vunpack.c.h.bf16 %v3126
        %v3549 = vunpack.c.l.bf16 %v3127
        %v3550 = vunpack.c.h.bf16 %v3127
        %v3551 = vunpack.c.l.bf16 %v3128
        %v3552 = vunpack.c.h.bf16 %v3128
        %v3553 = vunpack.c.l.bf16 %v3129
        %v3554 = vunpack.c.h.bf16 %v3129
        %v3555 = vunpack.c.l.bf16 %v3130
        %v3556 = vunpack.c.h.bf16 %v3130
        %v3557 = vunpack.c.l.bf16 %v3131
        %v3558 = vunpack.c.h.bf16 %v3131
        %v3559 = vunpack.c.l.bf16 %v3132
        %v3560 = vunpack.c.h.bf16 %v3132
        %v3561 = vunpack.c.l.bf16 %v3133
        %v3562 = vunpack.c.h.bf16 %v3133
        %v3563 = vunpack.c.l.bf16 %v3134
        %v3564 = vunpack.c.h.bf16 %v3134
        %v3565 = vunpack.c.l.bf16 %v3135
        %v3566 = vunpack.c.h.bf16 %v3135
        %v3567 = vunpack.c.l.bf16 %v3136
        %v3568 = vunpack.c.h.bf16 %v3136
        %v3569 = vunpack.c.l.bf16 %v3137
        %v3570 = vunpack.c.h.bf16 %v3137
        %v3571 = vunpack.c.l.bf16 %v3138
        %v3572 = vunpack.c.h.bf16 %v3138
        %v3573 = vunpack.c.l.bf16 %v3139
        %v3574 = vunpack.c.h.bf16 %v3139
        %v3575 = vunpack.c.l.bf16 %v3140
        %v3576 = vunpack.c.h.bf16 %v3140
        %v3577 = vunpack.c.l.bf16 %v3141
        %v3578 = vunpack.c.h.bf16 %v3141
        %v3579 = vunpack.c.l.bf16 %v3142
        %v3580 = vunpack.c.h.bf16 %v3142
        %v3581 = vunpack.c.l.bf16 %v3143
        %v3582 = vunpack.c.h.bf16 %v3143
        %v3583 = vunpack.c.l.bf16 %v3144
        %v3584 = vunpack.c.h.bf16 %v3144
        %v3585 = vunpack.c.l.bf16 %v3145
        %v3586 = vunpack.c.h.bf16 %v3145
        %v3587 = vunpack.c.l.bf16 %v3146
        %v3588 = vunpack.c.h.bf16 %v3146
        %v3589 = vunpack.c.l.bf16 %v3147
        %v3590 = vunpack.c.h.bf16 %v3147
        %v3591 = vunpack.c.l.bf16 %v3148
        %v3592 = vunpack.c.h.bf16 %v3148
        %v3593 = vunpack.c.l.bf16 %v3149
        %v3594 = vunpack.c.h.bf16 %v3149
        %v3595 = vunpack.c.l.bf16 %v3150
        %v3596 = vunpack.c.h.bf16 %v3150
        %v3597 = vunpack.c.l.bf16 %v3151
        %v3598 = vunpack.c.h.bf16 %v3151
        %v3599 = vunpack.c.l.bf16 %v3152
        %v3600 = vunpack.c.h.bf16 %v3152
        %v3601 = vunpack.c.l.bf16 %v3153
        %v3602 = vunpack.c.h.bf16 %v3153
        %v3603 = vunpack.c.l.bf16 %v3154
        %v3604 = vunpack.c.h.bf16 %v3154
        %v3605 = vunpack.c.l.bf16 %v3155
        %v3606 = vunpack.c.h.bf16 %v3155
        %v3607 = vunpack.c.l.bf16 %v3156
        %v3608 = vunpack.c.h.bf16 %v3156
        %v3609 = vunpack.c.l.bf16 %v3157
        %v3610 = vunpack.c.h.bf16 %v3157
        %v3611 = vunpack.c.l.bf16 %v3158
        %v3612 = vunpack.c.h.bf16 %v3158
        %v3613 = vunpack.c.l.bf16 %v3159
        %v3614 = vunpack.c.h.bf16 %v3159
        %v3615 = vunpack.c.l.bf16 %v3160
        %v3616 = vunpack.c.h.bf16 %v3160
        %v3617 = vunpack.c.l.bf16 %v3161
        %v3618 = vunpack.c.h.bf16 %v3161
        %v3619 = vunpack.c.l.bf16 %v3162
        %v3620 = vunpack.c.h.bf16 %v3162
        %v3621 = vunpack.c.l.bf16 %v3163
        %v3622 = vunpack.c.h.bf16 %v3163
        %v3623 = vunpack.c.l.bf16 %v3164
        %v3624 = vunpack.c.h.bf16 %v3164
        %v3625 = vunpack.c.l.bf16 %v3165
        %v3626 = vunpack.c.h.bf16 %v3165
        %v3627 = vunpack.c.l.bf16 %v3166
        %v3628 = vunpack.c.h.bf16 %v3166
        %v3629 = vunpack.c.l.bf16 %v3167
        %v3630 = vunpack.c.h.bf16 %v3167
        %v3631 = vunpack.c.l.bf16 %v3168
        %v3632 = vunpack.c.h.bf16 %v3168
        %v3633 = vunpack.c.l.bf16 %v3169
        %v3634 = vunpack.c.h.bf16 %v3169
        %v3635 = vunpack.c.l.bf16 %v3170
        %v3636 = vunpack.c.h.bf16 %v3170
        %v3637 = vunpack.c.l.bf16 %v3171
        %v3638 = vunpack.c.h.bf16 %v3171
        %v3639 = vunpack.c.l.bf16 %v3172
        %v3640 = vunpack.c.h.bf16 %v3172
        %v3641 = vunpack.c.l.bf16 %v3173
        %v3642 = vunpack.c.h.bf16 %v3173
        %v3643 = vunpack.c.l.bf16 %v3174
        %v3644 = vunpack.c.h.bf16 %v3174
        %v3645 = vunpack.c.l.bf16 %v3175
        %v3646 = vunpack.c.h.bf16 %v3175
        %v3647 = vunpack.c.l.bf16 %v3176
        %v3648 = vunpack.c.h.bf16 %v3176
        %v3649 = vunpack.c.l.bf16 %v3177
        %v3650 = vunpack.c.h.bf16 %v3177
        %v3651 = vunpack.c.l.bf16 %v3178
        %v3652 = vunpack.c.h.bf16 %v3178
        %v3653 = vunpack.c.l.bf16 %v3179
        %v3654 = vunpack.c.h.bf16 %v3179
        %v3655 = vunpack.c.l.bf16 %v3180
        %v3656 = vunpack.c.h.bf16 %v3180
        %v3657 = vunpack.c.l.bf16 %v3181
        %v3658 = vunpack.c.h.bf16 %v3181
        %v3659 = vunpack.c.l.bf16 %v3182
        %v3660 = vunpack.c.h.bf16 %v3182
        %v3661 = vunpack.c.l.bf16 %v3183
        %v3662 = vunpack.c.h.bf16 %v3183
        %v3663 = vunpack.c.l.bf16 %v3184
        %v3664 = vunpack.c.h.bf16 %v3184
        %v3665 = vunpack.c.l.bf16 %v3185
        %v3666 = vunpack.c.h.bf16 %v3185
        %v3667 = vunpack.c.l.bf16 %v3186
        %v3668 = vunpack.c.h.bf16 %v3186
        %v3669 = vunpack.c.l.bf16 %v3187
        %v3670 = vunpack.c.h.bf16 %v3187
        %v3671 = vunpack.c.l.bf16 %v3188
        %v3672 = vunpack.c.h.bf16 %v3188
        %v3673 = vunpack.c.l.bf16 %v3189
        %v3674 = vunpack.c.h.bf16 %v3189
        %v3675 = vunpack.c.l.bf16 %v3190
        %v3676 = vunpack.c.h.bf16 %v3190
        %v3677 = vunpack.c.l.bf16 %v3191
        %v3678 = vunpack.c.h.bf16 %v3191
        %v3679 = vunpack.c.l.bf16 %v3192
        %v3680 = vunpack.c.h.bf16 %v3192
        %v3681 = vunpack.c.l.bf16 %v3193
        %v3682 = vunpack.c.h.bf16 %v3193
        %v3683 = vunpack.c.l.bf16 %v3194
        %v3684 = vunpack.c.h.bf16 %v3194
        %v3685 = vunpack.c.l.bf16 %v3195
        %v3686 = vunpack.c.h.bf16 %v3195
        %v3687 = vunpack.c.l.bf16 %v3196
        %v3688 = vunpack.c.h.bf16 %v3196
        %v3689 = vunpack.c.l.bf16 %v3197
        %v3690 = vunpack.c.h.bf16 %v3197
        %v3691 = vunpack.c.l.bf16 %v3198
        %v3692 = vunpack.c.h.bf16 %v3198
        %v3693 = vunpack.c.l.bf16 %v3199
        %v3694 = vunpack.c.h.bf16 %v3199
        %v3695 = vunpack.c.l.bf16 %v3200
        %v3696 = vunpack.c.h.bf16 %v3200
        %v3697 = vunpack.c.l.bf16 %v3201
        %v3698 = vunpack.c.h.bf16 %v3201
        %v3699 = vunpack.c.l.bf16 %v3202
        %v3700 = vunpack.c.h.bf16 %v3202
        %v3701 = vunpack.c.l.bf16 %v3203
        %v3702 = vunpack.c.h.bf16 %v3203
        %v3703 = vunpack.c.l.bf16 %v3204
        %v3704 = vunpack.c.h.bf16 %v3204
        %v3705 = vunpack.c.l.bf16 %v3205
        %v3706 = vunpack.c.h.bf16 %v3205
        %v3707 = vunpack.c.l.bf16 %v3206
        %v3708 = vunpack.c.h.bf16 %v3206
        %v3709 = vunpack.c.l.bf16 %v3207
        %v3710 = vunpack.c.h.bf16 %v3207
        %v3711 = vunpack.c.l.bf16 %v3208
        %v3712 = vunpack.c.h.bf16 %v3208
        %v3713 = vunpack.c.l.bf16 %v3209
        %v3714 = vunpack.c.h.bf16 %v3209
        %v3715 = vunpack.c.l.bf16 %v3210
        %v3716 = vunpack.c.h.bf16 %v3210
        %v3717 = vunpack.c.l.bf16 %v3211
        %v3718 = vunpack.c.h.bf16 %v3211
        %v3719 = vunpack.c.l.bf16 %v3212
        %v3720 = vunpack.c.h.bf16 %v3212
        %v3721 = vunpack.c.l.bf16 %v3213
        %v3722 = vunpack.c.h.bf16 %v3213
        %v3723 = vunpack.c.l.bf16 %v3214
        %v3724 = vunpack.c.h.bf16 %v3214
        %v3725 = vunpack.c.l.bf16 %v3215
        %v3726 = vunpack.c.h.bf16 %v3215
        %v3727 = vunpack.c.l.bf16 %v3216
        %v3728 = vunpack.c.h.bf16 %v3216
        %v3729 = vunpack.c.l.bf16 %v3217
        %v3730 = vunpack.c.h.bf16 %v3217
        %v3731 = vunpack.c.l.bf16 %v3218
        %v3732 = vunpack.c.h.bf16 %v3218
        %v3733 = vunpack.c.l.bf16 %v3219
        %v3734 = vunpack.c.h.bf16 %v3219
        %v3735 = vunpack.c.l.bf16 %v3220
        %v3736 = vunpack.c.h.bf16 %v3220
        %v3737 = vunpack.c.l.bf16 %v3221
        %v3738 = vunpack.c.h.bf16 %v3221
        %v3739 = vunpack.c.l.bf16 %v3222
        %v3740 = vunpack.c.h.bf16 %v3222
        %v3741 = vunpack.c.l.bf16 %v3223
        %v3742 = vunpack.c.h.bf16 %v3223
        %v3743 = vunpack.c.l.bf16 %v3224
        %v3744 = vunpack.c.h.bf16 %v3224
        %v3745 = vunpack.c.l.bf16 %v3225
        %v3746 = vunpack.c.h.bf16 %v3225
        %v3747 = vunpack.c.l.bf16 %v3226
        %v3748 = vunpack.c.h.bf16 %v3226
        %v3749 = vunpack.c.l.bf16 %v3227
        %v3750 = vunpack.c.h.bf16 %v3227
        %v3751 = vunpack.c.l.bf16 %v3228
        %v3752 = vunpack.c.h.bf16 %v3228
        %v3753 = vunpack.c.l.bf16 %v3229
        %v3754 = vunpack.c.h.bf16 %v3229
        %v3755 = vunpack.c.l.bf16 %v3230
        %v3756 = vunpack.c.h.bf16 %v3230
        %v3757 = vunpack.c.l.bf16 %v3231
        %v3758 = vunpack.c.h.bf16 %v3231
        %v3759 = vunpack.c.l.bf16 %v3232
        %v3760 = vunpack.c.h.bf16 %v3232
        %v3761 = vunpack.c.l.bf16 %v3233
        %v3762 = vunpack.c.h.bf16 %v3233
        %v3763 = vunpack.c.l.bf16 %v3234
        %v3764 = vunpack.c.h.bf16 %v3234
        %v3765 = vunpack.c.l.bf16 %v3235
        %v3766 = vunpack.c.h.bf16 %v3235
        %v3767 = vunpack.c.l.bf16 %v3236
        %v3768 = vunpack.c.h.bf16 %v3236
        %v3769 = vunpack.c.l.bf16 %v3237
        %v3770 = vunpack.c.h.bf16 %v3237
        %v3771 = vunpack.c.l.bf16 %v3238
        %v3772 = vunpack.c.h.bf16 %v3238
        %v3773 = vunpack.c.l.bf16 %v3239
        %v3774 = vunpack.c.h.bf16 %v3239
        %v3775 = vunpack.c.l.bf16 %v3240
        %v3776 = vunpack.c.h.bf16 %v3240
        %v3777 = vunpack.c.l.bf16 %v3241
        %v3778 = vunpack.c.h.bf16 %v3241
        %v3779 = vunpack.c.l.bf16 %v3242
        %v3780 = vunpack.c.h.bf16 %v3242
        %v3781 = vunpack.c.l.bf16 %v3243
        %v3782 = vunpack.c.h.bf16 %v3243
        %v3783 = vunpack.c.l.bf16 %v3244
        %v3784 = vunpack.c.h.bf16 %v3244
        %v3785 = vunpack.c.l.bf16 %v3245
        %v3786 = vunpack.c.h.bf16 %v3245
        %v3787 = vunpack.c.l.bf16 %v3246
        %v3788 = vunpack.c.h.bf16 %v3246
        %v3789 = vunpack.c.l.bf16 %v3247
        %v3790 = vunpack.c.h.bf16 %v3247
        %v3791 = vunpack.c.l.bf16 %v3248
        %v3792 = vunpack.c.h.bf16 %v3248
        %v3793 = vunpack.c.l.bf16 %v3249
        %v3794 = vunpack.c.h.bf16 %v3249
        %v3795 = vunpack.c.l.bf16 %v3250
        %v3796 = vunpack.c.h.bf16 %v3250
        %v3797 = vunpack.c.l.bf16 %v3251
        %v3798 = vunpack.c.h.bf16 %v3251
        %v3799 = vunpack.c.l.bf16 %v3252
        %v3800 = vunpack.c.h.bf16 %v3252
        %v3801 = vunpack.c.l.bf16 %v3253
        %v3802 = vunpack.c.h.bf16 %v3253
        %v3803 = vunpack.c.l.bf16 %v3254
        %v3804 = vunpack.c.h.bf16 %v3254
        %v3805 = vunpack.c.l.bf16 %v3255
        %v3806 = vunpack.c.h.bf16 %v3255
        %v3807 = vunpack.c.l.bf16 %v3256
        %v3808 = vunpack.c.h.bf16 %v3256
        %v3809 = vunpack.c.l.bf16 %v3257
        %v3810 = vunpack.c.h.bf16 %v3257
        %v3811 = vunpack.c.l.bf16 %v3258
        %v3812 = vunpack.c.h.bf16 %v3258
        %v3813 = vunpack.c.l.bf16 %v3259
        %v3814 = vunpack.c.h.bf16 %v3259
        %v3815 = vunpack.c.l.bf16 %v3260
        %v3816 = vunpack.c.h.bf16 %v3260
        %v3817 = vunpack.c.l.bf16 %v3261
        %v3818 = vunpack.c.h.bf16 %v3261
        %v3819 = vunpack.c.l.bf16 %v3262
        %v3820 = vunpack.c.h.bf16 %v3262
        %v3821 = vunpack.c.l.bf16 %v3263
        %v3822 = vunpack.c.h.bf16 %v3263
        %v3823 = vunpack.c.l.bf16 %v3264
        %v3824 = vunpack.c.h.bf16 %v3264
        %v3825 = vunpack.c.l.bf16 %v3265
        %v3826 = vunpack.c.h.bf16 %v3265
        %v3827 = vunpack.c.l.bf16 %v3266
        %v3828 = vunpack.c.h.bf16 %v3266
        %v3829 = vunpack.c.l.bf16 %v3267
        %v3830 = vunpack.c.h.bf16 %v3267
        %v3831 = vunpack.c.l.bf16 %v3268
        %v3832 = vunpack.c.h.bf16 %v3268
        %v3833 = vunpack.c.l.bf16 %v3269
        %v3834 = vunpack.c.h.bf16 %v3269
        %v3835 = vunpack.c.l.bf16 %v3270
        %v3836 = vunpack.c.h.bf16 %v3270
        %v3837 = vunpack.c.l.bf16 %v3271
        %v3838 = vunpack.c.h.bf16 %v3271
        %v3839 = vunpack.c.l.bf16 %v3272
        %v3840 = vunpack.c.h.bf16 %v3272
        %v3841 = vunpack.c.l.bf16 %v3273
        %v3842 = vunpack.c.h.bf16 %v3273
        %v3843 = vunpack.c.l.bf16 %v3274
        %v3844 = vunpack.c.h.bf16 %v3274
        %v3845 = vunpack.c.l.bf16 %v3275
        %v3846 = vunpack.c.h.bf16 %v3275
        %v3847 = vunpack.c.l.bf16 %v3276
        %v3848 = vunpack.c.h.bf16 %v3276
        %v3849 = vunpack.c.l.bf16 %v3277
        %v3850 = vunpack.c.h.bf16 %v3277
        %v3851 = vunpack.c.l.bf16 %v3278
        %v3852 = vunpack.c.h.bf16 %v3278
        %v3853 = vunpack.c.l.bf16 %v3279
        %v3854 = vunpack.c.h.bf16 %v3279
        %v3855 = vunpack.c.l.bf16 %v3280
        %v3856 = vunpack.c.h.bf16 %v3280
        %v3857 = vunpack.c.l.bf16 %v3281
        %v3858 = vunpack.c.h.bf16 %v3281
        %v3859 = vunpack.c.l.bf16 %v3282
        %v3860 = vunpack.c.h.bf16 %v3282
        %v3861 = vunpack.c.l.bf16 %v3283
        %v3862 = vunpack.c.h.bf16 %v3283
        %v3863 = vunpack.c.l.bf16 %v3284
        %v3864 = vunpack.c.h.bf16 %v3284
        %v3865 = vunpack.c.l.bf16 %v3285
        %v3866 = vunpack.c.h.bf16 %v3285
        %v3867 = vunpack.c.l.bf16 %v3286
        %v3868 = vunpack.c.h.bf16 %v3286
        %v3869 = vunpack.c.l.bf16 %v3287
        %v3870 = vunpack.c.h.bf16 %v3287
        %v3871 = vunpack.c.l.bf16 %v3288
        %v3872 = vunpack.c.h.bf16 %v3288
        %v3873 = vunpack.c.l.bf16 %v3289
        %v3874 = vunpack.c.h.bf16 %v3289
        %v3875 = vunpack.c.l.bf16 %v3290
        %v3876 = vunpack.c.h.bf16 %v3290
        %v3877 = vunpack.c.l.bf16 %v3291
        %v3878 = vunpack.c.h.bf16 %v3291
        %v3879 = vunpack.c.l.bf16 %v3292
        %v3880 = vunpack.c.h.bf16 %v3292
        %v3881 = vunpack.c.l.bf16 %v3293
        %v3882 = vunpack.c.h.bf16 %v3293
        %v3883 = vunpack.c.l.bf16 %v3294
        %v3884 = vunpack.c.h.bf16 %v3294
        %v3885 = vunpack.c.l.bf16 %v3295
        %v3886 = vunpack.c.h.bf16 %v3295
        %v3887 = vunpack.c.l.bf16 %v3296
        %v3888 = vunpack.c.h.bf16 %v3296
        %v3889 = vunpack.c.l.bf16 %v3297
        %v3890 = vunpack.c.h.bf16 %v3297
        %v3891 = vunpack.c.l.bf16 %v3298
        %v3892 = vunpack.c.h.bf16 %v3298
        %v3893 = vunpack.c.l.bf16 %v3299
        %v3894 = vunpack.c.h.bf16 %v3299
        %v3895 = vunpack.c.l.bf16 %v3300
        %v3896 = vunpack.c.h.bf16 %v3300
        %v3897 = vunpack.c.l.bf16 %v3301
        %v3898 = vunpack.c.h.bf16 %v3301
        %v3899 = vunpack.c.l.bf16 %v3302
        %v3900 = vunpack.c.h.bf16 %v3302
        %v3901 = vunpack.c.l.bf16 %v3303
        %v3902 = vunpack.c.h.bf16 %v3303
        %v3903 = vunpack.c.l.bf16 %v3304
        %v3904 = vunpack.c.h.bf16 %v3304
        %v3905 = vunpack.c.l.bf16 %v3305
        %v3906 = vunpack.c.h.bf16 %v3305
        %v3907 = vunpack.c.l.bf16 %v3306
        %v3908 = vunpack.c.h.bf16 %v3306
        %v3909 = vunpack.c.l.bf16 %v3307
        %v3910 = vunpack.c.h.bf16 %v3307
        %v3911 = vunpack.c.l.bf16 %v3308
        %v3912 = vunpack.c.h.bf16 %v3308
        %v3913 = vunpack.c.l.bf16 %v3309
        %v3914 = vunpack.c.h.bf16 %v3309
        %v3915 = vunpack.c.l.bf16 %v3310
        %v3916 = vunpack.c.h.bf16 %v3310
        %v3917 = vunpack.c.l.bf16 %v3311
        %v3918 = vunpack.c.h.bf16 %v3311
        %v3919 = vunpack.c.l.bf16 %v3312
        %v3920 = vunpack.c.h.bf16 %v3312
        %v3921 = vunpack.c.l.bf16 %v3313
        %v3922 = vunpack.c.h.bf16 %v3313
        %v3923 = vunpack.c.l.bf16 %v3314
        %v3924 = vunpack.c.h.bf16 %v3314
        %v3925 = vunpack.c.l.bf16 %v3315
        %v3926 = vunpack.c.h.bf16 %v3315
        %v3927 = vunpack.c.l.bf16 %v3316
        %v3928 = vunpack.c.h.bf16 %v3316
        %v3929 = vunpack.c.l.bf16 %v3317
        %v3930 = vunpack.c.h.bf16 %v3317
        %v3931 = vunpack.c.l.bf16 %v3318
        %v3932 = vunpack.c.h.bf16 %v3318
        %v3933 = vunpack.c.l.bf16 %v3319
        %v3934 = vunpack.c.h.bf16 %v3319
        %v3935 = vunpack.c.l.bf16 %v3320
        %v3936 = vunpack.c.h.bf16 %v3320
        %v3937 = vunpack.c.l.bf16 %v3321
        %v3938 = vunpack.c.h.bf16 %v3321
        %v3939 = vunpack.c.l.bf16 %v3322
        %v3940 = vunpack.c.h.bf16 %v3322
        %v3941 = vunpack.c.l.bf16 %v3323
        %v3942 = vunpack.c.h.bf16 %v3323
        %v3943 = vunpack.c.l.bf16 %v3324
        %v3944 = vunpack.c.h.bf16 %v3324
        %v3945 = vunpack.c.l.bf16 %v3325
        %v3946 = vunpack.c.h.bf16 %v3325
        %v3947 = vunpack.c.l.bf16 %v3326
        %v3948 = vunpack.c.h.bf16 %v3326
        %v3949 = vunpack.c.l.bf16 %v3327
        %v3950 = vunpack.c.h.bf16 %v3327
        %v3951 = vunpack.c.l.bf16 %v3328
        %v3952 = vunpack.c.h.bf16 %v3328
        %v3953 = vunpack.c.l.bf16 %v3329
        %v3954 = vunpack.c.h.bf16 %v3329
        %v3955 = vunpack.c.l.bf16 %v3330
        %v3956 = vunpack.c.h.bf16 %v3330
        %v3957 = vunpack.c.l.bf16 %v3331
        %v3958 = vunpack.c.h.bf16 %v3331
        %v3959 = vunpack.c.l.bf16 %v3332
        %v3960 = vunpack.c.h.bf16 %v3332
        %v3961 = vunpack.c.l.bf16 %v3333
        %v3962 = vunpack.c.h.bf16 %v3333
        %v3963 = vunpack.c.l.bf16 %v3334
        %v3964 = vunpack.c.h.bf16 %v3334
        %v3965 = vunpack.c.l.bf16 %v3335
        %v3966 = vunpack.c.h.bf16 %v3335
        %v3967 = vunpack.c.l.bf16 %v3336
        %v3968 = vunpack.c.h.bf16 %v3336
        %v3969 = vunpack.c.l.bf16 %v3337
        %v3970 = vunpack.c.h.bf16 %v3337
        %v3971 = vunpack.c.l.bf16 %v3338
        %v3972 = vunpack.c.h.bf16 %v3338
        %v3973 = vunpack.c.l.bf16 %v3339
        %v3974 = vunpack.c.h.bf16 %v3339
        %v3975 = vunpack.c.l.bf16 %v3340
        %v3976 = vunpack.c.h.bf16 %v3340
        %v3977 = vunpack.c.l.bf16 %v3341
        %v3978 = vunpack.c.h.bf16 %v3341
        %v3979 = vunpack.c.l.bf16 %v3342
        %v3980 = vunpack.c.h.bf16 %v3342
        %v3981 = vunpack.c.l.bf16 %v3343
        %v3982 = vunpack.c.h.bf16 %v3343
        %v3983 = vunpack.c.l.bf16 %v3344
        %v3984 = vunpack.c.h.bf16 %v3344
        %v3985 = vunpack.c.l.bf16 %v3345
        %v3986 = vunpack.c.h.bf16 %v3345
        %v3987 = vunpack.c.l.bf16 %v3346
        %v3988 = vunpack.c.h.bf16 %v3346
        %v3989 = vunpack.c.l.bf16 %v3347
        %v3990 = vunpack.c.h.bf16 %v3347
        %v3991 = vunpack.c.l.bf16 %v3348
        %v3992 = vunpack.c.h.bf16 %v3348
        %v3993 = vunpack.c.l.bf16 %v3349
        %v3994 = vunpack.c.h.bf16 %v3349
        %v3995 = vunpack.c.l.bf16 %v3350
        %v3996 = vunpack.c.h.bf16 %v3350
        %v3997 = vunpack.c.l.bf16 %v3351
        %v3998 = vunpack.c.h.bf16 %v3351
        %v3999 = vunpack.c.l.bf16 %v3352
        %v4000 = vunpack.c.h.bf16 %v3352
        %v4001 = vunpack.c.l.bf16 %v3353
        %v4002 = vunpack.c.h.bf16 %v3353
        %v4003 = vunpack.c.l.bf16 %v3354
        %v4004 = vunpack.c.h.bf16 %v3354
        %v4005 = vunpack.c.l.bf16 %v3355
        %v4006 = vunpack.c.h.bf16 %v3355
        %v4007 = vunpack.c.l.bf16 %v3356
        %v4008 = vunpack.c.h.bf16 %v3356
        %v4009 = vunpack.c.l.bf16 %v3357
        %v4010 = vunpack.c.h.bf16 %v3357
        %v4011 = vunpack.c.l.bf16 %v3358
        %v4012 = vunpack.c.h.bf16 %v3358
        %v4013 = vunpack.c.l.bf16 %v3359
        %v4014 = vunpack.c.h.bf16 %v3359
        %v4015 = vunpack.c.l.bf16 %v3360
        %v4016 = vunpack.c.h.bf16 %v3360
        %v4017 = vunpack.c.l.bf16 %v3361
        %v4018 = vunpack.c.h.bf16 %v3361
        %v4019 = vunpack.c.l.bf16 %v3362
        %v4020 = vunpack.c.h.bf16 %v3362
        %v4021 = vunpack.c.l.bf16 %v3363
        %v4022 = vunpack.c.h.bf16 %v3363
        %v4023 = vunpack.c.l.bf16 %v3364
        %v4024 = vunpack.c.h.bf16 %v3364
        %v4025 = vunpack.c.l.bf16 %v3365
        %v4026 = vunpack.c.h.bf16 %v3365
        %v4027 = vunpack.c.l.bf16 %v3366
        %v4028 = vunpack.c.h.bf16 %v3366
        %v4029 = vunpack.c.l.bf16 %v3367
        %v4030 = vunpack.c.h.bf16 %v3367
        %v4031 = vunpack.c.l.bf16 %v3368
        %v4032 = vunpack.c.h.bf16 %v3368
        %v4033 = vunpack.c.l.bf16 %v3369
        %v4034 = vunpack.c.h.bf16 %v3369
        %v4035 = vunpack.c.l.bf16 %v3370
        %v4036 = vunpack.c.h.bf16 %v3370
        %v4037 = vunpack.c.l.bf16 %v3371
        %v4038 = vunpack.c.h.bf16 %v3371
        %v4039 = vunpack.c.l.bf16 %v3372
        %v4040 = vunpack.c.h.bf16 %v3372
        %v4041 = vunpack.c.l.bf16 %v3373
        %v4042 = vunpack.c.h.bf16 %v3373
        %v4043 = vunpack.c.l.bf16 %v3374
        %v4044 = vunpack.c.h.bf16 %v3374
        %v4045 = vunpack.c.l.bf16 %v3375
        %v4046 = vunpack.c.h.bf16 %v3375
        %v4047 = vunpack.c.l.bf16 %v3376
        %v4048 = vunpack.c.h.bf16 %v3376
        %v4049 = vunpack.c.l.bf16 %v3377
        %v4050 = vunpack.c.h.bf16 %v3377
        %v4051 = vunpack.c.l.bf16 %v3378
        %v4052 = vunpack.c.h.bf16 %v3378
        %v4053 = vunpack.c.l.bf16 %v3379
        %v4054 = vunpack.c.h.bf16 %v3379
        %v4055 = vunpack.c.l.bf16 %v3380
        %v4056 = vunpack.c.h.bf16 %v3380
        %v4057 = vunpack.c.l.bf16 %v3381
        %v4058 = vunpack.c.h.bf16 %v3381
        %v4059 = vunpack.c.l.bf16 %v3382
        %v4060 = vunpack.c.h.bf16 %v3382
        %v4061 = vunpack.c.l.bf16 %v3383
        %v4062 = vunpack.c.h.bf16 %v3383
        %v4063 = vunpack.c.l.bf16 %v3384
        %v4064 = vunpack.c.h.bf16 %v3384
        %v4065 = vunpack.c.l.bf16 %v3385
        %v4066 = vunpack.c.h.bf16 %v3385
        %v4067 = vunpack.c.l.bf16 %v3386
        %v4068 = vunpack.c.h.bf16 %v3386
        %v4069 = vunpack.c.l.bf16 %v3387
        %v4070 = vunpack.c.h.bf16 %v3387
        %v4071 = vunpack.c.l.bf16 %v3388
        %v4072 = vunpack.c.h.bf16 %v3388
        %v4073 = vunpack.c.l.bf16 %v3389
        %v4074 = vunpack.c.h.bf16 %v3389
        %v4075 = vunpack.c.l.bf16 %v3390
        %v4076 = vunpack.c.h.bf16 %v3390
        %v4077 = vunpack.c.l.bf16 %v3391
        %v4078 = vunpack.c.h.bf16 %v3391
        %v4079 = vunpack.c.l.bf16 %v3392
        %v4080 = vunpack.c.h.bf16 %v3392
        %v4081 = vunpack.c.l.bf16 %v3393
        %v4082 = vunpack.c.h.bf16 %v3393
        %v4083 = vunpack.c.l.bf16 %v3394
        %v4084 = vunpack.c.h.bf16 %v3394
        %v4085 = vunpack.c.l.bf16 %v3395
        %v4086 = vunpack.c.h.bf16 %v3395
        %v4087 = vunpack.c.l.bf16 %v3396
        %v4088 = vunpack.c.h.bf16 %v3396
        %v4089 = vunpack.c.l.bf16 %v3397
        %v4090 = vunpack.c.h.bf16 %v3397
        %v4091 = vunpack.c.l.bf16 %v3398
        %v4092 = vunpack.c.h.bf16 %v3398
        %v4093 = vunpack.c.l.bf16 %v3399
        %v4094 = vunpack.c.h.bf16 %v3399
        %v4095 = vunpack.c.l.bf16 %v3400
        %v4096 = vunpack.c.h.bf16 %v3400
        %v4097 = vunpack.c.l.bf16 %v3401
        %v4098 = vunpack.c.h.bf16 %v3401
        %v4099 = vunpack.c.l.bf16 %v3402
        %v4100 = vunpack.c.h.bf16 %v3402
        %v4101 = vunpack.c.l.bf16 %v3403
        %v4102 = vunpack.c.h.bf16 %v3403
        %v4103 = vunpack.c.l.bf16 %v3404
        %v4104 = vunpack.c.h.bf16 %v3404
        %v4105 = vunpack.c.l.bf16 %v3405
        %v4106 = vunpack.c.h.bf16 %v3405
        %v4107 = vunpack.c.l.bf16 %v3406
        %v4108 = vunpack.c.h.bf16 %v3406
        %v4109 = vunpack.c.l.bf16 %v3407
        %v4110 = vunpack.c.h.bf16 %v3407
        %v4111 = vunpack.c.l.bf16 %v3408
        %v4112 = vunpack.c.h.bf16 %v3408
        %v4113 = vunpack.c.l.bf16 %v3409
        %v4114 = vunpack.c.h.bf16 %v3409
        %v4115 = vunpack.c.l.bf16 %v3410
        %v4116 = vunpack.c.h.bf16 %v3410
        %v4117 = vunpack.c.l.bf16 %v3411
        %v4118 = vunpack.c.h.bf16 %v3411
        %v4119 = vunpack.c.l.bf16 %v3412
        %v4120 = vunpack.c.h.bf16 %v3412
        %v4121 = vunpack.c.l.bf16 %v3413
        %v4122 = vunpack.c.h.bf16 %v3413
        %v4123 = vunpack.c.l.bf16 %v3414
        %v4124 = vunpack.c.h.bf16 %v3414
        %v4125 = vunpack.c.l.bf16 %v3415
        %v4126 = vunpack.c.h.bf16 %v3415
        %v4127 = vunpack.c.l.bf16 %v3416
        %v4128 = vunpack.c.h.bf16 %v3416
        %v4129 = vunpack.c.l.bf16 %v3417
        %v4130 = vunpack.c.h.bf16 %v3417
        %v4131 = vunpack.c.l.bf16 %v3418
        %v4132 = vunpack.c.h.bf16 %v3418
        %v4133 = vunpack.c.l.bf16 %v3419
        %v4134 = vunpack.c.h.bf16 %v3419
        %v4135 = vunpack.c.l.bf16 %v3420
        %v4136 = vunpack.c.h.bf16 %v3420
        %v4137 = vunpack.c.l.bf16 %v3421
        %v4138 = vunpack.c.h.bf16 %v3421
        %v4139 = vunpack.c.l.bf16 %v3422
        %v4140 = vunpack.c.h.bf16 %v3422
        %v4141 = vunpack.c.l.bf16 %v3423
        %v4142 = vunpack.c.h.bf16 %v3423
        %v4143 = vunpack.c.l.bf16 %v3424
        %v4144 = vunpack.c.h.bf16 %v3424
        %v4145 = vunpack.c.l.bf16 %v3425
        %v4146 = vunpack.c.h.bf16 %v3425
        %v4147 = vunpack.c.l.bf16 %v3426
        %v4148 = vunpack.c.h.bf16 %v3426
        %v4149 = vunpack.c.l.bf16 %v3427
        %v4150 = vunpack.c.h.bf16 %v3427
        %v4151 = vunpack.c.l.bf16 %v3428
        %v4152 = vunpack.c.h.bf16 %v3428
        %v4153 = vunpack.c.l.bf16 %v3429
        %v4154 = vunpack.c.h.bf16 %v3429
        %v4155 = vunpack.c.l.bf16 %v3430
        %v4156 = vunpack.c.h.bf16 %v3430
        %v4157 = vunpack.c.l.bf16 %v3431
        %v4158 = vunpack.c.h.bf16 %v3431
        %v4159 = vunpack.c.l.bf16 %v3432
        %v4160 = vunpack.c.h.bf16 %v3432
        %v4161 = vunpack.c.l.bf16 %v3433
        %v4162 = vunpack.c.h.bf16 %v3433
        %v4163 = vunpack.c.l.bf16 %v3434
        %v4164 = vunpack.c.h.bf16 %v3434
        %v4165 = vunpack.c.l.bf16 %v3435
        %v4166 = vunpack.c.h.bf16 %v3435
        %v4167 = vunpack.c.l.bf16 %v3436
        %v4168 = vunpack.c.h.bf16 %v3436
        %v4169 = vunpack.c.l.bf16 %v3437
        %v4170 = vunpack.c.h.bf16 %v3437
        %v4171 = vunpack.c.l.bf16 %v3438
        %v4172 = vunpack.c.h.bf16 %v3438
        %v4173 = vunpack.c.l.bf16 %v3439
        %v4174 = vunpack.c.h.bf16 %v3439
        %v4175 = vunpack.c.l.bf16 %v3440
        %v4176 = vunpack.c.h.bf16 %v3440
        %v4177 = vunpack.c.l.bf16 %v3441
        %v4178 = vunpack.c.h.bf16 %v3441
        %v4179 = vunpack.c.l.bf16 %v3442
        %v4180 = vunpack.c.h.bf16 %v3442
        %v4181 = vunpack.c.l.bf16 %v3443
        %v4182 = vunpack.c.h.bf16 %v3443
        %v4183 = vunpack.c.l.bf16 %v3444
        %v4184 = vunpack.c.h.bf16 %v3444
        %v4185 = vunpack.c.l.bf16 %v3445
        %v4186 = vunpack.c.h.bf16 %v3445
        %v4187 = vunpack.c.l.bf16 %v3446
        %v4188 = vunpack.c.h.bf16 %v3446
        %v4189 = vunpack.c.l.bf16 %v3447
        %v4190 = vunpack.c.h.bf16 %v3447
        %v4191 = vunpack.c.l.bf16 %v3448
        %v4192 = vunpack.c.h.bf16 %v3448
        %v4193 = vunpack.c.l.bf16 %v3449
        %v4194 = vunpack.c.h.bf16 %v3449
        %v4195 = vunpack.c.l.bf16 %v3450
        %v4196 = vunpack.c.h.bf16 %v3450
        %v4197 = vunpack.c.l.bf16 %v3451
        %v4198 = vunpack.c.h.bf16 %v3451
        %v4199 = vunpack.c.l.bf16 %v3452
        %v4200 = vunpack.c.h.bf16 %v3452
        %v4201 = vunpack.c.l.bf16 %v3453
        %v4202 = vunpack.c.h.bf16 %v3453
        %v4203 = vunpack.c.l.bf16 %v3454
        %v4204 = vunpack.c.h.bf16 %v3454
        %v4205 = vunpack.c.l.bf16 %v3455
        %v4206 = vunpack.c.h.bf16 %v3455
        %v4207 = vunpack.c.l.bf16 %v3456
        %v4208 = vunpack.c.h.bf16 %v3456
        %v4209 = vunpack.c.l.bf16 %v3457
        %v4210 = vunpack.c.h.bf16 %v3457
        %v4211 = vunpack.c.l.bf16 %v3458
        %v4212 = vunpack.c.h.bf16 %v3458
        %v4213 = vunpack.c.l.bf16 %v3459
        %v4214 = vunpack.c.h.bf16 %v3459
        %v4215 = vunpack.c.l.bf16 %v3460
        %v4216 = vunpack.c.h.bf16 %v3460
        %v4217 = vunpack.c.l.bf16 %v3461
        %v4218 = vunpack.c.h.bf16 %v3461
        %v4219 = vunpack.c.l.bf16 %v3462
        %v4220 = vunpack.c.h.bf16 %v3462
        %v4221 = vunpack.c.l.bf16 %v3463
        %v4222 = vunpack.c.h.bf16 %v3463
        %v4223 = vunpack.c.l.bf16 %v3464
        %v4224 = vunpack.c.h.bf16 %v3464
        %v4225 = vunpack.c.l.bf16 %v3465
        %v4226 = vunpack.c.h.bf16 %v3465
        %v4227 = vunpack.c.l.bf16 %v3466
        %v4228 = vunpack.c.h.bf16 %v3466
        %v4229 = vunpack.c.l.bf16 %v3467
        %v4230 = vunpack.c.h.bf16 %v3467
        %v4231 = vunpack.c.l.bf16 %v3468
        %v4232 = vunpack.c.h.bf16 %v3468
        %v4233 = vunpack.c.l.bf16 %v3469
        %v4234 = vunpack.c.h.bf16 %v3469
        %v4235 = vunpack.c.l.bf16 %v3470
        %v4236 = vunpack.c.h.bf16 %v3470
        %v4237 = vunpack.c.l.bf16 %v3471
        %v4238 = vunpack.c.h.bf16 %v3471
        %v4239 = vunpack.c.l.bf16 %v3472
        %v4240 = vunpack.c.h.bf16 %v3472
        %v4241 = vld [vmem:[#allocation2] sm:$0xff]
        %v4242 = vld [vmem:[#allocation2 + $0x8] sm:$0xff]
        %v4243 = vld [vmem:[#allocation2 + $0x10] sm:$0xff]
        %v4244 = vld [vmem:[#allocation2 + $0x18] sm:$0xff]
        %v4245 = vld [vmem:[#allocation2 + $0x20] sm:$0xff]
        %v4246 = vld [vmem:[#allocation2 + $0x28] sm:$0xff]
        %v4247 = vadd.f32 %v3473, %v3479
        %v4248 = vadd.f32 %v4247, %v3485
        %v4249 = vadd.f32 %v4248, %v3491
        %v4250 = vadd.f32 %v4249, %v3497
        %v4251 = vadd.f32 %v4250, %v3503
        %v4252 = vadd.f32 %v4251, %v3509
        %v4253 = vadd.f32 %v4252, %v3515
        %v4254 = vadd.f32 %v4253, %v3521
        %v4255 = vadd.f32 %v4254, %v3527
        %v4256 = vadd.f32 %v4255, %v3533
        %v4257 = vadd.f32 %v4256, %v3539
        %v4258 = vadd.f32 %v4257, %v3545
        %v4259 = vadd.f32 %v4258, %v3551
        %v4260 = vadd.f32 %v4259, %v3557
        %v4261 = vadd.f32 %v4260, %v3563
        %v4262 = vrot.slane %v4261, 4
        %v4263 = vadd.f32 %v4261, %v4262
        %v4264 = vrot.slane %v4263, 2
        %v4265 = vadd.f32 %v4263, %v4264
        %v4266 = vrot.slane %v4265, 1
        %v4267 = vadd.f32 %v4265, %v4266
        %v4268 = vadd.f32 %v3474, %v3480
        %v4269 = vadd.f32 %v4268, %v3486
        %v4270 = vadd.f32 %v4269, %v3492
        %v4271 = vadd.f32 %v4270, %v3498
        %v4272 = vadd.f32 %v4271, %v3504
        %v4273 = vadd.f32 %v4272, %v3510
        %v4274 = vadd.f32 %v4273, %v3516
        %v4275 = vadd.f32 %v4274, %v3522
        %v4276 = vadd.f32 %v4275, %v3528
        %v4277 = vadd.f32 %v4276, %v3534
        %v4278 = vadd.f32 %v4277, %v3540
        %v4279 = vadd.f32 %v4278, %v3546
        %v4280 = vadd.f32 %v4279, %v3552
        %v4281 = vadd.f32 %v4280, %v3558
        %v4282 = vadd.f32 %v4281, %v3564
        %v4283 = vrot.slane %v4282, 4
        %v4284 = vadd.f32 %v4282, %v4283
        %v4285 = vrot.slane %v4284, 2
        %v4286 = vadd.f32 %v4284, %v4285
        %v4287 = vrot.slane %v4286, 1
        %v4288 = vadd.f32 %v4286, %v4287
        %v4289 = vadd.f32 %v3475, %v3481
        %v4290 = vadd.f32 %v4289, %v3487
        %v4291 = vadd.f32 %v4290, %v3493
        %v4292 = vadd.f32 %v4291, %v3499
        %v4293 = vadd.f32 %v4292, %v3505
        %v4294 = vadd.f32 %v4293, %v3511
        %v4295 = vadd.f32 %v4294, %v3517
        %v4296 = vadd.f32 %v4295, %v3523
        %v4297 = vadd.f32 %v4296, %v3529
        %v4298 = vadd.f32 %v4297, %v3535
        %v4299 = vadd.f32 %v4298, %v3541
        %v4300 = vadd.f32 %v4299, %v3547
        %v4301 = vadd.f32 %v4300, %v3553
        %v4302 = vadd.f32 %v4301, %v3559
        %v4303 = vadd.f32 %v4302, %v3565
        %v4304 = vrot.slane %v4303, 4
        %v4305 = vadd.f32 %v4303, %v4304
        %v4306 = vrot.slane %v4305, 2
        %v4307 = vadd.f32 %v4305, %v4306
        %v4308 = vrot.slane %v4307, 1
        %v4309 = vadd.f32 %v4307, %v4308
        %v4310 = vadd.f32 %v3476, %v3482
        %v4311 = vadd.f32 %v4310, %v3488
        %v4312 = vadd.f32 %v4311, %v3494
        %v4313 = vadd.f32 %v4312, %v3500
        %v4314 = vadd.f32 %v4313, %v3506
        %v4315 = vadd.f32 %v4314, %v3512
        %v4316 = vadd.f32 %v4315, %v3518
        %v4317 = vadd.f32 %v4316, %v3524
        %v4318 = vadd.f32 %v4317, %v3530
        %v4319 = vadd.f32 %v4318, %v3536
        %v4320 = vadd.f32 %v4319, %v3542
        %v4321 = vadd.f32 %v4320, %v3548
        %v4322 = vadd.f32 %v4321, %v3554
        %v4323 = vadd.f32 %v4322, %v3560
        %v4324 = vadd.f32 %v4323, %v3566
        %v4325 = vrot.slane %v4324, 4
        %v4326 = vadd.f32 %v4324, %v4325
        %v4327 = vrot.slane %v4326, 2
        %v4328 = vadd.f32 %v4326, %v4327
        %v4329 = vrot.slane %v4328, 1
        %v4330 = vadd.f32 %v4328, %v4329
        %v4331 = vadd.f32 %v3477, %v3483
        %v4332 = vadd.f32 %v4331, %v3489
        %v4333 = vadd.f32 %v4332, %v3495
        %v4334 = vadd.f32 %v4333, %v3501
        %v4335 = vadd.f32 %v4334, %v3507
        %v4336 = vadd.f32 %v4335, %v3513
        %v4337 = vadd.f32 %v4336, %v3519
        %v4338 = vadd.f32 %v4337, %v3525
        %v4339 = vadd.f32 %v4338, %v3531
        %v4340 = vadd.f32 %v4339, %v3537
        %v4341 = vadd.f32 %v4340, %v3543
        %v4342 = vadd.f32 %v4341, %v3549
        %v4343 = vadd.f32 %v4342, %v3555
        %v4344 = vadd.f32 %v4343, %v3561
        %v4345 = vadd.f32 %v4344, %v3567
        %v4346 = vrot.slane %v4345, 4
        %v4347 = vadd.f32 %v4345, %v4346
        %v4348 = vrot.slane %v4347, 2
        %v4349 = vadd.f32 %v4347, %v4348
        %v4350 = vrot.slane %v4349, 1
        %v4351 = vadd.f32 %v4349, %v4350
        %v4352 = vadd.f32 %v3478, %v3484
        %v4353 = vadd.f32 %v4352, %v3490
        %v4354 = vadd.f32 %v4353, %v3496
        %v4355 = vadd.f32 %v4354, %v3502
        %v4356 = vadd.f32 %v4355, %v3508
        %v4357 = vadd.f32 %v4356, %v3514
        %v4358 = vadd.f32 %v4357, %v3520
        %v4359 = vadd.f32 %v4358, %v3526
        %v4360 = vadd.f32 %v4359, %v3532
        %v4361 = vadd.f32 %v4360, %v3538
        %v4362 = vadd.f32 %v4361, %v3544
        %v4363 = vadd.f32 %v4362, %v3550
        %v4364 = vadd.f32 %v4363, %v3556
        %v4365 = vadd.f32 %v4364, %v3562
        %v4366 = vadd.f32 %v4365, %v3568
        %v4367 = vrot.slane %v4366, 4
        %v4368 = vadd.f32 %v4366, %v4367
        %v4369 = vrot.slane %v4368, 2
        %v4370 = vadd.f32 %v4368, %v4369
        %v4371 = vrot.slane %v4370, 1
        %v4372 = vadd.f32 %v4370, %v4371
        %v4373 = vadd.f32 %v3569, %v3575
        %v4374 = vadd.f32 %v4373, %v3581
        %v4375 = vadd.f32 %v4374, %v3587
        %v4376 = vadd.f32 %v4375, %v3593
        %v4377 = vadd.f32 %v4376, %v3599
        %v4378 = vadd.f32 %v4377, %v3605
        %v4379 = vadd.f32 %v4378, %v3611
        %v4380 = vadd.f32 %v4379, %v3617
        %v4381 = vadd.f32 %v4380, %v3623
        %v4382 = vadd.f32 %v4381, %v3629
        %v4383 = vadd.f32 %v4382, %v3635
        %v4384 = vadd.f32 %v4383, %v3641
        %v4385 = vadd.f32 %v4384, %v3647
        %v4386 = vadd.f32 %v4385, %v3653
        %v4387 = vadd.f32 %v4386, %v3659
        %v4388 = vrot.slane %v4387, 4
        %v4389 = vadd.f32 %v4387, %v4388
        %v4390 = vrot.slane %v4389, 2
        %v4391 = vadd.f32 %v4389, %v4390
        %v4392 = vrot.slane %v4391, 1
        %v4393 = vadd.f32 %v4391, %v4392
        %v4394 = vadd.f32 %v3570, %v3576
        %v4395 = vadd.f32 %v4394, %v3582
        %v4396 = vadd.f32 %v4395, %v3588
        %v4397 = vadd.f32 %v4396, %v3594
        %v4398 = vadd.f32 %v4397, %v3600
        %v4399 = vadd.f32 %v4398, %v3606
        %v4400 = vadd.f32 %v4399, %v3612
        %v4401 = vadd.f32 %v4400, %v3618
        %v4402 = vadd.f32 %v4401, %v3624
        %v4403 = vadd.f32 %v4402, %v3630
        %v4404 = vadd.f32 %v4403, %v3636
        %v4405 = vadd.f32 %v4404, %v3642
        %v4406 = vadd.f32 %v4405, %v3648
        %v4407 = vadd.f32 %v4406, %v3654
        %v4408 = vadd.f32 %v4407, %v3660
        %v4409 = vrot.slane %v4408, 4
        %v4410 = vadd.f32 %v4408, %v4409
        %v4411 = vrot.slane %v4410, 2
        %v4412 = vadd.f32 %v4410, %v4411
        %v4413 = vrot.slane %v4412, 1
        %v4414 = vadd.f32 %v4412, %v4413
        %v4415 = vadd.f32 %v3571, %v3577
        %v4416 = vadd.f32 %v4415, %v3583
        %v4417 = vadd.f32 %v4416, %v3589
        %v4418 = vadd.f32 %v4417, %v3595
        %v4419 = vadd.f32 %v4418, %v3601
        %v4420 = vadd.f32 %v4419, %v3607
        %v4421 = vadd.f32 %v4420, %v3613
        %v4422 = vadd.f32 %v4421, %v3619
        %v4423 = vadd.f32 %v4422, %v3625
        %v4424 = vadd.f32 %v4423, %v3631
        %v4425 = vadd.f32 %v4424, %v3637
        %v4426 = vadd.f32 %v4425, %v3643
        %v4427 = vadd.f32 %v4426, %v3649
        %v4428 = vadd.f32 %v4427, %v3655
        %v4429 = vadd.f32 %v4428, %v3661
        %v4430 = vrot.slane %v4429, 4
        %v4431 = vadd.f32 %v4429, %v4430
        %v4432 = vrot.slane %v4431, 2
        %v4433 = vadd.f32 %v4431, %v4432
        %v4434 = vrot.slane %v4433, 1
        %v4435 = vadd.f32 %v4433, %v4434
        %v4436 = vadd.f32 %v3572, %v3578
        %v4437 = vadd.f32 %v4436, %v3584
        %v4438 = vadd.f32 %v4437, %v3590
        %v4439 = vadd.f32 %v4438, %v3596
        %v4440 = vadd.f32 %v4439, %v3602
        %v4441 = vadd.f32 %v4440, %v3608
        %v4442 = vadd.f32 %v4441, %v3614
        %v4443 = vadd.f32 %v4442, %v3620
        %v4444 = vadd.f32 %v4443, %v3626
        %v4445 = vadd.f32 %v4444, %v3632
        %v4446 = vadd.f32 %v4445, %v3638
        %v4447 = vadd.f32 %v4446, %v3644
        %v4448 = vadd.f32 %v4447, %v3650
        %v4449 = vadd.f32 %v4448, %v3656
        %v4450 = vadd.f32 %v4449, %v3662
        %v4451 = vrot.slane %v4450, 4
        %v4452 = vadd.f32 %v4450, %v4451
        %v4453 = vrot.slane %v4452, 2
        %v4454 = vadd.f32 %v4452, %v4453
        %v4455 = vrot.slane %v4454, 1
        %v4456 = vadd.f32 %v4454, %v4455
        %v4457 = vadd.f32 %v3573, %v3579
        %v4458 = vadd.f32 %v4457, %v3585
        %v4459 = vadd.f32 %v4458, %v3591
        %v4460 = vadd.f32 %v4459, %v3597
        %v4461 = vadd.f32 %v4460, %v3603
        %v4462 = vadd.f32 %v4461, %v3609
        %v4463 = vadd.f32 %v4462, %v3615
        %v4464 = vadd.f32 %v4463, %v3621
        %v4465 = vadd.f32 %v4464, %v3627
        %v4466 = vadd.f32 %v4465, %v3633
        %v4467 = vadd.f32 %v4466, %v3639
        %v4468 = vadd.f32 %v4467, %v3645
        %v4469 = vadd.f32 %v4468, %v3651
        %v4470 = vadd.f32 %v4469, %v3657
        %v4471 = vadd.f32 %v4470, %v3663
        %v4472 = vrot.slane %v4471, 4
        %v4473 = vadd.f32 %v4471, %v4472
        %v4474 = vrot.slane %v4473, 2
        %v4475 = vadd.f32 %v4473, %v4474
        %v4476 = vrot.slane %v4475, 1
        %v4477 = vadd.f32 %v4475, %v4476
        %v4478 = vadd.f32 %v3574, %v3580
        %v4479 = vadd.f32 %v4478, %v3586
        %v4480 = vadd.f32 %v4479, %v3592
        %v4481 = vadd.f32 %v4480, %v3598
        %v4482 = vadd.f32 %v4481, %v3604
        %v4483 = vadd.f32 %v4482, %v3610
        %v4484 = vadd.f32 %v4483, %v3616
        %v4485 = vadd.f32 %v4484, %v3622
        %v4486 = vadd.f32 %v4485, %v3628
        %v4487 = vadd.f32 %v4486, %v3634
        %v4488 = vadd.f32 %v4487, %v3640
        %v4489 = vadd.f32 %v4488, %v3646
        %v4490 = vadd.f32 %v4489, %v3652
        %v4491 = vadd.f32 %v4490, %v3658
        %v4492 = vadd.f32 %v4491, %v3664
        %v4493 = vrot.slane %v4492, 4
        %v4494 = vadd.f32 %v4492, %v4493
        %v4495 = vrot.slane %v4494, 2
        %v4496 = vadd.f32 %v4494, %v4495
        %v4497 = vrot.slane %v4496, 1
        %v4498 = vadd.f32 %v4496, %v4497
        %v4499 = vadd.f32 %v3665, %v3671
        %v4500 = vadd.f32 %v4499, %v3677
        %v4501 = vadd.f32 %v4500, %v3683
        %v4502 = vadd.f32 %v4501, %v3689
        %v4503 = vadd.f32 %v4502, %v3695
        %v4504 = vadd.f32 %v4503, %v3701
        %v4505 = vadd.f32 %v4504, %v3707
        %v4506 = vadd.f32 %v4505, %v3713
        %v4507 = vadd.f32 %v4506, %v3719
        %v4508 = vadd.f32 %v4507, %v3725
        %v4509 = vadd.f32 %v4508, %v3731
        %v4510 = vadd.f32 %v4509, %v3737
        %v4511 = vadd.f32 %v4510, %v3743
        %v4512 = vadd.f32 %v4511, %v3749
        %v4513 = vadd.f32 %v4512, %v3755
        %v4514 = vrot.slane %v4513, 4
        %v4515 = vadd.f32 %v4513, %v4514
        %v4516 = vrot.slane %v4515, 2
        %v4517 = vadd.f32 %v4515, %v4516
        %v4518 = vrot.slane %v4517, 1
        %v4519 = vadd.f32 %v4517, %v4518
        %v4520 = vadd.f32 %v3666, %v3672
        %v4521 = vadd.f32 %v4520, %v3678
        %v4522 = vadd.f32 %v4521, %v3684
        %v4523 = vadd.f32 %v4522, %v3690
        %v4524 = vadd.f32 %v4523, %v3696
        %v4525 = vadd.f32 %v4524, %v3702
        %v4526 = vadd.f32 %v4525, %v3708
        %v4527 = vadd.f32 %v4526, %v3714
        %v4528 = vadd.f32 %v4527, %v3720
        %v4529 = vadd.f32 %v4528, %v3726
        %v4530 = vadd.f32 %v4529, %v3732
        %v4531 = vadd.f32 %v4530, %v3738
        %v4532 = vadd.f32 %v4531, %v3744
        %v4533 = vadd.f32 %v4532, %v3750
        %v4534 = vadd.f32 %v4533, %v3756
        %v4535 = vrot.slane %v4534, 4
        %v4536 = vadd.f32 %v4534, %v4535
        %v4537 = vrot.slane %v4536, 2
        %v4538 = vadd.f32 %v4536, %v4537
        %v4539 = vrot.slane %v4538, 1
        %v4540 = vadd.f32 %v4538, %v4539
        %v4541 = vadd.f32 %v3667, %v3673
        %v4542 = vadd.f32 %v4541, %v3679
        %v4543 = vadd.f32 %v4542, %v3685
        %v4544 = vadd.f32 %v4543, %v3691
        %v4545 = vadd.f32 %v4544, %v3697
        %v4546 = vadd.f32 %v4545, %v3703
        %v4547 = vadd.f32 %v4546, %v3709
        %v4548 = vadd.f32 %v4547, %v3715
        %v4549 = vadd.f32 %v4548, %v3721
        %v4550 = vadd.f32 %v4549, %v3727
        %v4551 = vadd.f32 %v4550, %v3733
        %v4552 = vadd.f32 %v4551, %v3739
        %v4553 = vadd.f32 %v4552, %v3745
        %v4554 = vadd.f32 %v4553, %v3751
        %v4555 = vadd.f32 %v4554, %v3757
        %v4556 = vrot.slane %v4555, 4
        %v4557 = vadd.f32 %v4555, %v4556
        %v4558 = vrot.slane %v4557, 2
        %v4559 = vadd.f32 %v4557, %v4558
        %v4560 = vrot.slane %v4559, 1
        %v4561 = vadd.f32 %v4559, %v4560
        %v4562 = vadd.f32 %v3668, %v3674
        %v4563 = vadd.f32 %v4562, %v3680
        %v4564 = vadd.f32 %v4563, %v3686
        %v4565 = vadd.f32 %v4564, %v3692
        %v4566 = vadd.f32 %v4565, %v3698
        %v4567 = vadd.f32 %v4566, %v3704
        %v4568 = vadd.f32 %v4567, %v3710
        %v4569 = vadd.f32 %v4568, %v3716
        %v4570 = vadd.f32 %v4569, %v3722
        %v4571 = vadd.f32 %v4570, %v3728
        %v4572 = vadd.f32 %v4571, %v3734
        %v4573 = vadd.f32 %v4572, %v3740
        %v4574 = vadd.f32 %v4573, %v3746
        %v4575 = vadd.f32 %v4574, %v3752
        %v4576 = vadd.f32 %v4575, %v3758
        %v4577 = vrot.slane %v4576, 4
        %v4578 = vadd.f32 %v4576, %v4577
        %v4579 = vrot.slane %v4578, 2
        %v4580 = vadd.f32 %v4578, %v4579
        %v4581 = vrot.slane %v4580, 1
        %v4582 = vadd.f32 %v4580, %v4581
        %v4583 = vadd.f32 %v3669, %v3675
        %v4584 = vadd.f32 %v4583, %v3681
        %v4585 = vadd.f32 %v4584, %v3687
        %v4586 = vadd.f32 %v4585, %v3693
        %v4587 = vadd.f32 %v4586, %v3699
        %v4588 = vadd.f32 %v4587, %v3705
        %v4589 = vadd.f32 %v4588, %v3711
        %v4590 = vadd.f32 %v4589, %v3717
        %v4591 = vadd.f32 %v4590, %v3723
        %v4592 = vadd.f32 %v4591, %v3729
        %v4593 = vadd.f32 %v4592, %v3735
        %v4594 = vadd.f32 %v4593, %v3741
        %v4595 = vadd.f32 %v4594, %v3747
        %v4596 = vadd.f32 %v4595, %v3753
        %v4597 = vadd.f32 %v4596, %v3759
        %v4598 = vrot.slane %v4597, 4
        %v4599 = vadd.f32 %v4597, %v4598
        %v4600 = vrot.slane %v4599, 2
        %v4601 = vadd.f32 %v4599, %v4600
        %v4602 = vrot.slane %v4601, 1
        %v4603 = vadd.f32 %v4601, %v4602
        %v4604 = vadd.f32 %v3670, %v3676
        %v4605 = vadd.f32 %v4604, %v3682
        %v4606 = vadd.f32 %v4605, %v3688
        %v4607 = vadd.f32 %v4606, %v3694
        %v4608 = vadd.f32 %v4607, %v3700
        %v4609 = vadd.f32 %v4608, %v3706
        %v4610 = vadd.f32 %v4609, %v3712
        %v4611 = vadd.f32 %v4610, %v3718
        %v4612 = vadd.f32 %v4611, %v3724
        %v4613 = vadd.f32 %v4612, %v3730
        %v4614 = vadd.f32 %v4613, %v3736
        %v4615 = vadd.f32 %v4614, %v3742
        %v4616 = vadd.f32 %v4615, %v3748
        %v4617 = vadd.f32 %v4616, %v3754
        %v4618 = vadd.f32 %v4617, %v3760
        %v4619 = vrot.slane %v4618, 4
        %v4620 = vadd.f32 %v4618, %v4619
        %v4621 = vrot.slane %v4620, 2
        %v4622 = vadd.f32 %v4620, %v4621
        %v4623 = vrot.slane %v4622, 1
        %v4624 = vadd.f32 %v4622, %v4623
        %v4625 = vadd.f32 %v3761, %v3767
        %v4626 = vadd.f32 %v4625, %v3773
        %v4627 = vadd.f32 %v4626, %v3779
        %v4628 = vadd.f32 %v4627, %v3785
        %v4629 = vadd.f32 %v4628, %v3791
        %v4630 = vadd.f32 %v4629, %v3797
        %v4631 = vadd.f32 %v4630, %v3803
        %v4632 = vadd.f32 %v4631, %v3809
        %v4633 = vadd.f32 %v4632, %v3815
        %v4634 = vadd.f32 %v4633, %v3821
        %v4635 = vadd.f32 %v4634, %v3827
        %v4636 = vadd.f32 %v4635, %v3833
        %v4637 = vadd.f32 %v4636, %v3839
        %v4638 = vadd.f32 %v4637, %v3845
        %v4639 = vadd.f32 %v4638, %v3851
        %v4640 = vrot.slane %v4639, 4
        %v4641 = vadd.f32 %v4639, %v4640
        %v4642 = vrot.slane %v4641, 2
        %v4643 = vadd.f32 %v4641, %v4642
        %v4644 = vrot.slane %v4643, 1
        %v4645 = vadd.f32 %v4643, %v4644
        %v4646 = vadd.f32 %v3762, %v3768
        %v4647 = vadd.f32 %v4646, %v3774
        %v4648 = vadd.f32 %v4647, %v3780
        %v4649 = vadd.f32 %v4648, %v3786
        %v4650 = vadd.f32 %v4649, %v3792
        %v4651 = vadd.f32 %v4650, %v3798
        %v4652 = vadd.f32 %v4651, %v3804
        %v4653 = vadd.f32 %v4652, %v3810
        %v4654 = vadd.f32 %v4653, %v3816
        %v4655 = vadd.f32 %v4654, %v3822
        %v4656 = vadd.f32 %v4655, %v3828
        %v4657 = vadd.f32 %v4656, %v3834
        %v4658 = vadd.f32 %v4657, %v3840
        %v4659 = vadd.f32 %v4658, %v3846
        %v4660 = vadd.f32 %v4659, %v3852
        %v4661 = vrot.slane %v4660, 4
        %v4662 = vadd.f32 %v4660, %v4661
        %v4663 = vrot.slane %v4662, 2
        %v4664 = vadd.f32 %v4662, %v4663
        %v4665 = vrot.slane %v4664, 1
        %v4666 = vadd.f32 %v4664, %v4665
        %v4667 = vadd.f32 %v3763, %v3769
        %v4668 = vadd.f32 %v4667, %v3775
        %v4669 = vadd.f32 %v4668, %v3781
        %v4670 = vadd.f32 %v4669, %v3787
        %v4671 = vadd.f32 %v4670, %v3793
        %v4672 = vadd.f32 %v4671, %v3799
        %v4673 = vadd.f32 %v4672, %v3805
        %v4674 = vadd.f32 %v4673, %v3811
        %v4675 = vadd.f32 %v4674, %v3817
        %v4676 = vadd.f32 %v4675, %v3823
        %v4677 = vadd.f32 %v4676, %v3829
        %v4678 = vadd.f32 %v4677, %v3835
        %v4679 = vadd.f32 %v4678, %v3841
        %v4680 = vadd.f32 %v4679, %v3847
        %v4681 = vadd.f32 %v4680, %v3853
        %v4682 = vrot.slane %v4681, 4
        %v4683 = vadd.f32 %v4681, %v4682
        %v4684 = vrot.slane %v4683, 2
        %v4685 = vadd.f32 %v4683, %v4684
        %v4686 = vrot.slane %v4685, 1
        %v4687 = vadd.f32 %v4685, %v4686
        %v4688 = vadd.f32 %v3764, %v3770
        %v4689 = vadd.f32 %v4688, %v3776
        %v4690 = vadd.f32 %v4689, %v3782
        %v4691 = vadd.f32 %v4690, %v3788
        %v4692 = vadd.f32 %v4691, %v3794
        %v4693 = vadd.f32 %v4692, %v3800
        %v4694 = vadd.f32 %v4693, %v3806
        %v4695 = vadd.f32 %v4694, %v3812
        %v4696 = vadd.f32 %v4695, %v3818
        %v4697 = vadd.f32 %v4696, %v3824
        %v4698 = vadd.f32 %v4697, %v3830
        %v4699 = vadd.f32 %v4698, %v3836
        %v4700 = vadd.f32 %v4699, %v3842
        %v4701 = vadd.f32 %v4700, %v3848
        %v4702 = vadd.f32 %v4701, %v3854
        %v4703 = vrot.slane %v4702, 4
        %v4704 = vadd.f32 %v4702, %v4703
        %v4705 = vrot.slane %v4704, 2
        %v4706 = vadd.f32 %v4704, %v4705
        %v4707 = vrot.slane %v4706, 1
        %v4708 = vadd.f32 %v4706, %v4707
        %v4709 = vadd.f32 %v3765, %v3771
        %v4710 = vadd.f32 %v4709, %v3777
        %v4711 = vadd.f32 %v4710, %v3783
        %v4712 = vadd.f32 %v4711, %v3789
        %v4713 = vadd.f32 %v4712, %v3795
        %v4714 = vadd.f32 %v4713, %v3801
        %v4715 = vadd.f32 %v4714, %v3807
        %v4716 = vadd.f32 %v4715, %v3813
        %v4717 = vadd.f32 %v4716, %v3819
        %v4718 = vadd.f32 %v4717, %v3825
        %v4719 = vadd.f32 %v4718, %v3831
        %v4720 = vadd.f32 %v4719, %v3837
        %v4721 = vadd.f32 %v4720, %v3843
        %v4722 = vadd.f32 %v4721, %v3849
        %v4723 = vadd.f32 %v4722, %v3855
        %v4724 = vrot.slane %v4723, 4
        %v4725 = vadd.f32 %v4723, %v4724
        %v4726 = vrot.slane %v4725, 2
        %v4727 = vadd.f32 %v4725, %v4726
        %v4728 = vrot.slane %v4727, 1
        %v4729 = vadd.f32 %v4727, %v4728
        %v4730 = vadd.f32 %v3766, %v3772
        %v4731 = vadd.f32 %v4730, %v3778
        %v4732 = vadd.f32 %v4731, %v3784
        %v4733 = vadd.f32 %v4732, %v3790
        %v4734 = vadd.f32 %v4733, %v3796
        %v4735 = vadd.f32 %v4734, %v3802
        %v4736 = vadd.f32 %v4735, %v3808
        %v4737 = vadd.f32 %v4736, %v3814
        %v4738 = vadd.f32 %v4737, %v3820
        %v4739 = vadd.f32 %v4738, %v3826
        %v4740 = vadd.f32 %v4739, %v3832
        %v4741 = vadd.f32 %v4740, %v3838
        %v4742 = vadd.f32 %v4741, %v3844
        %v4743 = vadd.f32 %v4742, %v3850
        %v4744 = vadd.f32 %v4743, %v3856
        %v4745 = vrot.slane %v4744, 4
        %v4746 = vadd.f32 %v4744, %v4745
        %v4747 = vrot.slane %v4746, 2
        %v4748 = vadd.f32 %v4746, %v4747
        %v4749 = vrot.slane %v4748, 1
        %v4750 = vadd.f32 %v4748, %v4749
        %v4751 = vadd.f32 %v3857, %v3863
        %v4752 = vadd.f32 %v4751, %v3869
        %v4753 = vadd.f32 %v4752, %v3875
        %v4754 = vadd.f32 %v4753, %v3881
        %v4755 = vadd.f32 %v4754, %v3887
        %v4756 = vadd.f32 %v4755, %v3893
        %v4757 = vadd.f32 %v4756, %v3899
        %v4758 = vadd.f32 %v4757, %v3905
        %v4759 = vadd.f32 %v4758, %v3911
        %v4760 = vadd.f32 %v4759, %v3917
        %v4761 = vadd.f32 %v4760, %v3923
        %v4762 = vadd.f32 %v4761, %v3929
        %v4763 = vadd.f32 %v4762, %v3935
        %v4764 = vadd.f32 %v4763, %v3941
        %v4765 = vadd.f32 %v4764, %v3947
        %v4766 = vrot.slane %v4765, 4
        %v4767 = vadd.f32 %v4765, %v4766
        %v4768 = vrot.slane %v4767, 2
        %v4769 = vadd.f32 %v4767, %v4768
        %v4770 = vrot.slane %v4769, 1
        %v4771 = vadd.f32 %v4769, %v4770
        %v4772 = vadd.f32 %v3858, %v3864
        %v4773 = vadd.f32 %v4772, %v3870
        %v4774 = vadd.f32 %v4773, %v3876
        %v4775 = vadd.f32 %v4774, %v3882
        %v4776 = vadd.f32 %v4775, %v3888
        %v4777 = vadd.f32 %v4776, %v3894
        %v4778 = vadd.f32 %v4777, %v3900
        %v4779 = vadd.f32 %v4778, %v3906
        %v4780 = vadd.f32 %v4779, %v3912
        %v4781 = vadd.f32 %v4780, %v3918
        %v4782 = vadd.f32 %v4781, %v3924
        %v4783 = vadd.f32 %v4782, %v3930
        %v4784 = vadd.f32 %v4783, %v3936
        %v4785 = vadd.f32 %v4784, %v3942
        %v4786 = vadd.f32 %v4785, %v3948
        %v4787 = vrot.slane %v4786, 4
        %v4788 = vadd.f32 %v4786, %v4787
        %v4789 = vrot.slane %v4788, 2
        %v4790 = vadd.f32 %v4788, %v4789
        %v4791 = vrot.slane %v4790, 1
        %v4792 = vadd.f32 %v4790, %v4791
        %v4793 = vadd.f32 %v3859, %v3865
        %v4794 = vadd.f32 %v4793, %v3871
        %v4795 = vadd.f32 %v4794, %v3877
        %v4796 = vadd.f32 %v4795, %v3883
        %v4797 = vadd.f32 %v4796, %v3889
        %v4798 = vadd.f32 %v4797, %v3895
        %v4799 = vadd.f32 %v4798, %v3901
        %v4800 = vadd.f32 %v4799, %v3907
        %v4801 = vadd.f32 %v4800, %v3913
        %v4802 = vadd.f32 %v4801, %v3919
        %v4803 = vadd.f32 %v4802, %v3925
        %v4804 = vadd.f32 %v4803, %v3931
        %v4805 = vadd.f32 %v4804, %v3937
        %v4806 = vadd.f32 %v4805, %v3943
        %v4807 = vadd.f32 %v4806, %v3949
        %v4808 = vrot.slane %v4807, 4
        %v4809 = vadd.f32 %v4807, %v4808
        %v4810 = vrot.slane %v4809, 2
        %v4811 = vadd.f32 %v4809, %v4810
        %v4812 = vrot.slane %v4811, 1
        %v4813 = vadd.f32 %v4811, %v4812
        %v4814 = vadd.f32 %v3860, %v3866
        %v4815 = vadd.f32 %v4814, %v3872
        %v4816 = vadd.f32 %v4815, %v3878
        %v4817 = vadd.f32 %v4816, %v3884
        %v4818 = vadd.f32 %v4817, %v3890
        %v4819 = vadd.f32 %v4818, %v3896
        %v4820 = vadd.f32 %v4819, %v3902
        %v4821 = vadd.f32 %v4820, %v3908
        %v4822 = vadd.f32 %v4821, %v3914
        %v4823 = vadd.f32 %v4822, %v3920
        %v4824 = vadd.f32 %v4823, %v3926
        %v4825 = vadd.f32 %v4824, %v3932
        %v4826 = vadd.f32 %v4825, %v3938
        %v4827 = vadd.f32 %v4826, %v3944
        %v4828 = vadd.f32 %v4827, %v3950
        %v4829 = vrot.slane %v4828, 4
        %v4830 = vadd.f32 %v4828, %v4829
        %v4831 = vrot.slane %v4830, 2
        %v4832 = vadd.f32 %v4830, %v4831
        %v4833 = vrot.slane %v4832, 1
        %v4834 = vadd.f32 %v4832, %v4833
        %v4835 = vadd.f32 %v3861, %v3867
        %v4836 = vadd.f32 %v4835, %v3873
        %v4837 = vadd.f32 %v4836, %v3879
        %v4838 = vadd.f32 %v4837, %v3885
        %v4839 = vadd.f32 %v4838, %v3891
        %v4840 = vadd.f32 %v4839, %v3897
        %v4841 = vadd.f32 %v4840, %v3903
        %v4842 = vadd.f32 %v4841, %v3909
        %v4843 = vadd.f32 %v4842, %v3915
        %v4844 = vadd.f32 %v4843, %v3921
        %v4845 = vadd.f32 %v4844, %v3927
        %v4846 = vadd.f32 %v4845, %v3933
        %v4847 = vadd.f32 %v4846, %v3939
        %v4848 = vadd.f32 %v4847, %v3945
        %v4849 = vadd.f32 %v4848, %v3951
        %v4850 = vrot.slane %v4849, 4
        %v4851 = vadd.f32 %v4849, %v4850
        %v4852 = vrot.slane %v4851, 2
        %v4853 = vadd.f32 %v4851, %v4852
        %v4854 = vrot.slane %v4853, 1
        %v4855 = vadd.f32 %v4853, %v4854
        %v4856 = vadd.f32 %v3862, %v3868
        %v4857 = vadd.f32 %v4856, %v3874
        %v4858 = vadd.f32 %v4857, %v3880
        %v4859 = vadd.f32 %v4858, %v3886
        %v4860 = vadd.f32 %v4859, %v3892
        %v4861 = vadd.f32 %v4860, %v3898
        %v4862 = vadd.f32 %v4861, %v3904
        %v4863 = vadd.f32 %v4862, %v3910
        %v4864 = vadd.f32 %v4863, %v3916
        %v4865 = vadd.f32 %v4864, %v3922
        %v4866 = vadd.f32 %v4865, %v3928
        %v4867 = vadd.f32 %v4866, %v3934
        %v4868 = vadd.f32 %v4867, %v3940
        %v4869 = vadd.f32 %v4868, %v3946
        %v4870 = vadd.f32 %v4869, %v3952
        %v4871 = vrot.slane %v4870, 4
        %v4872 = vadd.f32 %v4870, %v4871
        %v4873 = vrot.slane %v4872, 2
        %v4874 = vadd.f32 %v4872, %v4873
        %v4875 = vrot.slane %v4874, 1
        %v4876 = vadd.f32 %v4874, %v4875
        %v4877 = vadd.f32 %v3953, %v3959
        %v4878 = vadd.f32 %v4877, %v3965
        %v4879 = vadd.f32 %v4878, %v3971
        %v4880 = vadd.f32 %v4879, %v3977
        %v4881 = vadd.f32 %v4880, %v3983
        %v4882 = vadd.f32 %v4881, %v3989
        %v4883 = vadd.f32 %v4882, %v3995
        %v4884 = vadd.f32 %v4883, %v4001
        %v4885 = vadd.f32 %v4884, %v4007
        %v4886 = vadd.f32 %v4885, %v4013
        %v4887 = vadd.f32 %v4886, %v4019
        %v4888 = vadd.f32 %v4887, %v4025
        %v4889 = vadd.f32 %v4888, %v4031
        %v4890 = vadd.f32 %v4889, %v4037
        %v4891 = vadd.f32 %v4890, %v4043
        %v4892 = vrot.slane %v4891, 4
        %v4893 = vadd.f32 %v4891, %v4892
        %v4894 = vrot.slane %v4893, 2
        %v4895 = vadd.f32 %v4893, %v4894
        %v4896 = vrot.slane %v4895, 1
        %v4897 = vadd.f32 %v4895, %v4896
        %v4898 = vadd.f32 %v3954, %v3960
        %v4899 = vadd.f32 %v4898, %v3966
        %v4900 = vadd.f32 %v4899, %v3972
        %v4901 = vadd.f32 %v4900, %v3978
        %v4902 = vadd.f32 %v4901, %v3984
        %v4903 = vadd.f32 %v4902, %v3990
        %v4904 = vadd.f32 %v4903, %v3996
        %v4905 = vadd.f32 %v4904, %v4002
        %v4906 = vadd.f32 %v4905, %v4008
        %v4907 = vadd.f32 %v4906, %v4014
        %v4908 = vadd.f32 %v4907, %v4020
        %v4909 = vadd.f32 %v4908, %v4026
        %v4910 = vadd.f32 %v4909, %v4032
        %v4911 = vadd.f32 %v4910, %v4038
        %v4912 = vadd.f32 %v4911, %v4044
        %v4913 = vrot.slane %v4912, 4
        %v4914 = vadd.f32 %v4912, %v4913
        %v4915 = vrot.slane %v4914, 2
        %v4916 = vadd.f32 %v4914, %v4915
        %v4917 = vrot.slane %v4916, 1
        %v4918 = vadd.f32 %v4916, %v4917
        %v4919 = vadd.f32 %v3955, %v3961
        %v4920 = vadd.f32 %v4919, %v3967
        %v4921 = vadd.f32 %v4920, %v3973
        %v4922 = vadd.f32 %v4921, %v3979
        %v4923 = vadd.f32 %v4922, %v3985
        %v4924 = vadd.f32 %v4923, %v3991
        %v4925 = vadd.f32 %v4924, %v3997
        %v4926 = vadd.f32 %v4925, %v4003
        %v4927 = vadd.f32 %v4926, %v4009
        %v4928 = vadd.f32 %v4927, %v4015
        %v4929 = vadd.f32 %v4928, %v4021
        %v4930 = vadd.f32 %v4929, %v4027
        %v4931 = vadd.f32 %v4930, %v4033
        %v4932 = vadd.f32 %v4931, %v4039
        %v4933 = vadd.f32 %v4932, %v4045
        %v4934 = vrot.slane %v4933, 4
        %v4935 = vadd.f32 %v4933, %v4934
        %v4936 = vrot.slane %v4935, 2
        %v4937 = vadd.f32 %v4935, %v4936
        %v4938 = vrot.slane %v4937, 1
        %v4939 = vadd.f32 %v4937, %v4938
        %v4940 = vadd.f32 %v3956, %v3962
        %v4941 = vadd.f32 %v4940, %v3968
        %v4942 = vadd.f32 %v4941, %v3974
        %v4943 = vadd.f32 %v4942, %v3980
        %v4944 = vadd.f32 %v4943, %v3986
        %v4945 = vadd.f32 %v4944, %v3992
        %v4946 = vadd.f32 %v4945, %v3998
        %v4947 = vadd.f32 %v4946, %v4004
        %v4948 = vadd.f32 %v4947, %v4010
        %v4949 = vadd.f32 %v4948, %v4016
        %v4950 = vadd.f32 %v4949, %v4022
        %v4951 = vadd.f32 %v4950, %v4028
        %v4952 = vadd.f32 %v4951, %v4034
        %v4953 = vadd.f32 %v4952, %v4040
        %v4954 = vadd.f32 %v4953, %v4046
        %v4955 = vrot.slane %v4954, 4
        %v4956 = vadd.f32 %v4954, %v4955
        %v4957 = vrot.slane %v4956, 2
        %v4958 = vadd.f32 %v4956, %v4957
        %v4959 = vrot.slane %v4958, 1
        %v4960 = vadd.f32 %v4958, %v4959
        %v4961 = vadd.f32 %v3957, %v3963
        %v4962 = vadd.f32 %v4961, %v3969
        %v4963 = vadd.f32 %v4962, %v3975
        %v4964 = vadd.f32 %v4963, %v3981
        %v4965 = vadd.f32 %v4964, %v3987
        %v4966 = vadd.f32 %v4965, %v3993
        %v4967 = vadd.f32 %v4966, %v3999
        %v4968 = vadd.f32 %v4967, %v4005
        %v4969 = vadd.f32 %v4968, %v4011
        %v4970 = vadd.f32 %v4969, %v4017
        %v4971 = vadd.f32 %v4970, %v4023
        %v4972 = vadd.f32 %v4971, %v4029
        %v4973 = vadd.f32 %v4972, %v4035
        %v4974 = vadd.f32 %v4973, %v4041
        %v4975 = vadd.f32 %v4974, %v4047
        %v4976 = vrot.slane %v4975, 4
        %v4977 = vadd.f32 %v4975, %v4976
        %v4978 = vrot.slane %v4977, 2
        %v4979 = vadd.f32 %v4977, %v4978
        %v4980 = vrot.slane %v4979, 1
        %v4981 = vadd.f32 %v4979, %v4980
        %v4982 = vadd.f32 %v3958, %v3964
        %v4983 = vadd.f32 %v4982, %v3970
        %v4984 = vadd.f32 %v4983, %v3976
        %v4985 = vadd.f32 %v4984, %v3982
        %v4986 = vadd.f32 %v4985, %v3988
        %v4987 = vadd.f32 %v4986, %v3994
        %v4988 = vadd.f32 %v4987, %v4000
        %v4989 = vadd.f32 %v4988, %v4006
        %v4990 = vadd.f32 %v4989, %v4012
        %v4991 = vadd.f32 %v4990, %v4018
        %v4992 = vadd.f32 %v4991, %v4024
        %v4993 = vadd.f32 %v4992, %v4030
        %v4994 = vadd.f32 %v4993, %v4036
        %v4995 = vadd.f32 %v4994, %v4042
        %v4996 = vadd.f32 %v4995, %v4048
        %v4997 = vrot.slane %v4996, 4
        %v4998 = vadd.f32 %v4996, %v4997
        %v4999 = vrot.slane %v4998, 2
        %v5000 = vadd.f32 %v4998, %v4999
        %v5001 = vrot.slane %v5000, 1
        %v5002 = vadd.f32 %v5000, %v5001
        %v5003 = vadd.f32 %v4049, %v4055
        %v5004 = vadd.f32 %v5003, %v4061
        %v5005 = vadd.f32 %v5004, %v4067
        %v5006 = vadd.f32 %v5005, %v4073
        %v5007 = vadd.f32 %v5006, %v4079
        %v5008 = vadd.f32 %v5007, %v4085
        %v5009 = vadd.f32 %v5008, %v4091
        %v5010 = vadd.f32 %v5009, %v4097
        %v5011 = vadd.f32 %v5010, %v4103
        %v5012 = vadd.f32 %v5011, %v4109
        %v5013 = vadd.f32 %v5012, %v4115
        %v5014 = vadd.f32 %v5013, %v4121
        %v5015 = vadd.f32 %v5014, %v4127
        %v5016 = vadd.f32 %v5015, %v4133
        %v5017 = vadd.f32 %v5016, %v4139
        %v5018 = vrot.slane %v5017, 4
        %v5019 = vadd.f32 %v5017, %v5018
        %v5020 = vrot.slane %v5019, 2
        %v5021 = vadd.f32 %v5019, %v5020
        %v5022 = vrot.slane %v5021, 1
        %v5023 = vadd.f32 %v5021, %v5022
        %v5024 = vadd.f32 %v4050, %v4056
        %v5025 = vadd.f32 %v5024, %v4062
        %v5026 = vadd.f32 %v5025, %v4068
        %v5027 = vadd.f32 %v5026, %v4074
        %v5028 = vadd.f32 %v5027, %v4080
        %v5029 = vadd.f32 %v5028, %v4086
        %v5030 = vadd.f32 %v5029, %v4092
        %v5031 = vadd.f32 %v5030, %v4098
        %v5032 = vadd.f32 %v5031, %v4104
        %v5033 = vadd.f32 %v5032, %v4110
        %v5034 = vadd.f32 %v5033, %v4116
        %v5035 = vadd.f32 %v5034, %v4122
        %v5036 = vadd.f32 %v5035, %v4128
        %v5037 = vadd.f32 %v5036, %v4134
        %v5038 = vadd.f32 %v5037, %v4140
        %v5039 = vrot.slane %v5038, 4
        %v5040 = vadd.f32 %v5038, %v5039
        %v5041 = vrot.slane %v5040, 2
        %v5042 = vadd.f32 %v5040, %v5041
        %v5043 = vrot.slane %v5042, 1
        %v5044 = vadd.f32 %v5042, %v5043
        %v5045 = vadd.f32 %v4051, %v4057
        %v5046 = vadd.f32 %v5045, %v4063
        %v5047 = vadd.f32 %v5046, %v4069
        %v5048 = vadd.f32 %v5047, %v4075
        %v5049 = vadd.f32 %v5048, %v4081
        %v5050 = vadd.f32 %v5049, %v4087
        %v5051 = vadd.f32 %v5050, %v4093
        %v5052 = vadd.f32 %v5051, %v4099
        %v5053 = vadd.f32 %v5052, %v4105
        %v5054 = vadd.f32 %v5053, %v4111
        %v5055 = vadd.f32 %v5054, %v4117
        %v5056 = vadd.f32 %v5055, %v4123
        %v5057 = vadd.f32 %v5056, %v4129
        %v5058 = vadd.f32 %v5057, %v4135
        %v5059 = vadd.f32 %v5058, %v4141
        %v5060 = vrot.slane %v5059, 4
        %v5061 = vadd.f32 %v5059, %v5060
        %v5062 = vrot.slane %v5061, 2
        %v5063 = vadd.f32 %v5061, %v5062
        %v5064 = vrot.slane %v5063, 1
        %v5065 = vadd.f32 %v5063, %v5064
        %v5066 = vadd.f32 %v4052, %v4058
        %v5067 = vadd.f32 %v5066, %v4064
        %v5068 = vadd.f32 %v5067, %v4070
        %v5069 = vadd.f32 %v5068, %v4076
        %v5070 = vadd.f32 %v5069, %v4082
        %v5071 = vadd.f32 %v5070, %v4088
        %v5072 = vadd.f32 %v5071, %v4094
        %v5073 = vadd.f32 %v5072, %v4100
        %v5074 = vadd.f32 %v5073, %v4106
        %v5075 = vadd.f32 %v5074, %v4112
        %v5076 = vadd.f32 %v5075, %v4118
        %v5077 = vadd.f32 %v5076, %v4124
        %v5078 = vadd.f32 %v5077, %v4130
        %v5079 = vadd.f32 %v5078, %v4136
        %v5080 = vadd.f32 %v5079, %v4142
        %v5081 = vrot.slane %v5080, 4
        %v5082 = vadd.f32 %v5080, %v5081
        %v5083 = vrot.slane %v5082, 2
        %v5084 = vadd.f32 %v5082, %v5083
        %v5085 = vrot.slane %v5084, 1
        %v5086 = vadd.f32 %v5084, %v5085
        %v5087 = vadd.f32 %v4053, %v4059
        %v5088 = vadd.f32 %v5087, %v4065
        %v5089 = vadd.f32 %v5088, %v4071
        %v5090 = vadd.f32 %v5089, %v4077
        %v5091 = vadd.f32 %v5090, %v4083
        %v5092 = vadd.f32 %v5091, %v4089
        %v5093 = vadd.f32 %v5092, %v4095
        %v5094 = vadd.f32 %v5093, %v4101
        %v5095 = vadd.f32 %v5094, %v4107
        %v5096 = vadd.f32 %v5095, %v4113
        %v5097 = vadd.f32 %v5096, %v4119
        %v5098 = vadd.f32 %v5097, %v4125
        %v5099 = vadd.f32 %v5098, %v4131
        %v5100 = vadd.f32 %v5099, %v4137
        %v5101 = vadd.f32 %v5100, %v4143
        %v5102 = vrot.slane %v5101, 4
        %v5103 = vadd.f32 %v5101, %v5102
        %v5104 = vrot.slane %v5103, 2
        %v5105 = vadd.f32 %v5103, %v5104
        %v5106 = vrot.slane %v5105, 1
        %v5107 = vadd.f32 %v5105, %v5106
        %v5108 = vadd.f32 %v4054, %v4060
        %v5109 = vadd.f32 %v5108, %v4066
        %v5110 = vadd.f32 %v5109, %v4072
        %v5111 = vadd.f32 %v5110, %v4078
        %v5112 = vadd.f32 %v5111, %v4084
        %v5113 = vadd.f32 %v5112, %v4090
        %v5114 = vadd.f32 %v5113, %v4096
        %v5115 = vadd.f32 %v5114, %v4102
        %v5116 = vadd.f32 %v5115, %v4108
        %v5117 = vadd.f32 %v5116, %v4114
        %v5118 = vadd.f32 %v5117, %v4120
        %v5119 = vadd.f32 %v5118, %v4126
        %v5120 = vadd.f32 %v5119, %v4132
        %v5121 = vadd.f32 %v5120, %v4138
        %v5122 = vadd.f32 %v5121, %v4144
        %v5123 = vrot.slane %v5122, 4
        %v5124 = vadd.f32 %v5122, %v5123
        %v5125 = vrot.slane %v5124, 2
        %v5126 = vadd.f32 %v5124, %v5125
        %v5127 = vrot.slane %v5126, 1
        %v5128 = vadd.f32 %v5126, %v5127
        %v5129 = vadd.f32 %v4145, %v4151
        %v5130 = vadd.f32 %v5129, %v4157
        %v5131 = vadd.f32 %v5130, %v4163
        %v5132 = vadd.f32 %v5131, %v4169
        %v5133 = vadd.f32 %v5132, %v4175
        %v5134 = vadd.f32 %v5133, %v4181
        %v5135 = vadd.f32 %v5134, %v4187
        %v5136 = vadd.f32 %v5135, %v4193
        %v5137 = vadd.f32 %v5136, %v4199
        %v5138 = vadd.f32 %v5137, %v4205
        %v5139 = vadd.f32 %v5138, %v4211
        %v5140 = vadd.f32 %v5139, %v4217
        %v5141 = vadd.f32 %v5140, %v4223
        %v5142 = vadd.f32 %v5141, %v4229
        %v5143 = vadd.f32 %v5142, %v4235
        %v5144 = vrot.slane %v5143, 4
        %v5145 = vadd.f32 %v5143, %v5144
        %v5146 = vrot.slane %v5145, 2
        %v5147 = vadd.f32 %v5145, %v5146
        %v5148 = vrot.slane %v5147, 1
        %v5149 = vadd.f32 %v5147, %v5148
        %v5150 = vadd.f32 %v4146, %v4152
        %v5151 = vadd.f32 %v5150, %v4158
        %v5152 = vadd.f32 %v5151, %v4164
        %v5153 = vadd.f32 %v5152, %v4170
        %v5154 = vadd.f32 %v5153, %v4176
        %v5155 = vadd.f32 %v5154, %v4182
        %v5156 = vadd.f32 %v5155, %v4188
        %v5157 = vadd.f32 %v5156, %v4194
        %v5158 = vadd.f32 %v5157, %v4200
        %v5159 = vadd.f32 %v5158, %v4206
        %v5160 = vadd.f32 %v5159, %v4212
        %v5161 = vadd.f32 %v5160, %v4218
        %v5162 = vadd.f32 %v5161, %v4224
        %v5163 = vadd.f32 %v5162, %v4230
        %v5164 = vadd.f32 %v5163, %v4236
        %v5165 = vrot.slane %v5164, 4
        %v5166 = vadd.f32 %v5164, %v5165
        %v5167 = vrot.slane %v5166, 2
        %v5168 = vadd.f32 %v5166, %v5167
        %v5169 = vrot.slane %v5168, 1
        %v5170 = vadd.f32 %v5168, %v5169
        %v5171 = vadd.f32 %v4147, %v4153
        %v5172 = vadd.f32 %v5171, %v4159
        %v5173 = vadd.f32 %v5172, %v4165
        %v5174 = vadd.f32 %v5173, %v4171
        %v5175 = vadd.f32 %v5174, %v4177
        %v5176 = vadd.f32 %v5175, %v4183
        %v5177 = vadd.f32 %v5176, %v4189
        %v5178 = vadd.f32 %v5177, %v4195
        %v5179 = vadd.f32 %v5178, %v4201
        %v5180 = vadd.f32 %v5179, %v4207
        %v5181 = vadd.f32 %v5180, %v4213
        %v5182 = vadd.f32 %v5181, %v4219
        %v5183 = vadd.f32 %v5182, %v4225
        %v5184 = vadd.f32 %v5183, %v4231
        %v5185 = vadd.f32 %v5184, %v4237
        %v5186 = vrot.slane %v5185, 4
        %v5187 = vadd.f32 %v5185, %v5186
        %v5188 = vrot.slane %v5187, 2
        %v5189 = vadd.f32 %v5187, %v5188
        %v5190 = vrot.slane %v5189, 1
        %v5191 = vadd.f32 %v5189, %v5190
        %v5192 = vadd.f32 %v4148, %v4154
        %v5193 = vadd.f32 %v5192, %v4160
        %v5194 = vadd.f32 %v5193, %v4166
        %v5195 = vadd.f32 %v5194, %v4172
        %v5196 = vadd.f32 %v5195, %v4178
        %v5197 = vadd.f32 %v5196, %v4184
        %v5198 = vadd.f32 %v5197, %v4190
        %v5199 = vadd.f32 %v5198, %v4196
        %v5200 = vadd.f32 %v5199, %v4202
        %v5201 = vadd.f32 %v5200, %v4208
        %v5202 = vadd.f32 %v5201, %v4214
        %v5203 = vadd.f32 %v5202, %v4220
        %v5204 = vadd.f32 %v5203, %v4226
        %v5205 = vadd.f32 %v5204, %v4232
        %v5206 = vadd.f32 %v5205, %v4238
        %v5207 = vrot.slane %v5206, 4
        %v5208 = vadd.f32 %v5206, %v5207
        %v5209 = vrot.slane %v5208, 2
        %v5210 = vadd.f32 %v5208, %v5209
        %v5211 = vrot.slane %v5210, 1
        %v5212 = vadd.f32 %v5210, %v5211
        %v5213 = vadd.f32 %v4149, %v4155
        %v5214 = vadd.f32 %v5213, %v4161
        %v5215 = vadd.f32 %v5214, %v4167
        %v5216 = vadd.f32 %v5215, %v4173
        %v5217 = vadd.f32 %v5216, %v4179
        %v5218 = vadd.f32 %v5217, %v4185
        %v5219 = vadd.f32 %v5218, %v4191
        %v5220 = vadd.f32 %v5219, %v4197
        %v5221 = vadd.f32 %v5220, %v4203
        %v5222 = vadd.f32 %v5221, %v4209
        %v5223 = vadd.f32 %v5222, %v4215
        %v5224 = vadd.f32 %v5223, %v4221
        %v5225 = vadd.f32 %v5224, %v4227
        %v5226 = vadd.f32 %v5225, %v4233
        %v5227 = vadd.f32 %v5226, %v4239
        %v5228 = vrot.slane %v5227, 4
        %v5229 = vadd.f32 %v5227, %v5228
        %v5230 = vrot.slane %v5229, 2
        %v5231 = vadd.f32 %v5229, %v5230
        %v5232 = vrot.slane %v5231, 1
        %v5233 = vadd.f32 %v5231, %v5232
        %v5234 = vadd.f32 %v4150, %v4156
        %v5235 = vadd.f32 %v5234, %v4162
        %v5236 = vadd.f32 %v5235, %v4168
        %v5237 = vadd.f32 %v5236, %v4174
        %v5238 = vadd.f32 %v5237, %v4180
        %v5239 = vadd.f32 %v5238, %v4186
        %v5240 = vadd.f32 %v5239, %v4192
        %v5241 = vadd.f32 %v5240, %v4198
        %v5242 = vadd.f32 %v5241, %v4204
        %v5243 = vadd.f32 %v5242, %v4210
        %v5244 = vadd.f32 %v5243, %v4216
        %v5245 = vadd.f32 %v5244, %v4222
        %v5246 = vadd.f32 %v5245, %v4228
        %v5247 = vadd.f32 %v5246, %v4234
        %v5248 = vadd.f32 %v5247, %v4240
        %v5249 = vrot.slane %v5248, 4
        %v5250 = vadd.f32 %v5248, %v5249
        %v5251 = vrot.slane %v5250, 2
        %v5252 = vadd.f32 %v5250, %v5251
        %v5253 = vrot.slane %v5252, 1
        %v5254 = vadd.f32 %v5252, %v5253
        %vm5303 = vcmask 1041409
        %v5304 = vsel %vm5303, %v4393, %v4267
        %vm5305 = vcmask 1042434
        %v5306 = vsel %vm5305, %v4519, %v5304
        %vm5307 = vcmask 1043459
        %v5308 = vsel %vm5307, %v4645, %v5306
        %vm5309 = vcmask 1044484
        %v5310 = vsel %vm5309, %v4771, %v5308
        %vm5311 = vcmask 1045509
        %v5312 = vsel %vm5311, %v4897, %v5310
        %vm5313 = vcmask 1046534
        %v5314 = vsel %vm5313, %v5023, %v5312
        %vm5315 = vcmask 1047559
        %v5316 = vsel %vm5315, %v5149, %v5314
        %v5317 = vsel %vm5303, %v4414, %v4288
        %v5318 = vsel %vm5305, %v4540, %v5317
        %v5319 = vsel %vm5307, %v4666, %v5318
        %v5320 = vsel %vm5309, %v4792, %v5319
        %v5321 = vsel %vm5311, %v4918, %v5320
        %v5322 = vsel %vm5313, %v5044, %v5321
        %v5323 = vsel %vm5315, %v5170, %v5322
        %v5324 = vsel %vm5303, %v4435, %v4309
        %v5325 = vsel %vm5305, %v4561, %v5324
        %v5326 = vsel %vm5307, %v4687, %v5325
        %v5327 = vsel %vm5309, %v4813, %v5326
        %v5328 = vsel %vm5311, %v4939, %v5327
        %v5329 = vsel %vm5313, %v5065, %v5328
        %v5330 = vsel %vm5315, %v5191, %v5329
        %v5331 = vsel %vm5303, %v4456, %v4330
        %v5332 = vsel %vm5305, %v4582, %v5331
        %v5333 = vsel %vm5307, %v4708, %v5332
        %v5334 = vsel %vm5309, %v4834, %v5333
        %v5335 = vsel %vm5311, %v4960, %v5334
        %v5336 = vsel %vm5313, %v5086, %v5335
        %v5337 = vsel %vm5315, %v5212, %v5336
        %v5338 = vsel %vm5303, %v4477, %v4351
        %v5339 = vsel %vm5305, %v4603, %v5338
        %v5340 = vsel %vm5307, %v4729, %v5339
        %v5341 = vsel %vm5309, %v4855, %v5340
        %v5342 = vsel %vm5311, %v4981, %v5341
        %v5343 = vsel %vm5313, %v5107, %v5342
        %v5344 = vsel %vm5315, %v5233, %v5343
        %v5345 = vsel %vm5303, %v4498, %v4372
        %v5346 = vsel %vm5305, %v4624, %v5345
        %v5347 = vsel %vm5307, %v4750, %v5346
        %v5348 = vsel %vm5309, %v4876, %v5347
        %v5349 = vsel %vm5311, %v5002, %v5348
        %v5350 = vsel %vm5313, %v5128, %v5349
        %v5351 = vsel %vm5315, %v5254, %v5350
        %v5358 = vadd.f32 %v4241, %v5316
        %v5359 = vadd.f32 %v4242, %v5323
        %v5360 = vadd.f32 %v4243, %v5330
        %v5361 = vadd.f32 %v4244, %v5337
        %v5362 = vadd.f32 %v4245, %v5344
        %v5363 = vadd.f32 %v4246, %v5351
        %5364 = vst [vmem:[#allocation2] sm:$0xff] %v5358
        %5365 = vst [vmem:[#allocation2 + $0x8] sm:$0xff] %v5359
        %5366 = vst [vmem:[#allocation2 + $0x10] sm:$0xff] %v5360
        %5367 = vst [vmem:[#allocation2 + $0x18] sm:$0xff] %v5361
        %5368 = vst [vmem:[#allocation2 + $0x20] sm:$0xff] %v5362
        %5369 = vst [vmem:[#allocation2 + $0x28] sm:$0xff] %v5363
        %p5370 = scmp.eq.s32.totalorder %s31, 1
        // Predicated region
        $region122: #{tpu_custom_call.1} parent=88 // pred_check
          %p5371 = pneg %p5370
        $region123: #{tpu_custom_call.1} parent=88 // pred_check_branch
          %5373 = sbr.rel (%p5371) target = $region125
        $region124: #{tpu_custom_call.1} parent=88 // pred_region
          %v5374 = vld [vmem:[#allocation2] sm:$0xff]
          %v5375 = vld [vmem:[#allocation2 + $0x8] sm:$0xff]
          %v5376 = vld [vmem:[#allocation2 + $0x10] sm:$0xff]
          %v5377 = vld [vmem:[#allocation2 + $0x18] sm:$0xff]
          %v5378 = vld [vmem:[#allocation2 + $0x20] sm:$0xff]
          %v5379 = vld [vmem:[#allocation2 + $0x28] sm:$0xff]
          %v5380 = vld [vmem:[%s1030] sm:$0xff]
          %5382 = vset.pattern.permute.xlu0 0
          %5383 = vperm.xlu0 %5382, %v5380
          %v5384 = vpop.permute.xlu0 %5383
          %v5386 = vmul.f32 %v5374, %v5384
          %v5387 = vmul.f32 %v5375, %v5384
          %v5388 = vmul.f32 %v5376, %v5384
          %v5389 = vmul.f32 %v5377, %v5384
          %v5390 = vmul.f32 %v5378, %v5384
          %v5391 = vmul.f32 %v5379, %v5384
          %v5392 = vld [vmem:[#allocation7] sm:$0xff]
          %v5393 = vld [vmem:[#allocation7 + $0x8] sm:$0xff]
          %v5394 = vld [vmem:[#allocation7 + $0x10] sm:$0xff]
          %v5395 = vld [vmem:[#allocation7 + $0x18] sm:$0xff]
          %v5396 = vld [vmem:[#allocation7 + $0x20] sm:$0xff]
          %v5397 = vld [vmem:[#allocation7 + $0x28] sm:$0xff]
          %v5398 = vld [vmem:[#allocation7 + $0x30] sm:$0xff]
          %v5399 = vld [vmem:[#allocation7 + $0x38] sm:$0xff]
          %v5400 = vld [vmem:[#allocation7 + $0x40] sm:$0xff]
          %v5401 = vld [vmem:[#allocation7 + $0x48] sm:$0xff]
          %v5402 = vld [vmem:[#allocation7 + $0x50] sm:$0xff]
          %v5403 = vld [vmem:[#allocation7 + $0x58] sm:$0xff]
          %v5404 = vld [vmem:[#allocation7 + $0x60] sm:$0xff]
          %v5405 = vld [vmem:[#allocation7 + $0x68] sm:$0xff]
          %v5406 = vld [vmem:[#allocation7 + $0x70] sm:$0xff]
          %v5407 = vld [vmem:[#allocation7 + $0x78] sm:$0xff]
          %v5408 = vld [vmem:[#allocation7 + $0x80] sm:$0xff]
          %v5409 = vld [vmem:[#allocation7 + $0x88] sm:$0xff]
          %v5410 = vld [vmem:[#allocation7 + $0x90] sm:$0xff]
          %v5411 = vld [vmem:[#allocation7 + $0x98] sm:$0xff]
          %v5412 = vld [vmem:[#allocation7 + $0xa0] sm:$0xff]
          %v5413 = vld [vmem:[#allocation7 + $0xa8] sm:$0xff]
          %v5414 = vld [vmem:[#allocation7 + $0xb0] sm:$0xff]
          %v5415 = vld [vmem:[#allocation7 + $0xb8] sm:$0xff]
          %v5416 = vld [vmem:[#allocation7 + $0xc0] sm:$0xff]
          %v5417 = vld [vmem:[#allocation7 + $0xc8] sm:$0xff]
          %v5418 = vld [vmem:[#allocation7 + $0xd0] sm:$0xff]
          %v5419 = vld [vmem:[#allocation7 + $0xd8] sm:$0xff]
          %v5420 = vld [vmem:[#allocation7 + $0xe0] sm:$0xff]
          %v5421 = vld [vmem:[#allocation7 + $0xe8] sm:$0xff]
          %v5422 = vld [vmem:[#allocation7 + $0xf0] sm:$0xff]
          %v5423 = vld [vmem:[#allocation7 + $0xf8] sm:$0xff]
          %v5424 = vld [vmem:[#allocation7 + $0x100] sm:$0xff]
          %v5425 = vld [vmem:[#allocation7 + $0x108] sm:$0xff]
          %v5426 = vld [vmem:[#allocation7 + $0x110] sm:$0xff]
          %v5427 = vld [vmem:[#allocation7 + $0x118] sm:$0xff]
          %v5428 = vld [vmem:[#allocation7 + $0x120] sm:$0xff]
          %v5429 = vld [vmem:[#allocation7 + $0x128] sm:$0xff]
          %v5430 = vld [vmem:[#allocation7 + $0x130] sm:$0xff]
          %v5431 = vld [vmem:[#allocation7 + $0x138] sm:$0xff]
          %v5432 = vld [vmem:[#allocation7 + $0x140] sm:$0xff]
          %v5433 = vld [vmem:[#allocation7 + $0x148] sm:$0xff]
          %v5434 = vld [vmem:[#allocation7 + $0x150] sm:$0xff]
          %v5435 = vld [vmem:[#allocation7 + $0x158] sm:$0xff]
          %v5436 = vld [vmem:[#allocation7 + $0x160] sm:$0xff]
          %v5437 = vld [vmem:[#allocation7 + $0x168] sm:$0xff]
          %v5438 = vld [vmem:[#allocation7 + $0x170] sm:$0xff]
          %v5439 = vld [vmem:[#allocation7 + $0x178] sm:$0xff]
          %v5440 = vld [vmem:[#allocation7 + $0x180] sm:$0xff]
          %v5441 = vld [vmem:[#allocation7 + $0x188] sm:$0xff]
          %v5442 = vld [vmem:[#allocation7 + $0x190] sm:$0xff]
          %v5443 = vld [vmem:[#allocation7 + $0x198] sm:$0xff]
          %v5444 = vld [vmem:[#allocation7 + $0x1a0] sm:$0xff]
          %v5445 = vld [vmem:[#allocation7 + $0x1a8] sm:$0xff]
          %v5446 = vld [vmem:[#allocation7 + $0x1b0] sm:$0xff]
          %v5447 = vld [vmem:[#allocation7 + $0x1b8] sm:$0xff]
          %v5448 = vld [vmem:[#allocation7 + $0x1c0] sm:$0xff]
          %v5449 = vld [vmem:[#allocation7 + $0x1c8] sm:$0xff]
          %v5450 = vld [vmem:[#allocation7 + $0x1d0] sm:$0xff]
          %v5451 = vld [vmem:[#allocation7 + $0x1d8] sm:$0xff]
          %v5452 = vld [vmem:[#allocation7 + $0x1e0] sm:$0xff]
          %v5453 = vld [vmem:[#allocation7 + $0x1e8] sm:$0xff]
          %v5454 = vld [vmem:[#allocation7 + $0x1f0] sm:$0xff]
          %v5455 = vld [vmem:[#allocation7 + $0x1f8] sm:$0xff]
          %v5456 = vld [vmem:[#allocation7 + $0x200] sm:$0xff]
          %v5457 = vld [vmem:[#allocation7 + $0x208] sm:$0xff]
          %v5458 = vld [vmem:[#allocation7 + $0x210] sm:$0xff]
          %v5459 = vld [vmem:[#allocation7 + $0x218] sm:$0xff]
          %v5460 = vld [vmem:[#allocation7 + $0x220] sm:$0xff]
          %v5461 = vld [vmem:[#allocation7 + $0x228] sm:$0xff]
          %v5462 = vld [vmem:[#allocation7 + $0x230] sm:$0xff]
          %v5463 = vld [vmem:[#allocation7 + $0x238] sm:$0xff]
          %v5464 = vld [vmem:[#allocation7 + $0x240] sm:$0xff]
          %v5465 = vld [vmem:[#allocation7 + $0x248] sm:$0xff]
          %v5466 = vld [vmem:[#allocation7 + $0x250] sm:$0xff]
          %v5467 = vld [vmem:[#allocation7 + $0x258] sm:$0xff]
          %v5468 = vld [vmem:[#allocation7 + $0x260] sm:$0xff]
          %v5469 = vld [vmem:[#allocation7 + $0x268] sm:$0xff]
          %v5470 = vld [vmem:[#allocation7 + $0x270] sm:$0xff]
          %v5471 = vld [vmem:[#allocation7 + $0x278] sm:$0xff]
          %v5472 = vld [vmem:[#allocation7 + $0x280] sm:$0xff]
          %v5473 = vld [vmem:[#allocation7 + $0x288] sm:$0xff]
          %v5474 = vld [vmem:[#allocation7 + $0x290] sm:$0xff]
          %v5475 = vld [vmem:[#allocation7 + $0x298] sm:$0xff]
          %v5476 = vld [vmem:[#allocation7 + $0x2a0] sm:$0xff]
          %v5477 = vld [vmem:[#allocation7 + $0x2a8] sm:$0xff]
          %v5478 = vld [vmem:[#allocation7 + $0x2b0] sm:$0xff]
          %v5479 = vld [vmem:[#allocation7 + $0x2b8] sm:$0xff]
          %v5480 = vld [vmem:[#allocation7 + $0x2c0] sm:$0xff]
          %v5481 = vld [vmem:[#allocation7 + $0x2c8] sm:$0xff]
          %v5482 = vld [vmem:[#allocation7 + $0x2d0] sm:$0xff]
          %v5483 = vld [vmem:[#allocation7 + $0x2d8] sm:$0xff]
          %v5484 = vld [vmem:[#allocation7 + $0x2e0] sm:$0xff]
          %v5485 = vld [vmem:[#allocation7 + $0x2e8] sm:$0xff]
          %v5486 = vld [vmem:[#allocation7 + $0x2f0] sm:$0xff]
          %v5487 = vld [vmem:[#allocation7 + $0x2f8] sm:$0xff]
          %v5488 = vld [vmem:[#allocation7 + $0x300] sm:$0xff]
          %v5489 = vld [vmem:[#allocation7 + $0x308] sm:$0xff]
          %v5490 = vld [vmem:[#allocation7 + $0x310] sm:$0xff]
          %v5491 = vld [vmem:[#allocation7 + $0x318] sm:$0xff]
          %v5492 = vld [vmem:[#allocation7 + $0x320] sm:$0xff]
          %v5493 = vld [vmem:[#allocation7 + $0x328] sm:$0xff]
          %v5494 = vld [vmem:[#allocation7 + $0x330] sm:$0xff]
          %v5495 = vld [vmem:[#allocation7 + $0x338] sm:$0xff]
          %v5496 = vld [vmem:[#allocation7 + $0x340] sm:$0xff]
          %v5497 = vld [vmem:[#allocation7 + $0x348] sm:$0xff]
          %v5498 = vld [vmem:[#allocation7 + $0x350] sm:$0xff]
          %v5499 = vld [vmem:[#allocation7 + $0x358] sm:$0xff]
          %v5500 = vld [vmem:[#allocation7 + $0x360] sm:$0xff]
          %v5501 = vld [vmem:[#allocation7 + $0x368] sm:$0xff]
          %v5502 = vld [vmem:[#allocation7 + $0x370] sm:$0xff]
          %v5503 = vld [vmem:[#allocation7 + $0x378] sm:$0xff]
          %v5504 = vld [vmem:[#allocation7 + $0x380] sm:$0xff]
          %v5505 = vld [vmem:[#allocation7 + $0x388] sm:$0xff]
          %v5506 = vld [vmem:[#allocation7 + $0x390] sm:$0xff]
          %v5507 = vld [vmem:[#allocation7 + $0x398] sm:$0xff]
          %v5508 = vld [vmem:[#allocation7 + $0x3a0] sm:$0xff]
          %v5509 = vld [vmem:[#allocation7 + $0x3a8] sm:$0xff]
          %v5510 = vld [vmem:[#allocation7 + $0x3b0] sm:$0xff]
          %v5511 = vld [vmem:[#allocation7 + $0x3b8] sm:$0xff]
          %v5512 = vld [vmem:[#allocation7 + $0x3c0] sm:$0xff]
          %v5513 = vld [vmem:[#allocation7 + $0x3c8] sm:$0xff]
          %v5514 = vld [vmem:[#allocation7 + $0x3d0] sm:$0xff]
          %v5515 = vld [vmem:[#allocation7 + $0x3d8] sm:$0xff]
          %v5516 = vld [vmem:[#allocation7 + $0x3e0] sm:$0xff]
          %v5517 = vld [vmem:[#allocation7 + $0x3e8] sm:$0xff]
          %v5518 = vld [vmem:[#allocation7 + $0x3f0] sm:$0xff]
          %v5519 = vld [vmem:[#allocation7 + $0x3f8] sm:$0xff]
          %v5520 = vld [vmem:[#allocation7 + $0x400] sm:$0xff]
          %v5521 = vld [vmem:[#allocation7 + $0x408] sm:$0xff]
          %v5522 = vld [vmem:[#allocation7 + $0x410] sm:$0xff]
          %v5523 = vld [vmem:[#allocation7 + $0x418] sm:$0xff]
          %v5524 = vld [vmem:[#allocation7 + $0x420] sm:$0xff]
          %v5525 = vld [vmem:[#allocation7 + $0x428] sm:$0xff]
          %v5526 = vld [vmem:[#allocation7 + $0x430] sm:$0xff]
          %v5527 = vld [vmem:[#allocation7 + $0x438] sm:$0xff]
          %v5528 = vld [vmem:[#allocation7 + $0x440] sm:$0xff]
          %v5529 = vld [vmem:[#allocation7 + $0x448] sm:$0xff]
          %v5530 = vld [vmem:[#allocation7 + $0x450] sm:$0xff]
          %v5531 = vld [vmem:[#allocation7 + $0x458] sm:$0xff]
          %v5532 = vld [vmem:[#allocation7 + $0x460] sm:$0xff]
          %v5533 = vld [vmem:[#allocation7 + $0x468] sm:$0xff]
          %v5534 = vld [vmem:[#allocation7 + $0x470] sm:$0xff]
          %v5535 = vld [vmem:[#allocation7 + $0x478] sm:$0xff]
          %v5536 = vld [vmem:[#allocation7 + $0x480] sm:$0xff]
          %v5537 = vld [vmem:[#allocation7 + $0x488] sm:$0xff]
          %v5538 = vld [vmem:[#allocation7 + $0x490] sm:$0xff]
          %v5539 = vld [vmem:[#allocation7 + $0x498] sm:$0xff]
          %v5540 = vld [vmem:[#allocation7 + $0x4a0] sm:$0xff]
          %v5541 = vld [vmem:[#allocation7 + $0x4a8] sm:$0xff]
          %v5542 = vld [vmem:[#allocation7 + $0x4b0] sm:$0xff]
          %v5543 = vld [vmem:[#allocation7 + $0x4b8] sm:$0xff]
          %v5544 = vld [vmem:[#allocation7 + $0x4c0] sm:$0xff]
          %v5545 = vld [vmem:[#allocation7 + $0x4c8] sm:$0xff]
          %v5546 = vld [vmem:[#allocation7 + $0x4d0] sm:$0xff]
          %v5547 = vld [vmem:[#allocation7 + $0x4d8] sm:$0xff]
          %v5548 = vld [vmem:[#allocation7 + $0x4e0] sm:$0xff]
          %v5549 = vld [vmem:[#allocation7 + $0x4e8] sm:$0xff]
          %v5550 = vld [vmem:[#allocation7 + $0x4f0] sm:$0xff]
          %v5551 = vld [vmem:[#allocation7 + $0x4f8] sm:$0xff]
          %v5552 = vld [vmem:[#allocation7 + $0x500] sm:$0xff]
          %v5553 = vld [vmem:[#allocation7 + $0x508] sm:$0xff]
          %v5554 = vld [vmem:[#allocation7 + $0x510] sm:$0xff]
          %v5555 = vld [vmem:[#allocation7 + $0x518] sm:$0xff]
          %v5556 = vld [vmem:[#allocation7 + $0x520] sm:$0xff]
          %v5557 = vld [vmem:[#allocation7 + $0x528] sm:$0xff]
          %v5558 = vld [vmem:[#allocation7 + $0x530] sm:$0xff]
          %v5559 = vld [vmem:[#allocation7 + $0x538] sm:$0xff]
          %v5560 = vld [vmem:[#allocation7 + $0x540] sm:$0xff]
          %v5561 = vld [vmem:[#allocation7 + $0x548] sm:$0xff]
          %v5562 = vld [vmem:[#allocation7 + $0x550] sm:$0xff]
          %v5563 = vld [vmem:[#allocation7 + $0x558] sm:$0xff]
          %v5564 = vld [vmem:[#allocation7 + $0x560] sm:$0xff]
          %v5565 = vld [vmem:[#allocation7 + $0x568] sm:$0xff]
          %v5566 = vld [vmem:[#allocation7 + $0x570] sm:$0xff]
          %v5567 = vld [vmem:[#allocation7 + $0x578] sm:$0xff]
          %v5568 = vld [vmem:[#allocation7 + $0x580] sm:$0xff]
          %v5569 = vld [vmem:[#allocation7 + $0x588] sm:$0xff]
          %v5570 = vld [vmem:[#allocation7 + $0x590] sm:$0xff]
          %v5571 = vld [vmem:[#allocation7 + $0x598] sm:$0xff]
          %v5572 = vld [vmem:[#allocation7 + $0x5a0] sm:$0xff]
          %v5573 = vld [vmem:[#allocation7 + $0x5a8] sm:$0xff]
          %v5574 = vld [vmem:[#allocation7 + $0x5b0] sm:$0xff]
          %v5575 = vld [vmem:[#allocation7 + $0x5b8] sm:$0xff]
          %v5576 = vld [vmem:[#allocation7 + $0x5c0] sm:$0xff]
          %v5577 = vld [vmem:[#allocation7 + $0x5c8] sm:$0xff]
          %v5578 = vld [vmem:[#allocation7 + $0x5d0] sm:$0xff]
          %v5579 = vld [vmem:[#allocation7 + $0x5d8] sm:$0xff]
          %v5580 = vld [vmem:[#allocation7 + $0x5e0] sm:$0xff]
          %v5581 = vld [vmem:[#allocation7 + $0x5e8] sm:$0xff]
          %v5582 = vld [vmem:[#allocation7 + $0x5f0] sm:$0xff]
          %v5583 = vld [vmem:[#allocation7 + $0x5f8] sm:$0xff]
          %v5584 = vld [vmem:[#allocation7 + $0x600] sm:$0xff]
          %v5585 = vld [vmem:[#allocation7 + $0x608] sm:$0xff]
          %v5586 = vld [vmem:[#allocation7 + $0x610] sm:$0xff]
          %v5587 = vld [vmem:[#allocation7 + $0x618] sm:$0xff]
          %v5588 = vld [vmem:[#allocation7 + $0x620] sm:$0xff]
          %v5589 = vld [vmem:[#allocation7 + $0x628] sm:$0xff]
          %v5590 = vld [vmem:[#allocation7 + $0x630] sm:$0xff]
          %v5591 = vld [vmem:[#allocation7 + $0x638] sm:$0xff]
          %v5592 = vld [vmem:[#allocation7 + $0x640] sm:$0xff]
          %v5593 = vld [vmem:[#allocation7 + $0x648] sm:$0xff]
          %v5594 = vld [vmem:[#allocation7 + $0x650] sm:$0xff]
          %v5595 = vld [vmem:[#allocation7 + $0x658] sm:$0xff]
          %v5596 = vld [vmem:[#allocation7 + $0x660] sm:$0xff]
          %v5597 = vld [vmem:[#allocation7 + $0x668] sm:$0xff]
          %v5598 = vld [vmem:[#allocation7 + $0x670] sm:$0xff]
          %v5599 = vld [vmem:[#allocation7 + $0x678] sm:$0xff]
          %v5600 = vld [vmem:[#allocation7 + $0x680] sm:$0xff]
          %v5601 = vld [vmem:[#allocation7 + $0x688] sm:$0xff]
          %v5602 = vld [vmem:[#allocation7 + $0x690] sm:$0xff]
          %v5603 = vld [vmem:[#allocation7 + $0x698] sm:$0xff]
          %v5604 = vld [vmem:[#allocation7 + $0x6a0] sm:$0xff]
          %v5605 = vld [vmem:[#allocation7 + $0x6a8] sm:$0xff]
          %v5606 = vld [vmem:[#allocation7 + $0x6b0] sm:$0xff]
          %v5607 = vld [vmem:[#allocation7 + $0x6b8] sm:$0xff]
          %v5608 = vld [vmem:[#allocation7 + $0x6c0] sm:$0xff]
          %v5609 = vld [vmem:[#allocation7 + $0x6c8] sm:$0xff]
          %v5610 = vld [vmem:[#allocation7 + $0x6d0] sm:$0xff]
          %v5611 = vld [vmem:[#allocation7 + $0x6d8] sm:$0xff]
          %v5612 = vld [vmem:[#allocation7 + $0x6e0] sm:$0xff]
          %v5613 = vld [vmem:[#allocation7 + $0x6e8] sm:$0xff]
          %v5614 = vld [vmem:[#allocation7 + $0x6f0] sm:$0xff]
          %v5615 = vld [vmem:[#allocation7 + $0x6f8] sm:$0xff]
          %v5616 = vld [vmem:[#allocation7 + $0x700] sm:$0xff]
          %v5617 = vld [vmem:[#allocation7 + $0x708] sm:$0xff]
          %v5618 = vld [vmem:[#allocation7 + $0x710] sm:$0xff]
          %v5619 = vld [vmem:[#allocation7 + $0x718] sm:$0xff]
          %v5620 = vld [vmem:[#allocation7 + $0x720] sm:$0xff]
          %v5621 = vld [vmem:[#allocation7 + $0x728] sm:$0xff]
          %v5622 = vld [vmem:[#allocation7 + $0x730] sm:$0xff]
          %v5623 = vld [vmem:[#allocation7 + $0x738] sm:$0xff]
          %v5624 = vld [vmem:[#allocation7 + $0x740] sm:$0xff]
          %v5625 = vld [vmem:[#allocation7 + $0x748] sm:$0xff]
          %v5626 = vld [vmem:[#allocation7 + $0x750] sm:$0xff]
          %v5627 = vld [vmem:[#allocation7 + $0x758] sm:$0xff]
          %v5628 = vld [vmem:[#allocation7 + $0x760] sm:$0xff]
          %v5629 = vld [vmem:[#allocation7 + $0x768] sm:$0xff]
          %v5630 = vld [vmem:[#allocation7 + $0x770] sm:$0xff]
          %v5631 = vld [vmem:[#allocation7 + $0x778] sm:$0xff]
          %v5632 = vld [vmem:[#allocation7 + $0x780] sm:$0xff]
          %v5633 = vld [vmem:[#allocation7 + $0x788] sm:$0xff]
          %v5634 = vld [vmem:[#allocation7 + $0x790] sm:$0xff]
          %v5635 = vld [vmem:[#allocation7 + $0x798] sm:$0xff]
          %v5636 = vld [vmem:[#allocation7 + $0x7a0] sm:$0xff]
          %v5637 = vld [vmem:[#allocation7 + $0x7a8] sm:$0xff]
          %v5638 = vld [vmem:[#allocation7 + $0x7b0] sm:$0xff]
          %v5639 = vld [vmem:[#allocation7 + $0x7b8] sm:$0xff]
          %v5640 = vld [vmem:[#allocation7 + $0x7c0] sm:$0xff]
          %v5641 = vld [vmem:[#allocation7 + $0x7c8] sm:$0xff]
          %v5642 = vld [vmem:[#allocation7 + $0x7d0] sm:$0xff]
          %v5643 = vld [vmem:[#allocation7 + $0x7d8] sm:$0xff]
          %v5644 = vld [vmem:[#allocation7 + $0x7e0] sm:$0xff]
          %v5645 = vld [vmem:[#allocation7 + $0x7e8] sm:$0xff]
          %v5646 = vld [vmem:[#allocation7 + $0x7f0] sm:$0xff]
          %v5647 = vld [vmem:[#allocation7 + $0x7f8] sm:$0xff]
          %v5648 = vld [vmem:[#allocation7 + $0x800] sm:$0xff]
          %v5649 = vld [vmem:[#allocation7 + $0x808] sm:$0xff]
          %v5650 = vld [vmem:[#allocation7 + $0x810] sm:$0xff]
          %v5651 = vld [vmem:[#allocation7 + $0x818] sm:$0xff]
          %v5652 = vld [vmem:[#allocation7 + $0x820] sm:$0xff]
          %v5653 = vld [vmem:[#allocation7 + $0x828] sm:$0xff]
          %v5654 = vld [vmem:[#allocation7 + $0x830] sm:$0xff]
          %v5655 = vld [vmem:[#allocation7 + $0x838] sm:$0xff]
          %v5656 = vld [vmem:[#allocation7 + $0x840] sm:$0xff]
          %v5657 = vld [vmem:[#allocation7 + $0x848] sm:$0xff]
          %v5658 = vld [vmem:[#allocation7 + $0x850] sm:$0xff]
          %v5659 = vld [vmem:[#allocation7 + $0x858] sm:$0xff]
          %v5660 = vld [vmem:[#allocation7 + $0x860] sm:$0xff]
          %v5661 = vld [vmem:[#allocation7 + $0x868] sm:$0xff]
          %v5662 = vld [vmem:[#allocation7 + $0x870] sm:$0xff]
          %v5663 = vld [vmem:[#allocation7 + $0x878] sm:$0xff]
          %v5664 = vld [vmem:[#allocation7 + $0x880] sm:$0xff]
          %v5665 = vld [vmem:[#allocation7 + $0x888] sm:$0xff]
          %v5666 = vld [vmem:[#allocation7 + $0x890] sm:$0xff]
          %v5667 = vld [vmem:[#allocation7 + $0x898] sm:$0xff]
          %v5668 = vld [vmem:[#allocation7 + $0x8a0] sm:$0xff]
          %v5669 = vld [vmem:[#allocation7 + $0x8a8] sm:$0xff]
          %v5670 = vld [vmem:[#allocation7 + $0x8b0] sm:$0xff]
          %v5671 = vld [vmem:[#allocation7 + $0x8b8] sm:$0xff]
          %v5672 = vld [vmem:[#allocation7 + $0x8c0] sm:$0xff]
          %v5673 = vld [vmem:[#allocation7 + $0x8c8] sm:$0xff]
          %v5674 = vld [vmem:[#allocation7 + $0x8d0] sm:$0xff]
          %v5675 = vld [vmem:[#allocation7 + $0x8d8] sm:$0xff]
          %v5676 = vld [vmem:[#allocation7 + $0x8e0] sm:$0xff]
          %v5677 = vld [vmem:[#allocation7 + $0x8e8] sm:$0xff]
          %v5678 = vld [vmem:[#allocation7 + $0x8f0] sm:$0xff]
          %v5679 = vld [vmem:[#allocation7 + $0x8f8] sm:$0xff]
          %v5680 = vld [vmem:[#allocation7 + $0x900] sm:$0xff]
          %v5681 = vld [vmem:[#allocation7 + $0x908] sm:$0xff]
          %v5682 = vld [vmem:[#allocation7 + $0x910] sm:$0xff]
          %v5683 = vld [vmem:[#allocation7 + $0x918] sm:$0xff]
          %v5684 = vld [vmem:[#allocation7 + $0x920] sm:$0xff]
          %v5685 = vld [vmem:[#allocation7 + $0x928] sm:$0xff]
          %v5686 = vld [vmem:[#allocation7 + $0x930] sm:$0xff]
          %v5687 = vld [vmem:[#allocation7 + $0x938] sm:$0xff]
          %v5688 = vld [vmem:[#allocation7 + $0x940] sm:$0xff]
          %v5689 = vld [vmem:[#allocation7 + $0x948] sm:$0xff]
          %v5690 = vld [vmem:[#allocation7 + $0x950] sm:$0xff]
          %v5691 = vld [vmem:[#allocation7 + $0x958] sm:$0xff]
          %v5692 = vld [vmem:[#allocation7 + $0x960] sm:$0xff]
          %v5693 = vld [vmem:[#allocation7 + $0x968] sm:$0xff]
          %v5694 = vld [vmem:[#allocation7 + $0x970] sm:$0xff]
          %v5695 = vld [vmem:[#allocation7 + $0x978] sm:$0xff]
          %v5696 = vld [vmem:[#allocation7 + $0x980] sm:$0xff]
          %v5697 = vld [vmem:[#allocation7 + $0x988] sm:$0xff]
          %v5698 = vld [vmem:[#allocation7 + $0x990] sm:$0xff]
          %v5699 = vld [vmem:[#allocation7 + $0x998] sm:$0xff]
          %v5700 = vld [vmem:[#allocation7 + $0x9a0] sm:$0xff]
          %v5701 = vld [vmem:[#allocation7 + $0x9a8] sm:$0xff]
          %v5702 = vld [vmem:[#allocation7 + $0x9b0] sm:$0xff]
          %v5703 = vld [vmem:[#allocation7 + $0x9b8] sm:$0xff]
          %v5704 = vld [vmem:[#allocation7 + $0x9c0] sm:$0xff]
          %v5705 = vld [vmem:[#allocation7 + $0x9c8] sm:$0xff]
          %v5706 = vld [vmem:[#allocation7 + $0x9d0] sm:$0xff]
          %v5707 = vld [vmem:[#allocation7 + $0x9d8] sm:$0xff]
          %v5708 = vld [vmem:[#allocation7 + $0x9e0] sm:$0xff]
          %v5709 = vld [vmem:[#allocation7 + $0x9e8] sm:$0xff]
          %v5710 = vld [vmem:[#allocation7 + $0x9f0] sm:$0xff]
          %v5711 = vld [vmem:[#allocation7 + $0x9f8] sm:$0xff]
          %v5712 = vld [vmem:[#allocation7 + $0xa00] sm:$0xff]
          %v5713 = vld [vmem:[#allocation7 + $0xa08] sm:$0xff]
          %v5714 = vld [vmem:[#allocation7 + $0xa10] sm:$0xff]
          %v5715 = vld [vmem:[#allocation7 + $0xa18] sm:$0xff]
          %v5716 = vld [vmem:[#allocation7 + $0xa20] sm:$0xff]
          %v5717 = vld [vmem:[#allocation7 + $0xa28] sm:$0xff]
          %v5718 = vld [vmem:[#allocation7 + $0xa30] sm:$0xff]
          %v5719 = vld [vmem:[#allocation7 + $0xa38] sm:$0xff]
          %v5720 = vld [vmem:[#allocation7 + $0xa40] sm:$0xff]
          %v5721 = vld [vmem:[#allocation7 + $0xa48] sm:$0xff]
          %v5722 = vld [vmem:[#allocation7 + $0xa50] sm:$0xff]
          %v5723 = vld [vmem:[#allocation7 + $0xa58] sm:$0xff]
          %v5724 = vld [vmem:[#allocation7 + $0xa60] sm:$0xff]
          %v5725 = vld [vmem:[#allocation7 + $0xa68] sm:$0xff]
          %v5726 = vld [vmem:[#allocation7 + $0xa70] sm:$0xff]
          %v5727 = vld [vmem:[#allocation7 + $0xa78] sm:$0xff]
          %v5728 = vld [vmem:[#allocation7 + $0xa80] sm:$0xff]
          %v5729 = vld [vmem:[#allocation7 + $0xa88] sm:$0xff]
          %v5730 = vld [vmem:[#allocation7 + $0xa90] sm:$0xff]
          %v5731 = vld [vmem:[#allocation7 + $0xa98] sm:$0xff]
          %v5732 = vld [vmem:[#allocation7 + $0xaa0] sm:$0xff]
          %v5733 = vld [vmem:[#allocation7 + $0xaa8] sm:$0xff]
          %v5734 = vld [vmem:[#allocation7 + $0xab0] sm:$0xff]
          %v5735 = vld [vmem:[#allocation7 + $0xab8] sm:$0xff]
          %v5736 = vld [vmem:[#allocation7 + $0xac0] sm:$0xff]
          %v5737 = vld [vmem:[#allocation7 + $0xac8] sm:$0xff]
          %v5738 = vld [vmem:[#allocation7 + $0xad0] sm:$0xff]
          %v5739 = vld [vmem:[#allocation7 + $0xad8] sm:$0xff]
          %v5740 = vld [vmem:[#allocation7 + $0xae0] sm:$0xff]
          %v5741 = vld [vmem:[#allocation7 + $0xae8] sm:$0xff]
          %v5742 = vld [vmem:[#allocation7 + $0xaf0] sm:$0xff]
          %v5743 = vld [vmem:[#allocation7 + $0xaf8] sm:$0xff]
          %v5744 = vld [vmem:[#allocation7 + $0xb00] sm:$0xff]
          %v5745 = vld [vmem:[#allocation7 + $0xb08] sm:$0xff]
          %v5746 = vld [vmem:[#allocation7 + $0xb10] sm:$0xff]
          %v5747 = vld [vmem:[#allocation7 + $0xb18] sm:$0xff]
          %v5748 = vld [vmem:[#allocation7 + $0xb20] sm:$0xff]
          %v5749 = vld [vmem:[#allocation7 + $0xb28] sm:$0xff]
          %v5750 = vld [vmem:[#allocation7 + $0xb30] sm:$0xff]
          %v5751 = vld [vmem:[#allocation7 + $0xb38] sm:$0xff]
          %v5752 = vld [vmem:[#allocation7 + $0xb40] sm:$0xff]
          %v5753 = vld [vmem:[#allocation7 + $0xb48] sm:$0xff]
          %v5754 = vld [vmem:[#allocation7 + $0xb50] sm:$0xff]
          %v5755 = vld [vmem:[#allocation7 + $0xb58] sm:$0xff]
          %v5756 = vld [vmem:[#allocation7 + $0xb60] sm:$0xff]
          %v5757 = vld [vmem:[#allocation7 + $0xb68] sm:$0xff]
          %v5758 = vld [vmem:[#allocation7 + $0xb70] sm:$0xff]
          %v5759 = vld [vmem:[#allocation7 + $0xb78] sm:$0xff]
          %v5760 = vld [vmem:[#allocation7 + $0xb80] sm:$0xff]
          %v5761 = vld [vmem:[#allocation7 + $0xb88] sm:$0xff]
          %v5762 = vld [vmem:[#allocation7 + $0xb90] sm:$0xff]
          %v5763 = vld [vmem:[#allocation7 + $0xb98] sm:$0xff]
          %v5764 = vld [vmem:[#allocation7 + $0xba0] sm:$0xff]
          %v5765 = vld [vmem:[#allocation7 + $0xba8] sm:$0xff]
          %v5766 = vld [vmem:[#allocation7 + $0xbb0] sm:$0xff]
          %v5767 = vld [vmem:[#allocation7 + $0xbb8] sm:$0xff]
          %v5768 = vld [vmem:[#allocation7 + $0xbc0] sm:$0xff]
          %v5769 = vld [vmem:[#allocation7 + $0xbc8] sm:$0xff]
          %v5770 = vld [vmem:[#allocation7 + $0xbd0] sm:$0xff]
          %v5771 = vld [vmem:[#allocation7 + $0xbd8] sm:$0xff]
          %v5772 = vld [vmem:[#allocation7 + $0xbe0] sm:$0xff]
          %v5773 = vld [vmem:[#allocation7 + $0xbe8] sm:$0xff]
          %v5774 = vld [vmem:[#allocation7 + $0xbf0] sm:$0xff]
          %v5775 = vld [vmem:[#allocation7 + $0xbf8] sm:$0xff]
          %v5776 = vld [vmem:[#allocation7 + $0xc00] sm:$0xff]
          %v5777 = vld [vmem:[#allocation7 + $0xc08] sm:$0xff]
          %v5778 = vld [vmem:[#allocation7 + $0xc10] sm:$0xff]
          %v5779 = vld [vmem:[#allocation7 + $0xc18] sm:$0xff]
          %v5780 = vld [vmem:[#allocation7 + $0xc20] sm:$0xff]
          %v5781 = vld [vmem:[#allocation7 + $0xc28] sm:$0xff]
          %v5782 = vld [vmem:[#allocation7 + $0xc30] sm:$0xff]
          %v5783 = vld [vmem:[#allocation7 + $0xc38] sm:$0xff]
          %v5784 = vld [vmem:[#allocation7 + $0xc40] sm:$0xff]
          %v5785 = vld [vmem:[#allocation7 + $0xc48] sm:$0xff]
          %v5786 = vld [vmem:[#allocation7 + $0xc50] sm:$0xff]
          %v5787 = vld [vmem:[#allocation7 + $0xc58] sm:$0xff]
          %v5788 = vld [vmem:[#allocation7 + $0xc60] sm:$0xff]
          %v5789 = vld [vmem:[#allocation7 + $0xc68] sm:$0xff]
          %v5790 = vld [vmem:[#allocation7 + $0xc70] sm:$0xff]
          %v5791 = vld [vmem:[#allocation7 + $0xc78] sm:$0xff]
          %v5792 = vld [vmem:[#allocation7 + $0xc80] sm:$0xff]
          %v5793 = vld [vmem:[#allocation7 + $0xc88] sm:$0xff]
          %v5794 = vld [vmem:[#allocation7 + $0xc90] sm:$0xff]
          %v5795 = vld [vmem:[#allocation7 + $0xc98] sm:$0xff]
          %v5796 = vld [vmem:[#allocation7 + $0xca0] sm:$0xff]
          %v5797 = vld [vmem:[#allocation7 + $0xca8] sm:$0xff]
          %v5798 = vld [vmem:[#allocation7 + $0xcb0] sm:$0xff]
          %v5799 = vld [vmem:[#allocation7 + $0xcb8] sm:$0xff]
          %v5800 = vld [vmem:[#allocation7 + $0xcc0] sm:$0xff]
          %v5801 = vld [vmem:[#allocation7 + $0xcc8] sm:$0xff]
          %v5802 = vld [vmem:[#allocation7 + $0xcd0] sm:$0xff]
          %v5803 = vld [vmem:[#allocation7 + $0xcd8] sm:$0xff]
          %v5804 = vld [vmem:[#allocation7 + $0xce0] sm:$0xff]
          %v5805 = vld [vmem:[#allocation7 + $0xce8] sm:$0xff]
          %v5806 = vld [vmem:[#allocation7 + $0xcf0] sm:$0xff]
          %v5807 = vld [vmem:[#allocation7 + $0xcf8] sm:$0xff]
          %v5808 = vld [vmem:[#allocation7 + $0xd00] sm:$0xff]
          %v5809 = vld [vmem:[#allocation7 + $0xd08] sm:$0xff]
          %v5810 = vld [vmem:[#allocation7 + $0xd10] sm:$0xff]
          %v5811 = vld [vmem:[#allocation7 + $0xd18] sm:$0xff]
          %v5812 = vld [vmem:[#allocation7 + $0xd20] sm:$0xff]
          %v5813 = vld [vmem:[#allocation7 + $0xd28] sm:$0xff]
          %v5814 = vld [vmem:[#allocation7 + $0xd30] sm:$0xff]
          %v5815 = vld [vmem:[#allocation7 + $0xd38] sm:$0xff]
          %v5816 = vld [vmem:[#allocation7 + $0xd40] sm:$0xff]
          %v5817 = vld [vmem:[#allocation7 + $0xd48] sm:$0xff]
          %v5818 = vld [vmem:[#allocation7 + $0xd50] sm:$0xff]
          %v5819 = vld [vmem:[#allocation7 + $0xd58] sm:$0xff]
          %v5820 = vld [vmem:[#allocation7 + $0xd60] sm:$0xff]
          %v5821 = vld [vmem:[#allocation7 + $0xd68] sm:$0xff]
          %v5822 = vld [vmem:[#allocation7 + $0xd70] sm:$0xff]
          %v5823 = vld [vmem:[#allocation7 + $0xd78] sm:$0xff]
          %v5824 = vld [vmem:[#allocation7 + $0xd80] sm:$0xff]
          %v5825 = vld [vmem:[#allocation7 + $0xd88] sm:$0xff]
          %v5826 = vld [vmem:[#allocation7 + $0xd90] sm:$0xff]
          %v5827 = vld [vmem:[#allocation7 + $0xd98] sm:$0xff]
          %v5828 = vld [vmem:[#allocation7 + $0xda0] sm:$0xff]
          %v5829 = vld [vmem:[#allocation7 + $0xda8] sm:$0xff]
          %v5830 = vld [vmem:[#allocation7 + $0xdb0] sm:$0xff]
          %v5831 = vld [vmem:[#allocation7 + $0xdb8] sm:$0xff]
          %v5832 = vld [vmem:[#allocation7 + $0xdc0] sm:$0xff]
          %v5833 = vld [vmem:[#allocation7 + $0xdc8] sm:$0xff]
          %v5834 = vld [vmem:[#allocation7 + $0xdd0] sm:$0xff]
          %v5835 = vld [vmem:[#allocation7 + $0xdd8] sm:$0xff]
          %v5836 = vld [vmem:[#allocation7 + $0xde0] sm:$0xff]
          %v5837 = vld [vmem:[#allocation7 + $0xde8] sm:$0xff]
          %v5838 = vld [vmem:[#allocation7 + $0xdf0] sm:$0xff]
          %v5839 = vld [vmem:[#allocation7 + $0xdf8] sm:$0xff]
          %v5840 = vld [vmem:[#allocation7 + $0xe00] sm:$0xff]
          %v5841 = vld [vmem:[#allocation7 + $0xe08] sm:$0xff]
          %v5842 = vld [vmem:[#allocation7 + $0xe10] sm:$0xff]
          %v5843 = vld [vmem:[#allocation7 + $0xe18] sm:$0xff]
          %v5844 = vld [vmem:[#allocation7 + $0xe20] sm:$0xff]
          %v5845 = vld [vmem:[#allocation7 + $0xe28] sm:$0xff]
          %v5846 = vld [vmem:[#allocation7 + $0xe30] sm:$0xff]
          %v5847 = vld [vmem:[#allocation7 + $0xe38] sm:$0xff]
          %v5848 = vld [vmem:[#allocation7 + $0xe40] sm:$0xff]
          %v5849 = vld [vmem:[#allocation7 + $0xe48] sm:$0xff]
          %v5850 = vld [vmem:[#allocation7 + $0xe50] sm:$0xff]
          %v5851 = vld [vmem:[#allocation7 + $0xe58] sm:$0xff]
          %v5852 = vld [vmem:[#allocation7 + $0xe60] sm:$0xff]
          %v5853 = vld [vmem:[#allocation7 + $0xe68] sm:$0xff]
          %v5854 = vld [vmem:[#allocation7 + $0xe70] sm:$0xff]
          %v5855 = vld [vmem:[#allocation7 + $0xe78] sm:$0xff]
          %v5856 = vld [vmem:[#allocation7 + $0xe80] sm:$0xff]
          %v5857 = vld [vmem:[#allocation7 + $0xe88] sm:$0xff]
          %v5858 = vld [vmem:[#allocation7 + $0xe90] sm:$0xff]
          %v5859 = vld [vmem:[#allocation7 + $0xe98] sm:$0xff]
          %v5860 = vld [vmem:[#allocation7 + $0xea0] sm:$0xff]
          %v5861 = vld [vmem:[#allocation7 + $0xea8] sm:$0xff]
          %v5862 = vld [vmem:[#allocation7 + $0xeb0] sm:$0xff]
          %v5863 = vld [vmem:[#allocation7 + $0xeb8] sm:$0xff]
          %v5864 = vld [vmem:[#allocation7 + $0xec0] sm:$0xff]
          %v5865 = vld [vmem:[#allocation7 + $0xec8] sm:$0xff]
          %v5866 = vld [vmem:[#allocation7 + $0xed0] sm:$0xff]
          %v5867 = vld [vmem:[#allocation7 + $0xed8] sm:$0xff]
          %v5868 = vld [vmem:[#allocation7 + $0xee0] sm:$0xff]
          %v5869 = vld [vmem:[#allocation7 + $0xee8] sm:$0xff]
          %v5870 = vld [vmem:[#allocation7 + $0xef0] sm:$0xff]
          %v5871 = vld [vmem:[#allocation7 + $0xef8] sm:$0xff]
          %v5872 = vld [vmem:[#allocation7 + $0xf00] sm:$0xff]
          %v5873 = vld [vmem:[#allocation7 + $0xf08] sm:$0xff]
          %v5874 = vld [vmem:[#allocation7 + $0xf10] sm:$0xff]
          %v5875 = vld [vmem:[#allocation7 + $0xf18] sm:$0xff]
          %v5876 = vld [vmem:[#allocation7 + $0xf20] sm:$0xff]
          %v5877 = vld [vmem:[#allocation7 + $0xf28] sm:$0xff]
          %v5878 = vld [vmem:[#allocation7 + $0xf30] sm:$0xff]
          %v5879 = vld [vmem:[#allocation7 + $0xf38] sm:$0xff]
          %v5880 = vld [vmem:[#allocation7 + $0xf40] sm:$0xff]
          %v5881 = vld [vmem:[#allocation7 + $0xf48] sm:$0xff]
          %v5882 = vld [vmem:[#allocation7 + $0xf50] sm:$0xff]
          %v5883 = vld [vmem:[#allocation7 + $0xf58] sm:$0xff]
          %v5884 = vld [vmem:[#allocation7 + $0xf60] sm:$0xff]
          %v5885 = vld [vmem:[#allocation7 + $0xf68] sm:$0xff]
          %v5886 = vld [vmem:[#allocation7 + $0xf70] sm:$0xff]
          %v5887 = vld [vmem:[#allocation7 + $0xf78] sm:$0xff]
          %v5888 = vld [vmem:[#allocation7 + $0xf80] sm:$0xff]
          %v5889 = vld [vmem:[#allocation7 + $0xf88] sm:$0xff]
          %v5890 = vld [vmem:[#allocation7 + $0xf90] sm:$0xff]
          %v5891 = vld [vmem:[#allocation7 + $0xf98] sm:$0xff]
          %v5892 = vld [vmem:[#allocation7 + $0xfa0] sm:$0xff]
          %v5893 = vld [vmem:[#allocation7 + $0xfa8] sm:$0xff]
          %v5894 = vld [vmem:[#allocation7 + $0xfb0] sm:$0xff]
          %v5895 = vld [vmem:[#allocation7 + $0xfb8] sm:$0xff]
          %v5896 = vld [vmem:[#allocation7 + $0xfc0] sm:$0xff]
          %v5897 = vld [vmem:[#allocation7 + $0xfc8] sm:$0xff]
          %v5898 = vld [vmem:[#allocation7 + $0xfd0] sm:$0xff]
          %v5899 = vld [vmem:[#allocation7 + $0xfd8] sm:$0xff]
          %v5900 = vld [vmem:[#allocation7 + $0xfe0] sm:$0xff]
          %v5901 = vld [vmem:[#allocation7 + $0xfe8] sm:$0xff]
          %v5902 = vld [vmem:[#allocation7 + $0xff0] sm:$0xff]
          %v5903 = vld [vmem:[#allocation7 + $0xff8] sm:$0xff]
          %v5904 = vld [vmem:[#allocation7 + $0x1000] sm:$0xff]
          %v5905 = vld [vmem:[#allocation7 + $0x1008] sm:$0xff]
          %v5906 = vld [vmem:[#allocation7 + $0x1010] sm:$0xff]
          %v5907 = vld [vmem:[#allocation7 + $0x1018] sm:$0xff]
          %v5908 = vld [vmem:[#allocation7 + $0x1020] sm:$0xff]
          %v5909 = vld [vmem:[#allocation7 + $0x1028] sm:$0xff]
          %v5910 = vld [vmem:[#allocation7 + $0x1030] sm:$0xff]
          %v5911 = vld [vmem:[#allocation7 + $0x1038] sm:$0xff]
          %v5912 = vld [vmem:[#allocation7 + $0x1040] sm:$0xff]
          %v5913 = vld [vmem:[#allocation7 + $0x1048] sm:$0xff]
          %v5914 = vld [vmem:[#allocation7 + $0x1050] sm:$0xff]
          %v5915 = vld [vmem:[#allocation7 + $0x1058] sm:$0xff]
          %v5916 = vld [vmem:[#allocation7 + $0x1060] sm:$0xff]
          %v5917 = vld [vmem:[#allocation7 + $0x1068] sm:$0xff]
          %v5918 = vld [vmem:[#allocation7 + $0x1070] sm:$0xff]
          %v5919 = vld [vmem:[#allocation7 + $0x1078] sm:$0xff]
          %v5920 = vld [vmem:[#allocation7 + $0x1080] sm:$0xff]
          %v5921 = vld [vmem:[#allocation7 + $0x1088] sm:$0xff]
          %v5922 = vld [vmem:[#allocation7 + $0x1090] sm:$0xff]
          %v5923 = vld [vmem:[#allocation7 + $0x1098] sm:$0xff]
          %v5924 = vld [vmem:[#allocation7 + $0x10a0] sm:$0xff]
          %v5925 = vld [vmem:[#allocation7 + $0x10a8] sm:$0xff]
          %v5926 = vld [vmem:[#allocation7 + $0x10b0] sm:$0xff]
          %v5927 = vld [vmem:[#allocation7 + $0x10b8] sm:$0xff]
          %v5928 = vld [vmem:[#allocation7 + $0x10c0] sm:$0xff]
          %v5929 = vld [vmem:[#allocation7 + $0x10c8] sm:$0xff]
          %v5930 = vld [vmem:[#allocation7 + $0x10d0] sm:$0xff]
          %v5931 = vld [vmem:[#allocation7 + $0x10d8] sm:$0xff]
          %v5932 = vld [vmem:[#allocation7 + $0x10e0] sm:$0xff]
          %v5933 = vld [vmem:[#allocation7 + $0x10e8] sm:$0xff]
          %v5934 = vld [vmem:[#allocation7 + $0x10f0] sm:$0xff]
          %v5935 = vld [vmem:[#allocation7 + $0x10f8] sm:$0xff]
          %v5936 = vld [vmem:[#allocation7 + $0x1100] sm:$0xff]
          %v5937 = vld [vmem:[#allocation7 + $0x1108] sm:$0xff]
          %v5938 = vld [vmem:[#allocation7 + $0x1110] sm:$0xff]
          %v5939 = vld [vmem:[#allocation7 + $0x1118] sm:$0xff]
          %v5940 = vld [vmem:[#allocation7 + $0x1120] sm:$0xff]
          %v5941 = vld [vmem:[#allocation7 + $0x1128] sm:$0xff]
          %v5942 = vld [vmem:[#allocation7 + $0x1130] sm:$0xff]
          %v5943 = vld [vmem:[#allocation7 + $0x1138] sm:$0xff]
          %v5944 = vld [vmem:[#allocation7 + $0x1140] sm:$0xff]
          %v5945 = vld [vmem:[#allocation7 + $0x1148] sm:$0xff]
          %v5946 = vld [vmem:[#allocation7 + $0x1150] sm:$0xff]
          %v5947 = vld [vmem:[#allocation7 + $0x1158] sm:$0xff]
          %v5948 = vld [vmem:[#allocation7 + $0x1160] sm:$0xff]
          %v5949 = vld [vmem:[#allocation7 + $0x1168] sm:$0xff]
          %v5950 = vld [vmem:[#allocation7 + $0x1170] sm:$0xff]
          %v5951 = vld [vmem:[#allocation7 + $0x1178] sm:$0xff]
          %v5952 = vld [vmem:[#allocation7 + $0x1180] sm:$0xff]
          %v5953 = vld [vmem:[#allocation7 + $0x1188] sm:$0xff]
          %v5954 = vld [vmem:[#allocation7 + $0x1190] sm:$0xff]
          %v5955 = vld [vmem:[#allocation7 + $0x1198] sm:$0xff]
          %v5956 = vld [vmem:[#allocation7 + $0x11a0] sm:$0xff]
          %v5957 = vld [vmem:[#allocation7 + $0x11a8] sm:$0xff]
          %v5958 = vld [vmem:[#allocation7 + $0x11b0] sm:$0xff]
          %v5959 = vld [vmem:[#allocation7 + $0x11b8] sm:$0xff]
          %v5960 = vld [vmem:[#allocation7 + $0x11c0] sm:$0xff]
          %v5961 = vld [vmem:[#allocation7 + $0x11c8] sm:$0xff]
          %v5962 = vld [vmem:[#allocation7 + $0x11d0] sm:$0xff]
          %v5963 = vld [vmem:[#allocation7 + $0x11d8] sm:$0xff]
          %v5964 = vld [vmem:[#allocation7 + $0x11e0] sm:$0xff]
          %v5965 = vld [vmem:[#allocation7 + $0x11e8] sm:$0xff]
          %v5966 = vld [vmem:[#allocation7 + $0x11f0] sm:$0xff]
          %v5967 = vld [vmem:[#allocation7 + $0x11f8] sm:$0xff]
          %v5968 = vld [vmem:[#allocation9] sm:$0x3f]
          %v5970 = vlaneseq
          %v5971 = vshrl.u32 %v5970, 7
          %v5972 = vsub.s32 0, %v5971
          %v5973 = vrot.slane %v5968, %v5972
          %v5974 = vlaneseq
          %v5975 = vshrl.u32 %v5974, 7
          %v5976 = vsub.s32 1, %v5975
          %v5977 = vrot.slane %v5968, %v5976
          %v5978 = vlaneseq
          %v5979 = vshrl.u32 %v5978, 7
          %v5980 = vsub.s32 2, %v5979
          %v5981 = vrot.slane %v5968, %v5980
          %v5982 = vlaneseq
          %v5983 = vshrl.u32 %v5982, 7
          %v5984 = vsub.s32 3, %v5983
          %v5985 = vrot.slane %v5968, %v5984
          %v5986 = vlaneseq
          %v5987 = vshrl.u32 %v5986, 7
          %v5988 = vsub.s32 4, %v5987
          %v5989 = vrot.slane %v5968, %v5988
          %v5990 = vlaneseq
          %v5991 = vshrl.u32 %v5990, 7
          %v5992 = vsub.s32 5, %v5991
          %v5993 = vrot.slane %v5968, %v5992
          %6000 = vmatprep.subr.mxu0 %v5393
          %6001 = vmatpush1.msra.mxu0 %v5392
          %6002 = vmatprep.subr.mxu0 %v5399
          %6003 = vmatpush1.msra.mxu0 %v5398
          %6004 = vmatprep.subr.mxu0 %v5405
          %6005 = vmatpush1.msra.mxu0 %v5404
          %6006 = vmatprep.subr.mxu0 %v5411
          %6007 = vmatpush1.msra.mxu0 %v5410
          %6008 = vmatprep.subr.mxu0 %v5417
          %6009 = vmatpush1.msra.mxu0 %v5416
          %6010 = vmatprep.subr.mxu0 %v5423
          %6011 = vmatpush1.msra.mxu0 %v5422
          %6012 = vmatprep.subr.mxu0 %v5429
          %6013 = vmatpush1.msra.mxu0 %v5428
          %6014 = vmatprep.subr.mxu0 %v5435
          %6015 = vmatpush1.msra.mxu0 %v5434
          %6016 = vmatprep.subr.mxu0 %v5441
          %6017 = vmatpush1.msra.mxu0 %v5440
          %6018 = vmatprep.subr.mxu0 %v5447
          %6019 = vmatpush1.msra.mxu0 %v5446
          %6020 = vmatprep.subr.mxu0 %v5453
          %6021 = vmatpush1.msra.mxu0 %v5452
          %6022 = vmatprep.subr.mxu0 %v5459
          %6023 = vmatpush1.msra.mxu0 %v5458
          %6024 = vmatprep.subr.mxu0 %v5465
          %6025 = vmatpush1.msra.mxu0 %v5464
          %6026 = vmatprep.subr.mxu0 %v5471
          %6027 = vmatpush1.msra.mxu0 %v5470
          %6028 = vmatprep.subr.mxu0 %v5477
          %6029 = vmatpush1.msra.mxu0 %v5476
          %6030 = vmatprep.subr.mxu0 %v5483
          %6031 = vmatpush1.msra.mxu0 %v5482
          %6032 = vmatprep.subr.mxu0 %v5489
          %6033 = vmatpush1.msra.mxu0 %v5488
          %6034 = vmatprep.subr.mxu0 %v5495
          %6035 = vmatpush1.msra.mxu0 %v5494
          %6036 = vmatprep.subr.mxu0 %v5501
          %6037 = vmatpush1.msra.mxu0 %v5500
          %6038 = vmatprep.subr.mxu0 %v5507
          %6039 = vmatpush1.msra.mxu0 %v5506
          %6040 = vmatprep.subr.mxu0 %v5513
          %6041 = vmatpush1.msra.mxu0 %v5512
          %6042 = vmatprep.subr.mxu0 %v5519
          %6043 = vmatpush1.msra.mxu0 %v5518
          %6044 = vmatprep.subr.mxu0 %v5525
          %6045 = vmatpush1.msra.mxu0 %v5524
          %6046 = vmatprep.subr.mxu0 %v5531
          %6047 = vmatpush1.msra.mxu0 %v5530
          %6048 = vmatprep.subr.mxu0 %v5537
          %6049 = vmatpush1.msra.mxu0 %v5536
          %6050 = vmatprep.subr.mxu0 %v5543
          %6051 = vmatpush1.msra.mxu0 %v5542
          %6052 = vmatprep.subr.mxu0 %v5549
          %6053 = vmatpush1.msra.mxu0 %v5548
          %6054 = vmatprep.subr.mxu0 %v5555
          %6055 = vmatpush1.msra.mxu0 %v5554
          %6056 = vmatprep.subr.mxu0 %v5561
          %6057 = vmatpush1.msra.mxu0 %v5560
          %6058 = vmatprep.subr.mxu0 %v5567
          %6059 = vmatpush1.msra.mxu0 %v5566
          %6060 = vmatprep.subr.mxu0 %v5573
          %6061 = vmatpush1.msra.mxu0 %v5572
          %6062 = vmatprep.subr.mxu0 %v5579
          %6063 = vmatpush1.msra.mxu0 %v5578
          %6064 = vmatprep.mubr.f32.mxu0 %v5387
          %6065 = vmatmul.mubr.f32.gmra.mrb[0].mxu0 %v5386
          %v6066 = vpop.f32.mrb[0].mxu0
          %v6067 = vadd.f32 %v5973, %v6066
          %v6068 = vpop.f32.mrb[0].mxu0
          %v6069 = vadd.f32 %v5977, %v6068
          %6070 = vdwg.mxu0
          %6071 = vmatprep.subr.mxu0 %v5585
          %6072 = vmatpush1.msra.mxu0 %v5584
          %6073 = vmatprep.subr.mxu0 %v5591
          %6074 = vmatpush1.msra.mxu0 %v5590
          %6075 = vmatprep.subr.mxu0 %v5597
          %6076 = vmatpush1.msra.mxu0 %v5596
          %6077 = vmatprep.subr.mxu0 %v5603
          %6078 = vmatpush1.msra.mxu0 %v5602
          %6079 = vmatprep.subr.mxu0 %v5609
          %6080 = vmatpush1.msra.mxu0 %v5608
          %6081 = vmatprep.subr.mxu0 %v5615
          %6082 = vmatpush1.msra.mxu0 %v5614
          %6083 = vmatprep.subr.mxu0 %v5621
          %6084 = vmatpush1.msra.mxu0 %v5620
          %6085 = vmatprep.subr.mxu0 %v5627
          %6086 = vmatpush1.msra.mxu0 %v5626
          %6087 = vmatprep.subr.mxu0 %v5633
          %6088 = vmatpush1.msra.mxu0 %v5632
          %6089 = vmatprep.subr.mxu0 %v5639
          %6090 = vmatpush1.msra.mxu0 %v5638
          %6091 = vmatprep.subr.mxu0 %v5645
          %6092 = vmatpush1.msra.mxu0 %v5644
          %6093 = vmatprep.subr.mxu0 %v5651
          %6094 = vmatpush1.msra.mxu0 %v5650
          %6095 = vmatprep.subr.mxu0 %v5657
          %6096 = vmatpush1.msra.mxu0 %v5656
          %6097 = vmatprep.subr.mxu0 %v5663
          %6098 = vmatpush1.msra.mxu0 %v5662
          %6099 = vmatprep.subr.mxu0 %v5669
          %6100 = vmatpush1.msra.mxu0 %v5668
          %6101 = vmatprep.subr.mxu0 %v5675
          %6102 = vmatpush1.msra.mxu0 %v5674
          %6103 = vmatprep.subr.mxu0 %v5681
          %6104 = vmatpush1.msra.mxu0 %v5680
          %6105 = vmatprep.subr.mxu0 %v5687
          %6106 = vmatpush1.msra.mxu0 %v5686
          %6107 = vmatprep.subr.mxu0 %v5693
          %6108 = vmatpush1.msra.mxu0 %v5692
          %6109 = vmatprep.subr.mxu0 %v5699
          %6110 = vmatpush1.msra.mxu0 %v5698
          %6111 = vmatprep.subr.mxu0 %v5705
          %6112 = vmatpush1.msra.mxu0 %v5704
          %6113 = vmatprep.subr.mxu0 %v5711
          %6114 = vmatpush1.msra.mxu0 %v5710
          %6115 = vmatprep.subr.mxu0 %v5717
          %6116 = vmatpush1.msra.mxu0 %v5716
          %6117 = vmatprep.subr.mxu0 %v5723
          %6118 = vmatpush1.msra.mxu0 %v5722
          %6119 = vmatprep.subr.mxu0 %v5729
          %6120 = vmatpush1.msra.mxu0 %v5728
          %6121 = vmatprep.subr.mxu0 %v5735
          %6122 = vmatpush1.msra.mxu0 %v5734
          %6123 = vmatprep.subr.mxu0 %v5741
          %6124 = vmatpush1.msra.mxu0 %v5740
          %6125 = vmatprep.subr.mxu0 %v5747
          %6126 = vmatpush1.msra.mxu0 %v5746
          %6127 = vmatprep.subr.mxu0 %v5753
          %6128 = vmatpush1.msra.mxu0 %v5752
          %6129 = vmatprep.subr.mxu0 %v5759
          %6130 = vmatpush1.msra.mxu0 %v5758
          %6131 = vmatprep.subr.mxu0 %v5765
          %6132 = vmatpush1.msra.mxu0 %v5764
          %6133 = vmatprep.subr.mxu0 %v5771
          %6134 = vmatpush1.msra.mxu0 %v5770
          %6135 = vmatprep.mubr.f32.mxu0 %v5389
          %6136 = vmatmul.mubr.f32.gmra.mrb[0].mxu0 %v5388
          %v6137 = vpop.f32.mrb[0].mxu0
          %v6138 = vadd.f32 %v6067, %v6137
          %v6139 = vpop.f32.mrb[0].mxu0
          %v6140 = vadd.f32 %v6069, %v6139
          %6141 = vdwg.mxu0
          %6142 = vmatprep.subr.mxu0 %v5777
          %6143 = vmatpush1.msra.mxu0 %v5776
          %6144 = vmatprep.subr.mxu0 %v5783
          %6145 = vmatpush1.msra.mxu0 %v5782
          %6146 = vmatprep.subr.mxu0 %v5789
          %6147 = vmatpush1.msra.mxu0 %v5788
          %6148 = vmatprep.subr.mxu0 %v5795
          %6149 = vmatpush1.msra.mxu0 %v5794
          %6150 = vmatprep.subr.mxu0 %v5801
          %6151 = vmatpush1.msra.mxu0 %v5800
          %6152 = vmatprep.subr.mxu0 %v5807
          %6153 = vmatpush1.msra.mxu0 %v5806
          %6154 = vmatprep.subr.mxu0 %v5813
          %6155 = vmatpush1.msra.mxu0 %v5812
          %6156 = vmatprep.subr.mxu0 %v5819
          %6157 = vmatpush1.msra.mxu0 %v5818
          %6158 = vmatprep.subr.mxu0 %v5825
          %6159 = vmatpush1.msra.mxu0 %v5824
          %6160 = vmatprep.subr.mxu0 %v5831
          %6161 = vmatpush1.msra.mxu0 %v5830
          %6162 = vmatprep.subr.mxu0 %v5837
          %6163 = vmatpush1.msra.mxu0 %v5836
          %6164 = vmatprep.subr.mxu0 %v5843
          %6165 = vmatpush1.msra.mxu0 %v5842
          %6166 = vmatprep.subr.mxu0 %v5849
          %6167 = vmatpush1.msra.mxu0 %v5848
          %6168 = vmatprep.subr.mxu0 %v5855
          %6169 = vmatpush1.msra.mxu0 %v5854
          %6170 = vmatprep.subr.mxu0 %v5861
          %6171 = vmatpush1.msra.mxu0 %v5860
          %6172 = vmatprep.subr.mxu0 %v5867
          %6173 = vmatpush1.msra.mxu0 %v5866
          %6174 = vmatprep.subr.mxu0 %v5873
          %6175 = vmatpush1.msra.mxu0 %v5872
          %6176 = vmatprep.subr.mxu0 %v5879
          %6177 = vmatpush1.msra.mxu0 %v5878
          %6178 = vmatprep.subr.mxu0 %v5885
          %6179 = vmatpush1.msra.mxu0 %v5884
          %6180 = vmatprep.subr.mxu0 %v5891
          %6181 = vmatpush1.msra.mxu0 %v5890
          %6182 = vmatprep.subr.mxu0 %v5897
          %6183 = vmatpush1.msra.mxu0 %v5896
          %6184 = vmatprep.subr.mxu0 %v5903
          %6185 = vmatpush1.msra.mxu0 %v5902
          %6186 = vmatprep.subr.mxu0 %v5909
          %6187 = vmatpush1.msra.mxu0 %v5908
          %6188 = vmatprep.subr.mxu0 %v5915
          %6189 = vmatpush1.msra.mxu0 %v5914
          %6190 = vmatprep.subr.mxu0 %v5921
          %6191 = vmatpush1.msra.mxu0 %v5920
          %6192 = vmatprep.subr.mxu0 %v5927
          %6193 = vmatpush1.msra.mxu0 %v5926
          %6194 = vmatprep.subr.mxu0 %v5933
          %6195 = vmatpush1.msra.mxu0 %v5932
          %6196 = vmatprep.subr.mxu0 %v5939
          %6197 = vmatpush1.msra.mxu0 %v5938
          %6198 = vmatprep.subr.mxu0 %v5945
          %6199 = vmatpush1.msra.mxu0 %v5944
          %6200 = vmatprep.subr.mxu0 %v5951
          %6201 = vmatpush1.msra.mxu0 %v5950
          %6202 = vmatprep.subr.mxu0 %v5957
          %6203 = vmatpush1.msra.mxu0 %v5956
          %6204 = vmatprep.subr.mxu0 %v5963
          %6205 = vmatpush1.msra.mxu0 %v5962
          %6206 = vmatprep.mubr.f32.mxu0 %v5391
          %6207 = vmatmul.mubr.f32.gmra.mrb[0].mxu0 %v5390
          %v6208 = vpop.f32.mrb[0].mxu0
          %v6209 = vadd.f32 %v6138, %v6208
          %v6210 = vpop.f32.mrb[0].mxu0
          %v6211 = vadd.f32 %v6140, %v6210
          %6212 = vdwg.mxu0
          %6213 = vmatprep.subr.mxu0 %v5395
          %6214 = vmatpush1.msra.mxu0 %v5394
          %6215 = vmatprep.subr.mxu0 %v5401
          %6216 = vmatpush1.msra.mxu0 %v5400
          %6217 = vmatprep.subr.mxu0 %v5407
          %6218 = vmatpush1.msra.mxu0 %v5406
          %6219 = vmatprep.subr.mxu0 %v5413
          %6220 = vmatpush1.msra.mxu0 %v5412
          %6221 = vmatprep.subr.mxu0 %v5419
          %6222 = vmatpush1.msra.mxu0 %v5418
          %6223 = vmatprep.subr.mxu0 %v5425
          %6224 = vmatpush1.msra.mxu0 %v5424
          %6225 = vmatprep.subr.mxu0 %v5431
          %6226 = vmatpush1.msra.mxu0 %v5430
          %6227 = vmatprep.subr.mxu0 %v5437
          %6228 = vmatpush1.msra.mxu0 %v5436
          %6229 = vmatprep.subr.mxu0 %v5443
          %6230 = vmatpush1.msra.mxu0 %v5442
          %6231 = vmatprep.subr.mxu0 %v5449
          %6232 = vmatpush1.msra.mxu0 %v5448
          %6233 = vmatprep.subr.mxu0 %v5455
          %6234 = vmatpush1.msra.mxu0 %v5454
          %6235 = vmatprep.subr.mxu0 %v5461
          %6236 = vmatpush1.msra.mxu0 %v5460
          %6237 = vmatprep.subr.mxu0 %v5467
          %6238 = vmatpush1.msra.mxu0 %v5466
          %6239 = vmatprep.subr.mxu0 %v5473
          %6240 = vmatpush1.msra.mxu0 %v5472
          %6241 = vmatprep.subr.mxu0 %v5479
          %6242 = vmatpush1.msra.mxu0 %v5478
          %6243 = vmatprep.subr.mxu0 %v5485
          %6244 = vmatpush1.msra.mxu0 %v5484
          %6245 = vmatprep.subr.mxu0 %v5491
          %6246 = vmatpush1.msra.mxu0 %v5490
          %6247 = vmatprep.subr.mxu0 %v5497
          %6248 = vmatpush1.msra.mxu0 %v5496
          %6249 = vmatprep.subr.mxu0 %v5503
          %6250 = vmatpush1.msra.mxu0 %v5502
          %6251 = vmatprep.subr.mxu0 %v5509
          %6252 = vmatpush1.msra.mxu0 %v5508
          %6253 = vmatprep.subr.mxu0 %v5515
          %6254 = vmatpush1.msra.mxu0 %v5514
          %6255 = vmatprep.subr.mxu0 %v5521
          %6256 = vmatpush1.msra.mxu0 %v5520
          %6257 = vmatprep.subr.mxu0 %v5527
          %6258 = vmatpush1.msra.mxu0 %v5526
          %6259 = vmatprep.subr.mxu0 %v5533
          %6260 = vmatpush1.msra.mxu0 %v5532
          %6261 = vmatprep.subr.mxu0 %v5539
          %6262 = vmatpush1.msra.mxu0 %v5538
          %6263 = vmatprep.subr.mxu0 %v5545
          %6264 = vmatpush1.msra.mxu0 %v5544
          %6265 = vmatprep.subr.mxu0 %v5551
          %6266 = vmatpush1.msra.mxu0 %v5550
          %6267 = vmatprep.subr.mxu0 %v5557
          %6268 = vmatpush1.msra.mxu0 %v5556
          %6269 = vmatprep.subr.mxu0 %v5563
          %6270 = vmatpush1.msra.mxu0 %v5562
          %6271 = vmatprep.subr.mxu0 %v5569
          %6272 = vmatpush1.msra.mxu0 %v5568
          %6273 = vmatprep.subr.mxu0 %v5575
          %6274 = vmatpush1.msra.mxu0 %v5574
          %6275 = vmatprep.subr.mxu0 %v5581
          %6276 = vmatpush1.msra.mxu0 %v5580
          %6277 = vmatprep.mubr.f32.mxu0 %v5387
          %6278 = vmatmul.mubr.f32.gmra.mrb[0].mxu0 %v5386
          %v6279 = vpop.f32.mrb[0].mxu0
          %v6280 = vadd.f32 %v5981, %v6279
          %v6281 = vpop.f32.mrb[0].mxu0
          %v6282 = vadd.f32 %v5985, %v6281
          %6283 = vdwg.mxu0
          %6284 = vmatprep.subr.mxu0 %v5587
          %6285 = vmatpush1.msra.mxu0 %v5586
          %6286 = vmatprep.subr.mxu0 %v5593
          %6287 = vmatpush1.msra.mxu0 %v5592
          %6288 = vmatprep.subr.mxu0 %v5599
          %6289 = vmatpush1.msra.mxu0 %v5598
          %6290 = vmatprep.subr.mxu0 %v5605
          %6291 = vmatpush1.msra.mxu0 %v5604
          %6292 = vmatprep.subr.mxu0 %v5611
          %6293 = vmatpush1.msra.mxu0 %v5610
          %6294 = vmatprep.subr.mxu0 %v5617
          %6295 = vmatpush1.msra.mxu0 %v5616
          %6296 = vmatprep.subr.mxu0 %v5623
          %6297 = vmatpush1.msra.mxu0 %v5622
          %6298 = vmatprep.subr.mxu0 %v5629
          %6299 = vmatpush1.msra.mxu0 %v5628
          %6300 = vmatprep.subr.mxu0 %v5635
          %6301 = vmatpush1.msra.mxu0 %v5634
          %6302 = vmatprep.subr.mxu0 %v5641
          %6303 = vmatpush1.msra.mxu0 %v5640
          %6304 = vmatprep.subr.mxu0 %v5647
          %6305 = vmatpush1.msra.mxu0 %v5646
          %6306 = vmatprep.subr.mxu0 %v5653
          %6307 = vmatpush1.msra.mxu0 %v5652
          %6308 = vmatprep.subr.mxu0 %v5659
          %6309 = vmatpush1.msra.mxu0 %v5658
          %6310 = vmatprep.subr.mxu0 %v5665
          %6311 = vmatpush1.msra.mxu0 %v5664
          %6312 = vmatprep.subr.mxu0 %v5671
          %6313 = vmatpush1.msra.mxu0 %v5670
          %6314 = vmatprep.subr.mxu0 %v5677
          %6315 = vmatpush1.msra.mxu0 %v5676
          %6316 = vmatprep.subr.mxu0 %v5683
          %6317 = vmatpush1.msra.mxu0 %v5682
          %6318 = vmatprep.subr.mxu0 %v5689
          %6319 = vmatpush1.msra.mxu0 %v5688
          %6320 = vmatprep.subr.mxu0 %v5695
          %6321 = vmatpush1.msra.mxu0 %v5694
          %6322 = vmatprep.subr.mxu0 %v5701
          %6323 = vmatpush1.msra.mxu0 %v5700
          %6324 = vmatprep.subr.mxu0 %v5707
          %6325 = vmatpush1.msra.mxu0 %v5706
          %6326 = vmatprep.subr.mxu0 %v5713
          %6327 = vmatpush1.msra.mxu0 %v5712
          %6328 = vmatprep.subr.mxu0 %v5719
          %6329 = vmatpush1.msra.mxu0 %v5718
          %6330 = vmatprep.subr.mxu0 %v5725
          %6331 = vmatpush1.msra.mxu0 %v5724
          %6332 = vmatprep.subr.mxu0 %v5731
          %6333 = vmatpush1.msra.mxu0 %v5730
          %6334 = vmatprep.subr.mxu0 %v5737
          %6335 = vmatpush1.msra.mxu0 %v5736
          %6336 = vmatprep.subr.mxu0 %v5743
          %6337 = vmatpush1.msra.mxu0 %v5742
          %6338 = vmatprep.subr.mxu0 %v5749
          %6339 = vmatpush1.msra.mxu0 %v5748
          %6340 = vmatprep.subr.mxu0 %v5755
          %6341 = vmatpush1.msra.mxu0 %v5754
          %6342 = vmatprep.subr.mxu0 %v5761
          %6343 = vmatpush1.msra.mxu0 %v5760
          %6344 = vmatprep.subr.mxu0 %v5767
          %6345 = vmatpush1.msra.mxu0 %v5766
          %6346 = vmatprep.subr.mxu0 %v5773
          %6347 = vmatpush1.msra.mxu0 %v5772
          %6348 = vmatprep.mubr.f32.mxu0 %v5389
          %6349 = vmatmul.mubr.f32.gmra.mrb[0].mxu0 %v5388
          %v6350 = vpop.f32.mrb[0].mxu0
          %v6351 = vadd.f32 %v6280, %v6350
          %v6352 = vpop.f32.mrb[0].mxu0
          %v6353 = vadd.f32 %v6282, %v6352
          %6354 = vdwg.mxu0
          %6355 = vmatprep.subr.mxu0 %v5779
          %6356 = vmatpush1.msra.mxu0 %v5778
          %6357 = vmatprep.subr.mxu0 %v5785
          %6358 = vmatpush1.msra.mxu0 %v5784
          %6359 = vmatprep.subr.mxu0 %v5791
          %6360 = vmatpush1.msra.mxu0 %v5790
          %6361 = vmatprep.subr.mxu0 %v5797
          %6362 = vmatpush1.msra.mxu0 %v5796
          %6363 = vmatprep.subr.mxu0 %v5803
          %6364 = vmatpush1.msra.mxu0 %v5802
          %6365 = vmatprep.subr.mxu0 %v5809
          %6366 = vmatpush1.msra.mxu0 %v5808
          %6367 = vmatprep.subr.mxu0 %v5815
          %6368 = vmatpush1.msra.mxu0 %v5814
          %6369 = vmatprep.subr.mxu0 %v5821
          %6370 = vmatpush1.msra.mxu0 %v5820
          %6371 = vmatprep.subr.mxu0 %v5827
          %6372 = vmatpush1.msra.mxu0 %v5826
          %6373 = vmatprep.subr.mxu0 %v5833
          %6374 = vmatpush1.msra.mxu0 %v5832
          %6375 = vmatprep.subr.mxu0 %v5839
          %6376 = vmatpush1.msra.mxu0 %v5838
          %6377 = vmatprep.subr.mxu0 %v5845
          %6378 = vmatpush1.msra.mxu0 %v5844
          %6379 = vmatprep.subr.mxu0 %v5851
          %6380 = vmatpush1.msra.mxu0 %v5850
          %6381 = vmatprep.subr.mxu0 %v5857
          %6382 = vmatpush1.msra.mxu0 %v5856
          %6383 = vmatprep.subr.mxu0 %v5863
          %6384 = vmatpush1.msra.mxu0 %v5862
          %6385 = vmatprep.subr.mxu0 %v5869
          %6386 = vmatpush1.msra.mxu0 %v5868
          %6387 = vmatprep.subr.mxu0 %v5875
          %6388 = vmatpush1.msra.mxu0 %v5874
          %6389 = vmatprep.subr.mxu0 %v5881
          %6390 = vmatpush1.msra.mxu0 %v5880
          %6391 = vmatprep.subr.mxu0 %v5887
          %6392 = vmatpush1.msra.mxu0 %v5886
          %6393 = vmatprep.subr.mxu0 %v5893
          %6394 = vmatpush1.msra.mxu0 %v5892
          %6395 = vmatprep.subr.mxu0 %v5899
          %6396 = vmatpush1.msra.mxu0 %v5898
          %6397 = vmatprep.subr.mxu0 %v5905
          %6398 = vmatpush1.msra.mxu0 %v5904
          %6399 = vmatprep.subr.mxu0 %v5911
          %6400 = vmatpush1.msra.mxu0 %v5910
          %6401 = vmatprep.subr.mxu0 %v5917
          %6402 = vmatpush1.msra.mxu0 %v5916
          %6403 = vmatprep.subr.mxu0 %v5923
          %6404 = vmatpush1.msra.mxu0 %v5922
          %6405 = vmatprep.subr.mxu0 %v5929
          %6406 = vmatpush1.msra.mxu0 %v5928
          %6407 = vmatprep.subr.mxu0 %v5935
          %6408 = vmatpush1.msra.mxu0 %v5934
          %6409 = vmatprep.subr.mxu0 %v5941
          %6410 = vmatpush1.msra.mxu0 %v5940
          %6411 = vmatprep.subr.mxu0 %v5947
          %6412 = vmatpush1.msra.mxu0 %v5946
          %6413 = vmatprep.subr.mxu0 %v5953
          %6414 = vmatpush1.msra.mxu0 %v5952
          %6415 = vmatprep.subr.mxu0 %v5959
          %6416 = vmatpush1.msra.mxu0 %v5958
          %6417 = vmatprep.subr.mxu0 %v5965
          %6418 = vmatpush1.msra.mxu0 %v5964
          %6419 = vmatprep.mubr.f32.mxu0 %v5391
          %6420 = vmatmul.mubr.f32.gmra.mrb[0].mxu0 %v5390
          %v6421 = vpop.f32.mrb[0].mxu0
          %v6422 = vadd.f32 %v6351, %v6421
          %v6423 = vpop.f32.mrb[0].mxu0
          %v6424 = vadd.f32 %v6353, %v6423
          %6425 = vdwg.mxu0
          %6426 = vmatprep.subr.mxu0 %v5397
          %6427 = vmatpush1.msra.mxu0 %v5396
          %6428 = vmatprep.subr.mxu0 %v5403
          %6429 = vmatpush1.msra.mxu0 %v5402
          %6430 = vmatprep.subr.mxu0 %v5409
          %6431 = vmatpush1.msra.mxu0 %v5408
          %6432 = vmatprep.subr.mxu0 %v5415
          %6433 = vmatpush1.msra.mxu0 %v5414
          %6434 = vmatprep.subr.mxu0 %v5421
          %6435 = vmatpush1.msra.mxu0 %v5420
          %6436 = vmatprep.subr.mxu0 %v5427
          %6437 = vmatpush1.msra.mxu0 %v5426
          %6438 = vmatprep.subr.mxu0 %v5433
          %6439 = vmatpush1.msra.mxu0 %v5432
          %6440 = vmatprep.subr.mxu0 %v5439
          %6441 = vmatpush1.msra.mxu0 %v5438
          %6442 = vmatprep.subr.mxu0 %v5445
          %6443 = vmatpush1.msra.mxu0 %v5444
          %6444 = vmatprep.subr.mxu0 %v5451
          %6445 = vmatpush1.msra.mxu0 %v5450
          %6446 = vmatprep.subr.mxu0 %v5457
          %6447 = vmatpush1.msra.mxu0 %v5456
          %6448 = vmatprep.subr.mxu0 %v5463
          %6449 = vmatpush1.msra.mxu0 %v5462
          %6450 = vmatprep.subr.mxu0 %v5469
          %6451 = vmatpush1.msra.mxu0 %v5468
          %6452 = vmatprep.subr.mxu0 %v5475
          %6453 = vmatpush1.msra.mxu0 %v5474
          %6454 = vmatprep.subr.mxu0 %v5481
          %6455 = vmatpush1.msra.mxu0 %v5480
          %6456 = vmatprep.subr.mxu0 %v5487
          %6457 = vmatpush1.msra.mxu0 %v5486
          %6458 = vmatprep.subr.mxu0 %v5493
          %6459 = vmatpush1.msra.mxu0 %v5492
          %6460 = vmatprep.subr.mxu0 %v5499
          %6461 = vmatpush1.msra.mxu0 %v5498
          %6462 = vmatprep.subr.mxu0 %v5505
          %6463 = vmatpush1.msra.mxu0 %v5504
          %6464 = vmatprep.subr.mxu0 %v5511
          %6465 = vmatpush1.msra.mxu0 %v5510
          %6466 = vmatprep.subr.mxu0 %v5517
          %6467 = vmatpush1.msra.mxu0 %v5516
          %6468 = vmatprep.subr.mxu0 %v5523
          %6469 = vmatpush1.msra.mxu0 %v5522
          %6470 = vmatprep.subr.mxu0 %v5529
          %6471 = vmatpush1.msra.mxu0 %v5528
          %6472 = vmatprep.subr.mxu0 %v5535
          %6473 = vmatpush1.msra.mxu0 %v5534
          %6474 = vmatprep.subr.mxu0 %v5541
          %6475 = vmatpush1.msra.mxu0 %v5540
          %6476 = vmatprep.subr.mxu0 %v5547
          %6477 = vmatpush1.msra.mxu0 %v5546
          %6478 = vmatprep.subr.mxu0 %v5553
          %6479 = vmatpush1.msra.mxu0 %v5552
          %6480 = vmatprep.subr.mxu0 %v5559
          %6481 = vmatpush1.msra.mxu0 %v5558
          %6482 = vmatprep.subr.mxu0 %v5565
          %6483 = vmatpush1.msra.mxu0 %v5564
          %6484 = vmatprep.subr.mxu0 %v5571
          %6485 = vmatpush1.msra.mxu0 %v5570
          %6486 = vmatprep.subr.mxu0 %v5577
          %6487 = vmatpush1.msra.mxu0 %v5576
          %6488 = vmatprep.subr.mxu0 %v5583
          %6489 = vmatpush1.msra.mxu0 %v5582
          %6490 = vmatprep.mubr.f32.mxu0 %v5387
          %6491 = vmatmul.mubr.f32.gmra.mrb[0].mxu0 %v5386
          %v6492 = vpop.f32.mrb[0].mxu0
          %v6493 = vadd.f32 %v5989, %v6492
          %v6494 = vpop.f32.mrb[0].mxu0
          %v6495 = vadd.f32 %v5993, %v6494
          %6496 = vdwg.mxu0
          %6497 = vmatprep.subr.mxu0 %v5589
          %6498 = vmatpush1.msra.mxu0 %v5588
          %6499 = vmatprep.subr.mxu0 %v5595
          %6500 = vmatpush1.msra.mxu0 %v5594
          %6501 = vmatprep.subr.mxu0 %v5601
          %6502 = vmatpush1.msra.mxu0 %v5600
          %6503 = vmatprep.subr.mxu0 %v5607
          %6504 = vmatpush1.msra.mxu0 %v5606
          %6505 = vmatprep.subr.mxu0 %v5613
          %6506 = vmatpush1.msra.mxu0 %v5612
          %6507 = vmatprep.subr.mxu0 %v5619
          %6508 = vmatpush1.msra.mxu0 %v5618
          %6509 = vmatprep.subr.mxu0 %v5625
          %6510 = vmatpush1.msra.mxu0 %v5624
          %6511 = vmatprep.subr.mxu0 %v5631
          %6512 = vmatpush1.msra.mxu0 %v5630
          %6513 = vmatprep.subr.mxu0 %v5637
          %6514 = vmatpush1.msra.mxu0 %v5636
          %6515 = vmatprep.subr.mxu0 %v5643
          %6516 = vmatpush1.msra.mxu0 %v5642
          %6517 = vmatprep.subr.mxu0 %v5649
          %6518 = vmatpush1.msra.mxu0 %v5648
          %6519 = vmatprep.subr.mxu0 %v5655
          %6520 = vmatpush1.msra.mxu0 %v5654
          %6521 = vmatprep.subr.mxu0 %v5661
          %6522 = vmatpush1.msra.mxu0 %v5660
          %6523 = vmatprep.subr.mxu0 %v5667
          %6524 = vmatpush1.msra.mxu0 %v5666
          %6525 = vmatprep.subr.mxu0 %v5673
          %6526 = vmatpush1.msra.mxu0 %v5672
          %6527 = vmatprep.subr.mxu0 %v5679
          %6528 = vmatpush1.msra.mxu0 %v5678
          %6529 = vmatprep.subr.mxu0 %v5685
          %6530 = vmatpush1.msra.mxu0 %v5684
          %6531 = vmatprep.subr.mxu0 %v5691
          %6532 = vmatpush1.msra.mxu0 %v5690
          %6533 = vmatprep.subr.mxu0 %v5697
          %6534 = vmatpush1.msra.mxu0 %v5696
          %6535 = vmatprep.subr.mxu0 %v5703
          %6536 = vmatpush1.msra.mxu0 %v5702
          %6537 = vmatprep.subr.mxu0 %v5709
          %6538 = vmatpush1.msra.mxu0 %v5708
          %6539 = vmatprep.subr.mxu0 %v5715
          %6540 = vmatpush1.msra.mxu0 %v5714
          %6541 = vmatprep.subr.mxu0 %v5721
          %6542 = vmatpush1.msra.mxu0 %v5720
          %6543 = vmatprep.subr.mxu0 %v5727
          %6544 = vmatpush1.msra.mxu0 %v5726
          %6545 = vmatprep.subr.mxu0 %v5733
          %6546 = vmatpush1.msra.mxu0 %v5732
          %6547 = vmatprep.subr.mxu0 %v5739
          %6548 = vmatpush1.msra.mxu0 %v5738
          %6549 = vmatprep.subr.mxu0 %v5745
          %6550 = vmatpush1.msra.mxu0 %v5744
          %6551 = vmatprep.subr.mxu0 %v5751
          %6552 = vmatpush1.msra.mxu0 %v5750
          %6553 = vmatprep.subr.mxu0 %v5757
          %6554 = vmatpush1.msra.mxu0 %v5756
          %6555 = vmatprep.subr.mxu0 %v5763
          %6556 = vmatpush1.msra.mxu0 %v5762
          %6557 = vmatprep.subr.mxu0 %v5769
          %6558 = vmatpush1.msra.mxu0 %v5768
          %6559 = vmatprep.subr.mxu0 %v5775
          %6560 = vmatpush1.msra.mxu0 %v5774
          %6561 = vmatprep.mubr.f32.mxu0 %v5389
          %6562 = vmatmul.mubr.f32.gmra.mrb[0].mxu0 %v5388
          %v6563 = vpop.f32.mrb[0].mxu0
          %v6564 = vadd.f32 %v6493, %v6563
          %v6565 = vpop.f32.mrb[0].mxu0
          %v6566 = vadd.f32 %v6495, %v6565
          %6567 = vdwg.mxu0
          %6568 = vmatprep.subr.mxu0 %v5781
          %6569 = vmatpush1.msra.mxu0 %v5780
          %6570 = vmatprep.subr.mxu0 %v5787
          %6571 = vmatpush1.msra.mxu0 %v5786
          %6572 = vmatprep.subr.mxu0 %v5793
          %6573 = vmatpush1.msra.mxu0 %v5792
          %6574 = vmatprep.subr.mxu0 %v5799
          %6575 = vmatpush1.msra.mxu0 %v5798
          %6576 = vmatprep.subr.mxu0 %v5805
          %6577 = vmatpush1.msra.mxu0 %v5804
          %6578 = vmatprep.subr.mxu0 %v5811
          %6579 = vmatpush1.msra.mxu0 %v5810
          %6580 = vmatprep.subr.mxu0 %v5817
          %6581 = vmatpush1.msra.mxu0 %v5816
          %6582 = vmatprep.subr.mxu0 %v5823
          %6583 = vmatpush1.msra.mxu0 %v5822
          %6584 = vmatprep.subr.mxu0 %v5829
          %6585 = vmatpush1.msra.mxu0 %v5828
          %6586 = vmatprep.subr.mxu0 %v5835
          %6587 = vmatpush1.msra.mxu0 %v5834
          %6588 = vmatprep.subr.mxu0 %v5841
          %6589 = vmatpush1.msra.mxu0 %v5840
          %6590 = vmatprep.subr.mxu0 %v5847
          %6591 = vmatpush1.msra.mxu0 %v5846
          %6592 = vmatprep.subr.mxu0 %v5853
          %6593 = vmatpush1.msra.mxu0 %v5852
          %6594 = vmatprep.subr.mxu0 %v5859
          %6595 = vmatpush1.msra.mxu0 %v5858
          %6596 = vmatprep.subr.mxu0 %v5865
          %6597 = vmatpush1.msra.mxu0 %v5864
          %6598 = vmatprep.subr.mxu0 %v5871
          %6599 = vmatpush1.msra.mxu0 %v5870
          %6600 = vmatprep.subr.mxu0 %v5877
          %6601 = vmatpush1.msra.mxu0 %v5876
          %6602 = vmatprep.subr.mxu0 %v5883
          %6603 = vmatpush1.msra.mxu0 %v5882
          %6604 = vmatprep.subr.mxu0 %v5889
          %6605 = vmatpush1.msra.mxu0 %v5888
          %6606 = vmatprep.subr.mxu0 %v5895
          %6607 = vmatpush1.msra.mxu0 %v5894
          %6608 = vmatprep.subr.mxu0 %v5901
          %6609 = vmatpush1.msra.mxu0 %v5900
          %6610 = vmatprep.subr.mxu0 %v5907
          %6611 = vmatpush1.msra.mxu0 %v5906
          %6612 = vmatprep.subr.mxu0 %v5913
          %6613 = vmatpush1.msra.mxu0 %v5912
          %6614 = vmatprep.subr.mxu0 %v5919
          %6615 = vmatpush1.msra.mxu0 %v5918
          %6616 = vmatprep.subr.mxu0 %v5925
          %6617 = vmatpush1.msra.mxu0 %v5924
          %6618 = vmatprep.subr.mxu0 %v5931
          %6619 = vmatpush1.msra.mxu0 %v5930
          %6620 = vmatprep.subr.mxu0 %v5937
          %6621 = vmatpush1.msra.mxu0 %v5936
          %6622 = vmatprep.subr.mxu0 %v5943
          %6623 = vmatpush1.msra.mxu0 %v5942
          %6624 = vmatprep.subr.mxu0 %v5949
          %6625 = vmatpush1.msra.mxu0 %v5948
          %6626 = vmatprep.subr.mxu0 %v5955
          %6627 = vmatpush1.msra.mxu0 %v5954
          %6628 = vmatprep.subr.mxu0 %v5961
          %6629 = vmatpush1.msra.mxu0 %v5960
          %6630 = vmatprep.subr.mxu0 %v5967
          %6631 = vmatpush1.msra.mxu0 %v5966
          %6632 = vmatprep.mubr.f32.mxu0 %v5391
          %6633 = vmatmul.mubr.f32.gmra.mrb[0].mxu0 %v5390
          %v6634 = vpop.f32.mrb[0].mxu0
          %v6635 = vadd.f32 %v6564, %v6634
          %v6636 = vpop.f32.mrb[0].mxu0
          %v6637 = vadd.f32 %v6566, %v6636
          %6638 = vdwg.mxu0
          %v6639 = vtanh.pop %v6209
          %v6640 = vtanh.pop %v6211
          %v6641 = vtanh.pop %v6422
          %v6642 = vtanh.pop %v6424
          %v6643 = vtanh.pop %v6635
          %v6644 = vtanh.pop %v6637
          %v6645 = vld [vmem:[#allocation10] sm:$0xff]
          %v6646 = vld [vmem:[#allocation10 + $0x8] sm:$0xff]
          %v6647 = vld [vmem:[#allocation10 + $0x10] sm:$0xff]
          %v6648 = vld [vmem:[#allocation10 + $0x18] sm:$0xff]
          %v6649 = vld [vmem:[#allocation10 + $0x20] sm:$0xff]
          %v6650 = vld [vmem:[#allocation10 + $0x28] sm:$0xff]
          %v6651 = vmul.f32 %v6639, %v6645
          %v6652 = vmul.f32 %v6640, %v6646
          %v6653 = vmul.f32 %v6641, %v6647
          %v6654 = vmul.f32 %v6642, %v6648
          %v6655 = vmul.f32 %v6643, %v6649
          %v6656 = vmul.f32 %v6644, %v6650
          %v6657 = vld [vmem:[#allocation12] sm:$0xff]
          %v6658 = vld [vmem:[#allocation12 + $0x8] sm:$0xff]
          %v6659 = vld [vmem:[#allocation12 + $0x10] sm:$0xff]
          %v6660 = vld [vmem:[#allocation12 + $0x18] sm:$0xff]
          %v6661 = vld [vmem:[#allocation12 + $0x20] sm:$0xff]
          %v6662 = vld [vmem:[#allocation12 + $0x28] sm:$0xff]
          %v6663 = vld [vmem:[#allocation12 + $0x30] sm:$0xff]
          %v6664 = vld [vmem:[#allocation12 + $0x38] sm:$0xff]
          %v6665 = vld [vmem:[#allocation12 + $0x40] sm:$0xff]
          %v6666 = vld [vmem:[#allocation12 + $0x48] sm:$0xff]
          %v6667 = vld [vmem:[#allocation12 + $0x50] sm:$0xff]
          %v6668 = vld [vmem:[#allocation12 + $0x58] sm:$0xff]
          %v6669 = vld [vmem:[#allocation12 + $0x60] sm:$0xff]
          %v6670 = vld [vmem:[#allocation12 + $0x68] sm:$0xff]
          %v6671 = vld [vmem:[#allocation12 + $0x70] sm:$0xff]
          %v6672 = vld [vmem:[#allocation12 + $0x78] sm:$0xff]
          %v6673 = vld [vmem:[#allocation12 + $0x80] sm:$0xff]
          %v6674 = vld [vmem:[#allocation12 + $0x88] sm:$0xff]
          %v6675 = vld [vmem:[#allocation12 + $0x90] sm:$0xff]
          %v6676 = vld [vmem:[#allocation12 + $0x98] sm:$0xff]
          %v6677 = vld [vmem:[#allocation12 + $0xa0] sm:$0xff]
          %v6678 = vld [vmem:[#allocation12 + $0xa8] sm:$0xff]
          %v6679 = vld [vmem:[#allocation12 + $0xb0] sm:$0xff]
          %v6680 = vld [vmem:[#allocation12 + $0xb8] sm:$0xff]
          %v6681 = vld [vmem:[#allocation12 + $0xc0] sm:$0xff]
          %v6682 = vld [vmem:[#allocation12 + $0xc8] sm:$0xff]
          %v6683 = vld [vmem:[#allocation12 + $0xd0] sm:$0xff]
          %v6684 = vld [vmem:[#allocation12 + $0xd8] sm:$0xff]
          %v6685 = vld [vmem:[#allocation12 + $0xe0] sm:$0xff]
          %v6686 = vld [vmem:[#allocation12 + $0xe8] sm:$0xff]
          %v6687 = vld [vmem:[#allocation12 + $0xf0] sm:$0xff]
          %v6688 = vld [vmem:[#allocation12 + $0xf8] sm:$0xff]
          %v6689 = vld [vmem:[#allocation12 + $0x100] sm:$0xff]
          %v6690 = vld [vmem:[#allocation12 + $0x108] sm:$0xff]
          %v6691 = vld [vmem:[#allocation12 + $0x110] sm:$0xff]
          %v6692 = vld [vmem:[#allocation12 + $0x118] sm:$0xff]
          %v6693 = vld [vmem:[#allocation12 + $0x120] sm:$0xff]
          %v6694 = vld [vmem:[#allocation12 + $0x128] sm:$0xff]
          %v6695 = vld [vmem:[#allocation12 + $0x130] sm:$0xff]
          %v6696 = vld [vmem:[#allocation12 + $0x138] sm:$0xff]
          %v6697 = vld [vmem:[#allocation12 + $0x140] sm:$0xff]
          %v6698 = vld [vmem:[#allocation12 + $0x148] sm:$0xff]
          %v6699 = vld [vmem:[#allocation12 + $0x150] sm:$0xff]
          %v6700 = vld [vmem:[#allocation12 + $0x158] sm:$0xff]
          %v6701 = vld [vmem:[#allocation12 + $0x160] sm:$0xff]
          %v6702 = vld [vmem:[#allocation12 + $0x168] sm:$0xff]
          %v6703 = vld [vmem:[#allocation12 + $0x170] sm:$0xff]
          %v6704 = vld [vmem:[#allocation12 + $0x178] sm:$0xff]
          %v6705 = vld [vmem:[#allocation12 + $0x180] sm:$0xff]
          %v6706 = vld [vmem:[#allocation12 + $0x188] sm:$0xff]
          %v6707 = vld [vmem:[#allocation12 + $0x190] sm:$0xff]
          %v6708 = vld [vmem:[#allocation12 + $0x198] sm:$0xff]
          %v6709 = vld [vmem:[#allocation12 + $0x1a0] sm:$0xff]
          %v6710 = vld [vmem:[#allocation12 + $0x1a8] sm:$0xff]
          %v6711 = vld [vmem:[#allocation12 + $0x1b0] sm:$0xff]
          %v6712 = vld [vmem:[#allocation12 + $0x1b8] sm:$0xff]
          %v6713 = vld [vmem:[#allocation12 + $0x1c0] sm:$0xff]
          %v6714 = vld [vmem:[#allocation12 + $0x1c8] sm:$0xff]
          %v6715 = vld [vmem:[#allocation12 + $0x1d0] sm:$0xff]
          %v6716 = vld [vmem:[#allocation12 + $0x1d8] sm:$0xff]
          %v6717 = vld [vmem:[#allocation12 + $0x1e0] sm:$0xff]
          %v6718 = vld [vmem:[#allocation12 + $0x1e8] sm:$0xff]
          %v6719 = vld [vmem:[#allocation12 + $0x1f0] sm:$0xff]
          %v6720 = vld [vmem:[#allocation12 + $0x1f8] sm:$0xff]
          %v6721 = vld [vmem:[#allocation12 + $0x200] sm:$0xff]
          %v6722 = vld [vmem:[#allocation12 + $0x208] sm:$0xff]
          %v6723 = vld [vmem:[#allocation12 + $0x210] sm:$0xff]
          %v6724 = vld [vmem:[#allocation12 + $0x218] sm:$0xff]
          %v6725 = vld [vmem:[#allocation12 + $0x220] sm:$0xff]
          %v6726 = vld [vmem:[#allocation12 + $0x228] sm:$0xff]
          %v6727 = vld [vmem:[#allocation12 + $0x230] sm:$0xff]
          %v6728 = vld [vmem:[#allocation12 + $0x238] sm:$0xff]
          %v6729 = vld [vmem:[#allocation12 + $0x240] sm:$0xff]
          %v6730 = vld [vmem:[#allocation12 + $0x248] sm:$0xff]
          %v6731 = vld [vmem:[#allocation12 + $0x250] sm:$0xff]
          %v6732 = vld [vmem:[#allocation12 + $0x258] sm:$0xff]
          %v6733 = vld [vmem:[#allocation12 + $0x260] sm:$0xff]
          %v6734 = vld [vmem:[#allocation12 + $0x268] sm:$0xff]
          %v6735 = vld [vmem:[#allocation12 + $0x270] sm:$0xff]
          %v6736 = vld [vmem:[#allocation12 + $0x278] sm:$0xff]
          %v6737 = vld [vmem:[#allocation12 + $0x280] sm:$0xff]
          %v6738 = vld [vmem:[#allocation12 + $0x288] sm:$0xff]
          %v6739 = vld [vmem:[#allocation12 + $0x290] sm:$0xff]
          %v6740 = vld [vmem:[#allocation12 + $0x298] sm:$0xff]
          %v6741 = vld [vmem:[#allocation12 + $0x2a0] sm:$0xff]
          %v6742 = vld [vmem:[#allocation12 + $0x2a8] sm:$0xff]
          %v6743 = vld [vmem:[#allocation12 + $0x2b0] sm:$0xff]
          %v6744 = vld [vmem:[#allocation12 + $0x2b8] sm:$0xff]
          %v6745 = vld [vmem:[#allocation12 + $0x2c0] sm:$0xff]
          %v6746 = vld [vmem:[#allocation12 + $0x2c8] sm:$0xff]
          %v6747 = vld [vmem:[#allocation12 + $0x2d0] sm:$0xff]
          %v6748 = vld [vmem:[#allocation12 + $0x2d8] sm:$0xff]
          %v6749 = vld [vmem:[#allocation12 + $0x2e0] sm:$0xff]
          %v6750 = vld [vmem:[#allocation12 + $0x2e8] sm:$0xff]
          %v6751 = vld [vmem:[#allocation12 + $0x2f0] sm:$0xff]
          %v6752 = vld [vmem:[#allocation12 + $0x2f8] sm:$0xff]
          %v6753 = vld [vmem:[#allocation13] sm:$0x1]
          %v6755 = vlaneseq
          %v6756 = vshrl.u32 %v6755, 7
          %v6757 = vsub.s32 0, %v6756
          %v6758 = vrot.slane %v6753, %v6757
          %6760 = vmatprep.subr.mxu0 0.0
          %6761 = vmatpush1.msra.mxu0 %v6657
          %6762 = vmatprep.subr.mxu0 0.0
          %6763 = vmatpush1.msra.mxu0 %v6658
          %6764 = vmatprep.subr.mxu0 0.0
          %6765 = vmatpush1.msra.mxu0 %v6659
          %6766 = vmatprep.subr.mxu0 0.0
          %6767 = vmatpush1.msra.mxu0 %v6660
          %6768 = vmatprep.subr.mxu0 0.0
          %6769 = vmatpush1.msra.mxu0 %v6661
          %6770 = vmatprep.subr.mxu0 0.0
          %6771 = vmatpush1.msra.mxu0 %v6662
          %6772 = vmatprep.subr.mxu0 0.0
          %6773 = vmatpush1.msra.mxu0 %v6663
          %6774 = vmatprep.subr.mxu0 0.0
          %6775 = vmatpush1.msra.mxu0 %v6664
          %6776 = vmatprep.subr.mxu0 0.0
          %6777 = vmatpush1.msra.mxu0 %v6665
          %6778 = vmatprep.subr.mxu0 0.0
          %6779 = vmatpush1.msra.mxu0 %v6666
          %6780 = vmatprep.subr.mxu0 0.0
          %6781 = vmatpush1.msra.mxu0 %v6667
          %6782 = vmatprep.subr.mxu0 0.0
          %6783 = vmatpush1.msra.mxu0 %v6668
          %6784 = vmatprep.subr.mxu0 0.0
          %6785 = vmatpush1.msra.mxu0 %v6669
          %6786 = vmatprep.subr.mxu0 0.0
          %6787 = vmatpush1.msra.mxu0 %v6670
          %6788 = vmatprep.subr.mxu0 0.0
          %6789 = vmatpush1.msra.mxu0 %v6671
          %6790 = vmatprep.subr.mxu0 0.0
          %6791 = vmatpush1.msra.mxu0 %v6672
          %6792 = vmatprep.subr.mxu0 0.0
          %6793 = vmatpush1.msra.mxu0 %v6673
          %6794 = vmatprep.subr.mxu0 0.0
          %6795 = vmatpush1.msra.mxu0 %v6674
          %6796 = vmatprep.subr.mxu0 0.0
          %6797 = vmatpush1.msra.mxu0 %v6675
          %6798 = vmatprep.subr.mxu0 0.0
          %6799 = vmatpush1.msra.mxu0 %v6676
          %6800 = vmatprep.subr.mxu0 0.0
          %6801 = vmatpush1.msra.mxu0 %v6677
          %6802 = vmatprep.subr.mxu0 0.0
          %6803 = vmatpush1.msra.mxu0 %v6678
          %6804 = vmatprep.subr.mxu0 0.0
          %6805 = vmatpush1.msra.mxu0 %v6679
          %6806 = vmatprep.subr.mxu0 0.0
          %6807 = vmatpush1.msra.mxu0 %v6680
          %6808 = vmatprep.subr.mxu0 0.0
          %6809 = vmatpush1.msra.mxu0 %v6681
          %6810 = vmatprep.subr.mxu0 0.0
          %6811 = vmatpush1.msra.mxu0 %v6682
          %6812 = vmatprep.subr.mxu0 0.0
          %6813 = vmatpush1.msra.mxu0 %v6683
          %6814 = vmatprep.subr.mxu0 0.0
          %6815 = vmatpush1.msra.mxu0 %v6684
          %6816 = vmatprep.subr.mxu0 0.0
          %6817 = vmatpush1.msra.mxu0 %v6685
          %6818 = vmatprep.subr.mxu0 0.0
          %6819 = vmatpush1.msra.mxu0 %v6686
          %6820 = vmatprep.subr.mxu0 0.0
          %6821 = vmatpush1.msra.mxu0 %v6687
          %6822 = vmatprep.subr.mxu0 0.0
          %6823 = vmatpush1.msra.mxu0 %v6688
          %6824 = vmatprep.mubr.f32.mxu0 %v6652
          %6825 = vmatmul.mubr.f32.gmra.mrb[0].mxu0 %v6651
          %v6826 = vpop.f32.mrb[0].mxu0
          %v6827 = vadd.f32 %v6758, %v6826
          %v6828 = vpop.f32.mrb[0].mxu0
          %6829 = vdwg.mxu0
          %6830 = vmatprep.subr.mxu0 0.0
          %6831 = vmatpush1.msra.mxu0 %v6689
          %6832 = vmatprep.subr.mxu0 0.0
          %6833 = vmatpush1.msra.mxu0 %v6690
          %6834 = vmatprep.subr.mxu0 0.0
          %6835 = vmatpush1.msra.mxu0 %v6691
          %6836 = vmatprep.subr.mxu0 0.0
          %6837 = vmatpush1.msra.mxu0 %v6692
          %6838 = vmatprep.subr.mxu0 0.0
          %6839 = vmatpush1.msra.mxu0 %v6693
          %6840 = vmatprep.subr.mxu0 0.0
          %6841 = vmatpush1.msra.mxu0 %v6694
          %6842 = vmatprep.subr.mxu0 0.0
          %6843 = vmatpush1.msra.mxu0 %v6695
          %6844 = vmatprep.subr.mxu0 0.0
          %6845 = vmatpush1.msra.mxu0 %v6696
          %6846 = vmatprep.subr.mxu0 0.0
          %6847 = vmatpush1.msra.mxu0 %v6697
          %6848 = vmatprep.subr.mxu0 0.0
          %6849 = vmatpush1.msra.mxu0 %v6698
          %6850 = vmatprep.subr.mxu0 0.0
          %6851 = vmatpush1.msra.mxu0 %v6699
          %6852 = vmatprep.subr.mxu0 0.0
          %6853 = vmatpush1.msra.mxu0 %v6700
          %6854 = vmatprep.subr.mxu0 0.0
          %6855 = vmatpush1.msra.mxu0 %v6701
          %6856 = vmatprep.subr.mxu0 0.0
          %6857 = vmatpush1.msra.mxu0 %v6702
          %6858 = vmatprep.subr.mxu0 0.0
          %6859 = vmatpush1.msra.mxu0 %v6703
          %6860 = vmatprep.subr.mxu0 0.0
          %6861 = vmatpush1.msra.mxu0 %v6704
          %6862 = vmatprep.subr.mxu0 0.0
          %6863 = vmatpush1.msra.mxu0 %v6705
          %6864 = vmatprep.subr.mxu0 0.0
          %6865 = vmatpush1.msra.mxu0 %v6706
          %6866 = vmatprep.subr.mxu0 0.0
          %6867 = vmatpush1.msra.mxu0 %v6707
          %6868 = vmatprep.subr.mxu0 0.0
          %6869 = vmatpush1.msra.mxu0 %v6708
          %6870 = vmatprep.subr.mxu0 0.0
          %6871 = vmatpush1.msra.mxu0 %v6709
          %6872 = vmatprep.subr.mxu0 0.0
          %6873 = vmatpush1.msra.mxu0 %v6710
          %6874 = vmatprep.subr.mxu0 0.0
          %6875 = vmatpush1.msra.mxu0 %v6711
          %6876 = vmatprep.subr.mxu0 0.0
          %6877 = vmatpush1.msra.mxu0 %v6712
          %6878 = vmatprep.subr.mxu0 0.0
          %6879 = vmatpush1.msra.mxu0 %v6713
          %6880 = vmatprep.subr.mxu0 0.0
          %6881 = vmatpush1.msra.mxu0 %v6714
          %6882 = vmatprep.subr.mxu0 0.0
          %6883 = vmatpush1.msra.mxu0 %v6715
          %6884 = vmatprep.subr.mxu0 0.0
          %6885 = vmatpush1.msra.mxu0 %v6716
          %6886 = vmatprep.subr.mxu0 0.0
          %6887 = vmatpush1.msra.mxu0 %v6717
          %6888 = vmatprep.subr.mxu0 0.0
          %6889 = vmatpush1.msra.mxu0 %v6718
          %6890 = vmatprep.subr.mxu0 0.0
          %6891 = vmatpush1.msra.mxu0 %v6719
          %6892 = vmatprep.subr.mxu0 0.0
          %6893 = vmatpush1.msra.mxu0 %v6720
          %6894 = vmatprep.mubr.f32.mxu0 %v6654
          %6895 = vmatmul.mubr.f32.gmra.mrb[0].mxu0 %v6653
          %v6896 = vpop.f32.mrb[0].mxu0
          %v6897 = vadd.f32 %v6827, %v6896
          %v6898 = vpop.f32.mrb[0].mxu0
          %6899 = vdwg.mxu0
          %6900 = vmatprep.subr.mxu0 0.0
          %6901 = vmatpush1.msra.mxu0 %v6721
          %6902 = vmatprep.subr.mxu0 0.0
          %6903 = vmatpush1.msra.mxu0 %v6722
          %6904 = vmatprep.subr.mxu0 0.0
          %6905 = vmatpush1.msra.mxu0 %v6723
          %6906 = vmatprep.subr.mxu0 0.0
          %6907 = vmatpush1.msra.mxu0 %v6724
          %6908 = vmatprep.subr.mxu0 0.0
          %6909 = vmatpush1.msra.mxu0 %v6725
          %6910 = vmatprep.subr.mxu0 0.0
          %6911 = vmatpush1.msra.mxu0 %v6726
          %6912 = vmatprep.subr.mxu0 0.0
          %6913 = vmatpush1.msra.mxu0 %v6727
          %6914 = vmatprep.subr.mxu0 0.0
          %6915 = vmatpush1.msra.mxu0 %v6728
          %6916 = vmatprep.subr.mxu0 0.0
          %6917 = vmatpush1.msra.mxu0 %v6729
          %6918 = vmatprep.subr.mxu0 0.0
          %6919 = vmatpush1.msra.mxu0 %v6730
          %6920 = vmatprep.subr.mxu0 0.0
          %6921 = vmatpush1.msra.mxu0 %v6731
          %6922 = vmatprep.subr.mxu0 0.0
          %6923 = vmatpush1.msra.mxu0 %v6732
          %6924 = vmatprep.subr.mxu0 0.0
          %6925 = vmatpush1.msra.mxu0 %v6733
          %6926 = vmatprep.subr.mxu0 0.0
          %6927 = vmatpush1.msra.mxu0 %v6734
          %6928 = vmatprep.subr.mxu0 0.0
          %6929 = vmatpush1.msra.mxu0 %v6735
          %6930 = vmatprep.subr.mxu0 0.0
          %6931 = vmatpush1.msra.mxu0 %v6736
          %6932 = vmatprep.subr.mxu0 0.0
          %6933 = vmatpush1.msra.mxu0 %v6737
          %6934 = vmatprep.subr.mxu0 0.0
          %6935 = vmatpush1.msra.mxu0 %v6738
          %6936 = vmatprep.subr.mxu0 0.0
          %6937 = vmatpush1.msra.mxu0 %v6739
          %6938 = vmatprep.subr.mxu0 0.0
          %6939 = vmatpush1.msra.mxu0 %v6740
          %6940 = vmatprep.subr.mxu0 0.0
          %6941 = vmatpush1.msra.mxu0 %v6741
          %6942 = vmatprep.subr.mxu0 0.0
          %6943 = vmatpush1.msra.mxu0 %v6742
          %6944 = vmatprep.subr.mxu0 0.0
          %6945 = vmatpush1.msra.mxu0 %v6743
          %6946 = vmatprep.subr.mxu0 0.0
          %6947 = vmatpush1.msra.mxu0 %v6744
          %6948 = vmatprep.subr.mxu0 0.0
          %6949 = vmatpush1.msra.mxu0 %v6745
          %6950 = vmatprep.subr.mxu0 0.0
          %6951 = vmatpush1.msra.mxu0 %v6746
          %6952 = vmatprep.subr.mxu0 0.0
          %6953 = vmatpush1.msra.mxu0 %v6747
          %6954 = vmatprep.subr.mxu0 0.0
          %6955 = vmatpush1.msra.mxu0 %v6748
          %6956 = vmatprep.subr.mxu0 0.0
          %6957 = vmatpush1.msra.mxu0 %v6749
          %6958 = vmatprep.subr.mxu0 0.0
          %6959 = vmatpush1.msra.mxu0 %v6750
          %6960 = vmatprep.subr.mxu0 0.0
          %6961 = vmatpush1.msra.mxu0 %v6751
          %6962 = vmatprep.subr.mxu0 0.0
          %6963 = vmatpush1.msra.mxu0 %v6752
          %6964 = vmatprep.mubr.f32.mxu0 %v6656
          %6965 = vmatmul.mubr.f32.gmra.mrb[0].mxu0 %v6655
          %v6966 = vpop.f32.mrb[0].mxu0
          %v6967 = vadd.f32 %v6897, %v6966
          %v6968 = vpop.f32.mrb[0].mxu0
          %6969 = vdwg.mxu0
          %v6970 = vmax.f32 %v6967, 0.0
          %6971 = vst [vmem:[#allocation15] sm:$0xff] %v6970
        $region125: #{tpu_custom_call.1} parent=88 // pred_fallthru
          _
        // Predicated region
        $region126: #{tpu_custom_call.1} parent=88 // pred_check
          %p6972 = pneg %p248
        $region127: #{tpu_custom_call.1} parent=88 // pred_check_branch
          %6974 = sbr.rel (%p6972) target = $region129
        $region128: #{tpu_custom_call.1} parent=88 // pred_region
          %s6976 = ssub.s32 128, 128
          %6977 = vsyncadd [#allocation5], %s6976
          %s6978 = smul.addr %s30, 128
          %s6979 = scalar_lea.hbm %s8, %s6978
          %s6981 = sshll.u32 [#allocation15], 4
          %s6982 = int_to_ptr.vmem [resolvable:$true] %s6981
          %6984 = dma.vmem_to_hbm [thread:$0]  %s6982, 128, %s6979, [#allocation5]
        $region129: #{tpu_custom_call.1} parent=88 // pred_fallthru
          _
        // Predicated region
        $region130: #{tpu_custom_call.1} parent=88 // pred_check
          %p6985 = pneg %p248
        $region131: #{tpu_custom_call.1} parent=88 // pred_check_branch
          %6987 = sbr.rel (%p6985) target = $region133
        $region132: #{tpu_custom_call.1} parent=88 // pred_region
          %6988 = dma.done [#allocation5], 128
        $region133: #{tpu_custom_call.1} parent=88 // pred_fallthru
          _
      $region89: #{tpu_custom_call.1} parent=5 // pred_fallthru
        _
      %p6989 = scmp.le.s32.totalorder 2, %s21
      // Predicated region
      $region134: #{tpu_custom_call.1} parent=5 // pred_check
        %p6990 = pneg %p6989
      $region135: #{tpu_custom_call.1} parent=5 // pred_check_branch
        %6992 = sbr.rel (%p6990) target = $region137
      $region136: #{tpu_custom_call.1} parent=5 // pred_region
        %s6993 = ssub.s32 %s21, 2
      $region137: #{tpu_custom_call.1} parent=5 // pred_fallthru
        _
    $region6: #{tpu_custom_call.1} parent=1 // loop_footer
      %s25 = sadd.s32 1, %s21
    $region7: #{tpu_custom_call.1} parent=1 // loop_footer_branch
      %20 = sbr.rel target = $region3
    $region8: #{tpu_custom_call.1} parent=1 // loop_exit
      _
    %6994 = vsyncpa [#allocation4], 1
    %s6995 = scalar_lea.sflag [#allocation4], 1
    %6996 = vsyncpa %s6995, 1
    %6997 = vsyncpa [#allocation8], 1
    %6998 = vsyncpa [#allocation11], 1
    %6999 = vsyncpa [#allocation14], 1
    %7000 = vsyncpa [#allocation5], 1
    %s7001 = scalar_lea.sflag [#allocation5], 1
    %7002 = vsyncpa %s7001, 1

</llo_original>
